<compile_context>
chip_gen: v5e
topology: v5e:2x2
jax: 0.10.0
libtpu: 0.0.40
codegen_flags: <defaults>
</compile_context>

<pallas_src>
import functools
import math

import jax
import jax.numpy as jnp
from jax import lax
from jax.experimental import pallas as pl
from jax.experimental.pallas import tpu as pltpu

_LN_EPS = 1e-5
_SQRT_2_OVER_PI = 0.7978845608028654


def _gelu_tanh(x):
    # tanh-approx GELU (EUP tanh + a few VALU ops); |err| vs exact GELU < ~5e-4.
    return 0.5 * x * (1.0 + jnp.tanh(_SQRT_2_OVER_PI * (x + 0.044715 * x * x * x)))


# ------------------------------ fused kernel ---------------------------------
def _fused_kernel(x_ref, wtap_ref, bconv_ref, shm_ref, shp_ref, avg_ref,
                  g1_ref, b1_ref, g2_ref, b2_ref,
                  kh_ref, bh_ref, kw_ref, bw_ref, md_ref, bd_ref,
                  mfx_ref, mfh_ref, mfw_ref, mfd_ref, bf_ref,
                  o_ref, xpad0, xpadm, xpadp, *, H, W, D, C):
    DC = D * C
    HW = H * W
    hp = lax.Precision.HIGHEST
    f32 = jnp.float32

    xv = x_ref[0]                         # (H, W, DC), lane l = d*C + c
    xflat = xv.reshape(HW, DC)            # layout-free reshape (last dim kept)

    # ---- zero-halo volumes in VMEM: original + D-shifted copies -------------
    # D-axis neighbours come from matmuls with off-diagonal permutation
    # matrices (zero past the D edge -> implicit edge masking); the H/W halo is
    # simply the zeroed border of the scratch buffers.
    for buf in (xpad0, xpadm, xpadp):
        buf[...] = jnp.zeros_like(buf)
    xpad0[1:H + 1, 1:W + 1, :] = xv
    xpadm[1:H + 1, 1:W + 1, :] = jnp.dot(            # holds x[.., d-1, c]
        xflat, shm_ref[...], preferred_element_type=f32,
        precision=hp).reshape(H, W, DC)
    xpadp[1:H + 1, 1:W + 1, :] = jnp.dot(            # holds x[.., d+1, c]
        xflat, shp_ref[...], preferred_element_type=f32,
        precision=hp).reshape(H, W, DC)

    # ---- 27-tap depthwise 3x3x3 conv (+bias), fully unrolled -----------------
    acc = jnp.zeros((H, W, DC), f32) + bconv_ref[...]
    srcs = (xpadm, xpad0, xpadp)          # D-kernel index k = 0, 1, 2 <-> d-1, d, d+1
    t = 0
    for i in range(3):
        for j in range(3):
            for k in range(3):
                acc = acc + srcs[k][i:i + H, j:j + W, :] * wtap_ref[t]
                t += 1

    # ---- GELU(LayerNorm(.)) twice; LN-over-C via block-diag averaging matmul -
    avg = avg_ref[...]                    # (DC, DC), kron(I_D, ones(C,C)/C)

    def ln(v, g, b):
        m = jnp.dot(v, avg, preferred_element_type=f32, precision=hp)
        xm = v - m
        var = jnp.dot(xm * xm, avg, preferred_element_type=f32, precision=hp)
        return xm * lax.rsqrt(var + _LN_EPS) * g + b

    z = acc.reshape(HW, DC)
    y = _gelu_tanh(ln(z, g1_ref[...], b1_ref[...]))   # outer norm + act
    y = _gelu_tanh(ln(y, g2_ref[...], b2_ref[...]))   # SpareMLP.norm + act

    # ---- axis-mixing projections (Kronecker-expanded, 128-lane dense) --------
    x_h = jnp.dot(kh_ref[...], y, preferred_element_type=f32, precision=hp) + bh_ref[...]
    x_w = jnp.dot(kw_ref[...], y, preferred_element_type=f32, precision=hp) + bw_ref[...]
    x_d = jnp.dot(y, md_ref[...], preferred_element_type=f32, precision=hp) + bd_ref[...]

    # ---- fuse(concat([y, x_h, x_w, x_d])) as 4 block matmuls + residual ------
    out = (jnp.dot(y,   mfx_ref[...], preferred_element_type=f32, precision=hp)
           + jnp.dot(x_h, mfh_ref[...], preferred_element_type=f32, precision=hp)
           + jnp.dot(x_w, mfw_ref[...], preferred_element_type=f32, precision=hp)
           + jnp.dot(x_d, mfd_ref[...], preferred_element_type=f32, precision=hp)
           + bf_ref[...] + xflat)
    o_ref[0] = out.reshape(H, W, DC)


_PARAM_ORDER = ("wtap", "bconv", "shm", "shp", "avg",
                "g1", "b1", "g2", "b2",
                "kh", "bh", "kw", "bw", "md", "bd",
                "mfx", "mfh", "mfw", "mfd", "bf")


# ------------------------------ forward wrapper -------------------------------
def sparse_mlp_layer_forward(x_in, kp):
    B, H, W, D, C = x_in.shape
    DC = D * C
    x = x_in.reshape(B, H, W, DC)         # merge (D, C) -> lane-dense last dim

    kern = functools.partial(_fused_kernel, H=H, W=W, D=D, C=C)

    def _const_spec(a):
        n = a.ndim
        return pl.BlockSpec(a.shape, lambda b, n=n: (0,) * n)

    params = [kp[k] for k in _PARAM_ORDER]

    out = pl.pallas_call(
        kern,
        out_shape=jax.ShapeDtypeStruct((B, H, W, DC), jnp.float32),
        grid=(B,),
        in_specs=[pl.BlockSpec((1, H, W, DC), lambda b: (b, 0, 0, 0))]
                 + [_const_spec(a) for a in params],
        out_specs=pl.BlockSpec((1, H, W, DC), lambda b: (b, 0, 0, 0)),
        scratch_shapes=[pltpu.VMEM((H + 2, W + 2, DC), jnp.float32)
                        for _ in range(3)],
        compiler_params=pltpu.CompilerParams(dimension_semantics=("parallel",)),
    )(x, *params)
    return out.reshape(B, H, W, D, C)


# ---------------------- kernel-layout parameter expansion ---------------------
def prepare_kernel_params(p, feat_size, C):
    H, W, D = feat_size
    DC, HW = D * C, H * W
    f32 = jnp.float32
    eye_c = jnp.eye(C, dtype=f32)
    eye_h = jnp.eye(H, dtype=f32)
    eye_w = jnp.eye(W, dtype=f32)
    eye_d = jnp.eye(D, dtype=f32)
    wf = p["w_f"]                                             # (C, 4C) torch layout

    return dict(
        wtap=jnp.tile(p["w_conv"].reshape(27, C), (1, D)),    # (27, DC)
        bconv=jnp.tile(p["b_conv"], D).reshape(1, DC),
        shm=jnp.eye(DC, k=C, dtype=f32),                      # reads d-1
        shp=jnp.eye(DC, k=-C, dtype=f32),                     # reads d+1
        avg=jnp.kron(eye_d, jnp.full((C, C), 1.0 / C, f32)),  # LN mean operator
        g1=jnp.tile(p["ln1_g"], D).reshape(1, DC),
        b1=jnp.tile(p["ln1_b"], D).reshape(1, DC),
        g2=jnp.tile(p["ln2_g"], D).reshape(1, DC),
        b2=jnp.tile(p["ln2_b"], D).reshape(1, DC),
        kh=jnp.kron(p["w_h"], eye_w),                         # (HW, HW)
        bh=jnp.repeat(p["b_h"], W).reshape(HW, 1),
        kw=jnp.kron(eye_h, p["w_w"]),                         # (HW, HW)
        bw=jnp.tile(p["b_w"], H).reshape(HW, 1),
        md=jnp.kron(p["w_d"].T, eye_c),                       # (DC, DC)
        bd=jnp.repeat(p["b_d"], C).reshape(1, DC),
        mfx=jnp.kron(eye_d, wf[:, 0 * C:1 * C].T),            # fuse block for y
        mfh=jnp.kron(eye_d, wf[:, 1 * C:2 * C].T),            # ... for x_h
        mfw=jnp.kron(eye_d, wf[:, 2 * C:3 * C].T),            # ... for x_w
        mfd=jnp.kron(eye_d, wf[:, 3 * C:4 * C].T),            # ... for x_d
        bf=jnp.tile(p["b_f"], D).reshape(1, DC),
    )


# ------------------------------ params & reference ---------------------------
def init_params(key, C, feat_size):
    H, W, D = feat_size
    ks = jax.random.split(key, 14)

    def lin(kw, kb, fan_in, shape_w):
        bound = 1.0 / math.sqrt(fan_in)
        w = jax.random.uniform(kw, shape_w, jnp.float32, -bound, bound)
        b = jax.random.uniform(kb, (shape_w[0],), jnp.float32, -bound, bound)
        return w, b

    # depthwise conv: torch weight (C,1,3,3,3) stored here as (3,3,3,C)
    wc, bc = lin(ks[0], ks[1], 27, (C, 27))
    w_conv = wc.reshape(C, 3, 3, 3).transpose(1, 2, 3, 0)

    w_h, b_h = lin(ks[2], ks[3], H, (H, H))
    w_w, b_w = lin(ks[4], ks[5], W, (W, W))
    w_d, b_d = lin(ks[6], ks[7], D, (D, D))
    w_f, b_f = lin(ks[8], ks[9], 4 * C, (C, 4 * C))

    ln1_g = 1.0 + 0.1 * jax.random.normal(ks[10], (C,), jnp.float32)
    ln1_b = 0.1 * jax.random.normal(ks[11], (C,), jnp.float32)
    ln2_g = 1.0 + 0.1 * jax.random.normal(ks[12], (C,), jnp.float32)
    ln2_b = 0.1 * jax.random.normal(ks[13], (C,), jnp.float32)

    return dict(w_conv=w_conv, b_conv=bc,
                ln1_g=ln1_g, ln1_b=ln1_b, ln2_g=ln2_g, ln2_b=ln2_b,
                w_h=w_h, b_h=b_h, w_w=w_w, b_w=b_w, w_d=w_d, b_d=b_d,
                w_f=w_f, b_f=b_f)


def reference_forward(x_in, p):
    C = x_in.shape[-1]
    hp = lax.Precision.HIGHEST
    w = p["w_conv"].reshape(3, 3, 3, 1, C)
    conv = lax.conv_general_dilated(
        x_in, w, window_strides=(1, 1, 1), padding="SAME",
        dimension_numbers=("NHWDC", "HWDIO", "NHWDC"),
        feature_group_count=C, precision=hp) + p["b_conv"]

    def ln(x, g, b):
        m = x.mean(-1, keepdims=True)
        v = ((x - m) ** 2).mean(-1, keepdims=True)
        return (x - m) * lax.rsqrt(v + _LN_EPS) * g + b

    gelu = lambda x: 0.5 * x * (1.0 + lax.erf(x / math.sqrt(2.0)))  # exact (torch GELU)
    z = gelu(ln(conv, p["ln1_g"], p["ln1_b"]))
    y = gelu(ln(z, p["ln2_g"], p["ln2_b"]))

    x_h = jnp.einsum("vh,bhwdc->bvwdc", p["w_h"], y, precision=hp) \
        + p["b_h"][:, None, None, None]
    x_w = jnp.einsum("vw,bhwdc->bhvdc", p["w_w"], y, precision=hp) \
        + p["b_w"][:, None, None]
    x_d = jnp.einsum("vd,bhwdc->bhwvc", p["w_d"], y, precision=hp) \
        + p["b_d"][:, None]
    cat = jnp.concatenate([y, x_h, x_w, x_d], axis=-1)
    out = jnp.einsum("bhwdk,ck->bhwdc", cat, p["w_f"], precision=hp) \
        + p["b_f"] + x_in
    return out


# ------------------------------ main ------------------------------------------
if __name__ == "__main__":
    B, C = 2, 16
    feat_size = (8, 8, 8)           # (H, W, D);  D * C = 128 -> lane-dense layout
    H, W, D = feat_size

    key = jax.random.PRNGKey(0)
    k_params, k_x = jax.random.split(key)
    params = init_params(k_params, C, feat_size)
    kparams = prepare_kernel_params(params, feat_size, C)   # one-time expansion
    x_in = jax.random.normal(k_x, (B, H, W, D, C), jnp.float32)

    out = jax.jit(sparse_mlp_layer_forward)(x_in, kparams)
    out = jax.block_until_ready(out)

    ref = reference_forward(x_in, params)
    assert out.shape == x_in.shape and out.dtype == jnp.float32
    max_err = float(jnp.max(jnp.abs(out - ref)))
    if not bool(jnp.allclose(out, ref, atol=2e-2, rtol=2e-2)):
        raise AssertionError(f"kernel/reference mismatch, max abs err={max_err}")
    print("KERNEL_OK")
</pallas_src>

<mosaic_0001>
module attributes {stable_mosaic.version = 11 : i64} {
  func.func @_fused_kernel(%arg0: i32, %arg1: memref<1x8x8x128xf32, #tpu.memory_space<vmem>>, %arg2: memref<27x128xf32, #tpu.memory_space<vmem>>, %arg3: memref<1x128xf32, #tpu.memory_space<vmem>>, %arg4: memref<128x128xf32, #tpu.memory_space<vmem>>, %arg5: memref<128x128xf32, #tpu.memory_space<vmem>>, %arg6: memref<128x128xf32, #tpu.memory_space<vmem>>, %arg7: memref<1x128xf32, #tpu.memory_space<vmem>>, %arg8: memref<1x128xf32, #tpu.memory_space<vmem>>, %arg9: memref<1x128xf32, #tpu.memory_space<vmem>>, %arg10: memref<1x128xf32, #tpu.memory_space<vmem>>, %arg11: memref<64x64xf32, #tpu.memory_space<vmem>>, %arg12: memref<64x1xf32, #tpu.memory_space<vmem>>, %arg13: memref<64x64xf32, #tpu.memory_space<vmem>>, %arg14: memref<64x1xf32, #tpu.memory_space<vmem>>, %arg15: memref<128x128xf32, #tpu.memory_space<vmem>>, %arg16: memref<1x128xf32, #tpu.memory_space<vmem>>, %arg17: memref<128x128xf32, #tpu.memory_space<vmem>>, %arg18: memref<128x128xf32, #tpu.memory_space<vmem>>, %arg19: memref<128x128xf32, #tpu.memory_space<vmem>>, %arg20: memref<128x128xf32, #tpu.memory_space<vmem>>, %arg21: memref<1x128xf32, #tpu.memory_space<vmem>>, %arg22: memref<1x8x8x128xf32, #tpu.memory_space<vmem>>, %arg23: memref<10x10x128xf32, #tpu.memory_space<vmem>>, %arg24: memref<10x10x128xf32, #tpu.memory_space<vmem>>, %arg25: memref<10x10x128xf32, #tpu.memory_space<vmem>>) attributes {dimension_semantics = [#tpu.dimension_semantics<parallel>], iteration_bounds = array<i64: 2>, scalar_prefetch = 0 : i64, scratch_operands = 3 : i64, tpu.core_type = #tpu.core_type<tc>, window_params = [{transform_indices = @transform_0, window_bounds = array<i64: 1, 8, 8, 128>}, {pipeline_mode = #tpu.pipeline_mode<synchronous>, transform_indices = @transform_1, window_bounds = array<i64: 27, 128>}, {pipeline_mode = #tpu.pipeline_mode<synchronous>, transform_indices = @transform_2, window_bounds = array<i64: 1, 128>}, {pipeline_mode = #tpu.pipeline_mode<synchronous>, transform_indices = @transform_3, window_bounds = array<i64: 128, 128>}, {pipeline_mode = #tpu.pipeline_mode<synchronous>, transform_indices = @transform_4, window_bounds = array<i64: 128, 128>}, {pipeline_mode = #tpu.pipeline_mode<synchronous>, transform_indices = @transform_5, window_bounds = array<i64: 128, 128>}, {pipeline_mode = #tpu.pipeline_mode<synchronous>, transform_indices = @transform_6, window_bounds = array<i64: 1, 128>}, {pipeline_mode = #tpu.pipeline_mode<synchronous>, transform_indices = @transform_7, window_bounds = array<i64: 1, 128>}, {pipeline_mode = #tpu.pipeline_mode<synchronous>, transform_indices = @transform_8, window_bounds = array<i64: 1, 128>}, {pipeline_mode = #tpu.pipeline_mode<synchronous>, transform_indices = @transform_9, window_bounds = array<i64: 1, 128>}, {pipeline_mode = #tpu.pipeline_mode<synchronous>, transform_indices = @transform_10, window_bounds = array<i64: 64, 64>}, {pipeline_mode = #tpu.pipeline_mode<synchronous>, transform_indices = @transform_11, window_bounds = array<i64: 64, 1>}, {pipeline_mode = #tpu.pipeline_mode<synchronous>, transform_indices = @transform_12, window_bounds = array<i64: 64, 64>}, {pipeline_mode = #tpu.pipeline_mode<synchronous>, transform_indices = @transform_13, window_bounds = array<i64: 64, 1>}, {pipeline_mode = #tpu.pipeline_mode<synchronous>, transform_indices = @transform_14, window_bounds = array<i64: 128, 128>}, {pipeline_mode = #tpu.pipeline_mode<synchronous>, transform_indices = @transform_15, window_bounds = array<i64: 1, 128>}, {pipeline_mode = #tpu.pipeline_mode<synchronous>, transform_indices = @transform_16, window_bounds = array<i64: 128, 128>}, {pipeline_mode = #tpu.pipeline_mode<synchronous>, transform_indices = @transform_17, window_bounds = array<i64: 128, 128>}, {pipeline_mode = #tpu.pipeline_mode<synchronous>, transform_indices = @transform_18, window_bounds = array<i64: 128, 128>}, {pipeline_mode = #tpu.pipeline_mode<synchronous>, transform_indices = @transform_19, window_bounds = array<i64: 128, 128>}, {pipeline_mode = #tpu.pipeline_mode<synchronous>, transform_indices = @transform_20, window_bounds = array<i64: 1, 128>}, {transform_indices = @transform_21, window_bounds = array<i64: 1, 8, 8, 128>}]} {
    %c0 = arith.constant 0 : index
    %c0_0 = arith.constant 0 : index
    %c0_1 = arith.constant 0 : index
    %c0_2 = arith.constant 0 : index
    %0 = vector.load %arg1[%c0, %c0_0, %c0_1, %c0_2] : memref<1x8x8x128xf32, #tpu.memory_space<vmem>>, vector<1x8x8x128xf32>
    %1 = vector.shape_cast %0 : vector<1x8x8x128xf32> to vector<8x8x128xf32>
    %2 = vector.shape_cast %1 : vector<8x8x128xf32> to vector<64x128xf32>
    %cst = arith.constant 0.000000e+00 : f32
    %3 = vector.broadcast %cst : f32 to vector<10x10x128xf32>
    %c0_3 = arith.constant 0 : index
    %c0_4 = arith.constant 0 : index
    %c0_5 = arith.constant 0 : index
    %4 = vector.load %arg23[%c0_3, %c0_4, %c0_5] : memref<10x10x128xf32, #tpu.memory_space<vmem>>, vector<10x10x128xf32>
    tpu.vector_store %arg23[%c0_3, %c0_4, %c0_5], %3 {strides = array<i32>} : memref<10x10x128xf32, #tpu.memory_space<vmem>>, vector<10x10x128xf32>,
    %cst_6 = arith.constant 0.000000e+00 : f32
    %5 = vector.broadcast %cst_6 : f32 to vector<10x10x128xf32>
    %c0_7 = arith.constant 0 : index
    %c0_8 = arith.constant 0 : index
    %c0_9 = arith.constant 0 : index
    %6 = vector.load %arg24[%c0_7, %c0_8, %c0_9] : memref<10x10x128xf32, #tpu.memory_space<vmem>>, vector<10x10x128xf32>
    tpu.vector_store %arg24[%c0_7, %c0_8, %c0_9], %5 {strides = array<i32>} : memref<10x10x128xf32, #tpu.memory_space<vmem>>, vector<10x10x128xf32>,
    %cst_10 = arith.constant 0.000000e+00 : f32
    %7 = vector.broadcast %cst_10 : f32 to vector<10x10x128xf32>
    %c0_11 = arith.constant 0 : index
    %c0_12 = arith.constant 0 : index
    %c0_13 = arith.constant 0 : index
    %8 = vector.load %arg25[%c0_11, %c0_12, %c0_13] : memref<10x10x128xf32, #tpu.memory_space<vmem>>, vector<10x10x128xf32>
    tpu.vector_store %arg25[%c0_11, %c0_12, %c0_13], %7 {strides = array<i32>} : memref<10x10x128xf32, #tpu.memory_space<vmem>>, vector<10x10x128xf32>,
    %c1 = arith.constant 1 : index
    %c1_14 = arith.constant 1 : index
    %c0_15 = arith.constant 0 : index
    %9 = vector.load %arg23[%c1, %c1_14, %c0_15] : memref<10x10x128xf32, #tpu.memory_space<vmem>>, vector<8x8x128xf32>
    tpu.vector_store %arg23[%c1, %c1_14, %c0_15], %1 {strides = array<i32>} : memref<10x10x128xf32, #tpu.memory_space<vmem>>, vector<8x8x128xf32>,
    %c0_16 = arith.constant 0 : index
    %c0_17 = arith.constant 0 : index
    %10 = vector.load %arg4[%c0_16, %c0_17] : memref<128x128xf32, #tpu.memory_space<vmem>>, vector<128x128xf32>
    %cst_18 = arith.constant dense<0.000000e+00> : vector<64x128xf32>
    %11 = tpu.matmul %2, %10, %cst_18 {dimension_numbers = #tpu.dot_dimension_numbers<[1], [0], [0], [1], [0, 0, 1, 1], [], []>, precision = #tpu.contract_precision<fp32>} : vector<64x128xf32>, vector<128x128xf32>, vector<64x128xf32> -> vector<64x128xf32>
    %12 = vector.shape_cast %11 : vector<64x128xf32> to vector<8x8x128xf32>
    %c1_19 = arith.constant 1 : index
    %c1_20 = arith.constant 1 : index
    %c0_21 = arith.constant 0 : index
    %13 = vector.load %arg24[%c1_19, %c1_20, %c0_21] : memref<10x10x128xf32, #tpu.memory_space<vmem>>, vector<8x8x128xf32>
    tpu.vector_store %arg24[%c1_19, %c1_20, %c0_21], %12 {strides = array<i32>} : memref<10x10x128xf32, #tpu.memory_space<vmem>>, vector<8x8x128xf32>,
    %c0_22 = arith.constant 0 : index
    %c0_23 = arith.constant 0 : index
    %14 = vector.load %arg5[%c0_22, %c0_23] : memref<128x128xf32, #tpu.memory_space<vmem>>, vector<128x128xf32>
    %cst_24 = arith.constant dense<0.000000e+00> : vector<64x128xf32>
    %15 = tpu.matmul %2, %14, %cst_24 {dimension_numbers = #tpu.dot_dimension_numbers<[1], [0], [0], [1], [0, 0, 1, 1], [], []>, precision = #tpu.contract_precision<fp32>} : vector<64x128xf32>, vector<128x128xf32>, vector<64x128xf32> -> vector<64x128xf32>
    %16 = vector.shape_cast %15 : vector<64x128xf32> to vector<8x8x128xf32>
    %c1_25 = arith.constant 1 : index
    %c1_26 = arith.constant 1 : index
    %c0_27 = arith.constant 0 : index
    %17 = vector.load %arg25[%c1_25, %c1_26, %c0_27] : memref<10x10x128xf32, #tpu.memory_space<vmem>>, vector<8x8x128xf32>
    tpu.vector_store %arg25[%c1_25, %c1_26, %c0_27], %16 {strides = array<i32>} : memref<10x10x128xf32, #tpu.memory_space<vmem>>, vector<8x8x128xf32>,
    %cst_28 = arith.constant 0.000000e+00 : f32
    %18 = vector.broadcast %cst_28 : f32 to vector<8x8x128xf32>
    %c0_29 = arith.constant 0 : index
    %c0_30 = arith.constant 0 : index
    %19 = vector.load %arg3[%c0_29, %c0_30] : memref<1x128xf32, #tpu.memory_space<vmem>>, vector<1x128xf32>
    %20 = vector.shape_cast %19 : vector<1x128xf32> to vector<1x1x128xf32>
    %21 = vector.broadcast %20 : vector<1x1x128xf32> to vector<8x8x128xf32>
    %22 = arith.addf %18, %21 : vector<8x8x128xf32>
    %c0_31 = arith.constant 0 : index
    %c0_32 = arith.constant 0 : index
    %c0_33 = arith.constant 0 : index
    %23 = vector.load %arg24[%c0_31, %c0_32, %c0_33] : memref<10x10x128xf32, #tpu.memory_space<vmem>>, vector<8x8x128xf32>
    %c0_34 = arith.constant 0 : index
    %c0_35 = arith.constant 0 : index
    %24 = vector.load %arg2[%c0_34, %c0_35] : memref<27x128xf32, #tpu.memory_space<vmem>>, vector<1x128xf32>
    %25 = vector.shape_cast %24 : vector<1x128xf32> to vector<128xf32>
    %26 = vector.shape_cast %25 : vector<128xf32> to vector<1x1x128xf32>
    %27 = vector.broadcast %26 : vector<1x1x128xf32> to vector<8x8x128xf32>
    %28 = arith.mulf %23, %27 : vector<8x8x128xf32>
    %29 = arith.addf %22, %28 : vector<8x8x128xf32>
    %c0_36 = arith.constant 0 : index
    %c0_37 = arith.constant 0 : index
    %c0_38 = arith.constant 0 : index
    %30 = vector.load %arg23[%c0_36, %c0_37, %c0_38] : memref<10x10x128xf32, #tpu.memory_space<vmem>>, vector<8x8x128xf32>
    %c1_39 = arith.constant 1 : index
    %c0_40 = arith.constant 0 : index
    %31 = vector.load %arg2[%c1_39, %c0_40] : memref<27x128xf32, #tpu.memory_space<vmem>>, vector<1x128xf32>
    %32 = vector.shape_cast %31 : vector<1x128xf32> to vector<128xf32>
    %33 = vector.shape_cast %32 : vector<128xf32> to vector<1x1x128xf32>
    %34 = vector.broadcast %33 : vector<1x1x128xf32> to vector<8x8x128xf32>
    %35 = arith.mulf %30, %34 : vector<8x8x128xf32>
    %36 = arith.addf %29, %35 : vector<8x8x128xf32>
    %c0_41 = arith.constant 0 : index
    %c0_42 = arith.constant 0 : index
    %c0_43 = arith.constant 0 : index
    %37 = vector.load %arg25[%c0_41, %c0_42, %c0_43] : memref<10x10x128xf32, #tpu.memory_space<vmem>>, vector<8x8x128xf32>
    %c2 = arith.constant 2 : index
    %c0_44 = arith.constant 0 : index
    %38 = vector.load %arg2[%c2, %c0_44] : memref<27x128xf32, #tpu.memory_space<vmem>>, vector<1x128xf32>
    %39 = vector.shape_cast %38 : vector<1x128xf32> to vector<128xf32>
    %40 = vector.shape_cast %39 : vector<128xf32> to vector<1x1x128xf32>
    %41 = vector.broadcast %40 : vector<1x1x128xf32> to vector<8x8x128xf32>
    %42 = arith.mulf %37, %41 : vector<8x8x128xf32>
    %43 = arith.addf %36, %42 : vector<8x8x128xf32>
    %c0_45 = arith.constant 0 : index
    %c1_46 = arith.constant 1 : index
    %c0_47 = arith.constant 0 : index
    %44 = vector.load %arg24[%c0_45, %c1_46, %c0_47] : memref<10x10x128xf32, #tpu.memory_space<vmem>>, vector<8x8x128xf32>
    %c3 = arith.constant 3 : index
    %c0_48 = arith.constant 0 : index
    %45 = vector.load %arg2[%c3, %c0_48] : memref<27x128xf32, #tpu.memory_space<vmem>>, vector<1x128xf32>
    %46 = vector.shape_cast %45 : vector<1x128xf32> to vector<128xf32>
    %47 = vector.shape_cast %46 : vector<128xf32> to vector<1x1x128xf32>
    %48 = vector.broadcast %47 : vector<1x1x128xf32> to vector<8x8x128xf32>
    %49 = arith.mulf %44, %48 : vector<8x8x128xf32>
    %50 = arith.addf %43, %49 : vector<8x8x128xf32>
    %c0_49 = arith.constant 0 : index
    %c1_50 = arith.constant 1 : index
    %c0_51 = arith.constant 0 : index
    %51 = vector.load %arg23[%c0_49, %c1_50, %c0_51] : memref<10x10x128xf32, #tpu.memory_space<vmem>>, vector<8x8x128xf32>
    %c4 = arith.constant 4 : index
    %c0_52 = arith.constant 0 : index
    %52 = vector.load %arg2[%c4, %c0_52] : memref<27x128xf32, #tpu.memory_space<vmem>>, vector<1x128xf32>
    %53 = vector.shape_cast %52 : vector<1x128xf32> to vector<128xf32>
    %54 = vector.shape_cast %53 : vector<128xf32> to vector<1x1x128xf32>
    %55 = vector.broadcast %54 : vector<1x1x128xf32> to vector<8x8x128xf32>
    %56 = arith.mulf %51, %55 : vector<8x8x128xf32>
    %57 = arith.addf %50, %56 : vector<8x8x128xf32>
    %c0_53 = arith.constant 0 : index
    %c1_54 = arith.constant 1 : index
    %c0_55 = arith.constant 0 : index
    %58 = vector.load %arg25[%c0_53, %c1_54, %c0_55] : memref<10x10x128xf32, #tpu.memory_space<vmem>>, vector<8x8x128xf32>
    %c5 = arith.constant 5 : index
    %c0_56 = arith.constant 0 : index
    %59 = vector.load %arg2[%c5, %c0_56] : memref<27x128xf32, #tpu.memory_space<vmem>>, vector<1x128xf32>
    %60 = vector.shape_cast %59 : vector<1x128xf32> to vector<128xf32>
    %61 = vector.shape_cast %60 : vector<128xf32> to vector<1x1x128xf32>
    %62 = vector.broadcast %61 : vector<1x1x128xf32> to vector<8x8x128xf32>
    %63 = arith.mulf %58, %62 : vector<8x8x128xf32>
    %64 = arith.addf %57, %63 : vector<8x8x128xf32>
    %c0_57 = arith.constant 0 : index
    %c2_58 = arith.constant 2 : index
    %c0_59 = arith.constant 0 : index
    %65 = vector.load %arg24[%c0_57, %c2_58, %c0_59] : memref<10x10x128xf32, #tpu.memory_space<vmem>>, vector<8x8x128xf32>
    %c6 = arith.constant 6 : index
    %c0_60 = arith.constant 0 : index
    %66 = vector.load %arg2[%c6, %c0_60] : memref<27x128xf32, #tpu.memory_space<vmem>>, vector<1x128xf32>
    %67 = vector.shape_cast %66 : vector<1x128xf32> to vector<128xf32>
    %68 = vector.shape_cast %67 : vector<128xf32> to vector<1x1x128xf32>
    %69 = vector.broadcast %68 : vector<1x1x128xf32> to vector<8x8x128xf32>
    %70 = arith.mulf %65, %69 : vector<8x8x128xf32>
    %71 = arith.addf %64, %70 : vector<8x8x128xf32>
    %c0_61 = arith.constant 0 : index
    %c2_62 = arith.constant 2 : index
    %c0_63 = arith.constant 0 : index
    %72 = vector.load %arg23[%c0_61, %c2_62, %c0_63] : memref<10x10x128xf32, #tpu.memory_space<vmem>>, vector<8x8x128xf32>
    %c7 = arith.constant 7 : index
    %c0_64 = arith.constant 0 : index
    %73 = vector.load %arg2[%c7, %c0_64] : memref<27x128xf32, #tpu.memory_space<vmem>>, vector<1x128xf32>
    %74 = vector.shape_cast %73 : vector<1x128xf32> to vector<128xf32>
    %75 = vector.shape_cast %74 : vector<128xf32> to vector<1x1x128xf32>
    %76 = vector.broadcast %75 : vector<1x1x128xf32> to vector<8x8x128xf32>
    %77 = arith.mulf %72, %76 : vector<8x8x128xf32>
    %78 = arith.addf %71, %77 : vector<8x8x128xf32>
    %c0_65 = arith.constant 0 : index
    %c2_66 = arith.constant 2 : index
    %c0_67 = arith.constant 0 : index
    %79 = vector.load %arg25[%c0_65, %c2_66, %c0_67] : memref<10x10x128xf32, #tpu.memory_space<vmem>>, vector<8x8x128xf32>
    %c8 = arith.constant 8 : index
    %c0_68 = arith.constant 0 : index
    %80 = vector.load %arg2[%c8, %c0_68] : memref<27x128xf32, #tpu.memory_space<vmem>>, vector<1x128xf32>
    %81 = vector.shape_cast %80 : vector<1x128xf32> to vector<128xf32>
    %82 = vector.shape_cast %81 : vector<128xf32> to vector<1x1x128xf32>
    %83 = vector.broadcast %82 : vector<1x1x128xf32> to vector<8x8x128xf32>
    %84 = arith.mulf %79, %83 : vector<8x8x128xf32>
    %85 = arith.addf %78, %84 : vector<8x8x128xf32>
    %c1_69 = arith.constant 1 : index
    %c0_70 = arith.constant 0 : index
    %c0_71 = arith.constant 0 : index
    %86 = vector.load %arg24[%c1_69, %c0_70, %c0_71] : memref<10x10x128xf32, #tpu.memory_space<vmem>>, vector<8x8x128xf32>
    %c9 = arith.constant 9 : index
    %c0_72 = arith.constant 0 : index
    %87 = vector.load %arg2[%c9, %c0_72] : memref<27x128xf32, #tpu.memory_space<vmem>>, vector<1x128xf32>
    %88 = vector.shape_cast %87 : vector<1x128xf32> to vector<128xf32>
    %89 = vector.shape_cast %88 : vector<128xf32> to vector<1x1x128xf32>
    %90 = vector.broadcast %89 : vector<1x1x128xf32> to vector<8x8x128xf32>
    %91 = arith.mulf %86, %90 : vector<8x8x128xf32>
    %92 = arith.addf %85, %91 : vector<8x8x128xf32>
    %c1_73 = arith.constant 1 : index
    %c0_74 = arith.constant 0 : index
    %c0_75 = arith.constant 0 : index
    %93 = vector.load %arg23[%c1_73, %c0_74, %c0_75] : memref<10x10x128xf32, #tpu.memory_space<vmem>>, vector<8x8x128xf32>
    %c10 = arith.constant 10 : index
    %c0_76 = arith.constant 0 : index
    %94 = vector.load %arg2[%c10, %c0_76] : memref<27x128xf32, #tpu.memory_space<vmem>>, vector<1x128xf32>
    %95 = vector.shape_cast %94 : vector<1x128xf32> to vector<128xf32>
    %96 = vector.shape_cast %95 : vector<128xf32> to vector<1x1x128xf32>
    %97 = vector.broadcast %96 : vector<1x1x128xf32> to vector<8x8x128xf32>
    %98 = arith.mulf %93, %97 : vector<8x8x128xf32>
    %99 = arith.addf %92, %98 : vector<8x8x128xf32>
    %c1_77 = arith.constant 1 : index
    %c0_78 = arith.constant 0 : index
    %c0_79 = arith.constant 0 : index
    %100 = vector.load %arg25[%c1_77, %c0_78, %c0_79] : memref<10x10x128xf32, #tpu.memory_space<vmem>>, vector<8x8x128xf32>
    %c11 = arith.constant 11 : index
    %c0_80 = arith.constant 0 : index
    %101 = vector.load %arg2[%c11, %c0_80] : memref<27x128xf32, #tpu.memory_space<vmem>>, vector<1x128xf32>
    %102 = vector.shape_cast %101 : vector<1x128xf32> to vector<128xf32>
    %103 = vector.shape_cast %102 : vector<128xf32> to vector<1x1x128xf32>
    %104 = vector.broadcast %103 : vector<1x1x128xf32> to vector<8x8x128xf32>
    %105 = arith.mulf %100, %104 : vector<8x8x128xf32>
    %106 = arith.addf %99, %105 : vector<8x8x128xf32>
    %c1_81 = arith.constant 1 : index
    %c1_82 = arith.constant 1 : index
    %c0_83 = arith.constant 0 : index
    %107 = vector.load %arg24[%c1_81, %c1_82, %c0_83] : memref<10x10x128xf32, #tpu.memory_space<vmem>>, vector<8x8x128xf32>
    %c12 = arith.constant 12 : index
    %c0_84 = arith.constant 0 : index
    %108 = vector.load %arg2[%c12, %c0_84] : memref<27x128xf32, #tpu.memory_space<vmem>>, vector<1x128xf32>
    %109 = vector.shape_cast %108 : vector<1x128xf32> to vector<128xf32>
    %110 = vector.shape_cast %109 : vector<128xf32> to vector<1x1x128xf32>
    %111 = vector.broadcast %110 : vector<1x1x128xf32> to vector<8x8x128xf32>
    %112 = arith.mulf %107, %111 : vector<8x8x128xf32>
    %113 = arith.addf %106, %112 : vector<8x8x128xf32>
    %c1_85 = arith.constant 1 : index
    %c1_86 = arith.constant 1 : index
    %c0_87 = arith.constant 0 : index
    %114 = vector.load %arg23[%c1_85, %c1_86, %c0_87] : memref<10x10x128xf32, #tpu.memory_space<vmem>>, vector<8x8x128xf32>
    %c13 = arith.constant 13 : index
    %c0_88 = arith.constant 0 : index
    %115 = vector.load %arg2[%c13, %c0_88] : memref<27x128xf32, #tpu.memory_space<vmem>>, vector<1x128xf32>
    %116 = vector.shape_cast %115 : vector<1x128xf32> to vector<128xf32>
    %117 = vector.shape_cast %116 : vector<128xf32> to vector<1x1x128xf32>
    %118 = vector.broadcast %117 : vector<1x1x128xf32> to vector<8x8x128xf32>
    %119 = arith.mulf %114, %118 : vector<8x8x128xf32>
    %120 = arith.addf %113, %119 : vector<8x8x128xf32>
    %c1_89 = arith.constant 1 : index
    %c1_90 = arith.constant 1 : index
    %c0_91 = arith.constant 0 : index
    %121 = vector.load %arg25[%c1_89, %c1_90, %c0_91] : memref<10x10x128xf32, #tpu.memory_space<vmem>>, vector<8x8x128xf32>
    %c14 = arith.constant 14 : index
    %c0_92 = arith.constant 0 : index
    %122 = vector.load %arg2[%c14, %c0_92] : memref<27x128xf32, #tpu.memory_space<vmem>>, vector<1x128xf32>
    %123 = vector.shape_cast %122 : vector<1x128xf32> to vector<128xf32>
    %124 = vector.shape_cast %123 : vector<128xf32> to vector<1x1x128xf32>
    %125 = vector.broadcast %124 : vector<1x1x128xf32> to vector<8x8x128xf32>
    %126 = arith.mulf %121, %125 : vector<8x8x128xf32>
    %127 = arith.addf %120, %126 : vector<8x8x128xf32>
    %c1_93 = arith.constant 1 : index
    %c2_94 = arith.constant 2 : index
    %c0_95 = arith.constant 0 : index
    %128 = vector.load %arg24[%c1_93, %c2_94, %c0_95] : memref<10x10x128xf32, #tpu.memory_space<vmem>>, vector<8x8x128xf32>
    %c15 = arith.constant 15 : index
    %c0_96 = arith.constant 0 : index
    %129 = vector.load %arg2[%c15, %c0_96] : memref<27x128xf32, #tpu.memory_space<vmem>>, vector<1x128xf32>
    %130 = vector.shape_cast %129 : vector<1x128xf32> to vector<128xf32>
    %131 = vector.shape_cast %130 : vector<128xf32> to vector<1x1x128xf32>
    %132 = vector.broadcast %131 : vector<1x1x128xf32> to vector<8x8x128xf32>
    %133 = arith.mulf %128, %132 : vector<8x8x128xf32>
    %134 = arith.addf %127, %133 : vector<8x8x128xf32>
    %c1_97 = arith.constant 1 : index
    %c2_98 = arith.constant 2 : index
    %c0_99 = arith.constant 0 : index
    %135 = vector.load %arg23[%c1_97, %c2_98, %c0_99] : memref<10x10x128xf32, #tpu.memory_space<vmem>>, vector<8x8x128xf32>
    %c16 = arith.constant 16 : index
    %c0_100 = arith.constant 0 : index
    %136 = vector.load %arg2[%c16, %c0_100] : memref<27x128xf32, #tpu.memory_space<vmem>>, vector<1x128xf32>
    %137 = vector.shape_cast %136 : vector<1x128xf32> to vector<128xf32>
    %138 = vector.shape_cast %137 : vector<128xf32> to vector<1x1x128xf32>
    %139 = vector.broadcast %138 : vector<1x1x128xf32> to vector<8x8x128xf32>
    %140 = arith.mulf %135, %139 : vector<8x8x128xf32>
    %141 = arith.addf %134, %140 : vector<8x8x128xf32>
    %c1_101 = arith.constant 1 : index
    %c2_102 = arith.constant 2 : index
    %c0_103 = arith.constant 0 : index
    %142 = vector.load %arg25[%c1_101, %c2_102, %c0_103] : memref<10x10x128xf32, #tpu.memory_space<vmem>>, vector<8x8x128xf32>
    %c17 = arith.constant 17 : index
    %c0_104 = arith.constant 0 : index
    %143 = vector.load %arg2[%c17, %c0_104] : memref<27x128xf32, #tpu.memory_space<vmem>>, vector<1x128xf32>
    %144 = vector.shape_cast %143 : vector<1x128xf32> to vector<128xf32>
    %145 = vector.shape_cast %144 : vector<128xf32> to vector<1x1x128xf32>
    %146 = vector.broadcast %145 : vector<1x1x128xf32> to vector<8x8x128xf32>
    %147 = arith.mulf %142, %146 : vector<8x8x128xf32>
    %148 = arith.addf %141, %147 : vector<8x8x128xf32>
    %c2_105 = arith.constant 2 : index
    %c0_106 = arith.constant 0 : index
    %c0_107 = arith.constant 0 : index
    %149 = vector.load %arg24[%c2_105, %c0_106, %c0_107] : memref<10x10x128xf32, #tpu.memory_space<vmem>>, vector<8x8x128xf32>
    %c18 = arith.constant 18 : index
    %c0_108 = arith.constant 0 : index
    %150 = vector.load %arg2[%c18, %c0_108] : memref<27x128xf32, #tpu.memory_space<vmem>>, vector<1x128xf32>
    %151 = vector.shape_cast %150 : vector<1x128xf32> to vector<128xf32>
    %152 = vector.shape_cast %151 : vector<128xf32> to vector<1x1x128xf32>
    %153 = vector.broadcast %152 : vector<1x1x128xf32> to vector<8x8x128xf32>
    %154 = arith.mulf %149, %153 : vector<8x8x128xf32>
    %155 = arith.addf %148, %154 : vector<8x8x128xf32>
    %c2_109 = arith.constant 2 : index
    %c0_110 = arith.constant 0 : index
    %c0_111 = arith.constant 0 : index
    %156 = vector.load %arg23[%c2_109, %c0_110, %c0_111] : memref<10x10x128xf32, #tpu.memory_space<vmem>>, vector<8x8x128xf32>
    %c19 = arith.constant 19 : index
    %c0_112 = arith.constant 0 : index
    %157 = vector.load %arg2[%c19, %c0_112] : memref<27x128xf32, #tpu.memory_space<vmem>>, vector<1x128xf32>
    %158 = vector.shape_cast %157 : vector<1x128xf32> to vector<128xf32>
    %159 = vector.shape_cast %158 : vector<128xf32> to vector<1x1x128xf32>
    %160 = vector.broadcast %159 : vector<1x1x128xf32> to vector<8x8x128xf32>
    %161 = arith.mulf %156, %160 : vector<8x8x128xf32>
    %162 = arith.addf %155, %161 : vector<8x8x128xf32>
    %c2_113 = arith.constant 2 : index
    %c0_114 = arith.constant 0 : index
    %c0_115 = arith.constant 0 : index
    %163 = vector.load %arg25[%c2_113, %c0_114, %c0_115] : memref<10x10x128xf32, #tpu.memory_space<vmem>>, vector<8x8x128xf32>
    %c20 = arith.constant 20 : index
    %c0_116 = arith.constant 0 : index
    %164 = vector.load %arg2[%c20, %c0_116] : memref<27x128xf32, #tpu.memory_space<vmem>>, vector<1x128xf32>
    %165 = vector.shape_cast %164 : vector<1x128xf32> to vector<128xf32>
    %166 = vector.shape_cast %165 : vector<128xf32> to vector<1x1x128xf32>
    %167 = vector.broadcast %166 : vector<1x1x128xf32> to vector<8x8x128xf32>
    %168 = arith.mulf %163, %167 : vector<8x8x128xf32>
    %169 = arith.addf %162, %168 : vector<8x8x128xf32>
    %c2_117 = arith.constant 2 : index
    %c1_118 = arith.constant 1 : index
    %c0_119 = arith.constant 0 : index
    %170 = vector.load %arg24[%c2_117, %c1_118, %c0_119] : memref<10x10x128xf32, #tpu.memory_space<vmem>>, vector<8x8x128xf32>
    %c21 = arith.constant 21 : index
    %c0_120 = arith.constant 0 : index
    %171 = vector.load %arg2[%c21, %c0_120] : memref<27x128xf32, #tpu.memory_space<vmem>>, vector<1x128xf32>
    %172 = vector.shape_cast %171 : vector<1x128xf32> to vector<128xf32>
    %173 = vector.shape_cast %172 : vector<128xf32> to vector<1x1x128xf32>
    %174 = vector.broadcast %173 : vector<1x1x128xf32> to vector<8x8x128xf32>
    %175 = arith.mulf %170, %174 : vector<8x8x128xf32>
    %176 = arith.addf %169, %175 : vector<8x8x128xf32>
    %c2_121 = arith.constant 2 : index
    %c1_122 = arith.constant 1 : index
    %c0_123 = arith.constant 0 : index
    %177 = vector.load %arg23[%c2_121, %c1_122, %c0_123] : memref<10x10x128xf32, #tpu.memory_space<vmem>>, vector<8x8x128xf32>
    %c22 = arith.constant 22 : index
    %c0_124 = arith.constant 0 : index
    %178 = vector.load %arg2[%c22, %c0_124] : memref<27x128xf32, #tpu.memory_space<vmem>>, vector<1x128xf32>
    %179 = vector.shape_cast %178 : vector<1x128xf32> to vector<128xf32>
    %180 = vector.shape_cast %179 : vector<128xf32> to vector<1x1x128xf32>
    %181 = vector.broadcast %180 : vector<1x1x128xf32> to vector<8x8x128xf32>
    %182 = arith.mulf %177, %181 : vector<8x8x128xf32>
    %183 = arith.addf %176, %182 : vector<8x8x128xf32>
    %c2_125 = arith.constant 2 : index
    %c1_126 = arith.constant 1 : index
    %c0_127 = arith.constant 0 : index
    %184 = vector.load %arg25[%c2_125, %c1_126, %c0_127] : memref<10x10x128xf32, #tpu.memory_space<vmem>>, vector<8x8x128xf32>
    %c23 = arith.constant 23 : index
    %c0_128 = arith.constant 0 : index
    %185 = vector.load %arg2[%c23, %c0_128] : memref<27x128xf32, #tpu.memory_space<vmem>>, vector<1x128xf32>
    %186 = vector.shape_cast %185 : vector<1x128xf32> to vector<128xf32>
    %187 = vector.shape_cast %186 : vector<128xf32> to vector<1x1x128xf32>
    %188 = vector.broadcast %187 : vector<1x1x128xf32> to vector<8x8x128xf32>
    %189 = arith.mulf %184, %188 : vector<8x8x128xf32>
    %190 = arith.addf %183, %189 : vector<8x8x128xf32>
    %c2_129 = arith.constant 2 : index
    %c2_130 = arith.constant 2 : index
    %c0_131 = arith.constant 0 : index
    %191 = vector.load %arg24[%c2_129, %c2_130, %c0_131] : memref<10x10x128xf32, #tpu.memory_space<vmem>>, vector<8x8x128xf32>
    %c24 = arith.constant 24 : index
    %c0_132 = arith.constant 0 : index
    %192 = vector.load %arg2[%c24, %c0_132] : memref<27x128xf32, #tpu.memory_space<vmem>>, vector<1x128xf32>
    %193 = vector.shape_cast %192 : vector<1x128xf32> to vector<128xf32>
    %194 = vector.shape_cast %193 : vector<128xf32> to vector<1x1x128xf32>
    %195 = vector.broadcast %194 : vector<1x1x128xf32> to vector<8x8x128xf32>
    %196 = arith.mulf %191, %195 : vector<8x8x128xf32>
    %197 = arith.addf %190, %196 : vector<8x8x128xf32>
    %c2_133 = arith.constant 2 : index
    %c2_134 = arith.constant 2 : index
    %c0_135 = arith.constant 0 : index
    %198 = vector.load %arg23[%c2_133, %c2_134, %c0_135] : memref<10x10x128xf32, #tpu.memory_space<vmem>>, vector<8x8x128xf32>
    %c25 = arith.constant 25 : index
    %c0_136 = arith.constant 0 : index
    %199 = vector.load %arg2[%c25, %c0_136] : memref<27x128xf32, #tpu.memory_space<vmem>>, vector<1x128xf32>
    %200 = vector.shape_cast %199 : vector<1x128xf32> to vector<128xf32>
    %201 = vector.shape_cast %200 : vector<128xf32> to vector<1x1x128xf32>
    %202 = vector.broadcast %201 : vector<1x1x128xf32> to vector<8x8x128xf32>
    %203 = arith.mulf %198, %202 : vector<8x8x128xf32>
    %204 = arith.addf %197, %203 : vector<8x8x128xf32>
    %c2_137 = arith.constant 2 : index
    %c2_138 = arith.constant 2 : index
    %c0_139 = arith.constant 0 : index
    %205 = vector.load %arg25[%c2_137, %c2_138, %c0_139] : memref<10x10x128xf32, #tpu.memory_space<vmem>>, vector<8x8x128xf32>
    %c26 = arith.constant 26 : index
    %c0_140 = arith.constant 0 : index
    %206 = vector.load %arg2[%c26, %c0_140] : memref<27x128xf32, #tpu.memory_space<vmem>>, vector<1x128xf32>
    %207 = vector.shape_cast %206 : vector<1x128xf32> to vector<128xf32>
    %208 = vector.shape_cast %207 : vector<128xf32> to vector<1x1x128xf32>
    %209 = vector.broadcast %208 : vector<1x1x128xf32> to vector<8x8x128xf32>
    %210 = arith.mulf %205, %209 : vector<8x8x128xf32>
    %211 = arith.addf %204, %210 : vector<8x8x128xf32>
    %c0_141 = arith.constant 0 : index
    %c0_142 = arith.constant 0 : index
    %212 = vector.load %arg6[%c0_141, %c0_142] : memref<128x128xf32, #tpu.memory_space<vmem>>, vector<128x128xf32>
    %213 = vector.shape_cast %211 : vector<8x8x128xf32> to vector<64x128xf32>
    %c0_143 = arith.constant 0 : index
    %c0_144 = arith.constant 0 : index
    %214 = vector.load %arg7[%c0_143, %c0_144] : memref<1x128xf32, #tpu.memory_space<vmem>>, vector<1x128xf32>
    %c0_145 = arith.constant 0 : index
    %c0_146 = arith.constant 0 : index
    %215 = vector.load %arg8[%c0_145, %c0_146] : memref<1x128xf32, #tpu.memory_space<vmem>>, vector<1x128xf32>
    %cst_147 = arith.constant dense<0.000000e+00> : vector<64x128xf32>
    %216 = tpu.matmul %213, %212, %cst_147 {dimension_numbers = #tpu.dot_dimension_numbers<[1], [0], [0], [1], [0, 0, 1, 1], [], []>, precision = #tpu.contract_precision<fp32>} : vector<64x128xf32>, vector<128x128xf32>, vector<64x128xf32> -> vector<64x128xf32>
    %217 = arith.subf %213, %216 : vector<64x128xf32>
    %218 = arith.mulf %217, %217 : vector<64x128xf32>
    %cst_148 = arith.constant dense<0.000000e+00> : vector<64x128xf32>
    %219 = tpu.matmul %218, %212, %cst_148 {dimension_numbers = #tpu.dot_dimension_numbers<[1], [0], [0], [1], [0, 0, 1, 1], [], []>, precision = #tpu.contract_precision<fp32>} : vector<64x128xf32>, vector<128x128xf32>, vector<64x128xf32> -> vector<64x128xf32>
    %cst_149 = arith.constant 9.99999974E-6 : f32
    %220 = vector.broadcast %cst_149 : f32 to vector<64x128xf32>
    %221 = arith.addf %219, %220 : vector<64x128xf32>
    %222 = math.rsqrt %221 : vector<64x128xf32>
    %223 = arith.mulf %217, %222 : vector<64x128xf32>
    %224 = vector.broadcast %214 : vector<1x128xf32> to vector<64x128xf32>
    %225 = arith.mulf %223, %224 : vector<64x128xf32>
    %226 = vector.broadcast %215 : vector<1x128xf32> to vector<64x128xf32>
    %227 = arith.addf %225, %226 : vector<64x128xf32>
    %cst_150 = arith.constant 5.000000e-01 : f32
    %228 = vector.broadcast %cst_150 : f32 to vector<64x128xf32>
    %229 = arith.mulf %228, %227 : vector<64x128xf32>
    %cst_151 = arith.constant 4.471500e-02 : f32
    %230 = vector.broadcast %cst_151 : f32 to vector<64x128xf32>
    %231 = arith.mulf %230, %227 : vector<64x128xf32>
    %232 = arith.mulf %231, %227 : vector<64x128xf32>
    %233 = arith.mulf %232, %227 : vector<64x128xf32>
    %234 = arith.addf %227, %233 : vector<64x128xf32>
    %cst_152 = arith.constant 0.797884583 : f32
    %235 = vector.broadcast %cst_152 : f32 to vector<64x128xf32>
    %236 = arith.mulf %235, %234 : vector<64x128xf32>
    %237 = math.tanh %236 : vector<64x128xf32>
    %cst_153 = arith.constant 1.000000e+00 : f32
    %238 = vector.broadcast %cst_153 : f32 to vector<64x128xf32>
    %239 = arith.addf %238, %237 : vector<64x128xf32>
    %240 = arith.mulf %229, %239 : vector<64x128xf32>
    %c0_154 = arith.constant 0 : index
    %c0_155 = arith.constant 0 : index
    %241 = vector.load %arg9[%c0_154, %c0_155] : memref<1x128xf32, #tpu.memory_space<vmem>>, vector<1x128xf32>
    %c0_156 = arith.constant 0 : index
    %c0_157 = arith.constant 0 : index
    %242 = vector.load %arg10[%c0_156, %c0_157] : memref<1x128xf32, #tpu.memory_space<vmem>>, vector<1x128xf32>
    %cst_158 = arith.constant dense<0.000000e+00> : vector<64x128xf32>
    %243 = tpu.matmul %240, %212, %cst_158 {dimension_numbers = #tpu.dot_dimension_numbers<[1], [0], [0], [1], [0, 0, 1, 1], [], []>, precision = #tpu.contract_precision<fp32>} : vector<64x128xf32>, vector<128x128xf32>, vector<64x128xf32> -> vector<64x128xf32>
    %244 = arith.subf %240, %243 : vector<64x128xf32>
    %245 = arith.mulf %244, %244 : vector<64x128xf32>
    %cst_159 = arith.constant dense<0.000000e+00> : vector<64x128xf32>
    %246 = tpu.matmul %245, %212, %cst_159 {dimension_numbers = #tpu.dot_dimension_numbers<[1], [0], [0], [1], [0, 0, 1, 1], [], []>, precision = #tpu.contract_precision<fp32>} : vector<64x128xf32>, vector<128x128xf32>, vector<64x128xf32> -> vector<64x128xf32>
    %cst_160 = arith.constant 9.99999974E-6 : f32
    %247 = vector.broadcast %cst_160 : f32 to vector<64x128xf32>
    %248 = arith.addf %246, %247 : vector<64x128xf32>
    %249 = math.rsqrt %248 : vector<64x128xf32>
    %250 = arith.mulf %244, %249 : vector<64x128xf32>
    %251 = vector.broadcast %241 : vector<1x128xf32> to vector<64x128xf32>
    %252 = arith.mulf %250, %251 : vector<64x128xf32>
    %253 = vector.broadcast %242 : vector<1x128xf32> to vector<64x128xf32>
    %254 = arith.addf %252, %253 : vector<64x128xf32>
    %cst_161 = arith.constant 5.000000e-01 : f32
    %255 = vector.broadcast %cst_161 : f32 to vector<64x128xf32>
    %256 = arith.mulf %255, %254 : vector<64x128xf32>
    %cst_162 = arith.constant 4.471500e-02 : f32
    %257 = vector.broadcast %cst_162 : f32 to vector<64x128xf32>
    %258 = arith.mulf %257, %254 : vector<64x128xf32>
    %259 = arith.mulf %258, %254 : vector<64x128xf32>
    %260 = arith.mulf %259, %254 : vector<64x128xf32>
    %261 = arith.addf %254, %260 : vector<64x128xf32>
    %cst_163 = arith.constant 0.797884583 : f32
    %262 = vector.broadcast %cst_163 : f32 to vector<64x128xf32>
    %263 = arith.mulf %262, %261 : vector<64x128xf32>
    %264 = math.tanh %263 : vector<64x128xf32>
    %cst_164 = arith.constant 1.000000e+00 : f32
    %265 = vector.broadcast %cst_164 : f32 to vector<64x128xf32>
    %266 = arith.addf %265, %264 : vector<64x128xf32>
    %267 = arith.mulf %256, %266 : vector<64x128xf32>
    %c0_165 = arith.constant 0 : index
    %c0_166 = arith.constant 0 : index
    %268 = vector.load %arg11[%c0_165, %c0_166] : memref<64x64xf32, #tpu.memory_space<vmem>>, vector<64x64xf32>
    %cst_167 = arith.constant dense<0.000000e+00> : vector<64x128xf32>
    %269 = tpu.matmul %268, %267, %cst_167 {dimension_numbers = #tpu.dot_dimension_numbers<[1], [0], [0], [1], [0, 0, 1, 1], [], []>, precision = #tpu.contract_precision<fp32>} : vector<64x64xf32>, vector<64x128xf32>, vector<64x128xf32> -> vector<64x128xf32>
    %c0_168 = arith.constant 0 : index
    %c0_169 = arith.constant 0 : index
    %270 = vector.load %arg12[%c0_168, %c0_169] : memref<64x1xf32, #tpu.memory_space<vmem>>, vector<64x1xf32>
    %271 = vector.broadcast %270 : vector<64x1xf32> to vector<64x128xf32>
    %272 = arith.addf %269, %271 : vector<64x128xf32>
    %c0_170 = arith.constant 0 : index
    %c0_171 = arith.constant 0 : index
    %273 = vector.load %arg13[%c0_170, %c0_171] : memref<64x64xf32, #tpu.memory_space<vmem>>, vector<64x64xf32>
    %cst_172 = arith.constant dense<0.000000e+00> : vector<64x128xf32>
    %274 = tpu.matmul %273, %267, %cst_172 {dimension_numbers = #tpu.dot_dimension_numbers<[1], [0], [0], [1], [0, 0, 1, 1], [], []>, precision = #tpu.contract_precision<fp32>} : vector<64x64xf32>, vector<64x128xf32>, vector<64x128xf32> -> vector<64x128xf32>
    %c0_173 = arith.constant 0 : index
    %c0_174 = arith.constant 0 : index
    %275 = vector.load %arg14[%c0_173, %c0_174] : memref<64x1xf32, #tpu.memory_space<vmem>>, vector<64x1xf32>
    %276 = vector.broadcast %275 : vector<64x1xf32> to vector<64x128xf32>
    %277 = arith.addf %274, %276 : vector<64x128xf32>
    %c0_175 = arith.constant 0 : index
    %c0_176 = arith.constant 0 : index
    %278 = vector.load %arg15[%c0_175, %c0_176] : memref<128x128xf32, #tpu.memory_space<vmem>>, vector<128x128xf32>
    %cst_177 = arith.constant dense<0.000000e+00> : vector<64x128xf32>
    %279 = tpu.matmul %267, %278, %cst_177 {dimension_numbers = #tpu.dot_dimension_numbers<[1], [0], [0], [1], [0, 0, 1, 1], [], []>, precision = #tpu.contract_precision<fp32>} : vector<64x128xf32>, vector<128x128xf32>, vector<64x128xf32> -> vector<64x128xf32>
    %c0_178 = arith.constant 0 : index
    %c0_179 = arith.constant 0 : index
    %280 = vector.load %arg16[%c0_178, %c0_179] : memref<1x128xf32, #tpu.memory_space<vmem>>, vector<1x128xf32>
    %281 = vector.broadcast %280 : vector<1x128xf32> to vector<64x128xf32>
    %282 = arith.addf %279, %281 : vector<64x128xf32>
    %c0_180 = arith.constant 0 : index
    %c0_181 = arith.constant 0 : index
    %283 = vector.load %arg17[%c0_180, %c0_181] : memref<128x128xf32, #tpu.memory_space<vmem>>, vector<128x128xf32>
    %cst_182 = arith.constant dense<0.000000e+00> : vector<64x128xf32>
    %284 = tpu.matmul %267, %283, %cst_182 {dimension_numbers = #tpu.dot_dimension_numbers<[1], [0], [0], [1], [0, 0, 1, 1], [], []>, precision = #tpu.contract_precision<fp32>} : vector<64x128xf32>, vector<128x128xf32>, vector<64x128xf32> -> vector<64x128xf32>
    %c0_183 = arith.constant 0 : index
    %c0_184 = arith.constant 0 : index
    %285 = vector.load %arg18[%c0_183, %c0_184] : memref<128x128xf32, #tpu.memory_space<vmem>>, vector<128x128xf32>
    %cst_185 = arith.constant dense<0.000000e+00> : vector<64x128xf32>
    %286 = tpu.matmul %272, %285, %cst_185 {dimension_numbers = #tpu.dot_dimension_numbers<[1], [0], [0], [1], [0, 0, 1, 1], [], []>, precision = #tpu.contract_precision<fp32>} : vector<64x128xf32>, vector<128x128xf32>, vector<64x128xf32> -> vector<64x128xf32>
    %287 = arith.addf %284, %286 : vector<64x128xf32>
    %c0_186 = arith.constant 0 : index
    %c0_187 = arith.constant 0 : index
    %288 = vector.load %arg19[%c0_186, %c0_187] : memref<128x128xf32, #tpu.memory_space<vmem>>, vector<128x128xf32>
    %cst_188 = arith.constant dense<0.000000e+00> : vector<64x128xf32>
    %289 = tpu.matmul %277, %288, %cst_188 {dimension_numbers = #tpu.dot_dimension_numbers<[1], [0], [0], [1], [0, 0, 1, 1], [], []>, precision = #tpu.contract_precision<fp32>} : vector<64x128xf32>, vector<128x128xf32>, vector<64x128xf32> -> vector<64x128xf32>
    %290 = arith.addf %287, %289 : vector<64x128xf32>
    %c0_189 = arith.constant 0 : index
    %c0_190 = arith.constant 0 : index
    %291 = vector.load %arg20[%c0_189, %c0_190] : memref<128x128xf32, #tpu.memory_space<vmem>>, vector<128x128xf32>
    %cst_191 = arith.constant dense<0.000000e+00> : vector<64x128xf32>
    %292 = tpu.matmul %282, %291, %cst_191 {dimension_numbers = #tpu.dot_dimension_numbers<[1], [0], [0], [1], [0, 0, 1, 1], [], []>, precision = #tpu.contract_precision<fp32>} : vector<64x128xf32>, vector<128x128xf32>, vector<64x128xf32> -> vector<64x128xf32>
    %293 = arith.addf %290, %292 : vector<64x128xf32>
    %c0_192 = arith.constant 0 : index
    %c0_193 = arith.constant 0 : index
    %294 = vector.load %arg21[%c0_192, %c0_193] : memref<1x128xf32, #tpu.memory_space<vmem>>, vector<1x128xf32>
    %295 = vector.broadcast %294 : vector<1x128xf32> to vector<64x128xf32>
    %296 = arith.addf %293, %295 : vector<64x128xf32>
    %297 = arith.addf %296, %2 : vector<64x128xf32>
    %298 = vector.shape_cast %297 : vector<64x128xf32> to vector<8x8x128xf32>
    %c0_194 = arith.constant 0 : index
    %c0_195 = arith.constant 0 : index
    %c0_196 = arith.constant 0 : index
    %c0_197 = arith.constant 0 : index
    %299 = vector.load %arg22[%c0_194, %c0_195, %c0_196, %c0_197] : memref<1x8x8x128xf32, #tpu.memory_space<vmem>>, vector<1x8x8x128xf32>
    %300 = vector.shape_cast %299 : vector<1x8x8x128xf32> to vector<8x8x128xf32>
    %301 = vector.shape_cast %298 : vector<8x8x128xf32> to vector<1x8x8x128xf32>
    tpu.vector_store %arg22[%c0_194, %c0_195, %c0_196, %c0_197], %301 {strides = array<i32>} : memref<1x8x8x128xf32, #tpu.memory_space<vmem>>, vector<1x8x8x128xf32>,
    return
  }
  func.func @transform_0(%arg0: i32) -> (i32, i32, i32, i32) {
    %c0_i32 = arith.constant 0 : i32
    %c0_i32_0 = arith.constant 0 : i32
    %c0_i32_1 = arith.constant 0 : i32
    %c0_i32_2 = arith.constant 0 : i32
    return %arg0, %c0_i32, %c0_i32_0, %c0_i32_1 : i32, i32, i32, i32
  }
  func.func @transform_1(%arg0: i32) -> (i32, i32) {
    %c0_i32 = arith.constant 0 : i32
    %c0_i32_0 = arith.constant 0 : i32
    %c0_i32_1 = arith.constant 0 : i32
    return %c0_i32, %c0_i32_0 : i32, i32
  }
  func.func @transform_2(%arg0: i32) -> (i32, i32) {
    %c0_i32 = arith.constant 0 : i32
    %c0_i32_0 = arith.constant 0 : i32
    %c0_i32_1 = arith.constant 0 : i32
    return %c0_i32, %c0_i32_0 : i32, i32
  }
  func.func @transform_3(%arg0: i32) -> (i32, i32) {
    %c0_i32 = arith.constant 0 : i32
    %c0_i32_0 = arith.constant 0 : i32
    %c0_i32_1 = arith.constant 0 : i32
    return %c0_i32, %c0_i32_0 : i32, i32
  }
  func.func @transform_4(%arg0: i32) -> (i32, i32) {
    %c0_i32 = arith.constant 0 : i32
    %c0_i32_0 = arith.constant 0 : i32
    %c0_i32_1 = arith.constant 0 : i32
    return %c0_i32, %c0_i32_0 : i32, i32
  }
  func.func @transform_5(%arg0: i32) -> (i32, i32) {
    %c0_i32 = arith.constant 0 : i32
    %c0_i32_0 = arith.constant 0 : i32
    %c0_i32_1 = arith.constant 0 : i32
    return %c0_i32, %c0_i32_0 : i32, i32
  }
  func.func @transform_6(%arg0: i32) -> (i32, i32) {
    %c0_i32 = arith.constant 0 : i32
    %c0_i32_0 = arith.constant 0 : i32
    %c0_i32_1 = arith.constant 0 : i32
    return %c0_i32, %c0_i32_0 : i32, i32
  }
  func.func @transform_7(%arg0: i32) -> (i32, i32) {
    %c0_i32 = arith.constant 0 : i32
    %c0_i32_0 = arith.constant 0 : i32
    %c0_i32_1 = arith.constant 0 : i32
    return %c0_i32, %c0_i32_0 : i32, i32
  }
  func.func @transform_8(%arg0: i32) -> (i32, i32) {
    %c0_i32 = arith.constant 0 : i32
    %c0_i32_0 = arith.constant 0 : i32
    %c0_i32_1 = arith.constant 0 : i32
    return %c0_i32, %c0_i32_0 : i32, i32
  }
  func.func @transform_9(%arg0: i32) -> (i32, i32) {
    %c0_i32 = arith.constant 0 : i32
    %c0_i32_0 = arith.constant 0 : i32
    %c0_i32_1 = arith.constant 0 : i32
    return %c0_i32, %c0_i32_0 : i32, i32
  }
  func.func @transform_10(%arg0: i32) -> (i32, i32) {
    %c0_i32 = arith.constant 0 : i32
    %c0_i32_0 = arith.constant 0 : i32
    %c0_i32_1 = arith.constant 0 : i32
    return %c0_i32, %c0_i32_0 : i32, i32
  }
  func.func @transform_11(%arg0: i32) -> (i32, i32) {
    %c0_i32 = arith.constant 0 : i32
    %c0_i32_0 = arith.constant 0 : i32
    %c0_i32_1 = arith.constant 0 : i32
    return %c0_i32, %c0_i32_0 : i32, i32
  }
  func.func @transform_12(%arg0: i32) -> (i32, i32) {
    %c0_i32 = arith.constant 0 : i32
    %c0_i32_0 = arith.constant 0 : i32
    %c0_i32_1 = arith.constant 0 : i32
    return %c0_i32, %c0_i32_0 : i32, i32
  }
  func.func @transform_13(%arg0: i32) -> (i32, i32) {
    %c0_i32 = arith.constant 0 : i32
    %c0_i32_0 = arith.constant 0 : i32
    %c0_i32_1 = arith.constant 0 : i32
    return %c0_i32, %c0_i32_0 : i32, i32
  }
  func.func @transform_14(%arg0: i32) -> (i32, i32) {
    %c0_i32 = arith.constant 0 : i32
    %c0_i32_0 = arith.constant 0 : i32
    %c0_i32_1 = arith.constant 0 : i32
    return %c0_i32, %c0_i32_0 : i32, i32
  }
  func.func @transform_15(%arg0: i32) -> (i32, i32) {
    %c0_i32 = arith.constant 0 : i32
    %c0_i32_0 = arith.constant 0 : i32
    %c0_i32_1 = arith.constant 0 : i32
    return %c0_i32, %c0_i32_0 : i32, i32
  }
  func.func @transform_16(%arg0: i32) -> (i32, i32) {
    %c0_i32 = arith.constant 0 : i32
    %c0_i32_0 = arith.constant 0 : i32
    %c0_i32_1 = arith.constant 0 : i32
    return %c0_i32, %c0_i32_0 : i32, i32
  }
  func.func @transform_17(%arg0: i32) -> (i32, i32) {
    %c0_i32 = arith.constant 0 : i32
    %c0_i32_0 = arith.constant 0 : i32
    %c0_i32_1 = arith.constant 0 : i32
    return %c0_i32, %c0_i32_0 : i32, i32
  }
  func.func @transform_18(%arg0: i32) -> (i32, i32) {
    %c0_i32 = arith.constant 0 : i32
    %c0_i32_0 = arith.constant 0 : i32
    %c0_i32_1 = arith.constant 0 : i32
    return %c0_i32, %c0_i32_0 : i32, i32
  }
  func.func @transform_19(%arg0: i32) -> (i32, i32) {
    %c0_i32 = arith.constant 0 : i32
    %c0_i32_0 = arith.constant 0 : i32
    %c0_i32_1 = arith.constant 0 : i32
    return %c0_i32, %c0_i32_0 : i32, i32
  }
  func.func @transform_20(%arg0: i32) -> (i32, i32) {
    %c0_i32 = arith.constant 0 : i32
    %c0_i32_0 = arith.constant 0 : i32
    %c0_i32_1 = arith.constant 0 : i32
    return %c0_i32, %c0_i32_0 : i32, i32
  }
  func.func @transform_21(%arg0: i32) -> (i32, i32, i32, i32) {
    %c0_i32 = arith.constant 0 : i32
    %c0_i32_0 = arith.constant 0 : i32
    %c0_i32_1 = arith.constant 0 : i32
    %c0_i32_2 = arith.constant 0 : i32
    return %arg0, %c0_i32, %c0_i32_0, %c0_i32_1 : i32, i32, i32, i32
  }
}

</mosaic_0001>

<llo_original>
// kernel: sparse_mlp_layer_forward.1
$region0: #{sparse_mlp_layer_forward.1}
  #allocation0 [shape = 'u32[]', space=smem, size = 0x4, offset = 0x4, fixed_abs, tag = 'smem constant byte address 0x4 - core index']
  #allocation1 [shape = 'u32[72,128]{1,0:T(1,128)}', space=vmem, size = 0x9000, scoped, tag = 'internal scratch']
  #allocation2 [shape = 'f32[10,10,128]{2,1,0:T(8,128)}', space=vmem, size = 0x14000, scoped, tag = 'scratch operand']
  #allocation3 [shape = 'f32[10,10,128]{2,1,0:T(8,128)}', space=vmem, size = 0x14000, scoped, tag = 'scratch operand']
  #allocation4 [shape = 'f32[10,10,128]{2,1,0:T(8,128)}', space=vmem, size = 0x14000, scoped, tag = 'scratch operand']
  %s0 = inlined_call_operand.vmem [shape: f32[2,8,8,128], index: 0, kind: input, shape index: {}]
  %s1 = inlined_call_operand.vmem [shape: f32[27,128], index: 1, kind: input, shape index: {}]
  %s2 = inlined_call_operand.vmem [shape: f32[1,128], index: 2, kind: input, shape index: {}]
  %s3 = inlined_call_operand.vmem [shape: f32[128,128], index: 3, kind: input, shape index: {}]
  %s4 = inlined_call_operand.vmem [shape: f32[128,128], index: 4, kind: input, shape index: {}]
  %s5 = inlined_call_operand.vmem [shape: f32[128,128], index: 5, kind: input, shape index: {}]
  %s6 = inlined_call_operand.vmem [shape: f32[1,128], index: 6, kind: input, shape index: {}]
  %s7 = inlined_call_operand.vmem [shape: f32[1,128], index: 7, kind: input, shape index: {}]
  %s8 = inlined_call_operand.vmem [shape: f32[1,128], index: 8, kind: input, shape index: {}]
  %s9 = inlined_call_operand.vmem [shape: f32[1,128], index: 9, kind: input, shape index: {}]
  %s10 = inlined_call_operand.vmem [shape: f32[64,64], index: 10, kind: input, shape index: {}]
  %s11 = inlined_call_operand.vmem [shape: f32[64,1], index: 11, kind: input, shape index: {}]
  %s12 = inlined_call_operand.vmem [shape: f32[64,64], index: 12, kind: input, shape index: {}]
  %s13 = inlined_call_operand.vmem [shape: f32[64,1], index: 13, kind: input, shape index: {}]
  %s14 = inlined_call_operand.vmem [shape: f32[128,128], index: 14, kind: input, shape index: {}]
  %s15 = inlined_call_operand.vmem [shape: f32[1,128], index: 15, kind: input, shape index: {}]
  %s16 = inlined_call_operand.vmem [shape: f32[128,128], index: 16, kind: input, shape index: {}]
  %s17 = inlined_call_operand.vmem [shape: f32[128,128], index: 17, kind: input, shape index: {}]
  %s18 = inlined_call_operand.vmem [shape: f32[128,128], index: 18, kind: input, shape index: {}]
  %s19 = inlined_call_operand.vmem [shape: f32[128,128], index: 19, kind: input, shape index: {}]
  %s20 = inlined_call_operand.vmem [shape: f32[1,128], index: 20, kind: input, shape index: {}]
  %s21 = inlined_call_operand.vmem [shape: f32[2,8,8,128], index: 21, kind: output, shape index: {}]
  %s22 = sld [smem:[#allocation0]]
  $region117: #{sparse_mlp_layer_forward.1} parent=0
    _
  %s24 = ssub.s32 1, %s22
  %s25 = scalar_select 0, %s24, %s22
  loop: start=0, step=1, limit=4
  $region2: #{sparse_mlp_layer_forward.1} parent=0 // loop_pre_header
    _
  $region3: #{sparse_mlp_layer_forward.1} parent=0 // loop_header
    %s27 = sphi 0, %s31
    %p28 = scmp.ge.s32.totalorder %s27, 4
    %s37 = sphi 0, %s39
    %s40 = sphi 0, %s37
    %s41 = sphi 0, %s40
    %s57 = sphi 0, %s41
    %s61 = sphi 0, %s61
    %s63 = sphi 0, %s61
    %s64 = sphi 0, %s63
    %s78 = sphi 0, %s64
    %s82 = sphi 0, %s82
    %s84 = sphi 0, %s82
    %s85 = sphi 0, %s84
    %s99 = sphi 0, %s85
    %s103 = sphi 0, %s103
    %s105 = sphi 0, %s103
    %s106 = sphi 0, %s105
    %s120 = sphi 0, %s106
    %s124 = sphi 0, %s124
    %s126 = sphi 0, %s124
    %s127 = sphi 0, %s126
    %s141 = sphi 0, %s127
    %s145 = sphi 0, %s145
    %s147 = sphi 0, %s145
    %s148 = sphi 0, %s147
    %s162 = sphi 0, %s148
    %s166 = sphi 0, %s166
    %s168 = sphi 0, %s166
    %s169 = sphi 0, %s168
    %s183 = sphi 0, %s169
    %s187 = sphi 0, %s187
    %s189 = sphi 0, %s187
    %s190 = sphi 0, %s189
    %s204 = sphi 0, %s190
    %s208 = sphi 0, %s208
    %s210 = sphi 0, %s208
    %s211 = sphi 0, %s210
    %s225 = sphi 0, %s211
    %s229 = sphi 0, %s229
    %s231 = sphi 0, %s229
    %s232 = sphi 0, %s231
    %s246 = sphi 0, %s232
    %s250 = sphi 0, %s250
    %s252 = sphi 0, %s250
    %s253 = sphi 0, %s252
    %s267 = sphi 0, %s253
    %s271 = sphi 0, %s271
    %s273 = sphi 0, %s271
    %s274 = sphi 0, %s273
    %s288 = sphi 0, %s274
    %s292 = sphi 0, %s292
    %s294 = sphi 0, %s292
    %s295 = sphi 0, %s294
    %s309 = sphi 0, %s295
    %s313 = sphi 0, %s313
    %s315 = sphi 0, %s313
    %s316 = sphi 0, %s315
    %s330 = sphi 0, %s316
    %s334 = sphi 0, %s334
    %s336 = sphi 0, %s334
    %s337 = sphi 0, %s336
    %s351 = sphi 0, %s337
    %s355 = sphi 0, %s355
    %s357 = sphi 0, %s355
    %s358 = sphi 0, %s357
    %s372 = sphi 0, %s358
    %s376 = sphi 0, %s376
    %s378 = sphi 0, %s376
    %s379 = sphi 0, %s378
    %s393 = sphi 0, %s379
    %s397 = sphi 0, %s397
    %s399 = sphi 0, %s397
    %s400 = sphi 0, %s399
    %s414 = sphi 0, %s400
    %s418 = sphi 0, %s418
    %s420 = sphi 0, %s418
    %s421 = sphi 0, %s420
    %s435 = sphi 0, %s421
    %s439 = sphi 0, %s439
    %s441 = sphi 0, %s439
    %s442 = sphi 0, %s441
    %s456 = sphi 0, %s442
    %s460 = sphi 0, %s460
    %s462 = sphi 0, %s460
    %s463 = sphi 0, %s462
    %s477 = sphi 0, %s463
    %s483 = sphi 0, %s485
    %s486 = sphi 0, %s483
    %s487 = sphi 0, %s486
    %s503 = sphi 0, %s487
  $region4: #{sparse_mlp_layer_forward.1} parent=0 // loop_header_branch
    %30 = sbr.rel (%p28) target = $region8
  $region5: #{sparse_mlp_layer_forward.1} parent=0 // loop_body
    %s32 = ssub.s32 %s27, 1
    %s33 = ssub.s32 %s27, 2
    %s34 = sadd.s32 %s27, 1
    %s35 = ssub.s32 %s27, %s34
    %p36 = scmp.eq.s32.totalorder %s35, 0
    %s38 = sadd.s32 %s37, 1
    %s39 = scalar_select %p36, %s37, %s38
    %p42 = pneg %p36
    %p43 = scmp.eq.s32.totalorder %s27, 1
    %p44 = por %p42, %p43
    %p45 = scmp.ne.s32.totalorder %s37, %s40
    %p46 = scmp.eq.s32.totalorder %s27, 0
    %p47 = por %p45, %p46
    %p48 = scmp.ne.s32.totalorder %s37, %s40
    %p49 = scmp.eq.s32.totalorder %s32, 1
    %p50 = por %p48, %p49
    %p51 = scmp.ne.s32.totalorder %s40, %s41
    %p52 = scmp.eq.s32.totalorder %s32, 0
    %p53 = por %p51, %p52
    %p54 = scmp.ne.s32.totalorder %s40, %s41
    %p55 = scmp.eq.s32.totalorder %s33, 1
    %p56 = por %p54, %p55
    %p58 = scmp.ne.s32.totalorder %s41, %s57
    %p59 = scmp.eq.s32.totalorder %s33, 0
    %p60 = por %p58, %p59
    %s62 = sadd.s32 %s61, 1
    %p65 = scmp.eq.s32.totalorder %s27, 1
    %p66 = scmp.ne.s32.totalorder %s61, %s63
    %p67 = scmp.eq.s32.totalorder %s27, 0
    %p68 = por %p66, %p67
    %p69 = scmp.ne.s32.totalorder %s61, %s63
    %p70 = scmp.eq.s32.totalorder %s32, 1
    %p71 = por %p69, %p70
    %p72 = scmp.ne.s32.totalorder %s63, %s64
    %p73 = scmp.eq.s32.totalorder %s32, 0
    %p74 = por %p72, %p73
    %p75 = scmp.ne.s32.totalorder %s63, %s64
    %p76 = scmp.eq.s32.totalorder %s33, 1
    %p77 = por %p75, %p76
    %p79 = scmp.ne.s32.totalorder %s64, %s78
    %p80 = scmp.eq.s32.totalorder %s33, 0
    %p81 = por %p79, %p80
    %s83 = sadd.s32 %s82, 1
    %p86 = scmp.eq.s32.totalorder %s27, 1
    %p87 = scmp.ne.s32.totalorder %s82, %s84
    %p88 = scmp.eq.s32.totalorder %s27, 0
    %p89 = por %p87, %p88
    %p90 = scmp.ne.s32.totalorder %s82, %s84
    %p91 = scmp.eq.s32.totalorder %s32, 1
    %p92 = por %p90, %p91
    %p93 = scmp.ne.s32.totalorder %s84, %s85
    %p94 = scmp.eq.s32.totalorder %s32, 0
    %p95 = por %p93, %p94
    %p96 = scmp.ne.s32.totalorder %s84, %s85
    %p97 = scmp.eq.s32.totalorder %s33, 1
    %p98 = por %p96, %p97
    %p100 = scmp.ne.s32.totalorder %s85, %s99
    %p101 = scmp.eq.s32.totalorder %s33, 0
    %p102 = por %p100, %p101
    %s104 = sadd.s32 %s103, 1
    %p107 = scmp.eq.s32.totalorder %s27, 1
    %p108 = scmp.ne.s32.totalorder %s103, %s105
    %p109 = scmp.eq.s32.totalorder %s27, 0
    %p110 = por %p108, %p109
    %p111 = scmp.ne.s32.totalorder %s103, %s105
    %p112 = scmp.eq.s32.totalorder %s32, 1
    %p113 = por %p111, %p112
    %p114 = scmp.ne.s32.totalorder %s105, %s106
    %p115 = scmp.eq.s32.totalorder %s32, 0
    %p116 = por %p114, %p115
    %p117 = scmp.ne.s32.totalorder %s105, %s106
    %p118 = scmp.eq.s32.totalorder %s33, 1
    %p119 = por %p117, %p118
    %p121 = scmp.ne.s32.totalorder %s106, %s120
    %p122 = scmp.eq.s32.totalorder %s33, 0
    %p123 = por %p121, %p122
    %s125 = sadd.s32 %s124, 1
    %p128 = scmp.eq.s32.totalorder %s27, 1
    %p129 = scmp.ne.s32.totalorder %s124, %s126
    %p130 = scmp.eq.s32.totalorder %s27, 0
    %p131 = por %p129, %p130
    %p132 = scmp.ne.s32.totalorder %s124, %s126
    %p133 = scmp.eq.s32.totalorder %s32, 1
    %p134 = por %p132, %p133
    %p135 = scmp.ne.s32.totalorder %s126, %s127
    %p136 = scmp.eq.s32.totalorder %s32, 0
    %p137 = por %p135, %p136
    %p138 = scmp.ne.s32.totalorder %s126, %s127
    %p139 = scmp.eq.s32.totalorder %s33, 1
    %p140 = por %p138, %p139
    %p142 = scmp.ne.s32.totalorder %s127, %s141
    %p143 = scmp.eq.s32.totalorder %s33, 0
    %p144 = por %p142, %p143
    %s146 = sadd.s32 %s145, 1
    %p149 = scmp.eq.s32.totalorder %s27, 1
    %p150 = scmp.ne.s32.totalorder %s145, %s147
    %p151 = scmp.eq.s32.totalorder %s27, 0
    %p152 = por %p150, %p151
    %p153 = scmp.ne.s32.totalorder %s145, %s147
    %p154 = scmp.eq.s32.totalorder %s32, 1
    %p155 = por %p153, %p154
    %p156 = scmp.ne.s32.totalorder %s147, %s148
    %p157 = scmp.eq.s32.totalorder %s32, 0
    %p158 = por %p156, %p157
    %p159 = scmp.ne.s32.totalorder %s147, %s148
    %p160 = scmp.eq.s32.totalorder %s33, 1
    %p161 = por %p159, %p160
    %p163 = scmp.ne.s32.totalorder %s148, %s162
    %p164 = scmp.eq.s32.totalorder %s33, 0
    %p165 = por %p163, %p164
    %s167 = sadd.s32 %s166, 1
    %p170 = scmp.eq.s32.totalorder %s27, 1
    %p171 = scmp.ne.s32.totalorder %s166, %s168
    %p172 = scmp.eq.s32.totalorder %s27, 0
    %p173 = por %p171, %p172
    %p174 = scmp.ne.s32.totalorder %s166, %s168
    %p175 = scmp.eq.s32.totalorder %s32, 1
    %p176 = por %p174, %p175
    %p177 = scmp.ne.s32.totalorder %s168, %s169
    %p178 = scmp.eq.s32.totalorder %s32, 0
    %p179 = por %p177, %p178
    %p180 = scmp.ne.s32.totalorder %s168, %s169
    %p181 = scmp.eq.s32.totalorder %s33, 1
    %p182 = por %p180, %p181
    %p184 = scmp.ne.s32.totalorder %s169, %s183
    %p185 = scmp.eq.s32.totalorder %s33, 0
    %p186 = por %p184, %p185
    %s188 = sadd.s32 %s187, 1
    %p191 = scmp.eq.s32.totalorder %s27, 1
    %p192 = scmp.ne.s32.totalorder %s187, %s189
    %p193 = scmp.eq.s32.totalorder %s27, 0
    %p194 = por %p192, %p193
    %p195 = scmp.ne.s32.totalorder %s187, %s189
    %p196 = scmp.eq.s32.totalorder %s32, 1
    %p197 = por %p195, %p196
    %p198 = scmp.ne.s32.totalorder %s189, %s190
    %p199 = scmp.eq.s32.totalorder %s32, 0
    %p200 = por %p198, %p199
    %p201 = scmp.ne.s32.totalorder %s189, %s190
    %p202 = scmp.eq.s32.totalorder %s33, 1
    %p203 = por %p201, %p202
    %p205 = scmp.ne.s32.totalorder %s190, %s204
    %p206 = scmp.eq.s32.totalorder %s33, 0
    %p207 = por %p205, %p206
    %s209 = sadd.s32 %s208, 1
    %p212 = scmp.eq.s32.totalorder %s27, 1
    %p213 = scmp.ne.s32.totalorder %s208, %s210
    %p214 = scmp.eq.s32.totalorder %s27, 0
    %p215 = por %p213, %p214
    %p216 = scmp.ne.s32.totalorder %s208, %s210
    %p217 = scmp.eq.s32.totalorder %s32, 1
    %p218 = por %p216, %p217
    %p219 = scmp.ne.s32.totalorder %s210, %s211
    %p220 = scmp.eq.s32.totalorder %s32, 0
    %p221 = por %p219, %p220
    %p222 = scmp.ne.s32.totalorder %s210, %s211
    %p223 = scmp.eq.s32.totalorder %s33, 1
    %p224 = por %p222, %p223
    %p226 = scmp.ne.s32.totalorder %s211, %s225
    %p227 = scmp.eq.s32.totalorder %s33, 0
    %p228 = por %p226, %p227
    %s230 = sadd.s32 %s229, 1
    %p233 = scmp.eq.s32.totalorder %s27, 1
    %p234 = scmp.ne.s32.totalorder %s229, %s231
    %p235 = scmp.eq.s32.totalorder %s27, 0
    %p236 = por %p234, %p235
    %p237 = scmp.ne.s32.totalorder %s229, %s231
    %p238 = scmp.eq.s32.totalorder %s32, 1
    %p239 = por %p237, %p238
    %p240 = scmp.ne.s32.totalorder %s231, %s232
    %p241 = scmp.eq.s32.totalorder %s32, 0
    %p242 = por %p240, %p241
    %p243 = scmp.ne.s32.totalorder %s231, %s232
    %p244 = scmp.eq.s32.totalorder %s33, 1
    %p245 = por %p243, %p244
    %p247 = scmp.ne.s32.totalorder %s232, %s246
    %p248 = scmp.eq.s32.totalorder %s33, 0
    %p249 = por %p247, %p248
    %s251 = sadd.s32 %s250, 1
    %p254 = scmp.eq.s32.totalorder %s27, 1
    %p255 = scmp.ne.s32.totalorder %s250, %s252
    %p256 = scmp.eq.s32.totalorder %s27, 0
    %p257 = por %p255, %p256
    %p258 = scmp.ne.s32.totalorder %s250, %s252
    %p259 = scmp.eq.s32.totalorder %s32, 1
    %p260 = por %p258, %p259
    %p261 = scmp.ne.s32.totalorder %s252, %s253
    %p262 = scmp.eq.s32.totalorder %s32, 0
    %p263 = por %p261, %p262
    %p264 = scmp.ne.s32.totalorder %s252, %s253
    %p265 = scmp.eq.s32.totalorder %s33, 1
    %p266 = por %p264, %p265
    %p268 = scmp.ne.s32.totalorder %s253, %s267
    %p269 = scmp.eq.s32.totalorder %s33, 0
    %p270 = por %p268, %p269
    %s272 = sadd.s32 %s271, 1
    %p275 = scmp.eq.s32.totalorder %s27, 1
    %p276 = scmp.ne.s32.totalorder %s271, %s273
    %p277 = scmp.eq.s32.totalorder %s27, 0
    %p278 = por %p276, %p277
    %p279 = scmp.ne.s32.totalorder %s271, %s273
    %p280 = scmp.eq.s32.totalorder %s32, 1
    %p281 = por %p279, %p280
    %p282 = scmp.ne.s32.totalorder %s273, %s274
    %p283 = scmp.eq.s32.totalorder %s32, 0
    %p284 = por %p282, %p283
    %p285 = scmp.ne.s32.totalorder %s273, %s274
    %p286 = scmp.eq.s32.totalorder %s33, 1
    %p287 = por %p285, %p286
    %p289 = scmp.ne.s32.totalorder %s274, %s288
    %p290 = scmp.eq.s32.totalorder %s33, 0
    %p291 = por %p289, %p290
    %s293 = sadd.s32 %s292, 1
    %p296 = scmp.eq.s32.totalorder %s27, 1
    %p297 = scmp.ne.s32.totalorder %s292, %s294
    %p298 = scmp.eq.s32.totalorder %s27, 0
    %p299 = por %p297, %p298
    %p300 = scmp.ne.s32.totalorder %s292, %s294
    %p301 = scmp.eq.s32.totalorder %s32, 1
    %p302 = por %p300, %p301
    %p303 = scmp.ne.s32.totalorder %s294, %s295
    %p304 = scmp.eq.s32.totalorder %s32, 0
    %p305 = por %p303, %p304
    %p306 = scmp.ne.s32.totalorder %s294, %s295
    %p307 = scmp.eq.s32.totalorder %s33, 1
    %p308 = por %p306, %p307
    %p310 = scmp.ne.s32.totalorder %s295, %s309
    %p311 = scmp.eq.s32.totalorder %s33, 0
    %p312 = por %p310, %p311
    %s314 = sadd.s32 %s313, 1
    %p317 = scmp.eq.s32.totalorder %s27, 1
    %p318 = scmp.ne.s32.totalorder %s313, %s315
    %p319 = scmp.eq.s32.totalorder %s27, 0
    %p320 = por %p318, %p319
    %p321 = scmp.ne.s32.totalorder %s313, %s315
    %p322 = scmp.eq.s32.totalorder %s32, 1
    %p323 = por %p321, %p322
    %p324 = scmp.ne.s32.totalorder %s315, %s316
    %p325 = scmp.eq.s32.totalorder %s32, 0
    %p326 = por %p324, %p325
    %p327 = scmp.ne.s32.totalorder %s315, %s316
    %p328 = scmp.eq.s32.totalorder %s33, 1
    %p329 = por %p327, %p328
    %p331 = scmp.ne.s32.totalorder %s316, %s330
    %p332 = scmp.eq.s32.totalorder %s33, 0
    %p333 = por %p331, %p332
    %s335 = sadd.s32 %s334, 1
    %p338 = scmp.eq.s32.totalorder %s27, 1
    %p339 = scmp.ne.s32.totalorder %s334, %s336
    %p340 = scmp.eq.s32.totalorder %s27, 0
    %p341 = por %p339, %p340
    %p342 = scmp.ne.s32.totalorder %s334, %s336
    %p343 = scmp.eq.s32.totalorder %s32, 1
    %p344 = por %p342, %p343
    %p345 = scmp.ne.s32.totalorder %s336, %s337
    %p346 = scmp.eq.s32.totalorder %s32, 0
    %p347 = por %p345, %p346
    %p348 = scmp.ne.s32.totalorder %s336, %s337
    %p349 = scmp.eq.s32.totalorder %s33, 1
    %p350 = por %p348, %p349
    %p352 = scmp.ne.s32.totalorder %s337, %s351
    %p353 = scmp.eq.s32.totalorder %s33, 0
    %p354 = por %p352, %p353
    %s356 = sadd.s32 %s355, 1
    %p359 = scmp.eq.s32.totalorder %s27, 1
    %p360 = scmp.ne.s32.totalorder %s355, %s357
    %p361 = scmp.eq.s32.totalorder %s27, 0
    %p362 = por %p360, %p361
    %p363 = scmp.ne.s32.totalorder %s355, %s357
    %p364 = scmp.eq.s32.totalorder %s32, 1
    %p365 = por %p363, %p364
    %p366 = scmp.ne.s32.totalorder %s357, %s358
    %p367 = scmp.eq.s32.totalorder %s32, 0
    %p368 = por %p366, %p367
    %p369 = scmp.ne.s32.totalorder %s357, %s358
    %p370 = scmp.eq.s32.totalorder %s33, 1
    %p371 = por %p369, %p370
    %p373 = scmp.ne.s32.totalorder %s358, %s372
    %p374 = scmp.eq.s32.totalorder %s33, 0
    %p375 = por %p373, %p374
    %s377 = sadd.s32 %s376, 1
    %p380 = scmp.eq.s32.totalorder %s27, 1
    %p381 = scmp.ne.s32.totalorder %s376, %s378
    %p382 = scmp.eq.s32.totalorder %s27, 0
    %p383 = por %p381, %p382
    %p384 = scmp.ne.s32.totalorder %s376, %s378
    %p385 = scmp.eq.s32.totalorder %s32, 1
    %p386 = por %p384, %p385
    %p387 = scmp.ne.s32.totalorder %s378, %s379
    %p388 = scmp.eq.s32.totalorder %s32, 0
    %p389 = por %p387, %p388
    %p390 = scmp.ne.s32.totalorder %s378, %s379
    %p391 = scmp.eq.s32.totalorder %s33, 1
    %p392 = por %p390, %p391
    %p394 = scmp.ne.s32.totalorder %s379, %s393
    %p395 = scmp.eq.s32.totalorder %s33, 0
    %p396 = por %p394, %p395
    %s398 = sadd.s32 %s397, 1
    %p401 = scmp.eq.s32.totalorder %s27, 1
    %p402 = scmp.ne.s32.totalorder %s397, %s399
    %p403 = scmp.eq.s32.totalorder %s27, 0
    %p404 = por %p402, %p403
    %p405 = scmp.ne.s32.totalorder %s397, %s399
    %p406 = scmp.eq.s32.totalorder %s32, 1
    %p407 = por %p405, %p406
    %p408 = scmp.ne.s32.totalorder %s399, %s400
    %p409 = scmp.eq.s32.totalorder %s32, 0
    %p410 = por %p408, %p409
    %p411 = scmp.ne.s32.totalorder %s399, %s400
    %p412 = scmp.eq.s32.totalorder %s33, 1
    %p413 = por %p411, %p412
    %p415 = scmp.ne.s32.totalorder %s400, %s414
    %p416 = scmp.eq.s32.totalorder %s33, 0
    %p417 = por %p415, %p416
    %s419 = sadd.s32 %s418, 1
    %p422 = scmp.eq.s32.totalorder %s27, 1
    %p423 = scmp.ne.s32.totalorder %s418, %s420
    %p424 = scmp.eq.s32.totalorder %s27, 0
    %p425 = por %p423, %p424
    %p426 = scmp.ne.s32.totalorder %s418, %s420
    %p427 = scmp.eq.s32.totalorder %s32, 1
    %p428 = por %p426, %p427
    %p429 = scmp.ne.s32.totalorder %s420, %s421
    %p430 = scmp.eq.s32.totalorder %s32, 0
    %p431 = por %p429, %p430
    %p432 = scmp.ne.s32.totalorder %s420, %s421
    %p433 = scmp.eq.s32.totalorder %s33, 1
    %p434 = por %p432, %p433
    %p436 = scmp.ne.s32.totalorder %s421, %s435
    %p437 = scmp.eq.s32.totalorder %s33, 0
    %p438 = por %p436, %p437
    %s440 = sadd.s32 %s439, 1
    %p443 = scmp.eq.s32.totalorder %s27, 1
    %p444 = scmp.ne.s32.totalorder %s439, %s441
    %p445 = scmp.eq.s32.totalorder %s27, 0
    %p446 = por %p444, %p445
    %p447 = scmp.ne.s32.totalorder %s439, %s441
    %p448 = scmp.eq.s32.totalorder %s32, 1
    %p449 = por %p447, %p448
    %p450 = scmp.ne.s32.totalorder %s441, %s442
    %p451 = scmp.eq.s32.totalorder %s32, 0
    %p452 = por %p450, %p451
    %p453 = scmp.ne.s32.totalorder %s441, %s442
    %p454 = scmp.eq.s32.totalorder %s33, 1
    %p455 = por %p453, %p454
    %p457 = scmp.ne.s32.totalorder %s442, %s456
    %p458 = scmp.eq.s32.totalorder %s33, 0
    %p459 = por %p457, %p458
    %s461 = sadd.s32 %s460, 1
    %p464 = scmp.eq.s32.totalorder %s27, 1
    %p465 = scmp.ne.s32.totalorder %s460, %s462
    %p466 = scmp.eq.s32.totalorder %s27, 0
    %p467 = por %p465, %p466
    %p468 = scmp.ne.s32.totalorder %s460, %s462
    %p469 = scmp.eq.s32.totalorder %s32, 1
    %p470 = por %p468, %p469
    %p471 = scmp.ne.s32.totalorder %s462, %s463
    %p472 = scmp.eq.s32.totalorder %s32, 0
    %p473 = por %p471, %p472
    %p474 = scmp.ne.s32.totalorder %s462, %s463
    %p475 = scmp.eq.s32.totalorder %s33, 1
    %p476 = por %p474, %p475
    %p478 = scmp.ne.s32.totalorder %s463, %s477
    %p479 = scmp.eq.s32.totalorder %s33, 0
    %p480 = por %p478, %p479
    %s481 = ssub.s32 %s27, %s34
    %p482 = scmp.eq.s32.totalorder %s481, 0
    %s484 = sadd.s32 %s483, 1
    %s485 = scalar_select %p482, %s483, %s484
    %p488 = pneg %p482
    %p489 = scmp.eq.s32.totalorder %s27, 1
    %p490 = por %p488, %p489
    %p491 = scmp.ne.s32.totalorder %s483, %s486
    %p492 = scmp.eq.s32.totalorder %s27, 0
    %p493 = por %p491, %p492
    %p494 = scmp.ne.s32.totalorder %s483, %s486
    %p495 = scmp.eq.s32.totalorder %s32, 1
    %p496 = por %p494, %p495
    %p497 = scmp.ne.s32.totalorder %s486, %s487
    %p498 = scmp.eq.s32.totalorder %s32, 0
    %p499 = por %p497, %p498
    %p500 = scmp.ne.s32.totalorder %s486, %s487
    %p501 = scmp.eq.s32.totalorder %s33, 1
    %p502 = por %p500, %p501
    %p504 = scmp.ne.s32.totalorder %s487, %s503
    %p505 = scmp.eq.s32.totalorder %s33, 0
    %p506 = por %p504, %p505
    %p507 = scmp.le.s32.totalorder 1, %s27
    %p508 = scmp.lt.s32.totalorder %s27, 3
    %p509 = pnand %p507, %p508
    %p510 = pneg %p509
    // Predicated region
    $region9: #{sparse_mlp_layer_forward.1} parent=5 // pred_check
      _
    $region10: #{sparse_mlp_layer_forward.1} parent=5 // pred_check_branch
      %512 = sbr.rel (%p509) target = $region12
    $region11: #{sparse_mlp_layer_forward.1} parent=5 // pred_region
      %s513 = ssub.s32 %s27, 1
      // Predicated region
      $region13: #{sparse_mlp_layer_forward.1} parent=11 // pred_check
        %p514 = pneg %p74
      $region14: #{sparse_mlp_layer_forward.1} parent=11 // pred_check_branch
        %516 = sbr.rel (%p514) target = $region16
      $region15: #{sparse_mlp_layer_forward.1} parent=11 // pred_region
        _
      $region16: #{sparse_mlp_layer_forward.1} parent=11 // pred_fallthru
        _
      // Predicated region
      $region17: #{sparse_mlp_layer_forward.1} parent=11 // pred_check
        %p517 = pneg %p95
      $region18: #{sparse_mlp_layer_forward.1} parent=11 // pred_check_branch
        %519 = sbr.rel (%p517) target = $region20
      $region19: #{sparse_mlp_layer_forward.1} parent=11 // pred_region
        _
      $region20: #{sparse_mlp_layer_forward.1} parent=11 // pred_fallthru
        _
      // Predicated region
      $region21: #{sparse_mlp_layer_forward.1} parent=11 // pred_check
        %p520 = pneg %p116
      $region22: #{sparse_mlp_layer_forward.1} parent=11 // pred_check_branch
        %522 = sbr.rel (%p520) target = $region24
      $region23: #{sparse_mlp_layer_forward.1} parent=11 // pred_region
        _
      $region24: #{sparse_mlp_layer_forward.1} parent=11 // pred_fallthru
        _
      // Predicated region
      $region25: #{sparse_mlp_layer_forward.1} parent=11 // pred_check
        %p523 = pneg %p137
      $region26: #{sparse_mlp_layer_forward.1} parent=11 // pred_check_branch
        %525 = sbr.rel (%p523) target = $region28
      $region27: #{sparse_mlp_layer_forward.1} parent=11 // pred_region
        _
      $region28: #{sparse_mlp_layer_forward.1} parent=11 // pred_fallthru
        _
      // Predicated region
      $region29: #{sparse_mlp_layer_forward.1} parent=11 // pred_check
        %p526 = pneg %p158
      $region30: #{sparse_mlp_layer_forward.1} parent=11 // pred_check_branch
        %528 = sbr.rel (%p526) target = $region32
      $region31: #{sparse_mlp_layer_forward.1} parent=11 // pred_region
        _
      $region32: #{sparse_mlp_layer_forward.1} parent=11 // pred_fallthru
        _
      // Predicated region
      $region33: #{sparse_mlp_layer_forward.1} parent=11 // pred_check
        %p529 = pneg %p179
      $region34: #{sparse_mlp_layer_forward.1} parent=11 // pred_check_branch
        %531 = sbr.rel (%p529) target = $region36
      $region35: #{sparse_mlp_layer_forward.1} parent=11 // pred_region
        _
      $region36: #{sparse_mlp_layer_forward.1} parent=11 // pred_fallthru
        _
      // Predicated region
      $region37: #{sparse_mlp_layer_forward.1} parent=11 // pred_check
        %p532 = pneg %p200
      $region38: #{sparse_mlp_layer_forward.1} parent=11 // pred_check_branch
        %534 = sbr.rel (%p532) target = $region40
      $region39: #{sparse_mlp_layer_forward.1} parent=11 // pred_region
        _
      $region40: #{sparse_mlp_layer_forward.1} parent=11 // pred_fallthru
        _
      // Predicated region
      $region41: #{sparse_mlp_layer_forward.1} parent=11 // pred_check
        %p535 = pneg %p221
      $region42: #{sparse_mlp_layer_forward.1} parent=11 // pred_check_branch
        %537 = sbr.rel (%p535) target = $region44
      $region43: #{sparse_mlp_layer_forward.1} parent=11 // pred_region
        _
      $region44: #{sparse_mlp_layer_forward.1} parent=11 // pred_fallthru
        _
      // Predicated region
      $region45: #{sparse_mlp_layer_forward.1} parent=11 // pred_check
        %p538 = pneg %p242
      $region46: #{sparse_mlp_layer_forward.1} parent=11 // pred_check_branch
        %540 = sbr.rel (%p538) target = $region48
      $region47: #{sparse_mlp_layer_forward.1} parent=11 // pred_region
        _
      $region48: #{sparse_mlp_layer_forward.1} parent=11 // pred_fallthru
        _
      // Predicated region
      $region49: #{sparse_mlp_layer_forward.1} parent=11 // pred_check
        %p541 = pneg %p263
      $region50: #{sparse_mlp_layer_forward.1} parent=11 // pred_check_branch
        %543 = sbr.rel (%p541) target = $region52
      $region51: #{sparse_mlp_layer_forward.1} parent=11 // pred_region
        _
      $region52: #{sparse_mlp_layer_forward.1} parent=11 // pred_fallthru
        _
      // Predicated region
      $region53: #{sparse_mlp_layer_forward.1} parent=11 // pred_check
        %p544 = pneg %p284
      $region54: #{sparse_mlp_layer_forward.1} parent=11 // pred_check_branch
        %546 = sbr.rel (%p544) target = $region56
      $region55: #{sparse_mlp_layer_forward.1} parent=11 // pred_region
        _
      $region56: #{sparse_mlp_layer_forward.1} parent=11 // pred_fallthru
        _
      // Predicated region
      $region57: #{sparse_mlp_layer_forward.1} parent=11 // pred_check
        %p547 = pneg %p305
      $region58: #{sparse_mlp_layer_forward.1} parent=11 // pred_check_branch
        %549 = sbr.rel (%p547) target = $region60
      $region59: #{sparse_mlp_layer_forward.1} parent=11 // pred_region
        _
      $region60: #{sparse_mlp_layer_forward.1} parent=11 // pred_fallthru
        _
      // Predicated region
      $region61: #{sparse_mlp_layer_forward.1} parent=11 // pred_check
        %p550 = pneg %p326
      $region62: #{sparse_mlp_layer_forward.1} parent=11 // pred_check_branch
        %552 = sbr.rel (%p550) target = $region64
      $region63: #{sparse_mlp_layer_forward.1} parent=11 // pred_region
        _
      $region64: #{sparse_mlp_layer_forward.1} parent=11 // pred_fallthru
        _
      // Predicated region
      $region65: #{sparse_mlp_layer_forward.1} parent=11 // pred_check
        %p553 = pneg %p347
      $region66: #{sparse_mlp_layer_forward.1} parent=11 // pred_check_branch
        %555 = sbr.rel (%p553) target = $region68
      $region67: #{sparse_mlp_layer_forward.1} parent=11 // pred_region
        _
      $region68: #{sparse_mlp_layer_forward.1} parent=11 // pred_fallthru
        _
      // Predicated region
      $region69: #{sparse_mlp_layer_forward.1} parent=11 // pred_check
        %p556 = pneg %p368
      $region70: #{sparse_mlp_layer_forward.1} parent=11 // pred_check_branch
        %558 = sbr.rel (%p556) target = $region72
      $region71: #{sparse_mlp_layer_forward.1} parent=11 // pred_region
        _
      $region72: #{sparse_mlp_layer_forward.1} parent=11 // pred_fallthru
        _
      // Predicated region
      $region73: #{sparse_mlp_layer_forward.1} parent=11 // pred_check
        %p559 = pneg %p389
      $region74: #{sparse_mlp_layer_forward.1} parent=11 // pred_check_branch
        %561 = sbr.rel (%p559) target = $region76
      $region75: #{sparse_mlp_layer_forward.1} parent=11 // pred_region
        _
      $region76: #{sparse_mlp_layer_forward.1} parent=11 // pred_fallthru
        _
      // Predicated region
      $region77: #{sparse_mlp_layer_forward.1} parent=11 // pred_check
        %p562 = pneg %p410
      $region78: #{sparse_mlp_layer_forward.1} parent=11 // pred_check_branch
        %564 = sbr.rel (%p562) target = $region80
      $region79: #{sparse_mlp_layer_forward.1} parent=11 // pred_region
        _
      $region80: #{sparse_mlp_layer_forward.1} parent=11 // pred_fallthru
        _
      // Predicated region
      $region81: #{sparse_mlp_layer_forward.1} parent=11 // pred_check
        %p565 = pneg %p431
      $region82: #{sparse_mlp_layer_forward.1} parent=11 // pred_check_branch
        %567 = sbr.rel (%p565) target = $region84
      $region83: #{sparse_mlp_layer_forward.1} parent=11 // pred_region
        _
      $region84: #{sparse_mlp_layer_forward.1} parent=11 // pred_fallthru
        _
      // Predicated region
      $region85: #{sparse_mlp_layer_forward.1} parent=11 // pred_check
        %p568 = pneg %p452
      $region86: #{sparse_mlp_layer_forward.1} parent=11 // pred_check_branch
        %570 = sbr.rel (%p568) target = $region88
      $region87: #{sparse_mlp_layer_forward.1} parent=11 // pred_region
        _
      $region88: #{sparse_mlp_layer_forward.1} parent=11 // pred_fallthru
        _
      // Predicated region
      $region89: #{sparse_mlp_layer_forward.1} parent=11 // pred_check
        %p571 = pneg %p473
      $region90: #{sparse_mlp_layer_forward.1} parent=11 // pred_check_branch
        %573 = sbr.rel (%p571) target = $region92
      $region91: #{sparse_mlp_layer_forward.1} parent=11 // pred_region
        _
      $region92: #{sparse_mlp_layer_forward.1} parent=11 // pred_fallthru
        _
    $region12: #{sparse_mlp_layer_forward.1} parent=5 // pred_fallthru
      _
    %p574 = scmp.lt.s32.totalorder %s27, 2
    // Predicated region
    $region93: #{sparse_mlp_layer_forward.1} parent=5 // pred_check
      %p575 = pneg %p574
    $region94: #{sparse_mlp_layer_forward.1} parent=5 // pred_check_branch
      %577 = sbr.rel (%p575) target = $region96
    $region95: #{sparse_mlp_layer_forward.1} parent=5 // pred_region
      // Predicated region
      $region97: #{sparse_mlp_layer_forward.1} parent=95 // pred_check
        %p578 = pneg %p47
      $region98: #{sparse_mlp_layer_forward.1} parent=95 // pred_check_branch
        %580 = sbr.rel (%p578) target = $region100
      $region99: #{sparse_mlp_layer_forward.1} parent=95 // pred_region
        %p581 = scmp.lt.s32.totalorder %s27, 1
        %s582 = scalar_select %p581, %s27, 1
        %s583 = smul.addr %s582, 8
        %s584 = smul.addr %s583, 8
        %s585 = scalar_lea.vmem %s0, %s584
      $region100: #{sparse_mlp_layer_forward.1} parent=95 // pred_fallthru
        _
    $region96: #{sparse_mlp_layer_forward.1} parent=5 // pred_fallthru
      _
    %p586 = scmp.le.s32.totalorder 1, %s27
    %p587 = scmp.lt.s32.totalorder %s27, 3
    %p588 = pnand %p586, %p587
    %p589 = pneg %p588
    // Predicated region
    $region101: #{sparse_mlp_layer_forward.1} parent=5 // pred_check
      _
    $region102: #{sparse_mlp_layer_forward.1} parent=5 // pred_check_branch
      %591 = sbr.rel (%p588) target = $region104
    $region103: #{sparse_mlp_layer_forward.1} parent=5 // pred_region
      %s592 = ssub.s32 %s27, 1
      %p593 = scmp.lt.s32.totalorder %s32, 1
      %s594 = scalar_select %p593, %s32, 1
      %s595 = smul.addr %s594, 8
      %s596 = smul.addr %s595, 8
      %s597 = scalar_lea.vmem %s0, %s596
      %p598 = pneg %p53
      %p599 = pneg %p50
      %p600 = pneg %p74
      %p601 = pneg %p71
      %p602 = pneg %p95
      %p603 = pneg %p92
      %p604 = pneg %p116
      %p605 = pneg %p113
      %p606 = pneg %p137
      %p607 = pneg %p134
      %p608 = pneg %p158
      %p609 = pneg %p155
      %p610 = pneg %p179
      %p611 = pneg %p176
      %p612 = pneg %p200
      %p613 = pneg %p197
      %p614 = pneg %p221
      %p615 = pneg %p218
      %p616 = pneg %p242
      %p617 = pneg %p239
      %p618 = pneg %p263
      %p619 = pneg %p260
      %p620 = pneg %p284
      %p621 = pneg %p281
      %p622 = pneg %p305
      %p623 = pneg %p302
      %p624 = pneg %p326
      %p625 = pneg %p323
      %p626 = pneg %p347
      %p627 = pneg %p344
      %p628 = pneg %p368
      %p629 = pneg %p365
      %p630 = pneg %p389
      %p631 = pneg %p386
      %p632 = pneg %p410
      %p633 = pneg %p407
      %p634 = pneg %p431
      %p635 = pneg %p428
      %p636 = pneg %p452
      %p637 = pneg %p449
      %p638 = pneg %p473
      %p639 = pneg %p470
      %p640 = pneg %p499
      %p641 = pneg %p496
      %p642 = scmp.lt.s32.totalorder %s32, 1
      %s643 = scalar_select %p642, %s32, 1
      %s644 = smul.addr %s643, 8
      %s645 = smul.addr %s644, 8
      %s646 = scalar_lea.vmem %s21, %s645
      %p647 = scmp.lt.s32.totalorder %s32, 1
      %s648 = scalar_select %p647, %s32, 1
      %s649 = smul.addr %s648, 8
      %s650 = smul.addr %s649, 8
      %s651 = scalar_lea.vmem %s0, %s650
      %p652 = scmp.lt.s32.totalorder %s32, 1
      %s653 = scalar_select %p652, %s32, 1
      %s654 = smul.addr %s653, 8
      %s655 = smul.addr %s654, 8
      %s656 = scalar_lea.vmem %s21, %s655
      %v657 = vld [vmem:[%s651] sm:$0xff]
      %v658 = vld [vmem:[%s651 + $0x8] sm:$0xff]
      %v659 = vld [vmem:[%s651 + $0x10] sm:$0xff]
      %v660 = vld [vmem:[%s651 + $0x18] sm:$0xff]
      %v661 = vld [vmem:[%s651 + $0x20] sm:$0xff]
      %v662 = vld [vmem:[%s651 + $0x28] sm:$0xff]
      %v663 = vld [vmem:[%s651 + $0x30] sm:$0xff]
      %v664 = vld [vmem:[%s651 + $0x38] sm:$0xff]
      %665 = vst [vmem:[#allocation2] sm:$0xff] 0.0
      %666 = vst [vmem:[#allocation2 + $0x8] sm:$0x3] 0.0
      %667 = vst [vmem:[#allocation2 + $0x10] sm:$0xff] 0.0
      %668 = vst [vmem:[#allocation2 + $0x18] sm:$0x3] 0.0
      %669 = vst [vmem:[#allocation2 + $0x20] sm:$0xff] 0.0
      %670 = vst [vmem:[#allocation2 + $0x28] sm:$0x3] 0.0
      %671 = vst [vmem:[#allocation2 + $0x30] sm:$0xff] 0.0
      %672 = vst [vmem:[#allocation2 + $0x38] sm:$0x3] 0.0
      %673 = vst [vmem:[#allocation2 + $0x40] sm:$0xff] 0.0
      %674 = vst [vmem:[#allocation2 + $0x48] sm:$0x3] 0.0
      %675 = vst [vmem:[#allocation2 + $0x50] sm:$0xff] 0.0
      %676 = vst [vmem:[#allocation2 + $0x58] sm:$0x3] 0.0
      %677 = vst [vmem:[#allocation2 + $0x60] sm:$0xff] 0.0
      %678 = vst [vmem:[#allocation2 + $0x68] sm:$0x3] 0.0
      %679 = vst [vmem:[#allocation2 + $0x70] sm:$0xff] 0.0
      %680 = vst [vmem:[#allocation2 + $0x78] sm:$0x3] 0.0
      %681 = vst [vmem:[#allocation2 + $0x80] sm:$0xff] 0.0
      %682 = vst [vmem:[#allocation2 + $0x88] sm:$0x3] 0.0
      %683 = vst [vmem:[#allocation2 + $0x90] sm:$0xff] 0.0
      %684 = vst [vmem:[#allocation2 + $0x98] sm:$0x3] 0.0
      %685 = vst [vmem:[#allocation3] sm:$0xff] 0.0
      %686 = vst [vmem:[#allocation3 + $0x8] sm:$0x3] 0.0
      %687 = vst [vmem:[#allocation3 + $0x10] sm:$0xff] 0.0
      %688 = vst [vmem:[#allocation3 + $0x18] sm:$0x3] 0.0
      %689 = vst [vmem:[#allocation3 + $0x20] sm:$0xff] 0.0
      %690 = vst [vmem:[#allocation3 + $0x28] sm:$0x3] 0.0
      %691 = vst [vmem:[#allocation3 + $0x30] sm:$0xff] 0.0
      %692 = vst [vmem:[#allocation3 + $0x38] sm:$0x3] 0.0
      %693 = vst [vmem:[#allocation3 + $0x40] sm:$0xff] 0.0
      %694 = vst [vmem:[#allocation3 + $0x48] sm:$0x3] 0.0
      %695 = vst [vmem:[#allocation3 + $0x50] sm:$0xff] 0.0
      %696 = vst [vmem:[#allocation3 + $0x58] sm:$0x3] 0.0
      %697 = vst [vmem:[#allocation3 + $0x60] sm:$0xff] 0.0
      %698 = vst [vmem:[#allocation3 + $0x68] sm:$0x3] 0.0
      %699 = vst [vmem:[#allocation3 + $0x70] sm:$0xff] 0.0
      %700 = vst [vmem:[#allocation3 + $0x78] sm:$0x3] 0.0
      %701 = vst [vmem:[#allocation3 + $0x80] sm:$0xff] 0.0
      %702 = vst [vmem:[#allocation3 + $0x88] sm:$0x3] 0.0
      %703 = vst [vmem:[#allocation3 + $0x90] sm:$0xff] 0.0
      %704 = vst [vmem:[#allocation3 + $0x98] sm:$0x3] 0.0
      %705 = vst [vmem:[#allocation4] sm:$0xff] 0.0
      %706 = vst [vmem:[#allocation4 + $0x8] sm:$0x3] 0.0
      %707 = vst [vmem:[#allocation4 + $0x10] sm:$0xff] 0.0
      %708 = vst [vmem:[#allocation4 + $0x18] sm:$0x3] 0.0
      %709 = vst [vmem:[#allocation4 + $0x20] sm:$0xff] 0.0
      %710 = vst [vmem:[#allocation4 + $0x28] sm:$0x3] 0.0
      %711 = vst [vmem:[#allocation4 + $0x30] sm:$0xff] 0.0
      %712 = vst [vmem:[#allocation4 + $0x38] sm:$0x3] 0.0
      %713 = vst [vmem:[#allocation4 + $0x40] sm:$0xff] 0.0
      %714 = vst [vmem:[#allocation4 + $0x48] sm:$0x3] 0.0
      %715 = vst [vmem:[#allocation4 + $0x50] sm:$0xff] 0.0
      %716 = vst [vmem:[#allocation4 + $0x58] sm:$0x3] 0.0
      %717 = vst [vmem:[#allocation4 + $0x60] sm:$0xff] 0.0
      %718 = vst [vmem:[#allocation4 + $0x68] sm:$0x3] 0.0
      %719 = vst [vmem:[#allocation4 + $0x70] sm:$0xff] 0.0
      %720 = vst [vmem:[#allocation4 + $0x78] sm:$0x3] 0.0
      %721 = vst [vmem:[#allocation4 + $0x80] sm:$0xff] 0.0
      %722 = vst [vmem:[#allocation4 + $0x88] sm:$0x3] 0.0
      %723 = vst [vmem:[#allocation4 + $0x90] sm:$0xff] 0.0
      %724 = vst [vmem:[#allocation4 + $0x98] sm:$0x3] 0.0
      %s725 = scalar_lea.vmem [#allocation2], 16
      %726 = vst [vmem:[%s725 + $0x1] sm:$0xff] %v657
      %727 = vst [vmem:[%s725 + $0x11] sm:$0xff] %v658
      %728 = vst [vmem:[%s725 + $0x21] sm:$0xff] %v659
      %729 = vst [vmem:[%s725 + $0x31] sm:$0xff] %v660
      %730 = vst [vmem:[%s725 + $0x41] sm:$0xff] %v661
      %731 = vst [vmem:[%s725 + $0x51] sm:$0xff] %v662
      %732 = vst [vmem:[%s725 + $0x61] sm:$0xff] %v663
      %733 = vst [vmem:[%s725 + $0x71] sm:$0xff] %v664
      %v734 = vld [vmem:[%s3] sm:$0xff]
      %v735 = vld [vmem:[%s3 + $0x8] sm:$0xff]
      %v736 = vld [vmem:[%s3 + $0x10] sm:$0xff]
      %v737 = vld [vmem:[%s3 + $0x18] sm:$0xff]
      %v738 = vld [vmem:[%s3 + $0x20] sm:$0xff]
      %v739 = vld [vmem:[%s3 + $0x28] sm:$0xff]
      %v740 = vld [vmem:[%s3 + $0x30] sm:$0xff]
      %v741 = vld [vmem:[%s3 + $0x38] sm:$0xff]
      %v742 = vld [vmem:[%s3 + $0x40] sm:$0xff]
      %v743 = vld [vmem:[%s3 + $0x48] sm:$0xff]
      %v744 = vld [vmem:[%s3 + $0x50] sm:$0xff]
      %v745 = vld [vmem:[%s3 + $0x58] sm:$0xff]
      %v746 = vld [vmem:[%s3 + $0x60] sm:$0xff]
      %v747 = vld [vmem:[%s3 + $0x68] sm:$0xff]
      %v748 = vld [vmem:[%s3 + $0x70] sm:$0xff]
      %v749 = vld [vmem:[%s3 + $0x78] sm:$0xff]
      %v750 = vand.u32 %v749, 4294901760
      %751 = vmatpush.msra.mxu0 %v750
      %v752 = vand.u32 %v748, 4294901760
      %753 = vmatpush.msra.mxu0 %v752
      %v754 = vand.u32 %v747, 4294901760
      %755 = vmatpush.msra.mxu0 %v754
      %v756 = vand.u32 %v746, 4294901760
      %757 = vmatpush.msra.mxu0 %v756
      %v758 = vand.u32 %v745, 4294901760
      %759 = vmatpush.msra.mxu0 %v758
      %v760 = vand.u32 %v744, 4294901760
      %761 = vmatpush.msra.mxu0 %v760
      %v762 = vand.u32 %v743, 4294901760
      %763 = vmatpush.msra.mxu0 %v762
      %v764 = vand.u32 %v742, 4294901760
      %765 = vmatpush.msra.mxu0 %v764
      %v766 = vand.u32 %v741, 4294901760
      %767 = vmatpush.msra.mxu0 %v766
      %v768 = vand.u32 %v740, 4294901760
      %769 = vmatpush.msra.mxu0 %v768
      %v770 = vand.u32 %v739, 4294901760
      %771 = vmatpush.msra.mxu0 %v770
      %v772 = vand.u32 %v738, 4294901760
      %773 = vmatpush.msra.mxu0 %v772
      %v774 = vand.u32 %v737, 4294901760
      %775 = vmatpush.msra.mxu0 %v774
      %v776 = vand.u32 %v736, 4294901760
      %777 = vmatpush.msra.mxu0 %v776
      %v778 = vand.u32 %v735, 4294901760
      %779 = vmatpush.msra.mxu0 %v778
      %v780 = vand.u32 %v734, 4294901760
      %781 = vmatpush.msra.mxu0 %v780
      %v782 = vand.u32 %v657, 4294901760
      %v783 = vsub.f32 %v657, %v782
      %v784 = vand.u32 %v783, 4294901760
      %v785 = vsub.f32 %v783, %v784
      %v786 = vand.u32 %v785, 4294901760
      %787 = vmatmul.f32.gmra.mxu0 %v786
      %v788 = vpop.f32.mrf.mxu0
      %v789 = vadd.f32 0.0, %v788
      %v790 = vand.u32 %v658, 4294901760
      %v791 = vsub.f32 %v658, %v790
      %v792 = vand.u32 %v791, 4294901760
      %v793 = vsub.f32 %v791, %v792
      %v794 = vand.u32 %v793, 4294901760
      %795 = vmatmul.f32.gmra.mxu0 %v794
      %v796 = vpop.f32.mrf.mxu0
      %v797 = vadd.f32 0.0, %v796
      %v798 = vand.u32 %v659, 4294901760
      %v799 = vsub.f32 %v659, %v798
      %v800 = vand.u32 %v799, 4294901760
      %v801 = vsub.f32 %v799, %v800
      %v802 = vand.u32 %v801, 4294901760
      %803 = vmatmul.f32.gmra.mxu0 %v802
      %v804 = vpop.f32.mrf.mxu0
      %v805 = vadd.f32 0.0, %v804
      %v806 = vand.u32 %v660, 4294901760
      %v807 = vsub.f32 %v660, %v806
      %v808 = vand.u32 %v807, 4294901760
      %v809 = vsub.f32 %v807, %v808
      %v810 = vand.u32 %v809, 4294901760
      %811 = vmatmul.f32.gmra.mxu0 %v810
      %v812 = vpop.f32.mrf.mxu0
      %v813 = vadd.f32 0.0, %v812
      %v814 = vand.u32 %v661, 4294901760
      %v815 = vsub.f32 %v661, %v814
      %v816 = vand.u32 %v815, 4294901760
      %v817 = vsub.f32 %v815, %v816
      %v818 = vand.u32 %v817, 4294901760
      %819 = vmatmul.f32.gmra.mxu0 %v818
      %v820 = vpop.f32.mrf.mxu0
      %v821 = vadd.f32 0.0, %v820
      %v822 = vand.u32 %v662, 4294901760
      %v823 = vsub.f32 %v662, %v822
      %v824 = vand.u32 %v823, 4294901760
      %v825 = vsub.f32 %v823, %v824
      %v826 = vand.u32 %v825, 4294901760
      %827 = vmatmul.f32.gmra.mxu0 %v826
      %v828 = vpop.f32.mrf.mxu0
      %v829 = vadd.f32 0.0, %v828
      %v830 = vand.u32 %v663, 4294901760
      %v831 = vsub.f32 %v663, %v830
      %v832 = vand.u32 %v831, 4294901760
      %v833 = vsub.f32 %v831, %v832
      %v834 = vand.u32 %v833, 4294901760
      %835 = vmatmul.f32.gmra.mxu0 %v834
      %v836 = vpop.f32.mrf.mxu0
      %v837 = vadd.f32 0.0, %v836
      %v838 = vand.u32 %v664, 4294901760
      %v839 = vsub.f32 %v664, %v838
      %v840 = vand.u32 %v839, 4294901760
      %v841 = vsub.f32 %v839, %v840
      %v842 = vand.u32 %v841, 4294901760
      %843 = vmatmul.f32.gmra.mxu0 %v842
      %v844 = vpop.f32.mrf.mxu0
      %v845 = vadd.f32 0.0, %v844
      %846 = vdwg.mxu0
      %v847 = vand.u32 %v749, 4294901760
      %v848 = vsub.f32 %v749, %v847
      %v849 = vand.u32 %v848, 4294901760
      %v850 = vsub.f32 %v848, %v849
      %v851 = vand.u32 %v850, 4294901760
      %852 = vmatpush.msra.mxu0 %v851
      %v853 = vand.u32 %v748, 4294901760
      %v854 = vsub.f32 %v748, %v853
      %v855 = vand.u32 %v854, 4294901760
      %v856 = vsub.f32 %v854, %v855
      %v857 = vand.u32 %v856, 4294901760
      %858 = vmatpush.msra.mxu0 %v857
      %v859 = vand.u32 %v747, 4294901760
      %v860 = vsub.f32 %v747, %v859
      %v861 = vand.u32 %v860, 4294901760
      %v862 = vsub.f32 %v860, %v861
      %v863 = vand.u32 %v862, 4294901760
      %864 = vmatpush.msra.mxu0 %v863
      %v865 = vand.u32 %v746, 4294901760
      %v866 = vsub.f32 %v746, %v865
      %v867 = vand.u32 %v866, 4294901760
      %v868 = vsub.f32 %v866, %v867
      %v869 = vand.u32 %v868, 4294901760
      %870 = vmatpush.msra.mxu0 %v869
      %v871 = vand.u32 %v745, 4294901760
      %v872 = vsub.f32 %v745, %v871
      %v873 = vand.u32 %v872, 4294901760
      %v874 = vsub.f32 %v872, %v873
      %v875 = vand.u32 %v874, 4294901760
      %876 = vmatpush.msra.mxu0 %v875
      %v877 = vand.u32 %v744, 4294901760
      %v878 = vsub.f32 %v744, %v877
      %v879 = vand.u32 %v878, 4294901760
      %v880 = vsub.f32 %v878, %v879
      %v881 = vand.u32 %v880, 4294901760
      %882 = vmatpush.msra.mxu0 %v881
      %v883 = vand.u32 %v743, 4294901760
      %v884 = vsub.f32 %v743, %v883
      %v885 = vand.u32 %v884, 4294901760
      %v886 = vsub.f32 %v884, %v885
      %v887 = vand.u32 %v886, 4294901760
      %888 = vmatpush.msra.mxu0 %v887
      %v889 = vand.u32 %v742, 4294901760
      %v890 = vsub.f32 %v742, %v889
      %v891 = vand.u32 %v890, 4294901760
      %v892 = vsub.f32 %v890, %v891
      %v893 = vand.u32 %v892, 4294901760
      %894 = vmatpush.msra.mxu0 %v893
      %v895 = vand.u32 %v741, 4294901760
      %v896 = vsub.f32 %v741, %v895
      %v897 = vand.u32 %v896, 4294901760
      %v898 = vsub.f32 %v896, %v897
      %v899 = vand.u32 %v898, 4294901760
      %900 = vmatpush.msra.mxu0 %v899
      %v901 = vand.u32 %v740, 4294901760
      %v902 = vsub.f32 %v740, %v901
      %v903 = vand.u32 %v902, 4294901760
      %v904 = vsub.f32 %v902, %v903
      %v905 = vand.u32 %v904, 4294901760
      %906 = vmatpush.msra.mxu0 %v905
      %v907 = vand.u32 %v739, 4294901760
      %v908 = vsub.f32 %v739, %v907
      %v909 = vand.u32 %v908, 4294901760
      %v910 = vsub.f32 %v908, %v909
      %v911 = vand.u32 %v910, 4294901760
      %912 = vmatpush.msra.mxu0 %v911
      %v913 = vand.u32 %v738, 4294901760
      %v914 = vsub.f32 %v738, %v913
      %v915 = vand.u32 %v914, 4294901760
      %v916 = vsub.f32 %v914, %v915
      %v917 = vand.u32 %v916, 4294901760
      %918 = vmatpush.msra.mxu0 %v917
      %v919 = vand.u32 %v737, 4294901760
      %v920 = vsub.f32 %v737, %v919
      %v921 = vand.u32 %v920, 4294901760
      %v922 = vsub.f32 %v920, %v921
      %v923 = vand.u32 %v922, 4294901760
      %924 = vmatpush.msra.mxu0 %v923
      %v925 = vand.u32 %v736, 4294901760
      %v926 = vsub.f32 %v736, %v925
      %v927 = vand.u32 %v926, 4294901760
      %v928 = vsub.f32 %v926, %v927
      %v929 = vand.u32 %v928, 4294901760
      %930 = vmatpush.msra.mxu0 %v929
      %v931 = vand.u32 %v735, 4294901760
      %v932 = vsub.f32 %v735, %v931
      %v933 = vand.u32 %v932, 4294901760
      %v934 = vsub.f32 %v932, %v933
      %v935 = vand.u32 %v934, 4294901760
      %936 = vmatpush.msra.mxu0 %v935
      %v937 = vand.u32 %v734, 4294901760
      %v938 = vsub.f32 %v734, %v937
      %v939 = vand.u32 %v938, 4294901760
      %v940 = vsub.f32 %v938, %v939
      %v941 = vand.u32 %v940, 4294901760
      %942 = vmatpush.msra.mxu0 %v941
      %v943 = vand.u32 %v657, 4294901760
      %944 = vmatmul.f32.gmra.mxu0 %v943
      %v945 = vpop.f32.mrf.mxu0
      %v946 = vadd.f32 %v789, %v945
      %v947 = vand.u32 %v658, 4294901760
      %948 = vmatmul.f32.gmra.mxu0 %v947
      %v949 = vpop.f32.mrf.mxu0
      %v950 = vadd.f32 %v797, %v949
      %v951 = vand.u32 %v659, 4294901760
      %952 = vmatmul.f32.gmra.mxu0 %v951
      %v953 = vpop.f32.mrf.mxu0
      %v954 = vadd.f32 %v805, %v953
      %v955 = vand.u32 %v660, 4294901760
      %956 = vmatmul.f32.gmra.mxu0 %v955
      %v957 = vpop.f32.mrf.mxu0
      %v958 = vadd.f32 %v813, %v957
      %v959 = vand.u32 %v661, 4294901760
      %960 = vmatmul.f32.gmra.mxu0 %v959
      %v961 = vpop.f32.mrf.mxu0
      %v962 = vadd.f32 %v821, %v961
      %v963 = vand.u32 %v662, 4294901760
      %964 = vmatmul.f32.gmra.mxu0 %v963
      %v965 = vpop.f32.mrf.mxu0
      %v966 = vadd.f32 %v829, %v965
      %v967 = vand.u32 %v663, 4294901760
      %968 = vmatmul.f32.gmra.mxu0 %v967
      %v969 = vpop.f32.mrf.mxu0
      %v970 = vadd.f32 %v837, %v969
      %v971 = vand.u32 %v664, 4294901760
      %972 = vmatmul.f32.gmra.mxu0 %v971
      %v973 = vpop.f32.mrf.mxu0
      %v974 = vadd.f32 %v845, %v973
      %975 = vdwg.mxu0
      %v976 = vand.u32 %v749, 4294901760
      %v977 = vsub.f32 %v749, %v976
      %978 = vmatpush.msra.mxu0 %v977
      %v979 = vand.u32 %v748, 4294901760
      %v980 = vsub.f32 %v748, %v979
      %981 = vmatpush.msra.mxu0 %v980
      %v982 = vand.u32 %v747, 4294901760
      %v983 = vsub.f32 %v747, %v982
      %984 = vmatpush.msra.mxu0 %v983
      %v985 = vand.u32 %v746, 4294901760
      %v986 = vsub.f32 %v746, %v985
      %987 = vmatpush.msra.mxu0 %v986
      %v988 = vand.u32 %v745, 4294901760
      %v989 = vsub.f32 %v745, %v988
      %990 = vmatpush.msra.mxu0 %v989
      %v991 = vand.u32 %v744, 4294901760
      %v992 = vsub.f32 %v744, %v991
      %993 = vmatpush.msra.mxu0 %v992
      %v994 = vand.u32 %v743, 4294901760
      %v995 = vsub.f32 %v743, %v994
      %996 = vmatpush.msra.mxu0 %v995
      %v997 = vand.u32 %v742, 4294901760
      %v998 = vsub.f32 %v742, %v997
      %999 = vmatpush.msra.mxu0 %v998
      %v1000 = vand.u32 %v741, 4294901760
      %v1001 = vsub.f32 %v741, %v1000
      %1002 = vmatpush.msra.mxu0 %v1001
      %v1003 = vand.u32 %v740, 4294901760
      %v1004 = vsub.f32 %v740, %v1003
      %1005 = vmatpush.msra.mxu0 %v1004
      %v1006 = vand.u32 %v739, 4294901760
      %v1007 = vsub.f32 %v739, %v1006
      %1008 = vmatpush.msra.mxu0 %v1007
      %v1009 = vand.u32 %v738, 4294901760
      %v1010 = vsub.f32 %v738, %v1009
      %1011 = vmatpush.msra.mxu0 %v1010
      %v1012 = vand.u32 %v737, 4294901760
      %v1013 = vsub.f32 %v737, %v1012
      %1014 = vmatpush.msra.mxu0 %v1013
      %v1015 = vand.u32 %v736, 4294901760
      %v1016 = vsub.f32 %v736, %v1015
      %1017 = vmatpush.msra.mxu0 %v1016
      %v1018 = vand.u32 %v735, 4294901760
      %v1019 = vsub.f32 %v735, %v1018
      %1020 = vmatpush.msra.mxu0 %v1019
      %v1021 = vand.u32 %v734, 4294901760
      %v1022 = vsub.f32 %v734, %v1021
      %1023 = vmatpush.msra.mxu0 %v1022
      %v1024 = vand.u32 %v657, 4294901760
      %v1025 = vsub.f32 %v657, %v1024
      %1026 = vmatmul.f32.gmra.mxu0 %v1025
      %v1027 = vpop.f32.mrf.mxu0
      %v1028 = vadd.f32 %v946, %v1027
      %v1029 = vand.u32 %v658, 4294901760
      %v1030 = vsub.f32 %v658, %v1029
      %1031 = vmatmul.f32.gmra.mxu0 %v1030
      %v1032 = vpop.f32.mrf.mxu0
      %v1033 = vadd.f32 %v950, %v1032
      %v1034 = vand.u32 %v659, 4294901760
      %v1035 = vsub.f32 %v659, %v1034
      %1036 = vmatmul.f32.gmra.mxu0 %v1035
      %v1037 = vpop.f32.mrf.mxu0
      %v1038 = vadd.f32 %v954, %v1037
      %v1039 = vand.u32 %v660, 4294901760
      %v1040 = vsub.f32 %v660, %v1039
      %1041 = vmatmul.f32.gmra.mxu0 %v1040
      %v1042 = vpop.f32.mrf.mxu0
      %v1043 = vadd.f32 %v958, %v1042
      %v1044 = vand.u32 %v661, 4294901760
      %v1045 = vsub.f32 %v661, %v1044
      %1046 = vmatmul.f32.gmra.mxu0 %v1045
      %v1047 = vpop.f32.mrf.mxu0
      %v1048 = vadd.f32 %v962, %v1047
      %v1049 = vand.u32 %v662, 4294901760
      %v1050 = vsub.f32 %v662, %v1049
      %1051 = vmatmul.f32.gmra.mxu0 %v1050
      %v1052 = vpop.f32.mrf.mxu0
      %v1053 = vadd.f32 %v966, %v1052
      %v1054 = vand.u32 %v663, 4294901760
      %v1055 = vsub.f32 %v663, %v1054
      %1056 = vmatmul.f32.gmra.mxu0 %v1055
      %v1057 = vpop.f32.mrf.mxu0
      %v1058 = vadd.f32 %v970, %v1057
      %v1059 = vand.u32 %v664, 4294901760
      %v1060 = vsub.f32 %v664, %v1059
      %1061 = vmatmul.f32.gmra.mxu0 %v1060
      %v1062 = vpop.f32.mrf.mxu0
      %v1063 = vadd.f32 %v974, %v1062
      %1064 = vdwg.mxu0
      %v1065 = vand.u32 %v749, 4294901760
      %1066 = vmatpush.msra.mxu0 %v1065
      %v1067 = vand.u32 %v748, 4294901760
      %1068 = vmatpush.msra.mxu0 %v1067
      %v1069 = vand.u32 %v747, 4294901760
      %1070 = vmatpush.msra.mxu0 %v1069
      %v1071 = vand.u32 %v746, 4294901760
      %1072 = vmatpush.msra.mxu0 %v1071
      %v1073 = vand.u32 %v745, 4294901760
      %1074 = vmatpush.msra.mxu0 %v1073
      %v1075 = vand.u32 %v744, 4294901760
      %1076 = vmatpush.msra.mxu0 %v1075
      %v1077 = vand.u32 %v743, 4294901760
      %1078 = vmatpush.msra.mxu0 %v1077
      %v1079 = vand.u32 %v742, 4294901760
      %1080 = vmatpush.msra.mxu0 %v1079
      %v1081 = vand.u32 %v741, 4294901760
      %1082 = vmatpush.msra.mxu0 %v1081
      %v1083 = vand.u32 %v740, 4294901760
      %1084 = vmatpush.msra.mxu0 %v1083
      %v1085 = vand.u32 %v739, 4294901760
      %1086 = vmatpush.msra.mxu0 %v1085
      %v1087 = vand.u32 %v738, 4294901760
      %1088 = vmatpush.msra.mxu0 %v1087
      %v1089 = vand.u32 %v737, 4294901760
      %1090 = vmatpush.msra.mxu0 %v1089
      %v1091 = vand.u32 %v736, 4294901760
      %1092 = vmatpush.msra.mxu0 %v1091
      %v1093 = vand.u32 %v735, 4294901760
      %1094 = vmatpush.msra.mxu0 %v1093
      %v1095 = vand.u32 %v734, 4294901760
      %1096 = vmatpush.msra.mxu0 %v1095
      %v1097 = vand.u32 %v657, 4294901760
      %v1098 = vsub.f32 %v657, %v1097
      %v1099 = vand.u32 %v1098, 4294901760
      %1100 = vmatmul.f32.gmra.mxu0 %v1099
      %v1101 = vpop.f32.mrf.mxu0
      %v1102 = vadd.f32 %v1028, %v1101
      %v1103 = vand.u32 %v658, 4294901760
      %v1104 = vsub.f32 %v658, %v1103
      %v1105 = vand.u32 %v1104, 4294901760
      %1106 = vmatmul.f32.gmra.mxu0 %v1105
      %v1107 = vpop.f32.mrf.mxu0
      %v1108 = vadd.f32 %v1033, %v1107
      %v1109 = vand.u32 %v659, 4294901760
      %v1110 = vsub.f32 %v659, %v1109
      %v1111 = vand.u32 %v1110, 4294901760
      %1112 = vmatmul.f32.gmra.mxu0 %v1111
      %v1113 = vpop.f32.mrf.mxu0
      %v1114 = vadd.f32 %v1038, %v1113
      %v1115 = vand.u32 %v660, 4294901760
      %v1116 = vsub.f32 %v660, %v1115
      %v1117 = vand.u32 %v1116, 4294901760
      %1118 = vmatmul.f32.gmra.mxu0 %v1117
      %v1119 = vpop.f32.mrf.mxu0
      %v1120 = vadd.f32 %v1043, %v1119
      %v1121 = vand.u32 %v661, 4294901760
      %v1122 = vsub.f32 %v661, %v1121
      %v1123 = vand.u32 %v1122, 4294901760
      %1124 = vmatmul.f32.gmra.mxu0 %v1123
      %v1125 = vpop.f32.mrf.mxu0
      %v1126 = vadd.f32 %v1048, %v1125
      %v1127 = vand.u32 %v662, 4294901760
      %v1128 = vsub.f32 %v662, %v1127
      %v1129 = vand.u32 %v1128, 4294901760
      %1130 = vmatmul.f32.gmra.mxu0 %v1129
      %v1131 = vpop.f32.mrf.mxu0
      %v1132 = vadd.f32 %v1053, %v1131
      %v1133 = vand.u32 %v663, 4294901760
      %v1134 = vsub.f32 %v663, %v1133
      %v1135 = vand.u32 %v1134, 4294901760
      %1136 = vmatmul.f32.gmra.mxu0 %v1135
      %v1137 = vpop.f32.mrf.mxu0
      %v1138 = vadd.f32 %v1058, %v1137
      %v1139 = vand.u32 %v664, 4294901760
      %v1140 = vsub.f32 %v664, %v1139
      %v1141 = vand.u32 %v1140, 4294901760
      %1142 = vmatmul.f32.gmra.mxu0 %v1141
      %v1143 = vpop.f32.mrf.mxu0
      %v1144 = vadd.f32 %v1063, %v1143
      %1145 = vdwg.mxu0
      %v1146 = vand.u32 %v749, 4294901760
      %v1147 = vsub.f32 %v749, %v1146
      %v1148 = vand.u32 %v1147, 4294901760
      %1149 = vmatpush.msra.mxu0 %v1148
      %v1150 = vand.u32 %v748, 4294901760
      %v1151 = vsub.f32 %v748, %v1150
      %v1152 = vand.u32 %v1151, 4294901760
      %1153 = vmatpush.msra.mxu0 %v1152
      %v1154 = vand.u32 %v747, 4294901760
      %v1155 = vsub.f32 %v747, %v1154
      %v1156 = vand.u32 %v1155, 4294901760
      %1157 = vmatpush.msra.mxu0 %v1156
      %v1158 = vand.u32 %v746, 4294901760
      %v1159 = vsub.f32 %v746, %v1158
      %v1160 = vand.u32 %v1159, 4294901760
      %1161 = vmatpush.msra.mxu0 %v1160
      %v1162 = vand.u32 %v745, 4294901760
      %v1163 = vsub.f32 %v745, %v1162
      %v1164 = vand.u32 %v1163, 4294901760
      %1165 = vmatpush.msra.mxu0 %v1164
      %v1166 = vand.u32 %v744, 4294901760
      %v1167 = vsub.f32 %v744, %v1166
      %v1168 = vand.u32 %v1167, 4294901760
      %1169 = vmatpush.msra.mxu0 %v1168
      %v1170 = vand.u32 %v743, 4294901760
      %v1171 = vsub.f32 %v743, %v1170
      %v1172 = vand.u32 %v1171, 4294901760
      %1173 = vmatpush.msra.mxu0 %v1172
      %v1174 = vand.u32 %v742, 4294901760
      %v1175 = vsub.f32 %v742, %v1174
      %v1176 = vand.u32 %v1175, 4294901760
      %1177 = vmatpush.msra.mxu0 %v1176
      %v1178 = vand.u32 %v741, 4294901760
      %v1179 = vsub.f32 %v741, %v1178
      %v1180 = vand.u32 %v1179, 4294901760
      %1181 = vmatpush.msra.mxu0 %v1180
      %v1182 = vand.u32 %v740, 4294901760
      %v1183 = vsub.f32 %v740, %v1182
      %v1184 = vand.u32 %v1183, 4294901760
      %1185 = vmatpush.msra.mxu0 %v1184
      %v1186 = vand.u32 %v739, 4294901760
      %v1187 = vsub.f32 %v739, %v1186
      %v1188 = vand.u32 %v1187, 4294901760
      %1189 = vmatpush.msra.mxu0 %v1188
      %v1190 = vand.u32 %v738, 4294901760
      %v1191 = vsub.f32 %v738, %v1190
      %v1192 = vand.u32 %v1191, 4294901760
      %1193 = vmatpush.msra.mxu0 %v1192
      %v1194 = vand.u32 %v737, 4294901760
      %v1195 = vsub.f32 %v737, %v1194
      %v1196 = vand.u32 %v1195, 4294901760
      %1197 = vmatpush.msra.mxu0 %v1196
      %v1198 = vand.u32 %v736, 4294901760
      %v1199 = vsub.f32 %v736, %v1198
      %v1200 = vand.u32 %v1199, 4294901760
      %1201 = vmatpush.msra.mxu0 %v1200
      %v1202 = vand.u32 %v735, 4294901760
      %v1203 = vsub.f32 %v735, %v1202
      %v1204 = vand.u32 %v1203, 4294901760
      %1205 = vmatpush.msra.mxu0 %v1204
      %v1206 = vand.u32 %v734, 4294901760
      %v1207 = vsub.f32 %v734, %v1206
      %v1208 = vand.u32 %v1207, 4294901760
      %1209 = vmatpush.msra.mxu0 %v1208
      %v1210 = vand.u32 %v657, 4294901760
      %1211 = vmatmul.f32.gmra.mxu0 %v1210
      %v1212 = vpop.f32.mrf.mxu0
      %v1213 = vadd.f32 %v1102, %v1212
      %v1214 = vand.u32 %v658, 4294901760
      %1215 = vmatmul.f32.gmra.mxu0 %v1214
      %v1216 = vpop.f32.mrf.mxu0
      %v1217 = vadd.f32 %v1108, %v1216
      %v1218 = vand.u32 %v659, 4294901760
      %1219 = vmatmul.f32.gmra.mxu0 %v1218
      %v1220 = vpop.f32.mrf.mxu0
      %v1221 = vadd.f32 %v1114, %v1220
      %v1222 = vand.u32 %v660, 4294901760
      %1223 = vmatmul.f32.gmra.mxu0 %v1222
      %v1224 = vpop.f32.mrf.mxu0
      %v1225 = vadd.f32 %v1120, %v1224
      %v1226 = vand.u32 %v661, 4294901760
      %1227 = vmatmul.f32.gmra.mxu0 %v1226
      %v1228 = vpop.f32.mrf.mxu0
      %v1229 = vadd.f32 %v1126, %v1228
      %v1230 = vand.u32 %v662, 4294901760
      %1231 = vmatmul.f32.gmra.mxu0 %v1230
      %v1232 = vpop.f32.mrf.mxu0
      %v1233 = vadd.f32 %v1132, %v1232
      %v1234 = vand.u32 %v663, 4294901760
      %1235 = vmatmul.f32.gmra.mxu0 %v1234
      %v1236 = vpop.f32.mrf.mxu0
      %v1237 = vadd.f32 %v1138, %v1236
      %v1238 = vand.u32 %v664, 4294901760
      %1239 = vmatmul.f32.gmra.mxu0 %v1238
      %v1240 = vpop.f32.mrf.mxu0
      %v1241 = vadd.f32 %v1144, %v1240
      %1242 = vdwg.mxu0
      %v1243 = vand.u32 %v749, 4294901760
      %1244 = vmatpush.msra.mxu0 %v1243
      %v1245 = vand.u32 %v748, 4294901760
      %1246 = vmatpush.msra.mxu0 %v1245
      %v1247 = vand.u32 %v747, 4294901760
      %1248 = vmatpush.msra.mxu0 %v1247
      %v1249 = vand.u32 %v746, 4294901760
      %1250 = vmatpush.msra.mxu0 %v1249
      %v1251 = vand.u32 %v745, 4294901760
      %1252 = vmatpush.msra.mxu0 %v1251
      %v1253 = vand.u32 %v744, 4294901760
      %1254 = vmatpush.msra.mxu0 %v1253
      %v1255 = vand.u32 %v743, 4294901760
      %1256 = vmatpush.msra.mxu0 %v1255
      %v1257 = vand.u32 %v742, 4294901760
      %1258 = vmatpush.msra.mxu0 %v1257
      %v1259 = vand.u32 %v741, 4294901760
      %1260 = vmatpush.msra.mxu0 %v1259
      %v1261 = vand.u32 %v740, 4294901760
      %1262 = vmatpush.msra.mxu0 %v1261
      %v1263 = vand.u32 %v739, 4294901760
      %1264 = vmatpush.msra.mxu0 %v1263
      %v1265 = vand.u32 %v738, 4294901760
      %1266 = vmatpush.msra.mxu0 %v1265
      %v1267 = vand.u32 %v737, 4294901760
      %1268 = vmatpush.msra.mxu0 %v1267
      %v1269 = vand.u32 %v736, 4294901760
      %1270 = vmatpush.msra.mxu0 %v1269
      %v1271 = vand.u32 %v735, 4294901760
      %1272 = vmatpush.msra.mxu0 %v1271
      %v1273 = vand.u32 %v734, 4294901760
      %1274 = vmatpush.msra.mxu0 %v1273
      %v1275 = vand.u32 %v657, 4294901760
      %1276 = vmatmul.f32.gmra.mxu0 %v1275
      %v1277 = vpop.f32.mrf.mxu0
      %v1278 = vadd.f32 %v1213, %v1277
      %v1279 = vand.u32 %v658, 4294901760
      %1280 = vmatmul.f32.gmra.mxu0 %v1279
      %v1281 = vpop.f32.mrf.mxu0
      %v1282 = vadd.f32 %v1217, %v1281
      %v1283 = vand.u32 %v659, 4294901760
      %1284 = vmatmul.f32.gmra.mxu0 %v1283
      %v1285 = vpop.f32.mrf.mxu0
      %v1286 = vadd.f32 %v1221, %v1285
      %v1287 = vand.u32 %v660, 4294901760
      %1288 = vmatmul.f32.gmra.mxu0 %v1287
      %v1289 = vpop.f32.mrf.mxu0
      %v1290 = vadd.f32 %v1225, %v1289
      %v1291 = vand.u32 %v661, 4294901760
      %1292 = vmatmul.f32.gmra.mxu0 %v1291
      %v1293 = vpop.f32.mrf.mxu0
      %v1294 = vadd.f32 %v1229, %v1293
      %v1295 = vand.u32 %v662, 4294901760
      %1296 = vmatmul.f32.gmra.mxu0 %v1295
      %v1297 = vpop.f32.mrf.mxu0
      %v1298 = vadd.f32 %v1233, %v1297
      %v1299 = vand.u32 %v663, 4294901760
      %1300 = vmatmul.f32.gmra.mxu0 %v1299
      %v1301 = vpop.f32.mrf.mxu0
      %v1302 = vadd.f32 %v1237, %v1301
      %v1303 = vand.u32 %v664, 4294901760
      %1304 = vmatmul.f32.gmra.mxu0 %v1303
      %v1305 = vpop.f32.mrf.mxu0
      %v1306 = vadd.f32 %v1241, %v1305
      %1307 = vdwg.mxu0
      %s1308 = scalar_lea.vmem [#allocation3], 16
      %1309 = vst [vmem:[%s1308 + $0x1] sm:$0xff] %v1278
      %1310 = vst [vmem:[%s1308 + $0x11] sm:$0xff] %v1282
      %1311 = vst [vmem:[%s1308 + $0x21] sm:$0xff] %v1286
      %1312 = vst [vmem:[%s1308 + $0x31] sm:$0xff] %v1290
      %1313 = vst [vmem:[%s1308 + $0x41] sm:$0xff] %v1294
      %1314 = vst [vmem:[%s1308 + $0x51] sm:$0xff] %v1298
      %1315 = vst [vmem:[%s1308 + $0x61] sm:$0xff] %v1302
      %1316 = vst [vmem:[%s1308 + $0x71] sm:$0xff] %v1306
      %v1317 = vld [vmem:[%s4] sm:$0xff]
      %v1318 = vld [vmem:[%s4 + $0x8] sm:$0xff]
      %v1319 = vld [vmem:[%s4 + $0x10] sm:$0xff]
      %v1320 = vld [vmem:[%s4 + $0x18] sm:$0xff]
      %v1321 = vld [vmem:[%s4 + $0x20] sm:$0xff]
      %v1322 = vld [vmem:[%s4 + $0x28] sm:$0xff]
      %v1323 = vld [vmem:[%s4 + $0x30] sm:$0xff]
      %v1324 = vld [vmem:[%s4 + $0x38] sm:$0xff]
      %v1325 = vld [vmem:[%s4 + $0x40] sm:$0xff]
      %v1326 = vld [vmem:[%s4 + $0x48] sm:$0xff]
      %v1327 = vld [vmem:[%s4 + $0x50] sm:$0xff]
      %v1328 = vld [vmem:[%s4 + $0x58] sm:$0xff]
      %v1329 = vld [vmem:[%s4 + $0x60] sm:$0xff]
      %v1330 = vld [vmem:[%s4 + $0x68] sm:$0xff]
      %v1331 = vld [vmem:[%s4 + $0x70] sm:$0xff]
      %v1332 = vld [vmem:[%s4 + $0x78] sm:$0xff]
      %v1333 = vand.u32 %v1332, 4294901760
      %1334 = vmatpush.msra.mxu0 %v1333
      %v1335 = vand.u32 %v1331, 4294901760
      %1336 = vmatpush.msra.mxu0 %v1335
      %v1337 = vand.u32 %v1330, 4294901760
      %1338 = vmatpush.msra.mxu0 %v1337
      %v1339 = vand.u32 %v1329, 4294901760
      %1340 = vmatpush.msra.mxu0 %v1339
      %v1341 = vand.u32 %v1328, 4294901760
      %1342 = vmatpush.msra.mxu0 %v1341
      %v1343 = vand.u32 %v1327, 4294901760
      %1344 = vmatpush.msra.mxu0 %v1343
      %v1345 = vand.u32 %v1326, 4294901760
      %1346 = vmatpush.msra.mxu0 %v1345
      %v1347 = vand.u32 %v1325, 4294901760
      %1348 = vmatpush.msra.mxu0 %v1347
      %v1349 = vand.u32 %v1324, 4294901760
      %1350 = vmatpush.msra.mxu0 %v1349
      %v1351 = vand.u32 %v1323, 4294901760
      %1352 = vmatpush.msra.mxu0 %v1351
      %v1353 = vand.u32 %v1322, 4294901760
      %1354 = vmatpush.msra.mxu0 %v1353
      %v1355 = vand.u32 %v1321, 4294901760
      %1356 = vmatpush.msra.mxu0 %v1355
      %v1357 = vand.u32 %v1320, 4294901760
      %1358 = vmatpush.msra.mxu0 %v1357
      %v1359 = vand.u32 %v1319, 4294901760
      %1360 = vmatpush.msra.mxu0 %v1359
      %v1361 = vand.u32 %v1318, 4294901760
      %1362 = vmatpush.msra.mxu0 %v1361
      %v1363 = vand.u32 %v1317, 4294901760
      %1364 = vmatpush.msra.mxu0 %v1363
      %v1365 = vand.u32 %v657, 4294901760
      %v1366 = vsub.f32 %v657, %v1365
      %v1367 = vand.u32 %v1366, 4294901760
      %v1368 = vsub.f32 %v1366, %v1367
      %v1369 = vand.u32 %v1368, 4294901760
      %1370 = vmatmul.f32.gmra.mxu0 %v1369
      %v1371 = vpop.f32.mrf.mxu0
      %v1372 = vadd.f32 0.0, %v1371
      %v1373 = vand.u32 %v658, 4294901760
      %v1374 = vsub.f32 %v658, %v1373
      %v1375 = vand.u32 %v1374, 4294901760
      %v1376 = vsub.f32 %v1374, %v1375
      %v1377 = vand.u32 %v1376, 4294901760
      %1378 = vmatmul.f32.gmra.mxu0 %v1377
      %v1379 = vpop.f32.mrf.mxu0
      %v1380 = vadd.f32 0.0, %v1379
      %v1381 = vand.u32 %v659, 4294901760
      %v1382 = vsub.f32 %v659, %v1381
      %v1383 = vand.u32 %v1382, 4294901760
      %v1384 = vsub.f32 %v1382, %v1383
      %v1385 = vand.u32 %v1384, 4294901760
      %1386 = vmatmul.f32.gmra.mxu0 %v1385
      %v1387 = vpop.f32.mrf.mxu0
      %v1388 = vadd.f32 0.0, %v1387
      %v1389 = vand.u32 %v660, 4294901760
      %v1390 = vsub.f32 %v660, %v1389
      %v1391 = vand.u32 %v1390, 4294901760
      %v1392 = vsub.f32 %v1390, %v1391
      %v1393 = vand.u32 %v1392, 4294901760
      %1394 = vmatmul.f32.gmra.mxu0 %v1393
      %v1395 = vpop.f32.mrf.mxu0
      %v1396 = vadd.f32 0.0, %v1395
      %v1397 = vand.u32 %v661, 4294901760
      %v1398 = vsub.f32 %v661, %v1397
      %v1399 = vand.u32 %v1398, 4294901760
      %v1400 = vsub.f32 %v1398, %v1399
      %v1401 = vand.u32 %v1400, 4294901760
      %1402 = vmatmul.f32.gmra.mxu0 %v1401
      %v1403 = vpop.f32.mrf.mxu0
      %v1404 = vadd.f32 0.0, %v1403
      %v1405 = vand.u32 %v662, 4294901760
      %v1406 = vsub.f32 %v662, %v1405
      %v1407 = vand.u32 %v1406, 4294901760
      %v1408 = vsub.f32 %v1406, %v1407
      %v1409 = vand.u32 %v1408, 4294901760
      %1410 = vmatmul.f32.gmra.mxu0 %v1409
      %v1411 = vpop.f32.mrf.mxu0
      %v1412 = vadd.f32 0.0, %v1411
      %v1413 = vand.u32 %v663, 4294901760
      %v1414 = vsub.f32 %v663, %v1413
      %v1415 = vand.u32 %v1414, 4294901760
      %v1416 = vsub.f32 %v1414, %v1415
      %v1417 = vand.u32 %v1416, 4294901760
      %1418 = vmatmul.f32.gmra.mxu0 %v1417
      %v1419 = vpop.f32.mrf.mxu0
      %v1420 = vadd.f32 0.0, %v1419
      %v1421 = vand.u32 %v664, 4294901760
      %v1422 = vsub.f32 %v664, %v1421
      %v1423 = vand.u32 %v1422, 4294901760
      %v1424 = vsub.f32 %v1422, %v1423
      %v1425 = vand.u32 %v1424, 4294901760
      %1426 = vmatmul.f32.gmra.mxu0 %v1425
      %v1427 = vpop.f32.mrf.mxu0
      %v1428 = vadd.f32 0.0, %v1427
      %1429 = vdwg.mxu0
      %v1430 = vand.u32 %v1332, 4294901760
      %v1431 = vsub.f32 %v1332, %v1430
      %v1432 = vand.u32 %v1431, 4294901760
      %v1433 = vsub.f32 %v1431, %v1432
      %v1434 = vand.u32 %v1433, 4294901760
      %1435 = vmatpush.msra.mxu0 %v1434
      %v1436 = vand.u32 %v1331, 4294901760
      %v1437 = vsub.f32 %v1331, %v1436
      %v1438 = vand.u32 %v1437, 4294901760
      %v1439 = vsub.f32 %v1437, %v1438
      %v1440 = vand.u32 %v1439, 4294901760
      %1441 = vmatpush.msra.mxu0 %v1440
      %v1442 = vand.u32 %v1330, 4294901760
      %v1443 = vsub.f32 %v1330, %v1442
      %v1444 = vand.u32 %v1443, 4294901760
      %v1445 = vsub.f32 %v1443, %v1444
      %v1446 = vand.u32 %v1445, 4294901760
      %1447 = vmatpush.msra.mxu0 %v1446
      %v1448 = vand.u32 %v1329, 4294901760
      %v1449 = vsub.f32 %v1329, %v1448
      %v1450 = vand.u32 %v1449, 4294901760
      %v1451 = vsub.f32 %v1449, %v1450
      %v1452 = vand.u32 %v1451, 4294901760
      %1453 = vmatpush.msra.mxu0 %v1452
      %v1454 = vand.u32 %v1328, 4294901760
      %v1455 = vsub.f32 %v1328, %v1454
      %v1456 = vand.u32 %v1455, 4294901760
      %v1457 = vsub.f32 %v1455, %v1456
      %v1458 = vand.u32 %v1457, 4294901760
      %1459 = vmatpush.msra.mxu0 %v1458
      %v1460 = vand.u32 %v1327, 4294901760
      %v1461 = vsub.f32 %v1327, %v1460
      %v1462 = vand.u32 %v1461, 4294901760
      %v1463 = vsub.f32 %v1461, %v1462
      %v1464 = vand.u32 %v1463, 4294901760
      %1465 = vmatpush.msra.mxu0 %v1464
      %v1466 = vand.u32 %v1326, 4294901760
      %v1467 = vsub.f32 %v1326, %v1466
      %v1468 = vand.u32 %v1467, 4294901760
      %v1469 = vsub.f32 %v1467, %v1468
      %v1470 = vand.u32 %v1469, 4294901760
      %1471 = vmatpush.msra.mxu0 %v1470
      %v1472 = vand.u32 %v1325, 4294901760
      %v1473 = vsub.f32 %v1325, %v1472
      %v1474 = vand.u32 %v1473, 4294901760
      %v1475 = vsub.f32 %v1473, %v1474
      %v1476 = vand.u32 %v1475, 4294901760
      %1477 = vmatpush.msra.mxu0 %v1476
      %v1478 = vand.u32 %v1324, 4294901760
      %v1479 = vsub.f32 %v1324, %v1478
      %v1480 = vand.u32 %v1479, 4294901760
      %v1481 = vsub.f32 %v1479, %v1480
      %v1482 = vand.u32 %v1481, 4294901760
      %1483 = vmatpush.msra.mxu0 %v1482
      %v1484 = vand.u32 %v1323, 4294901760
      %v1485 = vsub.f32 %v1323, %v1484
      %v1486 = vand.u32 %v1485, 4294901760
      %v1487 = vsub.f32 %v1485, %v1486
      %v1488 = vand.u32 %v1487, 4294901760
      %1489 = vmatpush.msra.mxu0 %v1488
      %v1490 = vand.u32 %v1322, 4294901760
      %v1491 = vsub.f32 %v1322, %v1490
      %v1492 = vand.u32 %v1491, 4294901760
      %v1493 = vsub.f32 %v1491, %v1492
      %v1494 = vand.u32 %v1493, 4294901760
      %1495 = vmatpush.msra.mxu0 %v1494
      %v1496 = vand.u32 %v1321, 4294901760
      %v1497 = vsub.f32 %v1321, %v1496
      %v1498 = vand.u32 %v1497, 4294901760
      %v1499 = vsub.f32 %v1497, %v1498
      %v1500 = vand.u32 %v1499, 4294901760
      %1501 = vmatpush.msra.mxu0 %v1500
      %v1502 = vand.u32 %v1320, 4294901760
      %v1503 = vsub.f32 %v1320, %v1502
      %v1504 = vand.u32 %v1503, 4294901760
      %v1505 = vsub.f32 %v1503, %v1504
      %v1506 = vand.u32 %v1505, 4294901760
      %1507 = vmatpush.msra.mxu0 %v1506
      %v1508 = vand.u32 %v1319, 4294901760
      %v1509 = vsub.f32 %v1319, %v1508
      %v1510 = vand.u32 %v1509, 4294901760
      %v1511 = vsub.f32 %v1509, %v1510
      %v1512 = vand.u32 %v1511, 4294901760
      %1513 = vmatpush.msra.mxu0 %v1512
      %v1514 = vand.u32 %v1318, 4294901760
      %v1515 = vsub.f32 %v1318, %v1514
      %v1516 = vand.u32 %v1515, 4294901760
      %v1517 = vsub.f32 %v1515, %v1516
      %v1518 = vand.u32 %v1517, 4294901760
      %1519 = vmatpush.msra.mxu0 %v1518
      %v1520 = vand.u32 %v1317, 4294901760
      %v1521 = vsub.f32 %v1317, %v1520
      %v1522 = vand.u32 %v1521, 4294901760
      %v1523 = vsub.f32 %v1521, %v1522
      %v1524 = vand.u32 %v1523, 4294901760
      %1525 = vmatpush.msra.mxu0 %v1524
      %v1526 = vand.u32 %v657, 4294901760
      %1527 = vmatmul.f32.gmra.mxu0 %v1526
      %v1528 = vpop.f32.mrf.mxu0
      %v1529 = vadd.f32 %v1372, %v1528
      %v1530 = vand.u32 %v658, 4294901760
      %1531 = vmatmul.f32.gmra.mxu0 %v1530
      %v1532 = vpop.f32.mrf.mxu0
      %v1533 = vadd.f32 %v1380, %v1532
      %v1534 = vand.u32 %v659, 4294901760
      %1535 = vmatmul.f32.gmra.mxu0 %v1534
      %v1536 = vpop.f32.mrf.mxu0
      %v1537 = vadd.f32 %v1388, %v1536
      %v1538 = vand.u32 %v660, 4294901760
      %1539 = vmatmul.f32.gmra.mxu0 %v1538
      %v1540 = vpop.f32.mrf.mxu0
      %v1541 = vadd.f32 %v1396, %v1540
      %v1542 = vand.u32 %v661, 4294901760
      %1543 = vmatmul.f32.gmra.mxu0 %v1542
      %v1544 = vpop.f32.mrf.mxu0
      %v1545 = vadd.f32 %v1404, %v1544
      %v1546 = vand.u32 %v662, 4294901760
      %1547 = vmatmul.f32.gmra.mxu0 %v1546
      %v1548 = vpop.f32.mrf.mxu0
      %v1549 = vadd.f32 %v1412, %v1548
      %v1550 = vand.u32 %v663, 4294901760
      %1551 = vmatmul.f32.gmra.mxu0 %v1550
      %v1552 = vpop.f32.mrf.mxu0
      %v1553 = vadd.f32 %v1420, %v1552
      %v1554 = vand.u32 %v664, 4294901760
      %1555 = vmatmul.f32.gmra.mxu0 %v1554
      %v1556 = vpop.f32.mrf.mxu0
      %v1557 = vadd.f32 %v1428, %v1556
      %1558 = vdwg.mxu0
      %v1559 = vand.u32 %v1332, 4294901760
      %v1560 = vsub.f32 %v1332, %v1559
      %1561 = vmatpush.msra.mxu0 %v1560
      %v1562 = vand.u32 %v1331, 4294901760
      %v1563 = vsub.f32 %v1331, %v1562
      %1564 = vmatpush.msra.mxu0 %v1563
      %v1565 = vand.u32 %v1330, 4294901760
      %v1566 = vsub.f32 %v1330, %v1565
      %1567 = vmatpush.msra.mxu0 %v1566
      %v1568 = vand.u32 %v1329, 4294901760
      %v1569 = vsub.f32 %v1329, %v1568
      %1570 = vmatpush.msra.mxu0 %v1569
      %v1571 = vand.u32 %v1328, 4294901760
      %v1572 = vsub.f32 %v1328, %v1571
      %1573 = vmatpush.msra.mxu0 %v1572
      %v1574 = vand.u32 %v1327, 4294901760
      %v1575 = vsub.f32 %v1327, %v1574
      %1576 = vmatpush.msra.mxu0 %v1575
      %v1577 = vand.u32 %v1326, 4294901760
      %v1578 = vsub.f32 %v1326, %v1577
      %1579 = vmatpush.msra.mxu0 %v1578
      %v1580 = vand.u32 %v1325, 4294901760
      %v1581 = vsub.f32 %v1325, %v1580
      %1582 = vmatpush.msra.mxu0 %v1581
      %v1583 = vand.u32 %v1324, 4294901760
      %v1584 = vsub.f32 %v1324, %v1583
      %1585 = vmatpush.msra.mxu0 %v1584
      %v1586 = vand.u32 %v1323, 4294901760
      %v1587 = vsub.f32 %v1323, %v1586
      %1588 = vmatpush.msra.mxu0 %v1587
      %v1589 = vand.u32 %v1322, 4294901760
      %v1590 = vsub.f32 %v1322, %v1589
      %1591 = vmatpush.msra.mxu0 %v1590
      %v1592 = vand.u32 %v1321, 4294901760
      %v1593 = vsub.f32 %v1321, %v1592
      %1594 = vmatpush.msra.mxu0 %v1593
      %v1595 = vand.u32 %v1320, 4294901760
      %v1596 = vsub.f32 %v1320, %v1595
      %1597 = vmatpush.msra.mxu0 %v1596
      %v1598 = vand.u32 %v1319, 4294901760
      %v1599 = vsub.f32 %v1319, %v1598
      %1600 = vmatpush.msra.mxu0 %v1599
      %v1601 = vand.u32 %v1318, 4294901760
      %v1602 = vsub.f32 %v1318, %v1601
      %1603 = vmatpush.msra.mxu0 %v1602
      %v1604 = vand.u32 %v1317, 4294901760
      %v1605 = vsub.f32 %v1317, %v1604
      %1606 = vmatpush.msra.mxu0 %v1605
      %v1607 = vand.u32 %v657, 4294901760
      %v1608 = vsub.f32 %v657, %v1607
      %1609 = vmatmul.f32.gmra.mxu0 %v1608
      %v1610 = vpop.f32.mrf.mxu0
      %v1611 = vadd.f32 %v1529, %v1610
      %v1612 = vand.u32 %v658, 4294901760
      %v1613 = vsub.f32 %v658, %v1612
      %1614 = vmatmul.f32.gmra.mxu0 %v1613
      %v1615 = vpop.f32.mrf.mxu0
      %v1616 = vadd.f32 %v1533, %v1615
      %v1617 = vand.u32 %v659, 4294901760
      %v1618 = vsub.f32 %v659, %v1617
      %1619 = vmatmul.f32.gmra.mxu0 %v1618
      %v1620 = vpop.f32.mrf.mxu0
      %v1621 = vadd.f32 %v1537, %v1620
      %v1622 = vand.u32 %v660, 4294901760
      %v1623 = vsub.f32 %v660, %v1622
      %1624 = vmatmul.f32.gmra.mxu0 %v1623
      %v1625 = vpop.f32.mrf.mxu0
      %v1626 = vadd.f32 %v1541, %v1625
      %v1627 = vand.u32 %v661, 4294901760
      %v1628 = vsub.f32 %v661, %v1627
      %1629 = vmatmul.f32.gmra.mxu0 %v1628
      %v1630 = vpop.f32.mrf.mxu0
      %v1631 = vadd.f32 %v1545, %v1630
      %v1632 = vand.u32 %v662, 4294901760
      %v1633 = vsub.f32 %v662, %v1632
      %1634 = vmatmul.f32.gmra.mxu0 %v1633
      %v1635 = vpop.f32.mrf.mxu0
      %v1636 = vadd.f32 %v1549, %v1635
      %v1637 = vand.u32 %v663, 4294901760
      %v1638 = vsub.f32 %v663, %v1637
      %1639 = vmatmul.f32.gmra.mxu0 %v1638
      %v1640 = vpop.f32.mrf.mxu0
      %v1641 = vadd.f32 %v1553, %v1640
      %v1642 = vand.u32 %v664, 4294901760
      %v1643 = vsub.f32 %v664, %v1642
      %1644 = vmatmul.f32.gmra.mxu0 %v1643
      %v1645 = vpop.f32.mrf.mxu0
      %v1646 = vadd.f32 %v1557, %v1645
      %1647 = vdwg.mxu0
      %v1648 = vand.u32 %v1332, 4294901760
      %1649 = vmatpush.msra.mxu0 %v1648
      %v1650 = vand.u32 %v1331, 4294901760
      %1651 = vmatpush.msra.mxu0 %v1650
      %v1652 = vand.u32 %v1330, 4294901760
      %1653 = vmatpush.msra.mxu0 %v1652
      %v1654 = vand.u32 %v1329, 4294901760
      %1655 = vmatpush.msra.mxu0 %v1654
      %v1656 = vand.u32 %v1328, 4294901760
      %1657 = vmatpush.msra.mxu0 %v1656
      %v1658 = vand.u32 %v1327, 4294901760
      %1659 = vmatpush.msra.mxu0 %v1658
      %v1660 = vand.u32 %v1326, 4294901760
      %1661 = vmatpush.msra.mxu0 %v1660
      %v1662 = vand.u32 %v1325, 4294901760
      %1663 = vmatpush.msra.mxu0 %v1662
      %v1664 = vand.u32 %v1324, 4294901760
      %1665 = vmatpush.msra.mxu0 %v1664
      %v1666 = vand.u32 %v1323, 4294901760
      %1667 = vmatpush.msra.mxu0 %v1666
      %v1668 = vand.u32 %v1322, 4294901760
      %1669 = vmatpush.msra.mxu0 %v1668
      %v1670 = vand.u32 %v1321, 4294901760
      %1671 = vmatpush.msra.mxu0 %v1670
      %v1672 = vand.u32 %v1320, 4294901760
      %1673 = vmatpush.msra.mxu0 %v1672
      %v1674 = vand.u32 %v1319, 4294901760
      %1675 = vmatpush.msra.mxu0 %v1674
      %v1676 = vand.u32 %v1318, 4294901760
      %1677 = vmatpush.msra.mxu0 %v1676
      %v1678 = vand.u32 %v1317, 4294901760
      %1679 = vmatpush.msra.mxu0 %v1678
      %v1680 = vand.u32 %v657, 4294901760
      %v1681 = vsub.f32 %v657, %v1680
      %v1682 = vand.u32 %v1681, 4294901760
      %1683 = vmatmul.f32.gmra.mxu0 %v1682
      %v1684 = vpop.f32.mrf.mxu0
      %v1685 = vadd.f32 %v1611, %v1684
      %v1686 = vand.u32 %v658, 4294901760
      %v1687 = vsub.f32 %v658, %v1686
      %v1688 = vand.u32 %v1687, 4294901760
      %1689 = vmatmul.f32.gmra.mxu0 %v1688
      %v1690 = vpop.f32.mrf.mxu0
      %v1691 = vadd.f32 %v1616, %v1690
      %v1692 = vand.u32 %v659, 4294901760
      %v1693 = vsub.f32 %v659, %v1692
      %v1694 = vand.u32 %v1693, 4294901760
      %1695 = vmatmul.f32.gmra.mxu0 %v1694
      %v1696 = vpop.f32.mrf.mxu0
      %v1697 = vadd.f32 %v1621, %v1696
      %v1698 = vand.u32 %v660, 4294901760
      %v1699 = vsub.f32 %v660, %v1698
      %v1700 = vand.u32 %v1699, 4294901760
      %1701 = vmatmul.f32.gmra.mxu0 %v1700
      %v1702 = vpop.f32.mrf.mxu0
      %v1703 = vadd.f32 %v1626, %v1702
      %v1704 = vand.u32 %v661, 4294901760
      %v1705 = vsub.f32 %v661, %v1704
      %v1706 = vand.u32 %v1705, 4294901760
      %1707 = vmatmul.f32.gmra.mxu0 %v1706
      %v1708 = vpop.f32.mrf.mxu0
      %v1709 = vadd.f32 %v1631, %v1708
      %v1710 = vand.u32 %v662, 4294901760
      %v1711 = vsub.f32 %v662, %v1710
      %v1712 = vand.u32 %v1711, 4294901760
      %1713 = vmatmul.f32.gmra.mxu0 %v1712
      %v1714 = vpop.f32.mrf.mxu0
      %v1715 = vadd.f32 %v1636, %v1714
      %v1716 = vand.u32 %v663, 4294901760
      %v1717 = vsub.f32 %v663, %v1716
      %v1718 = vand.u32 %v1717, 4294901760
      %1719 = vmatmul.f32.gmra.mxu0 %v1718
      %v1720 = vpop.f32.mrf.mxu0
      %v1721 = vadd.f32 %v1641, %v1720
      %v1722 = vand.u32 %v664, 4294901760
      %v1723 = vsub.f32 %v664, %v1722
      %v1724 = vand.u32 %v1723, 4294901760
      %1725 = vmatmul.f32.gmra.mxu0 %v1724
      %v1726 = vpop.f32.mrf.mxu0
      %v1727 = vadd.f32 %v1646, %v1726
      %1728 = vdwg.mxu0
      %v1729 = vand.u32 %v1332, 4294901760
      %v1730 = vsub.f32 %v1332, %v1729
      %v1731 = vand.u32 %v1730, 4294901760
      %1732 = vmatpush.msra.mxu0 %v1731
      %v1733 = vand.u32 %v1331, 4294901760
      %v1734 = vsub.f32 %v1331, %v1733
      %v1735 = vand.u32 %v1734, 4294901760
      %1736 = vmatpush.msra.mxu0 %v1735
      %v1737 = vand.u32 %v1330, 4294901760
      %v1738 = vsub.f32 %v1330, %v1737
      %v1739 = vand.u32 %v1738, 4294901760
      %1740 = vmatpush.msra.mxu0 %v1739
      %v1741 = vand.u32 %v1329, 4294901760
      %v1742 = vsub.f32 %v1329, %v1741
      %v1743 = vand.u32 %v1742, 4294901760
      %1744 = vmatpush.msra.mxu0 %v1743
      %v1745 = vand.u32 %v1328, 4294901760
      %v1746 = vsub.f32 %v1328, %v1745
      %v1747 = vand.u32 %v1746, 4294901760
      %1748 = vmatpush.msra.mxu0 %v1747
      %v1749 = vand.u32 %v1327, 4294901760
      %v1750 = vsub.f32 %v1327, %v1749
      %v1751 = vand.u32 %v1750, 4294901760
      %1752 = vmatpush.msra.mxu0 %v1751
      %v1753 = vand.u32 %v1326, 4294901760
      %v1754 = vsub.f32 %v1326, %v1753
      %v1755 = vand.u32 %v1754, 4294901760
      %1756 = vmatpush.msra.mxu0 %v1755
      %v1757 = vand.u32 %v1325, 4294901760
      %v1758 = vsub.f32 %v1325, %v1757
      %v1759 = vand.u32 %v1758, 4294901760
      %1760 = vmatpush.msra.mxu0 %v1759
      %v1761 = vand.u32 %v1324, 4294901760
      %v1762 = vsub.f32 %v1324, %v1761
      %v1763 = vand.u32 %v1762, 4294901760
      %1764 = vmatpush.msra.mxu0 %v1763
      %v1765 = vand.u32 %v1323, 4294901760
      %v1766 = vsub.f32 %v1323, %v1765
      %v1767 = vand.u32 %v1766, 4294901760
      %1768 = vmatpush.msra.mxu0 %v1767
      %v1769 = vand.u32 %v1322, 4294901760
      %v1770 = vsub.f32 %v1322, %v1769
      %v1771 = vand.u32 %v1770, 4294901760
      %1772 = vmatpush.msra.mxu0 %v1771
      %v1773 = vand.u32 %v1321, 4294901760
      %v1774 = vsub.f32 %v1321, %v1773
      %v1775 = vand.u32 %v1774, 4294901760
      %1776 = vmatpush.msra.mxu0 %v1775
      %v1777 = vand.u32 %v1320, 4294901760
      %v1778 = vsub.f32 %v1320, %v1777
      %v1779 = vand.u32 %v1778, 4294901760
      %1780 = vmatpush.msra.mxu0 %v1779
      %v1781 = vand.u32 %v1319, 4294901760
      %v1782 = vsub.f32 %v1319, %v1781
      %v1783 = vand.u32 %v1782, 4294901760
      %1784 = vmatpush.msra.mxu0 %v1783
      %v1785 = vand.u32 %v1318, 4294901760
      %v1786 = vsub.f32 %v1318, %v1785
      %v1787 = vand.u32 %v1786, 4294901760
      %1788 = vmatpush.msra.mxu0 %v1787
      %v1789 = vand.u32 %v1317, 4294901760
      %v1790 = vsub.f32 %v1317, %v1789
      %v1791 = vand.u32 %v1790, 4294901760
      %1792 = vmatpush.msra.mxu0 %v1791
      %v1793 = vand.u32 %v657, 4294901760
      %1794 = vmatmul.f32.gmra.mxu0 %v1793
      %v1795 = vpop.f32.mrf.mxu0
      %v1796 = vadd.f32 %v1685, %v1795
      %v1797 = vand.u32 %v658, 4294901760
      %1798 = vmatmul.f32.gmra.mxu0 %v1797
      %v1799 = vpop.f32.mrf.mxu0
      %v1800 = vadd.f32 %v1691, %v1799
      %v1801 = vand.u32 %v659, 4294901760
      %1802 = vmatmul.f32.gmra.mxu0 %v1801
      %v1803 = vpop.f32.mrf.mxu0
      %v1804 = vadd.f32 %v1697, %v1803
      %v1805 = vand.u32 %v660, 4294901760
      %1806 = vmatmul.f32.gmra.mxu0 %v1805
      %v1807 = vpop.f32.mrf.mxu0
      %v1808 = vadd.f32 %v1703, %v1807
      %v1809 = vand.u32 %v661, 4294901760
      %1810 = vmatmul.f32.gmra.mxu0 %v1809
      %v1811 = vpop.f32.mrf.mxu0
      %v1812 = vadd.f32 %v1709, %v1811
      %v1813 = vand.u32 %v662, 4294901760
      %1814 = vmatmul.f32.gmra.mxu0 %v1813
      %v1815 = vpop.f32.mrf.mxu0
      %v1816 = vadd.f32 %v1715, %v1815
      %v1817 = vand.u32 %v663, 4294901760
      %1818 = vmatmul.f32.gmra.mxu0 %v1817
      %v1819 = vpop.f32.mrf.mxu0
      %v1820 = vadd.f32 %v1721, %v1819
      %v1821 = vand.u32 %v664, 4294901760
      %1822 = vmatmul.f32.gmra.mxu0 %v1821
      %v1823 = vpop.f32.mrf.mxu0
      %v1824 = vadd.f32 %v1727, %v1823
      %1825 = vdwg.mxu0
      %v1826 = vand.u32 %v1332, 4294901760
      %1827 = vmatpush.msra.mxu0 %v1826
      %v1828 = vand.u32 %v1331, 4294901760
      %1829 = vmatpush.msra.mxu0 %v1828
      %v1830 = vand.u32 %v1330, 4294901760
      %1831 = vmatpush.msra.mxu0 %v1830
      %v1832 = vand.u32 %v1329, 4294901760
      %1833 = vmatpush.msra.mxu0 %v1832
      %v1834 = vand.u32 %v1328, 4294901760
      %1835 = vmatpush.msra.mxu0 %v1834
      %v1836 = vand.u32 %v1327, 4294901760
      %1837 = vmatpush.msra.mxu0 %v1836
      %v1838 = vand.u32 %v1326, 4294901760
      %1839 = vmatpush.msra.mxu0 %v1838
      %v1840 = vand.u32 %v1325, 4294901760
      %1841 = vmatpush.msra.mxu0 %v1840
      %v1842 = vand.u32 %v1324, 4294901760
      %1843 = vmatpush.msra.mxu0 %v1842
      %v1844 = vand.u32 %v1323, 4294901760
      %1845 = vmatpush.msra.mxu0 %v1844
      %v1846 = vand.u32 %v1322, 4294901760
      %1847 = vmatpush.msra.mxu0 %v1846
      %v1848 = vand.u32 %v1321, 4294901760
      %1849 = vmatpush.msra.mxu0 %v1848
      %v1850 = vand.u32 %v1320, 4294901760
      %1851 = vmatpush.msra.mxu0 %v1850
      %v1852 = vand.u32 %v1319, 4294901760
      %1853 = vmatpush.msra.mxu0 %v1852
      %v1854 = vand.u32 %v1318, 4294901760
      %1855 = vmatpush.msra.mxu0 %v1854
      %v1856 = vand.u32 %v1317, 4294901760
      %1857 = vmatpush.msra.mxu0 %v1856
      %v1858 = vand.u32 %v657, 4294901760
      %1859 = vmatmul.f32.gmra.mxu0 %v1858
      %v1860 = vpop.f32.mrf.mxu0
      %v1861 = vadd.f32 %v1796, %v1860
      %v1862 = vand.u32 %v658, 4294901760
      %1863 = vmatmul.f32.gmra.mxu0 %v1862
      %v1864 = vpop.f32.mrf.mxu0
      %v1865 = vadd.f32 %v1800, %v1864
      %v1866 = vand.u32 %v659, 4294901760
      %1867 = vmatmul.f32.gmra.mxu0 %v1866
      %v1868 = vpop.f32.mrf.mxu0
      %v1869 = vadd.f32 %v1804, %v1868
      %v1870 = vand.u32 %v660, 4294901760
      %1871 = vmatmul.f32.gmra.mxu0 %v1870
      %v1872 = vpop.f32.mrf.mxu0
      %v1873 = vadd.f32 %v1808, %v1872
      %v1874 = vand.u32 %v661, 4294901760
      %1875 = vmatmul.f32.gmra.mxu0 %v1874
      %v1876 = vpop.f32.mrf.mxu0
      %v1877 = vadd.f32 %v1812, %v1876
      %v1878 = vand.u32 %v662, 4294901760
      %1879 = vmatmul.f32.gmra.mxu0 %v1878
      %v1880 = vpop.f32.mrf.mxu0
      %v1881 = vadd.f32 %v1816, %v1880
      %v1882 = vand.u32 %v663, 4294901760
      %1883 = vmatmul.f32.gmra.mxu0 %v1882
      %v1884 = vpop.f32.mrf.mxu0
      %v1885 = vadd.f32 %v1820, %v1884
      %v1886 = vand.u32 %v664, 4294901760
      %1887 = vmatmul.f32.gmra.mxu0 %v1886
      %v1888 = vpop.f32.mrf.mxu0
      %v1889 = vadd.f32 %v1824, %v1888
      %1890 = vdwg.mxu0
      %s1891 = scalar_lea.vmem [#allocation4], 16
      %1892 = vst [vmem:[%s1891 + $0x1] sm:$0xff] %v1861
      %1893 = vst [vmem:[%s1891 + $0x11] sm:$0xff] %v1865
      %1894 = vst [vmem:[%s1891 + $0x21] sm:$0xff] %v1869
      %1895 = vst [vmem:[%s1891 + $0x31] sm:$0xff] %v1873
      %1896 = vst [vmem:[%s1891 + $0x41] sm:$0xff] %v1877
      %1897 = vst [vmem:[%s1891 + $0x51] sm:$0xff] %v1881
      %1898 = vst [vmem:[%s1891 + $0x61] sm:$0xff] %v1885
      %1899 = vst [vmem:[%s1891 + $0x71] sm:$0xff] %v1889
      %v1900 = vld [vmem:[%s2] sm:$0x1]
      %v1902 = vperm.slane %v1900, 0
      %v1904 = vadd.f32 %v1902, 0.0
      %v1905 = vld [vmem:[#allocation3] sm:$0xff]
      %v1906 = vld [vmem:[#allocation3 + $0x10] sm:$0xff]
      %v1907 = vld [vmem:[#allocation3 + $0x20] sm:$0xff]
      %v1908 = vld [vmem:[#allocation3 + $0x30] sm:$0xff]
      %v1909 = vld [vmem:[#allocation3 + $0x40] sm:$0xff]
      %v1910 = vld [vmem:[#allocation3 + $0x50] sm:$0xff]
      %v1911 = vld [vmem:[#allocation3 + $0x60] sm:$0xff]
      %v1912 = vld [vmem:[#allocation3 + $0x70] sm:$0xff]
      %v1913 = vld [vmem:[%s1] sm:$0x1]
      %v1914 = vperm.slane %v1913, 0
      %v1915 = vmul.f32 %v1905, %v1914
      %v1916 = vmul.f32 %v1906, %v1914
      %v1917 = vmul.f32 %v1907, %v1914
      %v1918 = vmul.f32 %v1908, %v1914
      %v1919 = vmul.f32 %v1909, %v1914
      %v1920 = vmul.f32 %v1910, %v1914
      %v1921 = vmul.f32 %v1911, %v1914
      %v1922 = vmul.f32 %v1912, %v1914
      %v1923 = vadd.f32 %v1904, %v1915
      %v1924 = vadd.f32 %v1904, %v1916
      %v1925 = vadd.f32 %v1904, %v1917
      %v1926 = vadd.f32 %v1904, %v1918
      %v1927 = vadd.f32 %v1904, %v1919
      %v1928 = vadd.f32 %v1904, %v1920
      %v1929 = vadd.f32 %v1904, %v1921
      %v1930 = vadd.f32 %v1904, %v1922
      %v1931 = vld [vmem:[#allocation2] sm:$0xff]
      %v1932 = vld [vmem:[#allocation2 + $0x10] sm:$0xff]
      %v1933 = vld [vmem:[#allocation2 + $0x20] sm:$0xff]
      %v1934 = vld [vmem:[#allocation2 + $0x30] sm:$0xff]
      %v1935 = vld [vmem:[#allocation2 + $0x40] sm:$0xff]
      %v1936 = vld [vmem:[#allocation2 + $0x50] sm:$0xff]
      %v1937 = vld [vmem:[#allocation2 + $0x60] sm:$0xff]
      %v1938 = vld [vmem:[#allocation2 + $0x70] sm:$0xff]
      %v1939 = vld [vmem:[%s1 + $0x1] sm:$0x1]
      %v1940 = vperm.slane %v1939, 0
      %v1941 = vmul.f32 %v1931, %v1940
      %v1942 = vmul.f32 %v1932, %v1940
      %v1943 = vmul.f32 %v1933, %v1940
      %v1944 = vmul.f32 %v1934, %v1940
      %v1945 = vmul.f32 %v1935, %v1940
      %v1946 = vmul.f32 %v1936, %v1940
      %v1947 = vmul.f32 %v1937, %v1940
      %v1948 = vmul.f32 %v1938, %v1940
      %v1949 = vadd.f32 %v1923, %v1941
      %v1950 = vadd.f32 %v1924, %v1942
      %v1951 = vadd.f32 %v1925, %v1943
      %v1952 = vadd.f32 %v1926, %v1944
      %v1953 = vadd.f32 %v1927, %v1945
      %v1954 = vadd.f32 %v1928, %v1946
      %v1955 = vadd.f32 %v1929, %v1947
      %v1956 = vadd.f32 %v1930, %v1948
      %v1957 = vld [vmem:[#allocation4] sm:$0xff]
      %v1958 = vld [vmem:[#allocation4 + $0x10] sm:$0xff]
      %v1959 = vld [vmem:[#allocation4 + $0x20] sm:$0xff]
      %v1960 = vld [vmem:[#allocation4 + $0x30] sm:$0xff]
      %v1961 = vld [vmem:[#allocation4 + $0x40] sm:$0xff]
      %v1962 = vld [vmem:[#allocation4 + $0x50] sm:$0xff]
      %v1963 = vld [vmem:[#allocation4 + $0x60] sm:$0xff]
      %v1964 = vld [vmem:[#allocation4 + $0x70] sm:$0xff]
      %v1965 = vld [vmem:[%s1 + $0x2] sm:$0x1]
      %v1966 = vperm.slane %v1965, 0
      %v1967 = vmul.f32 %v1957, %v1966
      %v1968 = vmul.f32 %v1958, %v1966
      %v1969 = vmul.f32 %v1959, %v1966
      %v1970 = vmul.f32 %v1960, %v1966
      %v1971 = vmul.f32 %v1961, %v1966
      %v1972 = vmul.f32 %v1962, %v1966
      %v1973 = vmul.f32 %v1963, %v1966
      %v1974 = vmul.f32 %v1964, %v1966
      %v1975 = vadd.f32 %v1949, %v1967
      %v1976 = vadd.f32 %v1950, %v1968
      %v1977 = vadd.f32 %v1951, %v1969
      %v1978 = vadd.f32 %v1952, %v1970
      %v1979 = vadd.f32 %v1953, %v1971
      %v1980 = vadd.f32 %v1954, %v1972
      %v1981 = vadd.f32 %v1955, %v1973
      %v1982 = vadd.f32 %v1956, %v1974
      %v1983 = vld [vmem:[#allocation3 + $0x1] sm:$0xff]
      %v1984 = vld [vmem:[#allocation3 + $0x11] sm:$0xff]
      %v1985 = vld [vmem:[#allocation3 + $0x21] sm:$0xff]
      %v1986 = vld [vmem:[#allocation3 + $0x31] sm:$0xff]
      %v1987 = vld [vmem:[#allocation3 + $0x41] sm:$0xff]
      %v1988 = vld [vmem:[#allocation3 + $0x51] sm:$0xff]
      %v1989 = vld [vmem:[#allocation3 + $0x61] sm:$0xff]
      %v1990 = vld [vmem:[#allocation3 + $0x71] sm:$0xff]
      %v1991 = vld [vmem:[%s1 + $0x3] sm:$0x1]
      %v1992 = vperm.slane %v1991, 0
      %v1993 = vmul.f32 %v1983, %v1992
      %v1994 = vmul.f32 %v1984, %v1992
      %v1995 = vmul.f32 %v1985, %v1992
      %v1996 = vmul.f32 %v1986, %v1992
      %v1997 = vmul.f32 %v1987, %v1992
      %v1998 = vmul.f32 %v1988, %v1992
      %v1999 = vmul.f32 %v1989, %v1992
      %v2000 = vmul.f32 %v1990, %v1992
      %v2001 = vadd.f32 %v1975, %v1993
      %v2002 = vadd.f32 %v1976, %v1994
      %v2003 = vadd.f32 %v1977, %v1995
      %v2004 = vadd.f32 %v1978, %v1996
      %v2005 = vadd.f32 %v1979, %v1997
      %v2006 = vadd.f32 %v1980, %v1998
      %v2007 = vadd.f32 %v1981, %v1999
      %v2008 = vadd.f32 %v1982, %v2000
      %v2009 = vld [vmem:[#allocation2 + $0x1] sm:$0xff]
      %v2010 = vld [vmem:[#allocation2 + $0x11] sm:$0xff]
      %v2011 = vld [vmem:[#allocation2 + $0x21] sm:$0xff]
      %v2012 = vld [vmem:[#allocation2 + $0x31] sm:$0xff]
      %v2013 = vld [vmem:[#allocation2 + $0x41] sm:$0xff]
      %v2014 = vld [vmem:[#allocation2 + $0x51] sm:$0xff]
      %v2015 = vld [vmem:[#allocation2 + $0x61] sm:$0xff]
      %v2016 = vld [vmem:[#allocation2 + $0x71] sm:$0xff]
      %v2017 = vld [vmem:[%s1 + $0x4] sm:$0x1]
      %v2018 = vperm.slane %v2017, 0
      %v2019 = vmul.f32 %v2009, %v2018
      %v2020 = vmul.f32 %v2010, %v2018
      %v2021 = vmul.f32 %v2011, %v2018
      %v2022 = vmul.f32 %v2012, %v2018
      %v2023 = vmul.f32 %v2013, %v2018
      %v2024 = vmul.f32 %v2014, %v2018
      %v2025 = vmul.f32 %v2015, %v2018
      %v2026 = vmul.f32 %v2016, %v2018
      %v2027 = vadd.f32 %v2001, %v2019
      %v2028 = vadd.f32 %v2002, %v2020
      %v2029 = vadd.f32 %v2003, %v2021
      %v2030 = vadd.f32 %v2004, %v2022
      %v2031 = vadd.f32 %v2005, %v2023
      %v2032 = vadd.f32 %v2006, %v2024
      %v2033 = vadd.f32 %v2007, %v2025
      %v2034 = vadd.f32 %v2008, %v2026
      %v2035 = vld [vmem:[#allocation4 + $0x1] sm:$0xff]
      %v2036 = vld [vmem:[#allocation4 + $0x11] sm:$0xff]
      %v2037 = vld [vmem:[#allocation4 + $0x21] sm:$0xff]
      %v2038 = vld [vmem:[#allocation4 + $0x31] sm:$0xff]
      %v2039 = vld [vmem:[#allocation4 + $0x41] sm:$0xff]
      %v2040 = vld [vmem:[#allocation4 + $0x51] sm:$0xff]
      %v2041 = vld [vmem:[#allocation4 + $0x61] sm:$0xff]
      %v2042 = vld [vmem:[#allocation4 + $0x71] sm:$0xff]
      %v2043 = vld [vmem:[%s1 + $0x5] sm:$0x1]
      %v2044 = vperm.slane %v2043, 0
      %v2045 = vmul.f32 %v2035, %v2044
      %v2046 = vmul.f32 %v2036, %v2044
      %v2047 = vmul.f32 %v2037, %v2044
      %v2048 = vmul.f32 %v2038, %v2044
      %v2049 = vmul.f32 %v2039, %v2044
      %v2050 = vmul.f32 %v2040, %v2044
      %v2051 = vmul.f32 %v2041, %v2044
      %v2052 = vmul.f32 %v2042, %v2044
      %v2053 = vadd.f32 %v2027, %v2045
      %v2054 = vadd.f32 %v2028, %v2046
      %v2055 = vadd.f32 %v2029, %v2047
      %v2056 = vadd.f32 %v2030, %v2048
      %v2057 = vadd.f32 %v2031, %v2049
      %v2058 = vadd.f32 %v2032, %v2050
      %v2059 = vadd.f32 %v2033, %v2051
      %v2060 = vadd.f32 %v2034, %v2052
      %v2061 = vld [vmem:[#allocation3 + $0x2] sm:$0xff]
      %v2062 = vld [vmem:[#allocation3 + $0x12] sm:$0xff]
      %v2063 = vld [vmem:[#allocation3 + $0x22] sm:$0xff]
      %v2064 = vld [vmem:[#allocation3 + $0x32] sm:$0xff]
      %v2065 = vld [vmem:[#allocation3 + $0x42] sm:$0xff]
      %v2066 = vld [vmem:[#allocation3 + $0x52] sm:$0xff]
      %v2067 = vld [vmem:[#allocation3 + $0x62] sm:$0xff]
      %v2068 = vld [vmem:[#allocation3 + $0x72] sm:$0xff]
      %v2069 = vld [vmem:[%s1 + $0x6] sm:$0x1]
      %v2070 = vperm.slane %v2069, 0
      %v2071 = vmul.f32 %v2061, %v2070
      %v2072 = vmul.f32 %v2062, %v2070
      %v2073 = vmul.f32 %v2063, %v2070
      %v2074 = vmul.f32 %v2064, %v2070
      %v2075 = vmul.f32 %v2065, %v2070
      %v2076 = vmul.f32 %v2066, %v2070
      %v2077 = vmul.f32 %v2067, %v2070
      %v2078 = vmul.f32 %v2068, %v2070
      %v2079 = vadd.f32 %v2053, %v2071
      %v2080 = vadd.f32 %v2054, %v2072
      %v2081 = vadd.f32 %v2055, %v2073
      %v2082 = vadd.f32 %v2056, %v2074
      %v2083 = vadd.f32 %v2057, %v2075
      %v2084 = vadd.f32 %v2058, %v2076
      %v2085 = vadd.f32 %v2059, %v2077
      %v2086 = vadd.f32 %v2060, %v2078
      %v2087 = vld [vmem:[#allocation2 + $0x2] sm:$0xff]
      %v2088 = vld [vmem:[#allocation2 + $0x12] sm:$0xff]
      %v2089 = vld [vmem:[#allocation2 + $0x22] sm:$0xff]
      %v2090 = vld [vmem:[#allocation2 + $0x32] sm:$0xff]
      %v2091 = vld [vmem:[#allocation2 + $0x42] sm:$0xff]
      %v2092 = vld [vmem:[#allocation2 + $0x52] sm:$0xff]
      %v2093 = vld [vmem:[#allocation2 + $0x62] sm:$0xff]
      %v2094 = vld [vmem:[#allocation2 + $0x72] sm:$0xff]
      %v2095 = vld [vmem:[%s1 + $0x7] sm:$0x1]
      %v2096 = vperm.slane %v2095, 0
      %v2097 = vmul.f32 %v2087, %v2096
      %v2098 = vmul.f32 %v2088, %v2096
      %v2099 = vmul.f32 %v2089, %v2096
      %v2100 = vmul.f32 %v2090, %v2096
      %v2101 = vmul.f32 %v2091, %v2096
      %v2102 = vmul.f32 %v2092, %v2096
      %v2103 = vmul.f32 %v2093, %v2096
      %v2104 = vmul.f32 %v2094, %v2096
      %v2105 = vadd.f32 %v2079, %v2097
      %v2106 = vadd.f32 %v2080, %v2098
      %v2107 = vadd.f32 %v2081, %v2099
      %v2108 = vadd.f32 %v2082, %v2100
      %v2109 = vadd.f32 %v2083, %v2101
      %v2110 = vadd.f32 %v2084, %v2102
      %v2111 = vadd.f32 %v2085, %v2103
      %v2112 = vadd.f32 %v2086, %v2104
      %v2113 = vld [vmem:[#allocation4 + $0x2] sm:$0xff]
      %v2114 = vld [vmem:[#allocation4 + $0x12] sm:$0xff]
      %v2115 = vld [vmem:[#allocation4 + $0x22] sm:$0xff]
      %v2116 = vld [vmem:[#allocation4 + $0x32] sm:$0xff]
      %v2117 = vld [vmem:[#allocation4 + $0x42] sm:$0xff]
      %v2118 = vld [vmem:[#allocation4 + $0x52] sm:$0xff]
      %v2119 = vld [vmem:[#allocation4 + $0x62] sm:$0xff]
      %v2120 = vld [vmem:[#allocation4 + $0x72] sm:$0xff]
      %v2121 = vld [vmem:[%s1 + $0x8] sm:$0x1]
      %v2122 = vperm.slane %v2121, 0
      %v2123 = vmul.f32 %v2113, %v2122
      %v2124 = vmul.f32 %v2114, %v2122
      %v2125 = vmul.f32 %v2115, %v2122
      %v2126 = vmul.f32 %v2116, %v2122
      %v2127 = vmul.f32 %v2117, %v2122
      %v2128 = vmul.f32 %v2118, %v2122
      %v2129 = vmul.f32 %v2119, %v2122
      %v2130 = vmul.f32 %v2120, %v2122
      %v2131 = vadd.f32 %v2105, %v2123
      %v2132 = vadd.f32 %v2106, %v2124
      %v2133 = vadd.f32 %v2107, %v2125
      %v2134 = vadd.f32 %v2108, %v2126
      %v2135 = vadd.f32 %v2109, %v2127
      %v2136 = vadd.f32 %v2110, %v2128
      %v2137 = vadd.f32 %v2111, %v2129
      %v2138 = vadd.f32 %v2112, %v2130
      %v2139 = vld [vmem:[%s1308] sm:$0xff]
      %v2140 = vld [vmem:[%s1308 + $0x10] sm:$0xff]
      %v2141 = vld [vmem:[%s1308 + $0x20] sm:$0xff]
      %v2142 = vld [vmem:[%s1308 + $0x30] sm:$0xff]
      %v2143 = vld [vmem:[%s1308 + $0x40] sm:$0xff]
      %v2144 = vld [vmem:[%s1308 + $0x50] sm:$0xff]
      %v2145 = vld [vmem:[%s1308 + $0x60] sm:$0xff]
      %v2146 = vld [vmem:[%s1308 + $0x70] sm:$0xff]
      %v2147 = vld [vmem:[%s1 + $0x9] sm:$0x1]
      %v2148 = vperm.slane %v2147, 0
      %v2149 = vmul.f32 %v2139, %v2148
      %v2150 = vmul.f32 %v2140, %v2148
      %v2151 = vmul.f32 %v2141, %v2148
      %v2152 = vmul.f32 %v2142, %v2148
      %v2153 = vmul.f32 %v2143, %v2148
      %v2154 = vmul.f32 %v2144, %v2148
      %v2155 = vmul.f32 %v2145, %v2148
      %v2156 = vmul.f32 %v2146, %v2148
      %v2157 = vadd.f32 %v2131, %v2149
      %v2158 = vadd.f32 %v2132, %v2150
      %v2159 = vadd.f32 %v2133, %v2151
      %v2160 = vadd.f32 %v2134, %v2152
      %v2161 = vadd.f32 %v2135, %v2153
      %v2162 = vadd.f32 %v2136, %v2154
      %v2163 = vadd.f32 %v2137, %v2155
      %v2164 = vadd.f32 %v2138, %v2156
      %v2165 = vld [vmem:[%s725] sm:$0xff]
      %v2166 = vld [vmem:[%s725 + $0x10] sm:$0xff]
      %v2167 = vld [vmem:[%s725 + $0x20] sm:$0xff]
      %v2168 = vld [vmem:[%s725 + $0x30] sm:$0xff]
      %v2169 = vld [vmem:[%s725 + $0x40] sm:$0xff]
      %v2170 = vld [vmem:[%s725 + $0x50] sm:$0xff]
      %v2171 = vld [vmem:[%s725 + $0x60] sm:$0xff]
      %v2172 = vld [vmem:[%s725 + $0x70] sm:$0xff]
      %v2173 = vld [vmem:[%s1 + $0xa] sm:$0x1]
      %v2174 = vperm.slane %v2173, 0
      %v2175 = vmul.f32 %v2165, %v2174
      %v2176 = vmul.f32 %v2166, %v2174
      %v2177 = vmul.f32 %v2167, %v2174
      %v2178 = vmul.f32 %v2168, %v2174
      %v2179 = vmul.f32 %v2169, %v2174
      %v2180 = vmul.f32 %v2170, %v2174
      %v2181 = vmul.f32 %v2171, %v2174
      %v2182 = vmul.f32 %v2172, %v2174
      %v2183 = vadd.f32 %v2157, %v2175
      %v2184 = vadd.f32 %v2158, %v2176
      %v2185 = vadd.f32 %v2159, %v2177
      %v2186 = vadd.f32 %v2160, %v2178
      %v2187 = vadd.f32 %v2161, %v2179
      %v2188 = vadd.f32 %v2162, %v2180
      %v2189 = vadd.f32 %v2163, %v2181
      %v2190 = vadd.f32 %v2164, %v2182
      %v2191 = vld [vmem:[%s1891] sm:$0xff]
      %v2192 = vld [vmem:[%s1891 + $0x10] sm:$0xff]
      %v2193 = vld [vmem:[%s1891 + $0x20] sm:$0xff]
      %v2194 = vld [vmem:[%s1891 + $0x30] sm:$0xff]
      %v2195 = vld [vmem:[%s1891 + $0x40] sm:$0xff]
      %v2196 = vld [vmem:[%s1891 + $0x50] sm:$0xff]
      %v2197 = vld [vmem:[%s1891 + $0x60] sm:$0xff]
      %v2198 = vld [vmem:[%s1891 + $0x70] sm:$0xff]
      %v2199 = vld [vmem:[%s1 + $0xb] sm:$0x1]
      %v2200 = vperm.slane %v2199, 0
      %v2201 = vmul.f32 %v2191, %v2200
      %v2202 = vmul.f32 %v2192, %v2200
      %v2203 = vmul.f32 %v2193, %v2200
      %v2204 = vmul.f32 %v2194, %v2200
      %v2205 = vmul.f32 %v2195, %v2200
      %v2206 = vmul.f32 %v2196, %v2200
      %v2207 = vmul.f32 %v2197, %v2200
      %v2208 = vmul.f32 %v2198, %v2200
      %v2209 = vadd.f32 %v2183, %v2201
      %v2210 = vadd.f32 %v2184, %v2202
      %v2211 = vadd.f32 %v2185, %v2203
      %v2212 = vadd.f32 %v2186, %v2204
      %v2213 = vadd.f32 %v2187, %v2205
      %v2214 = vadd.f32 %v2188, %v2206
      %v2215 = vadd.f32 %v2189, %v2207
      %v2216 = vadd.f32 %v2190, %v2208
      %v2217 = vld [vmem:[%s1308 + $0x1] sm:$0xff]
      %v2218 = vld [vmem:[%s1308 + $0x11] sm:$0xff]
      %v2219 = vld [vmem:[%s1308 + $0x21] sm:$0xff]
      %v2220 = vld [vmem:[%s1308 + $0x31] sm:$0xff]
      %v2221 = vld [vmem:[%s1308 + $0x41] sm:$0xff]
      %v2222 = vld [vmem:[%s1308 + $0x51] sm:$0xff]
      %v2223 = vld [vmem:[%s1308 + $0x61] sm:$0xff]
      %v2224 = vld [vmem:[%s1308 + $0x71] sm:$0xff]
      %v2225 = vld [vmem:[%s1 + $0xc] sm:$0x1]
      %v2226 = vperm.slane %v2225, 0
      %v2227 = vmul.f32 %v2217, %v2226
      %v2228 = vmul.f32 %v2218, %v2226
      %v2229 = vmul.f32 %v2219, %v2226
      %v2230 = vmul.f32 %v2220, %v2226
      %v2231 = vmul.f32 %v2221, %v2226
      %v2232 = vmul.f32 %v2222, %v2226
      %v2233 = vmul.f32 %v2223, %v2226
      %v2234 = vmul.f32 %v2224, %v2226
      %v2235 = vadd.f32 %v2209, %v2227
      %v2236 = vadd.f32 %v2210, %v2228
      %v2237 = vadd.f32 %v2211, %v2229
      %v2238 = vadd.f32 %v2212, %v2230
      %v2239 = vadd.f32 %v2213, %v2231
      %v2240 = vadd.f32 %v2214, %v2232
      %v2241 = vadd.f32 %v2215, %v2233
      %v2242 = vadd.f32 %v2216, %v2234
      %v2243 = vld [vmem:[%s725 + $0x1] sm:$0xff]
      %v2244 = vld [vmem:[%s725 + $0x11] sm:$0xff]
      %v2245 = vld [vmem:[%s725 + $0x21] sm:$0xff]
      %v2246 = vld [vmem:[%s725 + $0x31] sm:$0xff]
      %v2247 = vld [vmem:[%s725 + $0x41] sm:$0xff]
      %v2248 = vld [vmem:[%s725 + $0x51] sm:$0xff]
      %v2249 = vld [vmem:[%s725 + $0x61] sm:$0xff]
      %v2250 = vld [vmem:[%s725 + $0x71] sm:$0xff]
      %v2251 = vld [vmem:[%s1 + $0xd] sm:$0x1]
      %v2252 = vperm.slane %v2251, 0
      %v2253 = vmul.f32 %v2243, %v2252
      %v2254 = vmul.f32 %v2244, %v2252
      %v2255 = vmul.f32 %v2245, %v2252
      %v2256 = vmul.f32 %v2246, %v2252
      %v2257 = vmul.f32 %v2247, %v2252
      %v2258 = vmul.f32 %v2248, %v2252
      %v2259 = vmul.f32 %v2249, %v2252
      %v2260 = vmul.f32 %v2250, %v2252
      %v2261 = vadd.f32 %v2235, %v2253
      %v2262 = vadd.f32 %v2236, %v2254
      %v2263 = vadd.f32 %v2237, %v2255
      %v2264 = vadd.f32 %v2238, %v2256
      %v2265 = vadd.f32 %v2239, %v2257
      %v2266 = vadd.f32 %v2240, %v2258
      %v2267 = vadd.f32 %v2241, %v2259
      %v2268 = vadd.f32 %v2242, %v2260
      %v2269 = vld [vmem:[%s1891 + $0x1] sm:$0xff]
      %v2270 = vld [vmem:[%s1891 + $0x11] sm:$0xff]
      %v2271 = vld [vmem:[%s1891 + $0x21] sm:$0xff]
      %v2272 = vld [vmem:[%s1891 + $0x31] sm:$0xff]
      %v2273 = vld [vmem:[%s1891 + $0x41] sm:$0xff]
      %v2274 = vld [vmem:[%s1891 + $0x51] sm:$0xff]
      %v2275 = vld [vmem:[%s1891 + $0x61] sm:$0xff]
      %v2276 = vld [vmem:[%s1891 + $0x71] sm:$0xff]
      %v2277 = vld [vmem:[%s1 + $0xe] sm:$0x1]
      %v2278 = vperm.slane %v2277, 0
      %v2279 = vmul.f32 %v2269, %v2278
      %v2280 = vmul.f32 %v2270, %v2278
      %v2281 = vmul.f32 %v2271, %v2278
      %v2282 = vmul.f32 %v2272, %v2278
      %v2283 = vmul.f32 %v2273, %v2278
      %v2284 = vmul.f32 %v2274, %v2278
      %v2285 = vmul.f32 %v2275, %v2278
      %v2286 = vmul.f32 %v2276, %v2278
      %v2287 = vadd.f32 %v2261, %v2279
      %v2288 = vadd.f32 %v2262, %v2280
      %v2289 = vadd.f32 %v2263, %v2281
      %v2290 = vadd.f32 %v2264, %v2282
      %v2291 = vadd.f32 %v2265, %v2283
      %v2292 = vadd.f32 %v2266, %v2284
      %v2293 = vadd.f32 %v2267, %v2285
      %v2294 = vadd.f32 %v2268, %v2286
      %v2295 = vld [vmem:[%s1308 + $0x2] sm:$0xff]
      %v2296 = vld [vmem:[%s1308 + $0x12] sm:$0xff]
      %v2297 = vld [vmem:[%s1308 + $0x22] sm:$0xff]
      %v2298 = vld [vmem:[%s1308 + $0x32] sm:$0xff]
      %v2299 = vld [vmem:[%s1308 + $0x42] sm:$0xff]
      %v2300 = vld [vmem:[%s1308 + $0x52] sm:$0xff]
      %v2301 = vld [vmem:[%s1308 + $0x62] sm:$0xff]
      %v2302 = vld [vmem:[%s1308 + $0x72] sm:$0xff]
      %v2303 = vld [vmem:[%s1 + $0xf] sm:$0x1]
      %v2304 = vperm.slane %v2303, 0
      %v2305 = vmul.f32 %v2295, %v2304
      %v2306 = vmul.f32 %v2296, %v2304
      %v2307 = vmul.f32 %v2297, %v2304
      %v2308 = vmul.f32 %v2298, %v2304
      %v2309 = vmul.f32 %v2299, %v2304
      %v2310 = vmul.f32 %v2300, %v2304
      %v2311 = vmul.f32 %v2301, %v2304
      %v2312 = vmul.f32 %v2302, %v2304
      %v2313 = vadd.f32 %v2287, %v2305
      %v2314 = vadd.f32 %v2288, %v2306
      %v2315 = vadd.f32 %v2289, %v2307
      %v2316 = vadd.f32 %v2290, %v2308
      %v2317 = vadd.f32 %v2291, %v2309
      %v2318 = vadd.f32 %v2292, %v2310
      %v2319 = vadd.f32 %v2293, %v2311
      %v2320 = vadd.f32 %v2294, %v2312
      %v2321 = vld [vmem:[%s725 + $0x2] sm:$0xff]
      %v2322 = vld [vmem:[%s725 + $0x12] sm:$0xff]
      %v2323 = vld [vmem:[%s725 + $0x22] sm:$0xff]
      %v2324 = vld [vmem:[%s725 + $0x32] sm:$0xff]
      %v2325 = vld [vmem:[%s725 + $0x42] sm:$0xff]
      %v2326 = vld [vmem:[%s725 + $0x52] sm:$0xff]
      %v2327 = vld [vmem:[%s725 + $0x62] sm:$0xff]
      %v2328 = vld [vmem:[%s725 + $0x72] sm:$0xff]
      %v2329 = vld [vmem:[%s1 + $0x10] sm:$0x1]
      %v2330 = vperm.slane %v2329, 0
      %v2331 = vmul.f32 %v2321, %v2330
      %v2332 = vmul.f32 %v2322, %v2330
      %v2333 = vmul.f32 %v2323, %v2330
      %v2334 = vmul.f32 %v2324, %v2330
      %v2335 = vmul.f32 %v2325, %v2330
      %v2336 = vmul.f32 %v2326, %v2330
      %v2337 = vmul.f32 %v2327, %v2330
      %v2338 = vmul.f32 %v2328, %v2330
      %v2339 = vadd.f32 %v2313, %v2331
      %v2340 = vadd.f32 %v2314, %v2332
      %v2341 = vadd.f32 %v2315, %v2333
      %v2342 = vadd.f32 %v2316, %v2334
      %v2343 = vadd.f32 %v2317, %v2335
      %v2344 = vadd.f32 %v2318, %v2336
      %v2345 = vadd.f32 %v2319, %v2337
      %v2346 = vadd.f32 %v2320, %v2338
      %v2347 = vld [vmem:[%s1891 + $0x2] sm:$0xff]
      %v2348 = vld [vmem:[%s1891 + $0x12] sm:$0xff]
      %v2349 = vld [vmem:[%s1891 + $0x22] sm:$0xff]
      %v2350 = vld [vmem:[%s1891 + $0x32] sm:$0xff]
      %v2351 = vld [vmem:[%s1891 + $0x42] sm:$0xff]
      %v2352 = vld [vmem:[%s1891 + $0x52] sm:$0xff]
      %v2353 = vld [vmem:[%s1891 + $0x62] sm:$0xff]
      %v2354 = vld [vmem:[%s1891 + $0x72] sm:$0xff]
      %v2355 = vld [vmem:[%s1 + $0x11] sm:$0x1]
      %v2356 = vperm.slane %v2355, 0
      %v2357 = vmul.f32 %v2347, %v2356
      %v2358 = vmul.f32 %v2348, %v2356
      %v2359 = vmul.f32 %v2349, %v2356
      %v2360 = vmul.f32 %v2350, %v2356
      %v2361 = vmul.f32 %v2351, %v2356
      %v2362 = vmul.f32 %v2352, %v2356
      %v2363 = vmul.f32 %v2353, %v2356
      %v2364 = vmul.f32 %v2354, %v2356
      %v2365 = vadd.f32 %v2339, %v2357
      %v2366 = vadd.f32 %v2340, %v2358
      %v2367 = vadd.f32 %v2341, %v2359
      %v2368 = vadd.f32 %v2342, %v2360
      %v2369 = vadd.f32 %v2343, %v2361
      %v2370 = vadd.f32 %v2344, %v2362
      %v2371 = vadd.f32 %v2345, %v2363
      %v2372 = vadd.f32 %v2346, %v2364
      %s2373 = scalar_lea.vmem [#allocation3], 32
      %v2374 = vld [vmem:[%s2373] sm:$0xff]
      %v2375 = vld [vmem:[%s2373 + $0x10] sm:$0xff]
      %v2376 = vld [vmem:[%s2373 + $0x20] sm:$0xff]
      %v2377 = vld [vmem:[%s2373 + $0x30] sm:$0xff]
      %v2378 = vld [vmem:[%s2373 + $0x40] sm:$0xff]
      %v2379 = vld [vmem:[%s2373 + $0x50] sm:$0xff]
      %v2380 = vld [vmem:[%s2373 + $0x60] sm:$0xff]
      %v2381 = vld [vmem:[%s2373 + $0x70] sm:$0xff]
      %v2382 = vld [vmem:[%s1 + $0x12] sm:$0x1]
      %v2383 = vperm.slane %v2382, 0
      %v2384 = vmul.f32 %v2374, %v2383
      %v2385 = vmul.f32 %v2375, %v2383
      %v2386 = vmul.f32 %v2376, %v2383
      %v2387 = vmul.f32 %v2377, %v2383
      %v2388 = vmul.f32 %v2378, %v2383
      %v2389 = vmul.f32 %v2379, %v2383
      %v2390 = vmul.f32 %v2380, %v2383
      %v2391 = vmul.f32 %v2381, %v2383
      %v2392 = vadd.f32 %v2365, %v2384
      %v2393 = vadd.f32 %v2366, %v2385
      %v2394 = vadd.f32 %v2367, %v2386
      %v2395 = vadd.f32 %v2368, %v2387
      %v2396 = vadd.f32 %v2369, %v2388
      %v2397 = vadd.f32 %v2370, %v2389
      %v2398 = vadd.f32 %v2371, %v2390
      %v2399 = vadd.f32 %v2372, %v2391
      %s2400 = scalar_lea.vmem [#allocation2], 32
      %v2401 = vld [vmem:[%s2400] sm:$0xff]
      %v2402 = vld [vmem:[%s2400 + $0x10] sm:$0xff]
      %v2403 = vld [vmem:[%s2400 + $0x20] sm:$0xff]
      %v2404 = vld [vmem:[%s2400 + $0x30] sm:$0xff]
      %v2405 = vld [vmem:[%s2400 + $0x40] sm:$0xff]
      %v2406 = vld [vmem:[%s2400 + $0x50] sm:$0xff]
      %v2407 = vld [vmem:[%s2400 + $0x60] sm:$0xff]
      %v2408 = vld [vmem:[%s2400 + $0x70] sm:$0xff]
      %v2409 = vld [vmem:[%s1 + $0x13] sm:$0x1]
      %v2410 = vperm.slane %v2409, 0
      %v2411 = vmul.f32 %v2401, %v2410
      %v2412 = vmul.f32 %v2402, %v2410
      %v2413 = vmul.f32 %v2403, %v2410
      %v2414 = vmul.f32 %v2404, %v2410
      %v2415 = vmul.f32 %v2405, %v2410
      %v2416 = vmul.f32 %v2406, %v2410
      %v2417 = vmul.f32 %v2407, %v2410
      %v2418 = vmul.f32 %v2408, %v2410
      %v2419 = vadd.f32 %v2392, %v2411
      %v2420 = vadd.f32 %v2393, %v2412
      %v2421 = vadd.f32 %v2394, %v2413
      %v2422 = vadd.f32 %v2395, %v2414
      %v2423 = vadd.f32 %v2396, %v2415
      %v2424 = vadd.f32 %v2397, %v2416
      %v2425 = vadd.f32 %v2398, %v2417
      %v2426 = vadd.f32 %v2399, %v2418
      %s2427 = scalar_lea.vmem [#allocation4], 32
      %v2428 = vld [vmem:[%s2427] sm:$0xff]
      %v2429 = vld [vmem:[%s2427 + $0x10] sm:$0xff]
      %v2430 = vld [vmem:[%s2427 + $0x20] sm:$0xff]
      %v2431 = vld [vmem:[%s2427 + $0x30] sm:$0xff]
      %v2432 = vld [vmem:[%s2427 + $0x40] sm:$0xff]
      %v2433 = vld [vmem:[%s2427 + $0x50] sm:$0xff]
      %v2434 = vld [vmem:[%s2427 + $0x60] sm:$0xff]
      %v2435 = vld [vmem:[%s2427 + $0x70] sm:$0xff]
      %v2436 = vld [vmem:[%s1 + $0x14] sm:$0x1]
      %v2437 = vperm.slane %v2436, 0
      %v2438 = vmul.f32 %v2428, %v2437
      %v2439 = vmul.f32 %v2429, %v2437
      %v2440 = vmul.f32 %v2430, %v2437
      %v2441 = vmul.f32 %v2431, %v2437
      %v2442 = vmul.f32 %v2432, %v2437
      %v2443 = vmul.f32 %v2433, %v2437
      %v2444 = vmul.f32 %v2434, %v2437
      %v2445 = vmul.f32 %v2435, %v2437
      %v2446 = vadd.f32 %v2419, %v2438
      %v2447 = vadd.f32 %v2420, %v2439
      %v2448 = vadd.f32 %v2421, %v2440
      %v2449 = vadd.f32 %v2422, %v2441
      %v2450 = vadd.f32 %v2423, %v2442
      %v2451 = vadd.f32 %v2424, %v2443
      %v2452 = vadd.f32 %v2425, %v2444
      %v2453 = vadd.f32 %v2426, %v2445
      %v2454 = vld [vmem:[%s2373 + $0x1] sm:$0xff]
      %v2455 = vld [vmem:[%s2373 + $0x11] sm:$0xff]
      %v2456 = vld [vmem:[%s2373 + $0x21] sm:$0xff]
      %v2457 = vld [vmem:[%s2373 + $0x31] sm:$0xff]
      %v2458 = vld [vmem:[%s2373 + $0x41] sm:$0xff]
      %v2459 = vld [vmem:[%s2373 + $0x51] sm:$0xff]
      %v2460 = vld [vmem:[%s2373 + $0x61] sm:$0xff]
      %v2461 = vld [vmem:[%s2373 + $0x71] sm:$0xff]
      %v2462 = vld [vmem:[%s1 + $0x15] sm:$0x1]
      %v2463 = vperm.slane %v2462, 0
      %v2464 = vmul.f32 %v2454, %v2463
      %v2465 = vmul.f32 %v2455, %v2463
      %v2466 = vmul.f32 %v2456, %v2463
      %v2467 = vmul.f32 %v2457, %v2463
      %v2468 = vmul.f32 %v2458, %v2463
      %v2469 = vmul.f32 %v2459, %v2463
      %v2470 = vmul.f32 %v2460, %v2463
      %v2471 = vmul.f32 %v2461, %v2463
      %v2472 = vadd.f32 %v2446, %v2464
      %v2473 = vadd.f32 %v2447, %v2465
      %v2474 = vadd.f32 %v2448, %v2466
      %v2475 = vadd.f32 %v2449, %v2467
      %v2476 = vadd.f32 %v2450, %v2468
      %v2477 = vadd.f32 %v2451, %v2469
      %v2478 = vadd.f32 %v2452, %v2470
      %v2479 = vadd.f32 %v2453, %v2471
      %v2480 = vld [vmem:[%s2400 + $0x1] sm:$0xff]
      %v2481 = vld [vmem:[%s2400 + $0x11] sm:$0xff]
      %v2482 = vld [vmem:[%s2400 + $0x21] sm:$0xff]
      %v2483 = vld [vmem:[%s2400 + $0x31] sm:$0xff]
      %v2484 = vld [vmem:[%s2400 + $0x41] sm:$0xff]
      %v2485 = vld [vmem:[%s2400 + $0x51] sm:$0xff]
      %v2486 = vld [vmem:[%s2400 + $0x61] sm:$0xff]
      %v2487 = vld [vmem:[%s2400 + $0x71] sm:$0xff]
      %v2488 = vld [vmem:[%s1 + $0x16] sm:$0x1]
      %v2489 = vperm.slane %v2488, 0
      %v2490 = vmul.f32 %v2480, %v2489
      %v2491 = vmul.f32 %v2481, %v2489
      %v2492 = vmul.f32 %v2482, %v2489
      %v2493 = vmul.f32 %v2483, %v2489
      %v2494 = vmul.f32 %v2484, %v2489
      %v2495 = vmul.f32 %v2485, %v2489
      %v2496 = vmul.f32 %v2486, %v2489
      %v2497 = vmul.f32 %v2487, %v2489
      %v2498 = vadd.f32 %v2472, %v2490
      %v2499 = vadd.f32 %v2473, %v2491
      %v2500 = vadd.f32 %v2474, %v2492
      %v2501 = vadd.f32 %v2475, %v2493
      %v2502 = vadd.f32 %v2476, %v2494
      %v2503 = vadd.f32 %v2477, %v2495
      %v2504 = vadd.f32 %v2478, %v2496
      %v2505 = vadd.f32 %v2479, %v2497
      %v2506 = vld [vmem:[%s2427 + $0x1] sm:$0xff]
      %v2507 = vld [vmem:[%s2427 + $0x11] sm:$0xff]
      %v2508 = vld [vmem:[%s2427 + $0x21] sm:$0xff]
      %v2509 = vld [vmem:[%s2427 + $0x31] sm:$0xff]
      %v2510 = vld [vmem:[%s2427 + $0x41] sm:$0xff]
      %v2511 = vld [vmem:[%s2427 + $0x51] sm:$0xff]
      %v2512 = vld [vmem:[%s2427 + $0x61] sm:$0xff]
      %v2513 = vld [vmem:[%s2427 + $0x71] sm:$0xff]
      %v2514 = vld [vmem:[%s1 + $0x17] sm:$0x1]
      %v2515 = vperm.slane %v2514, 0
      %v2516 = vmul.f32 %v2506, %v2515
      %v2517 = vmul.f32 %v2507, %v2515
      %v2518 = vmul.f32 %v2508, %v2515
      %v2519 = vmul.f32 %v2509, %v2515
      %v2520 = vmul.f32 %v2510, %v2515
      %v2521 = vmul.f32 %v2511, %v2515
      %v2522 = vmul.f32 %v2512, %v2515
      %v2523 = vmul.f32 %v2513, %v2515
      %v2524 = vadd.f32 %v2498, %v2516
      %v2525 = vadd.f32 %v2499, %v2517
      %v2526 = vadd.f32 %v2500, %v2518
      %v2527 = vadd.f32 %v2501, %v2519
      %v2528 = vadd.f32 %v2502, %v2520
      %v2529 = vadd.f32 %v2503, %v2521
      %v2530 = vadd.f32 %v2504, %v2522
      %v2531 = vadd.f32 %v2505, %v2523
      %v2532 = vld [vmem:[%s2373 + $0x2] sm:$0xff]
      %v2533 = vld [vmem:[%s2373 + $0x12] sm:$0xff]
      %v2534 = vld [vmem:[%s2373 + $0x22] sm:$0xff]
      %v2535 = vld [vmem:[%s2373 + $0x32] sm:$0xff]
      %v2536 = vld [vmem:[%s2373 + $0x42] sm:$0xff]
      %v2537 = vld [vmem:[%s2373 + $0x52] sm:$0xff]
      %v2538 = vld [vmem:[%s2373 + $0x62] sm:$0xff]
      %v2539 = vld [vmem:[%s2373 + $0x72] sm:$0xff]
      %v2540 = vld [vmem:[%s1 + $0x18] sm:$0x1]
      %v2541 = vperm.slane %v2540, 0
      %v2542 = vmul.f32 %v2532, %v2541
      %v2543 = vmul.f32 %v2533, %v2541
      %v2544 = vmul.f32 %v2534, %v2541
      %v2545 = vmul.f32 %v2535, %v2541
      %v2546 = vmul.f32 %v2536, %v2541
      %v2547 = vmul.f32 %v2537, %v2541
      %v2548 = vmul.f32 %v2538, %v2541
      %v2549 = vmul.f32 %v2539, %v2541
      %v2550 = vadd.f32 %v2524, %v2542
      %v2551 = vadd.f32 %v2525, %v2543
      %v2552 = vadd.f32 %v2526, %v2544
      %v2553 = vadd.f32 %v2527, %v2545
      %v2554 = vadd.f32 %v2528, %v2546
      %v2555 = vadd.f32 %v2529, %v2547
      %v2556 = vadd.f32 %v2530, %v2548
      %v2557 = vadd.f32 %v2531, %v2549
      %v2558 = vld [vmem:[%s2400 + $0x2] sm:$0xff]
      %v2559 = vld [vmem:[%s2400 + $0x12] sm:$0xff]
      %v2560 = vld [vmem:[%s2400 + $0x22] sm:$0xff]
      %v2561 = vld [vmem:[%s2400 + $0x32] sm:$0xff]
      %v2562 = vld [vmem:[%s2400 + $0x42] sm:$0xff]
      %v2563 = vld [vmem:[%s2400 + $0x52] sm:$0xff]
      %v2564 = vld [vmem:[%s2400 + $0x62] sm:$0xff]
      %v2565 = vld [vmem:[%s2400 + $0x72] sm:$0xff]
      %v2566 = vld [vmem:[%s1 + $0x19] sm:$0x1]
      %v2567 = vperm.slane %v2566, 0
      %v2568 = vmul.f32 %v2558, %v2567
      %v2569 = vmul.f32 %v2559, %v2567
      %v2570 = vmul.f32 %v2560, %v2567
      %v2571 = vmul.f32 %v2561, %v2567
      %v2572 = vmul.f32 %v2562, %v2567
      %v2573 = vmul.f32 %v2563, %v2567
      %v2574 = vmul.f32 %v2564, %v2567
      %v2575 = vmul.f32 %v2565, %v2567
      %v2576 = vadd.f32 %v2550, %v2568
      %v2577 = vadd.f32 %v2551, %v2569
      %v2578 = vadd.f32 %v2552, %v2570
      %v2579 = vadd.f32 %v2553, %v2571
      %v2580 = vadd.f32 %v2554, %v2572
      %v2581 = vadd.f32 %v2555, %v2573
      %v2582 = vadd.f32 %v2556, %v2574
      %v2583 = vadd.f32 %v2557, %v2575
      %v2584 = vld [vmem:[%s2427 + $0x2] sm:$0xff]
      %v2585 = vld [vmem:[%s2427 + $0x12] sm:$0xff]
      %v2586 = vld [vmem:[%s2427 + $0x22] sm:$0xff]
      %v2587 = vld [vmem:[%s2427 + $0x32] sm:$0xff]
      %v2588 = vld [vmem:[%s2427 + $0x42] sm:$0xff]
      %v2589 = vld [vmem:[%s2427 + $0x52] sm:$0xff]
      %v2590 = vld [vmem:[%s2427 + $0x62] sm:$0xff]
      %v2591 = vld [vmem:[%s2427 + $0x72] sm:$0xff]
      %v2592 = vld [vmem:[%s1 + $0x1a] sm:$0x1]
      %v2593 = vperm.slane %v2592, 0
      %v2594 = vmul.f32 %v2584, %v2593
      %v2595 = vmul.f32 %v2585, %v2593
      %v2596 = vmul.f32 %v2586, %v2593
      %v2597 = vmul.f32 %v2587, %v2593
      %v2598 = vmul.f32 %v2588, %v2593
      %v2599 = vmul.f32 %v2589, %v2593
      %v2600 = vmul.f32 %v2590, %v2593
      %v2601 = vmul.f32 %v2591, %v2593
      %v2602 = vadd.f32 %v2576, %v2594
      %v2603 = vadd.f32 %v2577, %v2595
      %v2604 = vadd.f32 %v2578, %v2596
      %v2605 = vadd.f32 %v2579, %v2597
      %v2606 = vadd.f32 %v2580, %v2598
      %v2607 = vadd.f32 %v2581, %v2599
      %v2608 = vadd.f32 %v2582, %v2600
      %v2609 = vadd.f32 %v2583, %v2601
      %v2610 = vld [vmem:[%s5] sm:$0xff]
      %v2611 = vld [vmem:[%s5 + $0x8] sm:$0xff]
      %v2612 = vld [vmem:[%s5 + $0x10] sm:$0xff]
      %v2613 = vld [vmem:[%s5 + $0x18] sm:$0xff]
      %v2614 = vld [vmem:[%s5 + $0x20] sm:$0xff]
      %v2615 = vld [vmem:[%s5 + $0x28] sm:$0xff]
      %v2616 = vld [vmem:[%s5 + $0x30] sm:$0xff]
      %v2617 = vld [vmem:[%s5 + $0x38] sm:$0xff]
      %v2618 = vld [vmem:[%s5 + $0x40] sm:$0xff]
      %v2619 = vld [vmem:[%s5 + $0x48] sm:$0xff]
      %v2620 = vld [vmem:[%s5 + $0x50] sm:$0xff]
      %v2621 = vld [vmem:[%s5 + $0x58] sm:$0xff]
      %v2622 = vld [vmem:[%s5 + $0x60] sm:$0xff]
      %v2623 = vld [vmem:[%s5 + $0x68] sm:$0xff]
      %v2624 = vld [vmem:[%s5 + $0x70] sm:$0xff]
      %v2625 = vld [vmem:[%s5 + $0x78] sm:$0xff]
      %v2626 = vld [vmem:[%s6] sm:$0x1]
      %v2627 = vld [vmem:[%s7] sm:$0x1]
      %v2628 = vand.u32 %v2625, 4294901760
      %2629 = vmatpush.msra.mxu0 %v2628
      %v2630 = vand.u32 %v2624, 4294901760
      %2631 = vmatpush.msra.mxu0 %v2630
      %v2632 = vand.u32 %v2623, 4294901760
      %2633 = vmatpush.msra.mxu0 %v2632
      %v2634 = vand.u32 %v2622, 4294901760
      %2635 = vmatpush.msra.mxu0 %v2634
      %v2636 = vand.u32 %v2621, 4294901760
      %2637 = vmatpush.msra.mxu0 %v2636
      %v2638 = vand.u32 %v2620, 4294901760
      %2639 = vmatpush.msra.mxu0 %v2638
      %v2640 = vand.u32 %v2619, 4294901760
      %2641 = vmatpush.msra.mxu0 %v2640
      %v2642 = vand.u32 %v2618, 4294901760
      %2643 = vmatpush.msra.mxu0 %v2642
      %v2644 = vand.u32 %v2617, 4294901760
      %2645 = vmatpush.msra.mxu0 %v2644
      %v2646 = vand.u32 %v2616, 4294901760
      %2647 = vmatpush.msra.mxu0 %v2646
      %v2648 = vand.u32 %v2615, 4294901760
      %2649 = vmatpush.msra.mxu0 %v2648
      %v2650 = vand.u32 %v2614, 4294901760
      %2651 = vmatpush.msra.mxu0 %v2650
      %v2652 = vand.u32 %v2613, 4294901760
      %2653 = vmatpush.msra.mxu0 %v2652
      %v2654 = vand.u32 %v2612, 4294901760
      %2655 = vmatpush.msra.mxu0 %v2654
      %v2656 = vand.u32 %v2611, 4294901760
      %2657 = vmatpush.msra.mxu0 %v2656
      %v2658 = vand.u32 %v2610, 4294901760
      %2659 = vmatpush.msra.mxu0 %v2658
      %v2660 = vand.u32 %v2602, 4294901760
      %v2661 = vsub.f32 %v2602, %v2660
      %v2662 = vand.u32 %v2661, 4294901760
      %v2663 = vsub.f32 %v2661, %v2662
      %v2664 = vand.u32 %v2663, 4294901760
      %2665 = vmatmul.f32.gmra.mxu0 %v2664
      %v2666 = vpop.f32.mrf.mxu0
      %v2667 = vadd.f32 0.0, %v2666
      %v2668 = vand.u32 %v2603, 4294901760
      %v2669 = vsub.f32 %v2603, %v2668
      %v2670 = vand.u32 %v2669, 4294901760
      %v2671 = vsub.f32 %v2669, %v2670
      %v2672 = vand.u32 %v2671, 4294901760
      %2673 = vmatmul.f32.gmra.mxu0 %v2672
      %v2674 = vpop.f32.mrf.mxu0
      %v2675 = vadd.f32 0.0, %v2674
      %v2676 = vand.u32 %v2604, 4294901760
      %v2677 = vsub.f32 %v2604, %v2676
      %v2678 = vand.u32 %v2677, 4294901760
      %v2679 = vsub.f32 %v2677, %v2678
      %v2680 = vand.u32 %v2679, 4294901760
      %2681 = vmatmul.f32.gmra.mxu0 %v2680
      %v2682 = vpop.f32.mrf.mxu0
      %v2683 = vadd.f32 0.0, %v2682
      %v2684 = vand.u32 %v2605, 4294901760
      %v2685 = vsub.f32 %v2605, %v2684
      %v2686 = vand.u32 %v2685, 4294901760
      %v2687 = vsub.f32 %v2685, %v2686
      %v2688 = vand.u32 %v2687, 4294901760
      %2689 = vmatmul.f32.gmra.mxu0 %v2688
      %v2690 = vpop.f32.mrf.mxu0
      %v2691 = vadd.f32 0.0, %v2690
      %v2692 = vand.u32 %v2606, 4294901760
      %v2693 = vsub.f32 %v2606, %v2692
      %v2694 = vand.u32 %v2693, 4294901760
      %v2695 = vsub.f32 %v2693, %v2694
      %v2696 = vand.u32 %v2695, 4294901760
      %2697 = vmatmul.f32.gmra.mxu0 %v2696
      %v2698 = vpop.f32.mrf.mxu0
      %v2699 = vadd.f32 0.0, %v2698
      %v2700 = vand.u32 %v2607, 4294901760
      %v2701 = vsub.f32 %v2607, %v2700
      %v2702 = vand.u32 %v2701, 4294901760
      %v2703 = vsub.f32 %v2701, %v2702
      %v2704 = vand.u32 %v2703, 4294901760
      %2705 = vmatmul.f32.gmra.mxu0 %v2704
      %v2706 = vpop.f32.mrf.mxu0
      %v2707 = vadd.f32 0.0, %v2706
      %v2708 = vand.u32 %v2608, 4294901760
      %v2709 = vsub.f32 %v2608, %v2708
      %v2710 = vand.u32 %v2709, 4294901760
      %v2711 = vsub.f32 %v2709, %v2710
      %v2712 = vand.u32 %v2711, 4294901760
      %2713 = vmatmul.f32.gmra.mxu0 %v2712
      %v2714 = vpop.f32.mrf.mxu0
      %v2715 = vadd.f32 0.0, %v2714
      %v2716 = vand.u32 %v2609, 4294901760
      %v2717 = vsub.f32 %v2609, %v2716
      %v2718 = vand.u32 %v2717, 4294901760
      %v2719 = vsub.f32 %v2717, %v2718
      %v2720 = vand.u32 %v2719, 4294901760
      %2721 = vmatmul.f32.gmra.mxu0 %v2720
      %v2722 = vpop.f32.mrf.mxu0
      %v2723 = vadd.f32 0.0, %v2722
      %2724 = vdwg.mxu0
      %v2725 = vand.u32 %v2625, 4294901760
      %v2726 = vsub.f32 %v2625, %v2725
      %v2727 = vand.u32 %v2726, 4294901760
      %v2728 = vsub.f32 %v2726, %v2727
      %v2729 = vand.u32 %v2728, 4294901760
      %2730 = vmatpush.msra.mxu0 %v2729
      %v2731 = vand.u32 %v2624, 4294901760
      %v2732 = vsub.f32 %v2624, %v2731
      %v2733 = vand.u32 %v2732, 4294901760
      %v2734 = vsub.f32 %v2732, %v2733
      %v2735 = vand.u32 %v2734, 4294901760
      %2736 = vmatpush.msra.mxu0 %v2735
      %v2737 = vand.u32 %v2623, 4294901760
      %v2738 = vsub.f32 %v2623, %v2737
      %v2739 = vand.u32 %v2738, 4294901760
      %v2740 = vsub.f32 %v2738, %v2739
      %v2741 = vand.u32 %v2740, 4294901760
      %2742 = vmatpush.msra.mxu0 %v2741
      %v2743 = vand.u32 %v2622, 4294901760
      %v2744 = vsub.f32 %v2622, %v2743
      %v2745 = vand.u32 %v2744, 4294901760
      %v2746 = vsub.f32 %v2744, %v2745
      %v2747 = vand.u32 %v2746, 4294901760
      %2748 = vmatpush.msra.mxu0 %v2747
      %v2749 = vand.u32 %v2621, 4294901760
      %v2750 = vsub.f32 %v2621, %v2749
      %v2751 = vand.u32 %v2750, 4294901760
      %v2752 = vsub.f32 %v2750, %v2751
      %v2753 = vand.u32 %v2752, 4294901760
      %2754 = vmatpush.msra.mxu0 %v2753
      %v2755 = vand.u32 %v2620, 4294901760
      %v2756 = vsub.f32 %v2620, %v2755
      %v2757 = vand.u32 %v2756, 4294901760
      %v2758 = vsub.f32 %v2756, %v2757
      %v2759 = vand.u32 %v2758, 4294901760
      %2760 = vmatpush.msra.mxu0 %v2759
      %v2761 = vand.u32 %v2619, 4294901760
      %v2762 = vsub.f32 %v2619, %v2761
      %v2763 = vand.u32 %v2762, 4294901760
      %v2764 = vsub.f32 %v2762, %v2763
      %v2765 = vand.u32 %v2764, 4294901760
      %2766 = vmatpush.msra.mxu0 %v2765
      %v2767 = vand.u32 %v2618, 4294901760
      %v2768 = vsub.f32 %v2618, %v2767
      %v2769 = vand.u32 %v2768, 4294901760
      %v2770 = vsub.f32 %v2768, %v2769
      %v2771 = vand.u32 %v2770, 4294901760
      %2772 = vmatpush.msra.mxu0 %v2771
      %v2773 = vand.u32 %v2617, 4294901760
      %v2774 = vsub.f32 %v2617, %v2773
      %v2775 = vand.u32 %v2774, 4294901760
      %v2776 = vsub.f32 %v2774, %v2775
      %v2777 = vand.u32 %v2776, 4294901760
      %2778 = vmatpush.msra.mxu0 %v2777
      %v2779 = vand.u32 %v2616, 4294901760
      %v2780 = vsub.f32 %v2616, %v2779
      %v2781 = vand.u32 %v2780, 4294901760
      %v2782 = vsub.f32 %v2780, %v2781
      %v2783 = vand.u32 %v2782, 4294901760
      %2784 = vmatpush.msra.mxu0 %v2783
      %v2785 = vand.u32 %v2615, 4294901760
      %v2786 = vsub.f32 %v2615, %v2785
      %v2787 = vand.u32 %v2786, 4294901760
      %v2788 = vsub.f32 %v2786, %v2787
      %v2789 = vand.u32 %v2788, 4294901760
      %2790 = vmatpush.msra.mxu0 %v2789
      %v2791 = vand.u32 %v2614, 4294901760
      %v2792 = vsub.f32 %v2614, %v2791
      %v2793 = vand.u32 %v2792, 4294901760
      %v2794 = vsub.f32 %v2792, %v2793
      %v2795 = vand.u32 %v2794, 4294901760
      %2796 = vmatpush.msra.mxu0 %v2795
      %v2797 = vand.u32 %v2613, 4294901760
      %v2798 = vsub.f32 %v2613, %v2797
      %v2799 = vand.u32 %v2798, 4294901760
      %v2800 = vsub.f32 %v2798, %v2799
      %v2801 = vand.u32 %v2800, 4294901760
      %2802 = vmatpush.msra.mxu0 %v2801
      %v2803 = vand.u32 %v2612, 4294901760
      %v2804 = vsub.f32 %v2612, %v2803
      %v2805 = vand.u32 %v2804, 4294901760
      %v2806 = vsub.f32 %v2804, %v2805
      %v2807 = vand.u32 %v2806, 4294901760
      %2808 = vmatpush.msra.mxu0 %v2807
      %v2809 = vand.u32 %v2611, 4294901760
      %v2810 = vsub.f32 %v2611, %v2809
      %v2811 = vand.u32 %v2810, 4294901760
      %v2812 = vsub.f32 %v2810, %v2811
      %v2813 = vand.u32 %v2812, 4294901760
      %2814 = vmatpush.msra.mxu0 %v2813
      %v2815 = vand.u32 %v2610, 4294901760
      %v2816 = vsub.f32 %v2610, %v2815
      %v2817 = vand.u32 %v2816, 4294901760
      %v2818 = vsub.f32 %v2816, %v2817
      %v2819 = vand.u32 %v2818, 4294901760
      %2820 = vmatpush.msra.mxu0 %v2819
      %v2821 = vand.u32 %v2602, 4294901760
      %2822 = vmatmul.f32.gmra.mxu0 %v2821
      %v2823 = vpop.f32.mrf.mxu0
      %v2824 = vadd.f32 %v2667, %v2823
      %v2825 = vand.u32 %v2603, 4294901760
      %2826 = vmatmul.f32.gmra.mxu0 %v2825
      %v2827 = vpop.f32.mrf.mxu0
      %v2828 = vadd.f32 %v2675, %v2827
      %v2829 = vand.u32 %v2604, 4294901760
      %2830 = vmatmul.f32.gmra.mxu0 %v2829
      %v2831 = vpop.f32.mrf.mxu0
      %v2832 = vadd.f32 %v2683, %v2831
      %v2833 = vand.u32 %v2605, 4294901760
      %2834 = vmatmul.f32.gmra.mxu0 %v2833
      %v2835 = vpop.f32.mrf.mxu0
      %v2836 = vadd.f32 %v2691, %v2835
      %v2837 = vand.u32 %v2606, 4294901760
      %2838 = vmatmul.f32.gmra.mxu0 %v2837
      %v2839 = vpop.f32.mrf.mxu0
      %v2840 = vadd.f32 %v2699, %v2839
      %v2841 = vand.u32 %v2607, 4294901760
      %2842 = vmatmul.f32.gmra.mxu0 %v2841
      %v2843 = vpop.f32.mrf.mxu0
      %v2844 = vadd.f32 %v2707, %v2843
      %v2845 = vand.u32 %v2608, 4294901760
      %2846 = vmatmul.f32.gmra.mxu0 %v2845
      %v2847 = vpop.f32.mrf.mxu0
      %v2848 = vadd.f32 %v2715, %v2847
      %v2849 = vand.u32 %v2609, 4294901760
      %2850 = vmatmul.f32.gmra.mxu0 %v2849
      %v2851 = vpop.f32.mrf.mxu0
      %v2852 = vadd.f32 %v2723, %v2851
      %2853 = vdwg.mxu0
      %v2854 = vand.u32 %v2625, 4294901760
      %v2855 = vsub.f32 %v2625, %v2854
      %2856 = vmatpush.msra.mxu0 %v2855
      %v2857 = vand.u32 %v2624, 4294901760
      %v2858 = vsub.f32 %v2624, %v2857
      %2859 = vmatpush.msra.mxu0 %v2858
      %v2860 = vand.u32 %v2623, 4294901760
      %v2861 = vsub.f32 %v2623, %v2860
      %2862 = vmatpush.msra.mxu0 %v2861
      %v2863 = vand.u32 %v2622, 4294901760
      %v2864 = vsub.f32 %v2622, %v2863
      %2865 = vmatpush.msra.mxu0 %v2864
      %v2866 = vand.u32 %v2621, 4294901760
      %v2867 = vsub.f32 %v2621, %v2866
      %2868 = vmatpush.msra.mxu0 %v2867
      %v2869 = vand.u32 %v2620, 4294901760
      %v2870 = vsub.f32 %v2620, %v2869
      %2871 = vmatpush.msra.mxu0 %v2870
      %v2872 = vand.u32 %v2619, 4294901760
      %v2873 = vsub.f32 %v2619, %v2872
      %2874 = vmatpush.msra.mxu0 %v2873
      %v2875 = vand.u32 %v2618, 4294901760
      %v2876 = vsub.f32 %v2618, %v2875
      %2877 = vmatpush.msra.mxu0 %v2876
      %v2878 = vand.u32 %v2617, 4294901760
      %v2879 = vsub.f32 %v2617, %v2878
      %2880 = vmatpush.msra.mxu0 %v2879
      %v2881 = vand.u32 %v2616, 4294901760
      %v2882 = vsub.f32 %v2616, %v2881
      %2883 = vmatpush.msra.mxu0 %v2882
      %v2884 = vand.u32 %v2615, 4294901760
      %v2885 = vsub.f32 %v2615, %v2884
      %2886 = vmatpush.msra.mxu0 %v2885
      %v2887 = vand.u32 %v2614, 4294901760
      %v2888 = vsub.f32 %v2614, %v2887
      %2889 = vmatpush.msra.mxu0 %v2888
      %v2890 = vand.u32 %v2613, 4294901760
      %v2891 = vsub.f32 %v2613, %v2890
      %2892 = vmatpush.msra.mxu0 %v2891
      %v2893 = vand.u32 %v2612, 4294901760
      %v2894 = vsub.f32 %v2612, %v2893
      %2895 = vmatpush.msra.mxu0 %v2894
      %v2896 = vand.u32 %v2611, 4294901760
      %v2897 = vsub.f32 %v2611, %v2896
      %2898 = vmatpush.msra.mxu0 %v2897
      %v2899 = vand.u32 %v2610, 4294901760
      %v2900 = vsub.f32 %v2610, %v2899
      %2901 = vmatpush.msra.mxu0 %v2900
      %v2902 = vand.u32 %v2602, 4294901760
      %v2903 = vsub.f32 %v2602, %v2902
      %2904 = vmatmul.f32.gmra.mxu0 %v2903
      %v2905 = vpop.f32.mrf.mxu0
      %v2906 = vadd.f32 %v2824, %v2905
      %v2907 = vand.u32 %v2603, 4294901760
      %v2908 = vsub.f32 %v2603, %v2907
      %2909 = vmatmul.f32.gmra.mxu0 %v2908
      %v2910 = vpop.f32.mrf.mxu0
      %v2911 = vadd.f32 %v2828, %v2910
      %v2912 = vand.u32 %v2604, 4294901760
      %v2913 = vsub.f32 %v2604, %v2912
      %2914 = vmatmul.f32.gmra.mxu0 %v2913
      %v2915 = vpop.f32.mrf.mxu0
      %v2916 = vadd.f32 %v2832, %v2915
      %v2917 = vand.u32 %v2605, 4294901760
      %v2918 = vsub.f32 %v2605, %v2917
      %2919 = vmatmul.f32.gmra.mxu0 %v2918
      %v2920 = vpop.f32.mrf.mxu0
      %v2921 = vadd.f32 %v2836, %v2920
      %v2922 = vand.u32 %v2606, 4294901760
      %v2923 = vsub.f32 %v2606, %v2922
      %2924 = vmatmul.f32.gmra.mxu0 %v2923
      %v2925 = vpop.f32.mrf.mxu0
      %v2926 = vadd.f32 %v2840, %v2925
      %v2927 = vand.u32 %v2607, 4294901760
      %v2928 = vsub.f32 %v2607, %v2927
      %2929 = vmatmul.f32.gmra.mxu0 %v2928
      %v2930 = vpop.f32.mrf.mxu0
      %v2931 = vadd.f32 %v2844, %v2930
      %v2932 = vand.u32 %v2608, 4294901760
      %v2933 = vsub.f32 %v2608, %v2932
      %2934 = vmatmul.f32.gmra.mxu0 %v2933
      %v2935 = vpop.f32.mrf.mxu0
      %v2936 = vadd.f32 %v2848, %v2935
      %v2937 = vand.u32 %v2609, 4294901760
      %v2938 = vsub.f32 %v2609, %v2937
      %2939 = vmatmul.f32.gmra.mxu0 %v2938
      %v2940 = vpop.f32.mrf.mxu0
      %v2941 = vadd.f32 %v2852, %v2940
      %2942 = vdwg.mxu0
      %v2943 = vand.u32 %v2625, 4294901760
      %2944 = vmatpush.msra.mxu0 %v2943
      %v2945 = vand.u32 %v2624, 4294901760
      %2946 = vmatpush.msra.mxu0 %v2945
      %v2947 = vand.u32 %v2623, 4294901760
      %2948 = vmatpush.msra.mxu0 %v2947
      %v2949 = vand.u32 %v2622, 4294901760
      %2950 = vmatpush.msra.mxu0 %v2949
      %v2951 = vand.u32 %v2621, 4294901760
      %2952 = vmatpush.msra.mxu0 %v2951
      %v2953 = vand.u32 %v2620, 4294901760
      %2954 = vmatpush.msra.mxu0 %v2953
      %v2955 = vand.u32 %v2619, 4294901760
      %2956 = vmatpush.msra.mxu0 %v2955
      %v2957 = vand.u32 %v2618, 4294901760
      %2958 = vmatpush.msra.mxu0 %v2957
      %v2959 = vand.u32 %v2617, 4294901760
      %2960 = vmatpush.msra.mxu0 %v2959
      %v2961 = vand.u32 %v2616, 4294901760
      %2962 = vmatpush.msra.mxu0 %v2961
      %v2963 = vand.u32 %v2615, 4294901760
      %2964 = vmatpush.msra.mxu0 %v2963
      %v2965 = vand.u32 %v2614, 4294901760
      %2966 = vmatpush.msra.mxu0 %v2965
      %v2967 = vand.u32 %v2613, 4294901760
      %2968 = vmatpush.msra.mxu0 %v2967
      %v2969 = vand.u32 %v2612, 4294901760
      %2970 = vmatpush.msra.mxu0 %v2969
      %v2971 = vand.u32 %v2611, 4294901760
      %2972 = vmatpush.msra.mxu0 %v2971
      %v2973 = vand.u32 %v2610, 4294901760
      %2974 = vmatpush.msra.mxu0 %v2973
      %v2975 = vand.u32 %v2602, 4294901760
      %v2976 = vsub.f32 %v2602, %v2975
      %v2977 = vand.u32 %v2976, 4294901760
      %2978 = vmatmul.f32.gmra.mxu0 %v2977
      %v2979 = vpop.f32.mrf.mxu0
      %v2980 = vadd.f32 %v2906, %v2979
      %v2981 = vand.u32 %v2603, 4294901760
      %v2982 = vsub.f32 %v2603, %v2981
      %v2983 = vand.u32 %v2982, 4294901760
      %2984 = vmatmul.f32.gmra.mxu0 %v2983
      %v2985 = vpop.f32.mrf.mxu0
      %v2986 = vadd.f32 %v2911, %v2985
      %v2987 = vand.u32 %v2604, 4294901760
      %v2988 = vsub.f32 %v2604, %v2987
      %v2989 = vand.u32 %v2988, 4294901760
      %2990 = vmatmul.f32.gmra.mxu0 %v2989
      %v2991 = vpop.f32.mrf.mxu0
      %v2992 = vadd.f32 %v2916, %v2991
      %v2993 = vand.u32 %v2605, 4294901760
      %v2994 = vsub.f32 %v2605, %v2993
      %v2995 = vand.u32 %v2994, 4294901760
      %2996 = vmatmul.f32.gmra.mxu0 %v2995
      %v2997 = vpop.f32.mrf.mxu0
      %v2998 = vadd.f32 %v2921, %v2997
      %v2999 = vand.u32 %v2606, 4294901760
      %v3000 = vsub.f32 %v2606, %v2999
      %v3001 = vand.u32 %v3000, 4294901760
      %3002 = vmatmul.f32.gmra.mxu0 %v3001
      %v3003 = vpop.f32.mrf.mxu0
      %v3004 = vadd.f32 %v2926, %v3003
      %v3005 = vand.u32 %v2607, 4294901760
      %v3006 = vsub.f32 %v2607, %v3005
      %v3007 = vand.u32 %v3006, 4294901760
      %3008 = vmatmul.f32.gmra.mxu0 %v3007
      %v3009 = vpop.f32.mrf.mxu0
      %v3010 = vadd.f32 %v2931, %v3009
      %v3011 = vand.u32 %v2608, 4294901760
      %v3012 = vsub.f32 %v2608, %v3011
      %v3013 = vand.u32 %v3012, 4294901760
      %3014 = vmatmul.f32.gmra.mxu0 %v3013
      %v3015 = vpop.f32.mrf.mxu0
      %v3016 = vadd.f32 %v2936, %v3015
      %v3017 = vand.u32 %v2609, 4294901760
      %v3018 = vsub.f32 %v2609, %v3017
      %v3019 = vand.u32 %v3018, 4294901760
      %3020 = vmatmul.f32.gmra.mxu0 %v3019
      %v3021 = vpop.f32.mrf.mxu0
      %v3022 = vadd.f32 %v2941, %v3021
      %3023 = vdwg.mxu0
      %v3024 = vand.u32 %v2625, 4294901760
      %v3025 = vsub.f32 %v2625, %v3024
      %v3026 = vand.u32 %v3025, 4294901760
      %3027 = vmatpush.msra.mxu0 %v3026
      %v3028 = vand.u32 %v2624, 4294901760
      %v3029 = vsub.f32 %v2624, %v3028
      %v3030 = vand.u32 %v3029, 4294901760
      %3031 = vmatpush.msra.mxu0 %v3030
      %v3032 = vand.u32 %v2623, 4294901760
      %v3033 = vsub.f32 %v2623, %v3032
      %v3034 = vand.u32 %v3033, 4294901760
      %3035 = vmatpush.msra.mxu0 %v3034
      %v3036 = vand.u32 %v2622, 4294901760
      %v3037 = vsub.f32 %v2622, %v3036
      %v3038 = vand.u32 %v3037, 4294901760
      %3039 = vmatpush.msra.mxu0 %v3038
      %v3040 = vand.u32 %v2621, 4294901760
      %v3041 = vsub.f32 %v2621, %v3040
      %v3042 = vand.u32 %v3041, 4294901760
      %3043 = vmatpush.msra.mxu0 %v3042
      %v3044 = vand.u32 %v2620, 4294901760
      %v3045 = vsub.f32 %v2620, %v3044
      %v3046 = vand.u32 %v3045, 4294901760
      %3047 = vmatpush.msra.mxu0 %v3046
      %v3048 = vand.u32 %v2619, 4294901760
      %v3049 = vsub.f32 %v2619, %v3048
      %v3050 = vand.u32 %v3049, 4294901760
      %3051 = vmatpush.msra.mxu0 %v3050
      %v3052 = vand.u32 %v2618, 4294901760
      %v3053 = vsub.f32 %v2618, %v3052
      %v3054 = vand.u32 %v3053, 4294901760
      %3055 = vmatpush.msra.mxu0 %v3054
      %v3056 = vand.u32 %v2617, 4294901760
      %v3057 = vsub.f32 %v2617, %v3056
      %v3058 = vand.u32 %v3057, 4294901760
      %3059 = vmatpush.msra.mxu0 %v3058
      %v3060 = vand.u32 %v2616, 4294901760
      %v3061 = vsub.f32 %v2616, %v3060
      %v3062 = vand.u32 %v3061, 4294901760
      %3063 = vmatpush.msra.mxu0 %v3062
      %v3064 = vand.u32 %v2615, 4294901760
      %v3065 = vsub.f32 %v2615, %v3064
      %v3066 = vand.u32 %v3065, 4294901760
      %3067 = vmatpush.msra.mxu0 %v3066
      %v3068 = vand.u32 %v2614, 4294901760
      %v3069 = vsub.f32 %v2614, %v3068
      %v3070 = vand.u32 %v3069, 4294901760
      %3071 = vmatpush.msra.mxu0 %v3070
      %v3072 = vand.u32 %v2613, 4294901760
      %v3073 = vsub.f32 %v2613, %v3072
      %v3074 = vand.u32 %v3073, 4294901760
      %3075 = vmatpush.msra.mxu0 %v3074
      %v3076 = vand.u32 %v2612, 4294901760
      %v3077 = vsub.f32 %v2612, %v3076
      %v3078 = vand.u32 %v3077, 4294901760
      %3079 = vmatpush.msra.mxu0 %v3078
      %v3080 = vand.u32 %v2611, 4294901760
      %v3081 = vsub.f32 %v2611, %v3080
      %v3082 = vand.u32 %v3081, 4294901760
      %3083 = vmatpush.msra.mxu0 %v3082
      %v3084 = vand.u32 %v2610, 4294901760
      %v3085 = vsub.f32 %v2610, %v3084
      %v3086 = vand.u32 %v3085, 4294901760
      %3087 = vmatpush.msra.mxu0 %v3086
      %v3088 = vand.u32 %v2602, 4294901760
      %3089 = vmatmul.f32.gmra.mxu0 %v3088
      %v3090 = vpop.f32.mrf.mxu0
      %v3091 = vadd.f32 %v2980, %v3090
      %v3092 = vand.u32 %v2603, 4294901760
      %3093 = vmatmul.f32.gmra.mxu0 %v3092
      %v3094 = vpop.f32.mrf.mxu0
      %v3095 = vadd.f32 %v2986, %v3094
      %v3096 = vand.u32 %v2604, 4294901760
      %3097 = vmatmul.f32.gmra.mxu0 %v3096
      %v3098 = vpop.f32.mrf.mxu0
      %v3099 = vadd.f32 %v2992, %v3098
      %v3100 = vand.u32 %v2605, 4294901760
      %3101 = vmatmul.f32.gmra.mxu0 %v3100
      %v3102 = vpop.f32.mrf.mxu0
      %v3103 = vadd.f32 %v2998, %v3102
      %v3104 = vand.u32 %v2606, 4294901760
      %3105 = vmatmul.f32.gmra.mxu0 %v3104
      %v3106 = vpop.f32.mrf.mxu0
      %v3107 = vadd.f32 %v3004, %v3106
      %v3108 = vand.u32 %v2607, 4294901760
      %3109 = vmatmul.f32.gmra.mxu0 %v3108
      %v3110 = vpop.f32.mrf.mxu0
      %v3111 = vadd.f32 %v3010, %v3110
      %v3112 = vand.u32 %v2608, 4294901760
      %3113 = vmatmul.f32.gmra.mxu0 %v3112
      %v3114 = vpop.f32.mrf.mxu0
      %v3115 = vadd.f32 %v3016, %v3114
      %v3116 = vand.u32 %v2609, 4294901760
      %3117 = vmatmul.f32.gmra.mxu0 %v3116
      %v3118 = vpop.f32.mrf.mxu0
      %v3119 = vadd.f32 %v3022, %v3118
      %3120 = vdwg.mxu0
      %v3121 = vand.u32 %v2625, 4294901760
      %3122 = vmatpush.msra.mxu0 %v3121
      %v3123 = vand.u32 %v2624, 4294901760
      %3124 = vmatpush.msra.mxu0 %v3123
      %v3125 = vand.u32 %v2623, 4294901760
      %3126 = vmatpush.msra.mxu0 %v3125
      %v3127 = vand.u32 %v2622, 4294901760
      %3128 = vmatpush.msra.mxu0 %v3127
      %v3129 = vand.u32 %v2621, 4294901760
      %3130 = vmatpush.msra.mxu0 %v3129
      %v3131 = vand.u32 %v2620, 4294901760
      %3132 = vmatpush.msra.mxu0 %v3131
      %v3133 = vand.u32 %v2619, 4294901760
      %3134 = vmatpush.msra.mxu0 %v3133
      %v3135 = vand.u32 %v2618, 4294901760
      %3136 = vmatpush.msra.mxu0 %v3135
      %v3137 = vand.u32 %v2617, 4294901760
      %3138 = vmatpush.msra.mxu0 %v3137
      %v3139 = vand.u32 %v2616, 4294901760
      %3140 = vmatpush.msra.mxu0 %v3139
      %v3141 = vand.u32 %v2615, 4294901760
      %3142 = vmatpush.msra.mxu0 %v3141
      %v3143 = vand.u32 %v2614, 4294901760
      %3144 = vmatpush.msra.mxu0 %v3143
      %v3145 = vand.u32 %v2613, 4294901760
      %3146 = vmatpush.msra.mxu0 %v3145
      %v3147 = vand.u32 %v2612, 4294901760
      %3148 = vmatpush.msra.mxu0 %v3147
      %v3149 = vand.u32 %v2611, 4294901760
      %3150 = vmatpush.msra.mxu0 %v3149
      %v3151 = vand.u32 %v2610, 4294901760
      %3152 = vmatpush.msra.mxu0 %v3151
      %v3153 = vand.u32 %v2602, 4294901760
      %3154 = vmatmul.f32.gmra.mxu0 %v3153
      %v3155 = vpop.f32.mrf.mxu0
      %v3156 = vadd.f32 %v3091, %v3155
      %v3157 = vand.u32 %v2603, 4294901760
      %3158 = vmatmul.f32.gmra.mxu0 %v3157
      %v3159 = vpop.f32.mrf.mxu0
      %v3160 = vadd.f32 %v3095, %v3159
      %v3161 = vand.u32 %v2604, 4294901760
      %3162 = vmatmul.f32.gmra.mxu0 %v3161
      %v3163 = vpop.f32.mrf.mxu0
      %v3164 = vadd.f32 %v3099, %v3163
      %v3165 = vand.u32 %v2605, 4294901760
      %3166 = vmatmul.f32.gmra.mxu0 %v3165
      %v3167 = vpop.f32.mrf.mxu0
      %v3168 = vadd.f32 %v3103, %v3167
      %v3169 = vand.u32 %v2606, 4294901760
      %3170 = vmatmul.f32.gmra.mxu0 %v3169
      %v3171 = vpop.f32.mrf.mxu0
      %v3172 = vadd.f32 %v3107, %v3171
      %v3173 = vand.u32 %v2607, 4294901760
      %3174 = vmatmul.f32.gmra.mxu0 %v3173
      %v3175 = vpop.f32.mrf.mxu0
      %v3176 = vadd.f32 %v3111, %v3175
      %v3177 = vand.u32 %v2608, 4294901760
      %3178 = vmatmul.f32.gmra.mxu0 %v3177
      %v3179 = vpop.f32.mrf.mxu0
      %v3180 = vadd.f32 %v3115, %v3179
      %v3181 = vand.u32 %v2609, 4294901760
      %3182 = vmatmul.f32.gmra.mxu0 %v3181
      %v3183 = vpop.f32.mrf.mxu0
      %v3184 = vadd.f32 %v3119, %v3183
      %3185 = vdwg.mxu0
      %v3186 = vsub.f32 %v2602, %v3156
      %v3187 = vsub.f32 %v2603, %v3160
      %v3188 = vsub.f32 %v2604, %v3164
      %v3189 = vsub.f32 %v2605, %v3168
      %v3190 = vsub.f32 %v2606, %v3172
      %v3191 = vsub.f32 %v2607, %v3176
      %v3192 = vsub.f32 %v2608, %v3180
      %v3193 = vsub.f32 %v2609, %v3184
      %v3194 = vmul.f32 %v3186, %v3186
      %v3195 = vmul.f32 %v3187, %v3187
      %v3196 = vmul.f32 %v3188, %v3188
      %v3197 = vmul.f32 %v3189, %v3189
      %v3198 = vmul.f32 %v3190, %v3190
      %v3199 = vmul.f32 %v3191, %v3191
      %v3200 = vmul.f32 %v3192, %v3192
      %v3201 = vmul.f32 %v3193, %v3193
      %v3202 = vand.u32 %v2625, 4294901760
      %3203 = vmatpush.msra.mxu0 %v3202
      %v3204 = vand.u32 %v2624, 4294901760
      %3205 = vmatpush.msra.mxu0 %v3204
      %v3206 = vand.u32 %v2623, 4294901760
      %3207 = vmatpush.msra.mxu0 %v3206
      %v3208 = vand.u32 %v2622, 4294901760
      %3209 = vmatpush.msra.mxu0 %v3208
      %v3210 = vand.u32 %v2621, 4294901760
      %3211 = vmatpush.msra.mxu0 %v3210
      %v3212 = vand.u32 %v2620, 4294901760
      %3213 = vmatpush.msra.mxu0 %v3212
      %v3214 = vand.u32 %v2619, 4294901760
      %3215 = vmatpush.msra.mxu0 %v3214
      %v3216 = vand.u32 %v2618, 4294901760
      %3217 = vmatpush.msra.mxu0 %v3216
      %v3218 = vand.u32 %v2617, 4294901760
      %3219 = vmatpush.msra.mxu0 %v3218
      %v3220 = vand.u32 %v2616, 4294901760
      %3221 = vmatpush.msra.mxu0 %v3220
      %v3222 = vand.u32 %v2615, 4294901760
      %3223 = vmatpush.msra.mxu0 %v3222
      %v3224 = vand.u32 %v2614, 4294901760
      %3225 = vmatpush.msra.mxu0 %v3224
      %v3226 = vand.u32 %v2613, 4294901760
      %3227 = vmatpush.msra.mxu0 %v3226
      %v3228 = vand.u32 %v2612, 4294901760
      %3229 = vmatpush.msra.mxu0 %v3228
      %v3230 = vand.u32 %v2611, 4294901760
      %3231 = vmatpush.msra.mxu0 %v3230
      %v3232 = vand.u32 %v2610, 4294901760
      %3233 = vmatpush.msra.mxu0 %v3232
      %v3234 = vand.u32 %v3194, 4294901760
      %v3235 = vsub.f32 %v3194, %v3234
      %v3236 = vand.u32 %v3235, 4294901760
      %v3237 = vsub.f32 %v3235, %v3236
      %v3238 = vand.u32 %v3237, 4294901760
      %3239 = vmatmul.f32.gmra.mxu0 %v3238
      %v3240 = vpop.f32.mrf.mxu0
      %v3241 = vadd.f32 1e-05, %v3240
      %v3242 = vand.u32 %v3195, 4294901760
      %v3243 = vsub.f32 %v3195, %v3242
      %v3244 = vand.u32 %v3243, 4294901760
      %v3245 = vsub.f32 %v3243, %v3244
      %v3246 = vand.u32 %v3245, 4294901760
      %3247 = vmatmul.f32.gmra.mxu0 %v3246
      %v3248 = vpop.f32.mrf.mxu0
      %v3249 = vadd.f32 1e-05, %v3248
      %v3250 = vand.u32 %v3196, 4294901760
      %v3251 = vsub.f32 %v3196, %v3250
      %v3252 = vand.u32 %v3251, 4294901760
      %v3253 = vsub.f32 %v3251, %v3252
      %v3254 = vand.u32 %v3253, 4294901760
      %3255 = vmatmul.f32.gmra.mxu0 %v3254
      %v3256 = vpop.f32.mrf.mxu0
      %v3257 = vadd.f32 1e-05, %v3256
      %v3258 = vand.u32 %v3197, 4294901760
      %v3259 = vsub.f32 %v3197, %v3258
      %v3260 = vand.u32 %v3259, 4294901760
      %v3261 = vsub.f32 %v3259, %v3260
      %v3262 = vand.u32 %v3261, 4294901760
      %3263 = vmatmul.f32.gmra.mxu0 %v3262
      %v3264 = vpop.f32.mrf.mxu0
      %v3265 = vadd.f32 1e-05, %v3264
      %v3266 = vand.u32 %v3198, 4294901760
      %v3267 = vsub.f32 %v3198, %v3266
      %v3268 = vand.u32 %v3267, 4294901760
      %v3269 = vsub.f32 %v3267, %v3268
      %v3270 = vand.u32 %v3269, 4294901760
      %3271 = vmatmul.f32.gmra.mxu0 %v3270
      %v3272 = vpop.f32.mrf.mxu0
      %v3273 = vadd.f32 1e-05, %v3272
      %v3274 = vand.u32 %v3199, 4294901760
      %v3275 = vsub.f32 %v3199, %v3274
      %v3276 = vand.u32 %v3275, 4294901760
      %v3277 = vsub.f32 %v3275, %v3276
      %v3278 = vand.u32 %v3277, 4294901760
      %3279 = vmatmul.f32.gmra.mxu0 %v3278
      %v3280 = vpop.f32.mrf.mxu0
      %v3281 = vadd.f32 1e-05, %v3280
      %v3282 = vand.u32 %v3200, 4294901760
      %v3283 = vsub.f32 %v3200, %v3282
      %v3284 = vand.u32 %v3283, 4294901760
      %v3285 = vsub.f32 %v3283, %v3284
      %v3286 = vand.u32 %v3285, 4294901760
      %3287 = vmatmul.f32.gmra.mxu0 %v3286
      %v3288 = vpop.f32.mrf.mxu0
      %v3289 = vadd.f32 1e-05, %v3288
      %v3290 = vand.u32 %v3201, 4294901760
      %v3291 = vsub.f32 %v3201, %v3290
      %v3292 = vand.u32 %v3291, 4294901760
      %v3293 = vsub.f32 %v3291, %v3292
      %v3294 = vand.u32 %v3293, 4294901760
      %3295 = vmatmul.f32.gmra.mxu0 %v3294
      %v3296 = vpop.f32.mrf.mxu0
      %v3297 = vadd.f32 1e-05, %v3296
      %3298 = vdwg.mxu0
      %v3299 = vand.u32 %v2625, 4294901760
      %v3300 = vsub.f32 %v2625, %v3299
      %v3301 = vand.u32 %v3300, 4294901760
      %v3302 = vsub.f32 %v3300, %v3301
      %v3303 = vand.u32 %v3302, 4294901760
      %3304 = vmatpush.msra.mxu0 %v3303
      %v3305 = vand.u32 %v2624, 4294901760
      %v3306 = vsub.f32 %v2624, %v3305
      %v3307 = vand.u32 %v3306, 4294901760
      %v3308 = vsub.f32 %v3306, %v3307
      %v3309 = vand.u32 %v3308, 4294901760
      %3310 = vmatpush.msra.mxu0 %v3309
      %v3311 = vand.u32 %v2623, 4294901760
      %v3312 = vsub.f32 %v2623, %v3311
      %v3313 = vand.u32 %v3312, 4294901760
      %v3314 = vsub.f32 %v3312, %v3313
      %v3315 = vand.u32 %v3314, 4294901760
      %3316 = vmatpush.msra.mxu0 %v3315
      %v3317 = vand.u32 %v2622, 4294901760
      %v3318 = vsub.f32 %v2622, %v3317
      %v3319 = vand.u32 %v3318, 4294901760
      %v3320 = vsub.f32 %v3318, %v3319
      %v3321 = vand.u32 %v3320, 4294901760
      %3322 = vmatpush.msra.mxu0 %v3321
      %v3323 = vand.u32 %v2621, 4294901760
      %v3324 = vsub.f32 %v2621, %v3323
      %v3325 = vand.u32 %v3324, 4294901760
      %v3326 = vsub.f32 %v3324, %v3325
      %v3327 = vand.u32 %v3326, 4294901760
      %3328 = vmatpush.msra.mxu0 %v3327
      %v3329 = vand.u32 %v2620, 4294901760
      %v3330 = vsub.f32 %v2620, %v3329
      %v3331 = vand.u32 %v3330, 4294901760
      %v3332 = vsub.f32 %v3330, %v3331
      %v3333 = vand.u32 %v3332, 4294901760
      %3334 = vmatpush.msra.mxu0 %v3333
      %v3335 = vand.u32 %v2619, 4294901760
      %v3336 = vsub.f32 %v2619, %v3335
      %v3337 = vand.u32 %v3336, 4294901760
      %v3338 = vsub.f32 %v3336, %v3337
      %v3339 = vand.u32 %v3338, 4294901760
      %3340 = vmatpush.msra.mxu0 %v3339
      %v3341 = vand.u32 %v2618, 4294901760
      %v3342 = vsub.f32 %v2618, %v3341
      %v3343 = vand.u32 %v3342, 4294901760
      %v3344 = vsub.f32 %v3342, %v3343
      %v3345 = vand.u32 %v3344, 4294901760
      %3346 = vmatpush.msra.mxu0 %v3345
      %v3347 = vand.u32 %v2617, 4294901760
      %v3348 = vsub.f32 %v2617, %v3347
      %v3349 = vand.u32 %v3348, 4294901760
      %v3350 = vsub.f32 %v3348, %v3349
      %v3351 = vand.u32 %v3350, 4294901760
      %3352 = vmatpush.msra.mxu0 %v3351
      %v3353 = vand.u32 %v2616, 4294901760
      %v3354 = vsub.f32 %v2616, %v3353
      %v3355 = vand.u32 %v3354, 4294901760
      %v3356 = vsub.f32 %v3354, %v3355
      %v3357 = vand.u32 %v3356, 4294901760
      %3358 = vmatpush.msra.mxu0 %v3357
      %v3359 = vand.u32 %v2615, 4294901760
      %v3360 = vsub.f32 %v2615, %v3359
      %v3361 = vand.u32 %v3360, 4294901760
      %v3362 = vsub.f32 %v3360, %v3361
      %v3363 = vand.u32 %v3362, 4294901760
      %3364 = vmatpush.msra.mxu0 %v3363
      %v3365 = vand.u32 %v2614, 4294901760
      %v3366 = vsub.f32 %v2614, %v3365
      %v3367 = vand.u32 %v3366, 4294901760
      %v3368 = vsub.f32 %v3366, %v3367
      %v3369 = vand.u32 %v3368, 4294901760
      %3370 = vmatpush.msra.mxu0 %v3369
      %v3371 = vand.u32 %v2613, 4294901760
      %v3372 = vsub.f32 %v2613, %v3371
      %v3373 = vand.u32 %v3372, 4294901760
      %v3374 = vsub.f32 %v3372, %v3373
      %v3375 = vand.u32 %v3374, 4294901760
      %3376 = vmatpush.msra.mxu0 %v3375
      %v3377 = vand.u32 %v2612, 4294901760
      %v3378 = vsub.f32 %v2612, %v3377
      %v3379 = vand.u32 %v3378, 4294901760
      %v3380 = vsub.f32 %v3378, %v3379
      %v3381 = vand.u32 %v3380, 4294901760
      %3382 = vmatpush.msra.mxu0 %v3381
      %v3383 = vand.u32 %v2611, 4294901760
      %v3384 = vsub.f32 %v2611, %v3383
      %v3385 = vand.u32 %v3384, 4294901760
      %v3386 = vsub.f32 %v3384, %v3385
      %v3387 = vand.u32 %v3386, 4294901760
      %3388 = vmatpush.msra.mxu0 %v3387
      %v3389 = vand.u32 %v2610, 4294901760
      %v3390 = vsub.f32 %v2610, %v3389
      %v3391 = vand.u32 %v3390, 4294901760
      %v3392 = vsub.f32 %v3390, %v3391
      %v3393 = vand.u32 %v3392, 4294901760
      %3394 = vmatpush.msra.mxu0 %v3393
      %v3395 = vand.u32 %v3194, 4294901760
      %3396 = vmatmul.f32.gmra.mxu0 %v3395
      %v3397 = vpop.f32.mrf.mxu0
      %v3398 = vadd.f32 %v3241, %v3397
      %v3399 = vand.u32 %v3195, 4294901760
      %3400 = vmatmul.f32.gmra.mxu0 %v3399
      %v3401 = vpop.f32.mrf.mxu0
      %v3402 = vadd.f32 %v3249, %v3401
      %v3403 = vand.u32 %v3196, 4294901760
      %3404 = vmatmul.f32.gmra.mxu0 %v3403
      %v3405 = vpop.f32.mrf.mxu0
      %v3406 = vadd.f32 %v3257, %v3405
      %v3407 = vand.u32 %v3197, 4294901760
      %3408 = vmatmul.f32.gmra.mxu0 %v3407
      %v3409 = vpop.f32.mrf.mxu0
      %v3410 = vadd.f32 %v3265, %v3409
      %v3411 = vand.u32 %v3198, 4294901760
      %3412 = vmatmul.f32.gmra.mxu0 %v3411
      %v3413 = vpop.f32.mrf.mxu0
      %v3414 = vadd.f32 %v3273, %v3413
      %v3415 = vand.u32 %v3199, 4294901760
      %3416 = vmatmul.f32.gmra.mxu0 %v3415
      %v3417 = vpop.f32.mrf.mxu0
      %v3418 = vadd.f32 %v3281, %v3417
      %v3419 = vand.u32 %v3200, 4294901760
      %3420 = vmatmul.f32.gmra.mxu0 %v3419
      %v3421 = vpop.f32.mrf.mxu0
      %v3422 = vadd.f32 %v3289, %v3421
      %v3423 = vand.u32 %v3201, 4294901760
      %3424 = vmatmul.f32.gmra.mxu0 %v3423
      %v3425 = vpop.f32.mrf.mxu0
      %v3426 = vadd.f32 %v3297, %v3425
      %3427 = vdwg.mxu0
      %v3428 = vand.u32 %v2625, 4294901760
      %v3429 = vsub.f32 %v2625, %v3428
      %3430 = vmatpush.msra.mxu0 %v3429
      %v3431 = vand.u32 %v2624, 4294901760
      %v3432 = vsub.f32 %v2624, %v3431
      %3433 = vmatpush.msra.mxu0 %v3432
      %v3434 = vand.u32 %v2623, 4294901760
      %v3435 = vsub.f32 %v2623, %v3434
      %3436 = vmatpush.msra.mxu0 %v3435
      %v3437 = vand.u32 %v2622, 4294901760
      %v3438 = vsub.f32 %v2622, %v3437
      %3439 = vmatpush.msra.mxu0 %v3438
      %v3440 = vand.u32 %v2621, 4294901760
      %v3441 = vsub.f32 %v2621, %v3440
      %3442 = vmatpush.msra.mxu0 %v3441
      %v3443 = vand.u32 %v2620, 4294901760
      %v3444 = vsub.f32 %v2620, %v3443
      %3445 = vmatpush.msra.mxu0 %v3444
      %v3446 = vand.u32 %v2619, 4294901760
      %v3447 = vsub.f32 %v2619, %v3446
      %3448 = vmatpush.msra.mxu0 %v3447
      %v3449 = vand.u32 %v2618, 4294901760
      %v3450 = vsub.f32 %v2618, %v3449
      %3451 = vmatpush.msra.mxu0 %v3450
      %v3452 = vand.u32 %v2617, 4294901760
      %v3453 = vsub.f32 %v2617, %v3452
      %3454 = vmatpush.msra.mxu0 %v3453
      %v3455 = vand.u32 %v2616, 4294901760
      %v3456 = vsub.f32 %v2616, %v3455
      %3457 = vmatpush.msra.mxu0 %v3456
      %v3458 = vand.u32 %v2615, 4294901760
      %v3459 = vsub.f32 %v2615, %v3458
      %3460 = vmatpush.msra.mxu0 %v3459
      %v3461 = vand.u32 %v2614, 4294901760
      %v3462 = vsub.f32 %v2614, %v3461
      %3463 = vmatpush.msra.mxu0 %v3462
      %v3464 = vand.u32 %v2613, 4294901760
      %v3465 = vsub.f32 %v2613, %v3464
      %3466 = vmatpush.msra.mxu0 %v3465
      %v3467 = vand.u32 %v2612, 4294901760
      %v3468 = vsub.f32 %v2612, %v3467
      %3469 = vmatpush.msra.mxu0 %v3468
      %v3470 = vand.u32 %v2611, 4294901760
      %v3471 = vsub.f32 %v2611, %v3470
      %3472 = vmatpush.msra.mxu0 %v3471
      %v3473 = vand.u32 %v2610, 4294901760
      %v3474 = vsub.f32 %v2610, %v3473
      %3475 = vmatpush.msra.mxu0 %v3474
      %v3476 = vand.u32 %v3194, 4294901760
      %v3477 = vsub.f32 %v3194, %v3476
      %3478 = vmatmul.f32.gmra.mxu0 %v3477
      %v3479 = vpop.f32.mrf.mxu0
      %v3480 = vadd.f32 %v3398, %v3479
      %v3481 = vand.u32 %v3195, 4294901760
      %v3482 = vsub.f32 %v3195, %v3481
      %3483 = vmatmul.f32.gmra.mxu0 %v3482
      %v3484 = vpop.f32.mrf.mxu0
      %v3485 = vadd.f32 %v3402, %v3484
      %v3486 = vand.u32 %v3196, 4294901760
      %v3487 = vsub.f32 %v3196, %v3486
      %3488 = vmatmul.f32.gmra.mxu0 %v3487
      %v3489 = vpop.f32.mrf.mxu0
      %v3490 = vadd.f32 %v3406, %v3489
      %v3491 = vand.u32 %v3197, 4294901760
      %v3492 = vsub.f32 %v3197, %v3491
      %3493 = vmatmul.f32.gmra.mxu0 %v3492
      %v3494 = vpop.f32.mrf.mxu0
      %v3495 = vadd.f32 %v3410, %v3494
      %v3496 = vand.u32 %v3198, 4294901760
      %v3497 = vsub.f32 %v3198, %v3496
      %3498 = vmatmul.f32.gmra.mxu0 %v3497
      %v3499 = vpop.f32.mrf.mxu0
      %v3500 = vadd.f32 %v3414, %v3499
      %v3501 = vand.u32 %v3199, 4294901760
      %v3502 = vsub.f32 %v3199, %v3501
      %3503 = vmatmul.f32.gmra.mxu0 %v3502
      %v3504 = vpop.f32.mrf.mxu0
      %v3505 = vadd.f32 %v3418, %v3504
      %v3506 = vand.u32 %v3200, 4294901760
      %v3507 = vsub.f32 %v3200, %v3506
      %3508 = vmatmul.f32.gmra.mxu0 %v3507
      %v3509 = vpop.f32.mrf.mxu0
      %v3510 = vadd.f32 %v3422, %v3509
      %v3511 = vand.u32 %v3201, 4294901760
      %v3512 = vsub.f32 %v3201, %v3511
      %3513 = vmatmul.f32.gmra.mxu0 %v3512
      %v3514 = vpop.f32.mrf.mxu0
      %v3515 = vadd.f32 %v3426, %v3514
      %3516 = vdwg.mxu0
      %v3517 = vand.u32 %v2625, 4294901760
      %3518 = vmatpush.msra.mxu0 %v3517
      %v3519 = vand.u32 %v2624, 4294901760
      %3520 = vmatpush.msra.mxu0 %v3519
      %v3521 = vand.u32 %v2623, 4294901760
      %3522 = vmatpush.msra.mxu0 %v3521
      %v3523 = vand.u32 %v2622, 4294901760
      %3524 = vmatpush.msra.mxu0 %v3523
      %v3525 = vand.u32 %v2621, 4294901760
      %3526 = vmatpush.msra.mxu0 %v3525
      %v3527 = vand.u32 %v2620, 4294901760
      %3528 = vmatpush.msra.mxu0 %v3527
      %v3529 = vand.u32 %v2619, 4294901760
      %3530 = vmatpush.msra.mxu0 %v3529
      %v3531 = vand.u32 %v2618, 4294901760
      %3532 = vmatpush.msra.mxu0 %v3531
      %v3533 = vand.u32 %v2617, 4294901760
      %3534 = vmatpush.msra.mxu0 %v3533
      %v3535 = vand.u32 %v2616, 4294901760
      %3536 = vmatpush.msra.mxu0 %v3535
      %v3537 = vand.u32 %v2615, 4294901760
      %3538 = vmatpush.msra.mxu0 %v3537
      %v3539 = vand.u32 %v2614, 4294901760
      %3540 = vmatpush.msra.mxu0 %v3539
      %v3541 = vand.u32 %v2613, 4294901760
      %3542 = vmatpush.msra.mxu0 %v3541
      %v3543 = vand.u32 %v2612, 4294901760
      %3544 = vmatpush.msra.mxu0 %v3543
      %v3545 = vand.u32 %v2611, 4294901760
      %3546 = vmatpush.msra.mxu0 %v3545
      %v3547 = vand.u32 %v2610, 4294901760
      %3548 = vmatpush.msra.mxu0 %v3547
      %v3549 = vand.u32 %v3194, 4294901760
      %v3550 = vsub.f32 %v3194, %v3549
      %v3551 = vand.u32 %v3550, 4294901760
      %3552 = vmatmul.f32.gmra.mxu0 %v3551
      %v3553 = vpop.f32.mrf.mxu0
      %v3554 = vadd.f32 %v3480, %v3553
      %v3555 = vand.u32 %v3195, 4294901760
      %v3556 = vsub.f32 %v3195, %v3555
      %v3557 = vand.u32 %v3556, 4294901760
      %3558 = vmatmul.f32.gmra.mxu0 %v3557
      %v3559 = vpop.f32.mrf.mxu0
      %v3560 = vadd.f32 %v3485, %v3559
      %v3561 = vand.u32 %v3196, 4294901760
      %v3562 = vsub.f32 %v3196, %v3561
      %v3563 = vand.u32 %v3562, 4294901760
      %3564 = vmatmul.f32.gmra.mxu0 %v3563
      %v3565 = vpop.f32.mrf.mxu0
      %v3566 = vadd.f32 %v3490, %v3565
      %v3567 = vand.u32 %v3197, 4294901760
      %v3568 = vsub.f32 %v3197, %v3567
      %v3569 = vand.u32 %v3568, 4294901760
      %3570 = vmatmul.f32.gmra.mxu0 %v3569
      %v3571 = vpop.f32.mrf.mxu0
      %v3572 = vadd.f32 %v3495, %v3571
      %v3573 = vand.u32 %v3198, 4294901760
      %v3574 = vsub.f32 %v3198, %v3573
      %v3575 = vand.u32 %v3574, 4294901760
      %3576 = vmatmul.f32.gmra.mxu0 %v3575
      %v3577 = vpop.f32.mrf.mxu0
      %v3578 = vadd.f32 %v3500, %v3577
      %v3579 = vand.u32 %v3199, 4294901760
      %v3580 = vsub.f32 %v3199, %v3579
      %v3581 = vand.u32 %v3580, 4294901760
      %3582 = vmatmul.f32.gmra.mxu0 %v3581
      %v3583 = vpop.f32.mrf.mxu0
      %v3584 = vadd.f32 %v3505, %v3583
      %v3585 = vand.u32 %v3200, 4294901760
      %v3586 = vsub.f32 %v3200, %v3585
      %v3587 = vand.u32 %v3586, 4294901760
      %3588 = vmatmul.f32.gmra.mxu0 %v3587
      %v3589 = vpop.f32.mrf.mxu0
      %v3590 = vadd.f32 %v3510, %v3589
      %v3591 = vand.u32 %v3201, 4294901760
      %v3592 = vsub.f32 %v3201, %v3591
      %v3593 = vand.u32 %v3592, 4294901760
      %3594 = vmatmul.f32.gmra.mxu0 %v3593
      %v3595 = vpop.f32.mrf.mxu0
      %v3596 = vadd.f32 %v3515, %v3595
      %3597 = vdwg.mxu0
      %v3598 = vand.u32 %v2625, 4294901760
      %v3599 = vsub.f32 %v2625, %v3598
      %v3600 = vand.u32 %v3599, 4294901760
      %3601 = vmatpush.msra.mxu0 %v3600
      %v3602 = vand.u32 %v2624, 4294901760
      %v3603 = vsub.f32 %v2624, %v3602
      %v3604 = vand.u32 %v3603, 4294901760
      %3605 = vmatpush.msra.mxu0 %v3604
      %v3606 = vand.u32 %v2623, 4294901760
      %v3607 = vsub.f32 %v2623, %v3606
      %v3608 = vand.u32 %v3607, 4294901760
      %3609 = vmatpush.msra.mxu0 %v3608
      %v3610 = vand.u32 %v2622, 4294901760
      %v3611 = vsub.f32 %v2622, %v3610
      %v3612 = vand.u32 %v3611, 4294901760
      %3613 = vmatpush.msra.mxu0 %v3612
      %v3614 = vand.u32 %v2621, 4294901760
      %v3615 = vsub.f32 %v2621, %v3614
      %v3616 = vand.u32 %v3615, 4294901760
      %3617 = vmatpush.msra.mxu0 %v3616
      %v3618 = vand.u32 %v2620, 4294901760
      %v3619 = vsub.f32 %v2620, %v3618
      %v3620 = vand.u32 %v3619, 4294901760
      %3621 = vmatpush.msra.mxu0 %v3620
      %v3622 = vand.u32 %v2619, 4294901760
      %v3623 = vsub.f32 %v2619, %v3622
      %v3624 = vand.u32 %v3623, 4294901760
      %3625 = vmatpush.msra.mxu0 %v3624
      %v3626 = vand.u32 %v2618, 4294901760
      %v3627 = vsub.f32 %v2618, %v3626
      %v3628 = vand.u32 %v3627, 4294901760
      %3629 = vmatpush.msra.mxu0 %v3628
      %v3630 = vand.u32 %v2617, 4294901760
      %v3631 = vsub.f32 %v2617, %v3630
      %v3632 = vand.u32 %v3631, 4294901760
      %3633 = vmatpush.msra.mxu0 %v3632
      %v3634 = vand.u32 %v2616, 4294901760
      %v3635 = vsub.f32 %v2616, %v3634
      %v3636 = vand.u32 %v3635, 4294901760
      %3637 = vmatpush.msra.mxu0 %v3636
      %v3638 = vand.u32 %v2615, 4294901760
      %v3639 = vsub.f32 %v2615, %v3638
      %v3640 = vand.u32 %v3639, 4294901760
      %3641 = vmatpush.msra.mxu0 %v3640
      %v3642 = vand.u32 %v2614, 4294901760
      %v3643 = vsub.f32 %v2614, %v3642
      %v3644 = vand.u32 %v3643, 4294901760
      %3645 = vmatpush.msra.mxu0 %v3644
      %v3646 = vand.u32 %v2613, 4294901760
      %v3647 = vsub.f32 %v2613, %v3646
      %v3648 = vand.u32 %v3647, 4294901760
      %3649 = vmatpush.msra.mxu0 %v3648
      %v3650 = vand.u32 %v2612, 4294901760
      %v3651 = vsub.f32 %v2612, %v3650
      %v3652 = vand.u32 %v3651, 4294901760
      %3653 = vmatpush.msra.mxu0 %v3652
      %v3654 = vand.u32 %v2611, 4294901760
      %v3655 = vsub.f32 %v2611, %v3654
      %v3656 = vand.u32 %v3655, 4294901760
      %3657 = vmatpush.msra.mxu0 %v3656
      %v3658 = vand.u32 %v2610, 4294901760
      %v3659 = vsub.f32 %v2610, %v3658
      %v3660 = vand.u32 %v3659, 4294901760
      %3661 = vmatpush.msra.mxu0 %v3660
      %v3662 = vand.u32 %v3194, 4294901760
      %3663 = vmatmul.f32.gmra.mxu0 %v3662
      %v3664 = vpop.f32.mrf.mxu0
      %v3665 = vadd.f32 %v3554, %v3664
      %v3666 = vand.u32 %v3195, 4294901760
      %3667 = vmatmul.f32.gmra.mxu0 %v3666
      %v3668 = vpop.f32.mrf.mxu0
      %v3669 = vadd.f32 %v3560, %v3668
      %v3670 = vand.u32 %v3196, 4294901760
      %3671 = vmatmul.f32.gmra.mxu0 %v3670
      %v3672 = vpop.f32.mrf.mxu0
      %v3673 = vadd.f32 %v3566, %v3672
      %v3674 = vand.u32 %v3197, 4294901760
      %3675 = vmatmul.f32.gmra.mxu0 %v3674
      %v3676 = vpop.f32.mrf.mxu0
      %v3677 = vadd.f32 %v3572, %v3676
      %v3678 = vand.u32 %v3198, 4294901760
      %3679 = vmatmul.f32.gmra.mxu0 %v3678
      %v3680 = vpop.f32.mrf.mxu0
      %v3681 = vadd.f32 %v3578, %v3680
      %v3682 = vand.u32 %v3199, 4294901760
      %3683 = vmatmul.f32.gmra.mxu0 %v3682
      %v3684 = vpop.f32.mrf.mxu0
      %v3685 = vadd.f32 %v3584, %v3684
      %v3686 = vand.u32 %v3200, 4294901760
      %3687 = vmatmul.f32.gmra.mxu0 %v3686
      %v3688 = vpop.f32.mrf.mxu0
      %v3689 = vadd.f32 %v3590, %v3688
      %v3690 = vand.u32 %v3201, 4294901760
      %3691 = vmatmul.f32.gmra.mxu0 %v3690
      %v3692 = vpop.f32.mrf.mxu0
      %v3693 = vadd.f32 %v3596, %v3692
      %3694 = vdwg.mxu0
      %v3695 = vand.u32 %v2625, 4294901760
      %3696 = vmatpush.msra.mxu0 %v3695
      %v3697 = vand.u32 %v2624, 4294901760
      %3698 = vmatpush.msra.mxu0 %v3697
      %v3699 = vand.u32 %v2623, 4294901760
      %3700 = vmatpush.msra.mxu0 %v3699
      %v3701 = vand.u32 %v2622, 4294901760
      %3702 = vmatpush.msra.mxu0 %v3701
      %v3703 = vand.u32 %v2621, 4294901760
      %3704 = vmatpush.msra.mxu0 %v3703
      %v3705 = vand.u32 %v2620, 4294901760
      %3706 = vmatpush.msra.mxu0 %v3705
      %v3707 = vand.u32 %v2619, 4294901760
      %3708 = vmatpush.msra.mxu0 %v3707
      %v3709 = vand.u32 %v2618, 4294901760
      %3710 = vmatpush.msra.mxu0 %v3709
      %v3711 = vand.u32 %v2617, 4294901760
      %3712 = vmatpush.msra.mxu0 %v3711
      %v3713 = vand.u32 %v2616, 4294901760
      %3714 = vmatpush.msra.mxu0 %v3713
      %v3715 = vand.u32 %v2615, 4294901760
      %3716 = vmatpush.msra.mxu0 %v3715
      %v3717 = vand.u32 %v2614, 4294901760
      %3718 = vmatpush.msra.mxu0 %v3717
      %v3719 = vand.u32 %v2613, 4294901760
      %3720 = vmatpush.msra.mxu0 %v3719
      %v3721 = vand.u32 %v2612, 4294901760
      %3722 = vmatpush.msra.mxu0 %v3721
      %v3723 = vand.u32 %v2611, 4294901760
      %3724 = vmatpush.msra.mxu0 %v3723
      %v3725 = vand.u32 %v2610, 4294901760
      %3726 = vmatpush.msra.mxu0 %v3725
      %v3727 = vand.u32 %v3194, 4294901760
      %3728 = vmatmul.f32.gmra.mxu0 %v3727
      %v3729 = vpop.f32.mrf.mxu0
      %v3730 = vadd.f32 %v3665, %v3729
      %v3731 = vand.u32 %v3195, 4294901760
      %3732 = vmatmul.f32.gmra.mxu0 %v3731
      %v3733 = vpop.f32.mrf.mxu0
      %v3734 = vadd.f32 %v3669, %v3733
      %v3735 = vand.u32 %v3196, 4294901760
      %3736 = vmatmul.f32.gmra.mxu0 %v3735
      %v3737 = vpop.f32.mrf.mxu0
      %v3738 = vadd.f32 %v3673, %v3737
      %v3739 = vand.u32 %v3197, 4294901760
      %3740 = vmatmul.f32.gmra.mxu0 %v3739
      %v3741 = vpop.f32.mrf.mxu0
      %v3742 = vadd.f32 %v3677, %v3741
      %v3743 = vand.u32 %v3198, 4294901760
      %3744 = vmatmul.f32.gmra.mxu0 %v3743
      %v3745 = vpop.f32.mrf.mxu0
      %v3746 = vadd.f32 %v3681, %v3745
      %v3747 = vand.u32 %v3199, 4294901760
      %3748 = vmatmul.f32.gmra.mxu0 %v3747
      %v3749 = vpop.f32.mrf.mxu0
      %v3750 = vadd.f32 %v3685, %v3749
      %v3751 = vand.u32 %v3200, 4294901760
      %3752 = vmatmul.f32.gmra.mxu0 %v3751
      %v3753 = vpop.f32.mrf.mxu0
      %v3754 = vadd.f32 %v3689, %v3753
      %v3755 = vand.u32 %v3201, 4294901760
      %3756 = vmatmul.f32.gmra.mxu0 %v3755
      %v3757 = vpop.f32.mrf.mxu0
      %v3758 = vadd.f32 %v3693, %v3757
      %3759 = vdwg.mxu0
      %v3760 = vrsqrt.pop %v3730
      %v3761 = vmul.f32 %v3760, %v3730
      %v3762 = vmul.f32 %v3761, %v3760
      %v3763 = vmul.f32 0.5, %v3762
      %v3764 = vsub.f32 1.5, %v3763
      %v3765 = vmul.f32 %v3760, %v3764
      %vm3766 = vweird.f32 %v3730
      %vm3767 = vweird.f32 %v3760
      %vm3768 = vmor %vm3766, %vm3767
      %v3769 = vsel %vm3768, %v3760, %v3765
      %v3770 = vrsqrt.pop %v3734
      %v3771 = vmul.f32 %v3770, %v3734
      %v3772 = vmul.f32 %v3771, %v3770
      %v3773 = vmul.f32 0.5, %v3772
      %v3774 = vsub.f32 1.5, %v3773
      %v3775 = vmul.f32 %v3770, %v3774
      %vm3776 = vweird.f32 %v3734
      %vm3777 = vweird.f32 %v3770
      %vm3778 = vmor %vm3776, %vm3777
      %v3779 = vsel %vm3778, %v3770, %v3775
      %v3780 = vrsqrt.pop %v3738
      %v3781 = vmul.f32 %v3780, %v3738
      %v3782 = vmul.f32 %v3781, %v3780
      %v3783 = vmul.f32 0.5, %v3782
      %v3784 = vsub.f32 1.5, %v3783
      %v3785 = vmul.f32 %v3780, %v3784
      %vm3786 = vweird.f32 %v3738
      %vm3787 = vweird.f32 %v3780
      %vm3788 = vmor %vm3786, %vm3787
      %v3789 = vsel %vm3788, %v3780, %v3785
      %v3790 = vrsqrt.pop %v3742
      %v3791 = vmul.f32 %v3790, %v3742
      %v3792 = vmul.f32 %v3791, %v3790
      %v3793 = vmul.f32 0.5, %v3792
      %v3794 = vsub.f32 1.5, %v3793
      %v3795 = vmul.f32 %v3790, %v3794
      %vm3796 = vweird.f32 %v3742
      %vm3797 = vweird.f32 %v3790
      %vm3798 = vmor %vm3796, %vm3797
      %v3799 = vsel %vm3798, %v3790, %v3795
      %v3800 = vrsqrt.pop %v3746
      %v3801 = vmul.f32 %v3800, %v3746
      %v3802 = vmul.f32 %v3801, %v3800
      %v3803 = vmul.f32 0.5, %v3802
      %v3804 = vsub.f32 1.5, %v3803
      %v3805 = vmul.f32 %v3800, %v3804
      %vm3806 = vweird.f32 %v3746
      %vm3807 = vweird.f32 %v3800
      %vm3808 = vmor %vm3806, %vm3807
      %v3809 = vsel %vm3808, %v3800, %v3805
      %v3810 = vrsqrt.pop %v3750
      %v3811 = vmul.f32 %v3810, %v3750
      %v3812 = vmul.f32 %v3811, %v3810
      %v3813 = vmul.f32 0.5, %v3812
      %v3814 = vsub.f32 1.5, %v3813
      %v3815 = vmul.f32 %v3810, %v3814
      %vm3816 = vweird.f32 %v3750
      %vm3817 = vweird.f32 %v3810
      %vm3818 = vmor %vm3816, %vm3817
      %v3819 = vsel %vm3818, %v3810, %v3815
      %v3820 = vrsqrt.pop %v3754
      %v3821 = vmul.f32 %v3820, %v3754
      %v3822 = vmul.f32 %v3821, %v3820
      %v3823 = vmul.f32 0.5, %v3822
      %v3824 = vsub.f32 1.5, %v3823
      %v3825 = vmul.f32 %v3820, %v3824
      %vm3826 = vweird.f32 %v3754
      %vm3827 = vweird.f32 %v3820
      %vm3828 = vmor %vm3826, %vm3827
      %v3829 = vsel %vm3828, %v3820, %v3825
      %v3830 = vrsqrt.pop %v3758
      %v3831 = vmul.f32 %v3830, %v3758
      %v3832 = vmul.f32 %v3831, %v3830
      %v3833 = vmul.f32 0.5, %v3832
      %v3834 = vsub.f32 1.5, %v3833
      %v3835 = vmul.f32 %v3830, %v3834
      %vm3836 = vweird.f32 %v3758
      %vm3837 = vweird.f32 %v3830
      %vm3838 = vmor %vm3836, %vm3837
      %v3839 = vsel %vm3838, %v3830, %v3835
      %v3840 = vmul.f32 %v3186, %v3769
      %v3841 = vmul.f32 %v3187, %v3779
      %v3842 = vmul.f32 %v3188, %v3789
      %v3843 = vmul.f32 %v3189, %v3799
      %v3844 = vmul.f32 %v3190, %v3809
      %v3845 = vmul.f32 %v3191, %v3819
      %v3846 = vmul.f32 %v3192, %v3829
      %v3847 = vmul.f32 %v3193, %v3839
      %v3849 = vperm.slane %v2626, 0
      %v3851 = vmul.f32 %v3840, %v3849
      %v3852 = vmul.f32 %v3841, %v3849
      %v3853 = vmul.f32 %v3842, %v3849
      %v3854 = vmul.f32 %v3843, %v3849
      %v3855 = vmul.f32 %v3844, %v3849
      %v3856 = vmul.f32 %v3845, %v3849
      %v3857 = vmul.f32 %v3846, %v3849
      %v3858 = vmul.f32 %v3847, %v3849
      %v3860 = vperm.slane %v2627, 0
      %v3862 = vadd.f32 %v3851, %v3860
      %v3863 = vadd.f32 %v3852, %v3860
      %v3864 = vadd.f32 %v3853, %v3860
      %v3865 = vadd.f32 %v3854, %v3860
      %v3866 = vadd.f32 %v3855, %v3860
      %v3867 = vadd.f32 %v3856, %v3860
      %v3868 = vadd.f32 %v3857, %v3860
      %v3869 = vadd.f32 %v3858, %v3860
      %v3870 = vmul.f32 %v3862, 0.5
      %v3871 = vmul.f32 %v3863, 0.5
      %v3872 = vmul.f32 %v3864, 0.5
      %v3873 = vmul.f32 %v3865, 0.5
      %v3874 = vmul.f32 %v3866, 0.5
      %v3875 = vmul.f32 %v3867, 0.5
      %v3876 = vmul.f32 %v3868, 0.5
      %v3877 = vmul.f32 %v3869, 0.5
      %v3878 = vmul.f32 %v3862, 0.044715
      %v3879 = vmul.f32 %v3863, 0.044715
      %v3880 = vmul.f32 %v3864, 0.044715
      %v3881 = vmul.f32 %v3865, 0.044715
      %v3882 = vmul.f32 %v3866, 0.044715
      %v3883 = vmul.f32 %v3867, 0.044715
      %v3884 = vmul.f32 %v3868, 0.044715
      %v3885 = vmul.f32 %v3869, 0.044715
      %v3886 = vmul.f32 %v3878, %v3862
      %v3887 = vmul.f32 %v3879, %v3863
      %v3888 = vmul.f32 %v3880, %v3864
      %v3889 = vmul.f32 %v3881, %v3865
      %v3890 = vmul.f32 %v3882, %v3866
      %v3891 = vmul.f32 %v3883, %v3867
      %v3892 = vmul.f32 %v3884, %v3868
      %v3893 = vmul.f32 %v3885, %v3869
      %v3894 = vmul.f32 %v3886, %v3862
      %v3895 = vmul.f32 %v3887, %v3863
      %v3896 = vmul.f32 %v3888, %v3864
      %v3897 = vmul.f32 %v3889, %v3865
      %v3898 = vmul.f32 %v3890, %v3866
      %v3899 = vmul.f32 %v3891, %v3867
      %v3900 = vmul.f32 %v3892, %v3868
      %v3901 = vmul.f32 %v3893, %v3869
      %v3902 = vadd.f32 %v3862, %v3894
      %v3903 = vadd.f32 %v3863, %v3895
      %v3904 = vadd.f32 %v3864, %v3896
      %v3905 = vadd.f32 %v3865, %v3897
      %v3906 = vadd.f32 %v3866, %v3898
      %v3907 = vadd.f32 %v3867, %v3899
      %v3908 = vadd.f32 %v3868, %v3900
      %v3909 = vadd.f32 %v3869, %v3901
      %v3910 = vmul.f32 %v3902, 0.7978846
      %v3911 = vmul.f32 %v3903, 0.7978846
      %v3912 = vmul.f32 %v3904, 0.7978846
      %v3913 = vmul.f32 %v3905, 0.7978846
      %v3914 = vmul.f32 %v3906, 0.7978846
      %v3915 = vmul.f32 %v3907, 0.7978846
      %v3916 = vmul.f32 %v3908, 0.7978846
      %v3917 = vmul.f32 %v3909, 0.7978846
      %v3918 = vtanh.pop %v3910
      %v3919 = vtanh.pop %v3911
      %v3920 = vtanh.pop %v3912
      %v3921 = vtanh.pop %v3913
      %v3922 = vtanh.pop %v3914
      %v3923 = vtanh.pop %v3915
      %v3924 = vtanh.pop %v3916
      %v3925 = vtanh.pop %v3917
      %v3926 = vadd.f32 %v3918, 1.0
      %v3927 = vadd.f32 %v3919, 1.0
      %v3928 = vadd.f32 %v3920, 1.0
      %v3929 = vadd.f32 %v3921, 1.0
      %v3930 = vadd.f32 %v3922, 1.0
      %v3931 = vadd.f32 %v3923, 1.0
      %v3932 = vadd.f32 %v3924, 1.0
      %v3933 = vadd.f32 %v3925, 1.0
      %v3934 = vmul.f32 %v3870, %v3926
      %v3935 = vmul.f32 %v3871, %v3927
      %v3936 = vmul.f32 %v3872, %v3928
      %v3937 = vmul.f32 %v3873, %v3929
      %v3938 = vmul.f32 %v3874, %v3930
      %v3939 = vmul.f32 %v3875, %v3931
      %v3940 = vmul.f32 %v3876, %v3932
      %v3941 = vmul.f32 %v3877, %v3933
      %v3942 = vld [vmem:[%s8] sm:$0x1]
      %v3943 = vld [vmem:[%s9] sm:$0x1]
      %v3944 = vand.u32 %v2625, 4294901760
      %3945 = vmatpush.msra.mxu0 %v3944
      %v3946 = vand.u32 %v2624, 4294901760
      %3947 = vmatpush.msra.mxu0 %v3946
      %v3948 = vand.u32 %v2623, 4294901760
      %3949 = vmatpush.msra.mxu0 %v3948
      %v3950 = vand.u32 %v2622, 4294901760
      %3951 = vmatpush.msra.mxu0 %v3950
      %v3952 = vand.u32 %v2621, 4294901760
      %3953 = vmatpush.msra.mxu0 %v3952
      %v3954 = vand.u32 %v2620, 4294901760
      %3955 = vmatpush.msra.mxu0 %v3954
      %v3956 = vand.u32 %v2619, 4294901760
      %3957 = vmatpush.msra.mxu0 %v3956
      %v3958 = vand.u32 %v2618, 4294901760
      %3959 = vmatpush.msra.mxu0 %v3958
      %v3960 = vand.u32 %v2617, 4294901760
      %3961 = vmatpush.msra.mxu0 %v3960
      %v3962 = vand.u32 %v2616, 4294901760
      %3963 = vmatpush.msra.mxu0 %v3962
      %v3964 = vand.u32 %v2615, 4294901760
      %3965 = vmatpush.msra.mxu0 %v3964
      %v3966 = vand.u32 %v2614, 4294901760
      %3967 = vmatpush.msra.mxu0 %v3966
      %v3968 = vand.u32 %v2613, 4294901760
      %3969 = vmatpush.msra.mxu0 %v3968
      %v3970 = vand.u32 %v2612, 4294901760
      %3971 = vmatpush.msra.mxu0 %v3970
      %v3972 = vand.u32 %v2611, 4294901760
      %3973 = vmatpush.msra.mxu0 %v3972
      %v3974 = vand.u32 %v2610, 4294901760
      %3975 = vmatpush.msra.mxu0 %v3974
      %v3976 = vand.u32 %v3934, 4294901760
      %v3977 = vsub.f32 %v3934, %v3976
      %v3978 = vand.u32 %v3977, 4294901760
      %v3979 = vsub.f32 %v3977, %v3978
      %v3980 = vand.u32 %v3979, 4294901760
      %3981 = vmatmul.f32.gmra.mxu0 %v3980
      %v3982 = vpop.f32.mrf.mxu0
      %v3983 = vadd.f32 0.0, %v3982
      %v3984 = vand.u32 %v3935, 4294901760
      %v3985 = vsub.f32 %v3935, %v3984
      %v3986 = vand.u32 %v3985, 4294901760
      %v3987 = vsub.f32 %v3985, %v3986
      %v3988 = vand.u32 %v3987, 4294901760
      %3989 = vmatmul.f32.gmra.mxu0 %v3988
      %v3990 = vpop.f32.mrf.mxu0
      %v3991 = vadd.f32 0.0, %v3990
      %v3992 = vand.u32 %v3936, 4294901760
      %v3993 = vsub.f32 %v3936, %v3992
      %v3994 = vand.u32 %v3993, 4294901760
      %v3995 = vsub.f32 %v3993, %v3994
      %v3996 = vand.u32 %v3995, 4294901760
      %3997 = vmatmul.f32.gmra.mxu0 %v3996
      %v3998 = vpop.f32.mrf.mxu0
      %v3999 = vadd.f32 0.0, %v3998
      %v4000 = vand.u32 %v3937, 4294901760
      %v4001 = vsub.f32 %v3937, %v4000
      %v4002 = vand.u32 %v4001, 4294901760
      %v4003 = vsub.f32 %v4001, %v4002
      %v4004 = vand.u32 %v4003, 4294901760
      %4005 = vmatmul.f32.gmra.mxu0 %v4004
      %v4006 = vpop.f32.mrf.mxu0
      %v4007 = vadd.f32 0.0, %v4006
      %v4008 = vand.u32 %v3938, 4294901760
      %v4009 = vsub.f32 %v3938, %v4008
      %v4010 = vand.u32 %v4009, 4294901760
      %v4011 = vsub.f32 %v4009, %v4010
      %v4012 = vand.u32 %v4011, 4294901760
      %4013 = vmatmul.f32.gmra.mxu0 %v4012
      %v4014 = vpop.f32.mrf.mxu0
      %v4015 = vadd.f32 0.0, %v4014
      %v4016 = vand.u32 %v3939, 4294901760
      %v4017 = vsub.f32 %v3939, %v4016
      %v4018 = vand.u32 %v4017, 4294901760
      %v4019 = vsub.f32 %v4017, %v4018
      %v4020 = vand.u32 %v4019, 4294901760
      %4021 = vmatmul.f32.gmra.mxu0 %v4020
      %v4022 = vpop.f32.mrf.mxu0
      %v4023 = vadd.f32 0.0, %v4022
      %v4024 = vand.u32 %v3940, 4294901760
      %v4025 = vsub.f32 %v3940, %v4024
      %v4026 = vand.u32 %v4025, 4294901760
      %v4027 = vsub.f32 %v4025, %v4026
      %v4028 = vand.u32 %v4027, 4294901760
      %4029 = vmatmul.f32.gmra.mxu0 %v4028
      %v4030 = vpop.f32.mrf.mxu0
      %v4031 = vadd.f32 0.0, %v4030
      %v4032 = vand.u32 %v3941, 4294901760
      %v4033 = vsub.f32 %v3941, %v4032
      %v4034 = vand.u32 %v4033, 4294901760
      %v4035 = vsub.f32 %v4033, %v4034
      %v4036 = vand.u32 %v4035, 4294901760
      %4037 = vmatmul.f32.gmra.mxu0 %v4036
      %v4038 = vpop.f32.mrf.mxu0
      %v4039 = vadd.f32 0.0, %v4038
      %4040 = vdwg.mxu0
      %v4041 = vand.u32 %v2625, 4294901760
      %v4042 = vsub.f32 %v2625, %v4041
      %v4043 = vand.u32 %v4042, 4294901760
      %v4044 = vsub.f32 %v4042, %v4043
      %v4045 = vand.u32 %v4044, 4294901760
      %4046 = vmatpush.msra.mxu0 %v4045
      %v4047 = vand.u32 %v2624, 4294901760
      %v4048 = vsub.f32 %v2624, %v4047
      %v4049 = vand.u32 %v4048, 4294901760
      %v4050 = vsub.f32 %v4048, %v4049
      %v4051 = vand.u32 %v4050, 4294901760
      %4052 = vmatpush.msra.mxu0 %v4051
      %v4053 = vand.u32 %v2623, 4294901760
      %v4054 = vsub.f32 %v2623, %v4053
      %v4055 = vand.u32 %v4054, 4294901760
      %v4056 = vsub.f32 %v4054, %v4055
      %v4057 = vand.u32 %v4056, 4294901760
      %4058 = vmatpush.msra.mxu0 %v4057
      %v4059 = vand.u32 %v2622, 4294901760
      %v4060 = vsub.f32 %v2622, %v4059
      %v4061 = vand.u32 %v4060, 4294901760
      %v4062 = vsub.f32 %v4060, %v4061
      %v4063 = vand.u32 %v4062, 4294901760
      %4064 = vmatpush.msra.mxu0 %v4063
      %v4065 = vand.u32 %v2621, 4294901760
      %v4066 = vsub.f32 %v2621, %v4065
      %v4067 = vand.u32 %v4066, 4294901760
      %v4068 = vsub.f32 %v4066, %v4067
      %v4069 = vand.u32 %v4068, 4294901760
      %4070 = vmatpush.msra.mxu0 %v4069
      %v4071 = vand.u32 %v2620, 4294901760
      %v4072 = vsub.f32 %v2620, %v4071
      %v4073 = vand.u32 %v4072, 4294901760
      %v4074 = vsub.f32 %v4072, %v4073
      %v4075 = vand.u32 %v4074, 4294901760
      %4076 = vmatpush.msra.mxu0 %v4075
      %v4077 = vand.u32 %v2619, 4294901760
      %v4078 = vsub.f32 %v2619, %v4077
      %v4079 = vand.u32 %v4078, 4294901760
      %v4080 = vsub.f32 %v4078, %v4079
      %v4081 = vand.u32 %v4080, 4294901760
      %4082 = vmatpush.msra.mxu0 %v4081
      %v4083 = vand.u32 %v2618, 4294901760
      %v4084 = vsub.f32 %v2618, %v4083
      %v4085 = vand.u32 %v4084, 4294901760
      %v4086 = vsub.f32 %v4084, %v4085
      %v4087 = vand.u32 %v4086, 4294901760
      %4088 = vmatpush.msra.mxu0 %v4087
      %v4089 = vand.u32 %v2617, 4294901760
      %v4090 = vsub.f32 %v2617, %v4089
      %v4091 = vand.u32 %v4090, 4294901760
      %v4092 = vsub.f32 %v4090, %v4091
      %v4093 = vand.u32 %v4092, 4294901760
      %4094 = vmatpush.msra.mxu0 %v4093
      %v4095 = vand.u32 %v2616, 4294901760
      %v4096 = vsub.f32 %v2616, %v4095
      %v4097 = vand.u32 %v4096, 4294901760
      %v4098 = vsub.f32 %v4096, %v4097
      %v4099 = vand.u32 %v4098, 4294901760
      %4100 = vmatpush.msra.mxu0 %v4099
      %v4101 = vand.u32 %v2615, 4294901760
      %v4102 = vsub.f32 %v2615, %v4101
      %v4103 = vand.u32 %v4102, 4294901760
      %v4104 = vsub.f32 %v4102, %v4103
      %v4105 = vand.u32 %v4104, 4294901760
      %4106 = vmatpush.msra.mxu0 %v4105
      %v4107 = vand.u32 %v2614, 4294901760
      %v4108 = vsub.f32 %v2614, %v4107
      %v4109 = vand.u32 %v4108, 4294901760
      %v4110 = vsub.f32 %v4108, %v4109
      %v4111 = vand.u32 %v4110, 4294901760
      %4112 = vmatpush.msra.mxu0 %v4111
      %v4113 = vand.u32 %v2613, 4294901760
      %v4114 = vsub.f32 %v2613, %v4113
      %v4115 = vand.u32 %v4114, 4294901760
      %v4116 = vsub.f32 %v4114, %v4115
      %v4117 = vand.u32 %v4116, 4294901760
      %4118 = vmatpush.msra.mxu0 %v4117
      %v4119 = vand.u32 %v2612, 4294901760
      %v4120 = vsub.f32 %v2612, %v4119
      %v4121 = vand.u32 %v4120, 4294901760
      %v4122 = vsub.f32 %v4120, %v4121
      %v4123 = vand.u32 %v4122, 4294901760
      %4124 = vmatpush.msra.mxu0 %v4123
      %v4125 = vand.u32 %v2611, 4294901760
      %v4126 = vsub.f32 %v2611, %v4125
      %v4127 = vand.u32 %v4126, 4294901760
      %v4128 = vsub.f32 %v4126, %v4127
      %v4129 = vand.u32 %v4128, 4294901760
      %4130 = vmatpush.msra.mxu0 %v4129
      %v4131 = vand.u32 %v2610, 4294901760
      %v4132 = vsub.f32 %v2610, %v4131
      %v4133 = vand.u32 %v4132, 4294901760
      %v4134 = vsub.f32 %v4132, %v4133
      %v4135 = vand.u32 %v4134, 4294901760
      %4136 = vmatpush.msra.mxu0 %v4135
      %v4137 = vand.u32 %v3934, 4294901760
      %4138 = vmatmul.f32.gmra.mxu0 %v4137
      %v4139 = vpop.f32.mrf.mxu0
      %v4140 = vadd.f32 %v3983, %v4139
      %v4141 = vand.u32 %v3935, 4294901760
      %4142 = vmatmul.f32.gmra.mxu0 %v4141
      %v4143 = vpop.f32.mrf.mxu0
      %v4144 = vadd.f32 %v3991, %v4143
      %v4145 = vand.u32 %v3936, 4294901760
      %4146 = vmatmul.f32.gmra.mxu0 %v4145
      %v4147 = vpop.f32.mrf.mxu0
      %v4148 = vadd.f32 %v3999, %v4147
      %v4149 = vand.u32 %v3937, 4294901760
      %4150 = vmatmul.f32.gmra.mxu0 %v4149
      %v4151 = vpop.f32.mrf.mxu0
      %v4152 = vadd.f32 %v4007, %v4151
      %v4153 = vand.u32 %v3938, 4294901760
      %4154 = vmatmul.f32.gmra.mxu0 %v4153
      %v4155 = vpop.f32.mrf.mxu0
      %v4156 = vadd.f32 %v4015, %v4155
      %v4157 = vand.u32 %v3939, 4294901760
      %4158 = vmatmul.f32.gmra.mxu0 %v4157
      %v4159 = vpop.f32.mrf.mxu0
      %v4160 = vadd.f32 %v4023, %v4159
      %v4161 = vand.u32 %v3940, 4294901760
      %4162 = vmatmul.f32.gmra.mxu0 %v4161
      %v4163 = vpop.f32.mrf.mxu0
      %v4164 = vadd.f32 %v4031, %v4163
      %v4165 = vand.u32 %v3941, 4294901760
      %4166 = vmatmul.f32.gmra.mxu0 %v4165
      %v4167 = vpop.f32.mrf.mxu0
      %v4168 = vadd.f32 %v4039, %v4167
      %4169 = vdwg.mxu0
      %v4170 = vand.u32 %v2625, 4294901760
      %v4171 = vsub.f32 %v2625, %v4170
      %4172 = vmatpush.msra.mxu0 %v4171
      %v4173 = vand.u32 %v2624, 4294901760
      %v4174 = vsub.f32 %v2624, %v4173
      %4175 = vmatpush.msra.mxu0 %v4174
      %v4176 = vand.u32 %v2623, 4294901760
      %v4177 = vsub.f32 %v2623, %v4176
      %4178 = vmatpush.msra.mxu0 %v4177
      %v4179 = vand.u32 %v2622, 4294901760
      %v4180 = vsub.f32 %v2622, %v4179
      %4181 = vmatpush.msra.mxu0 %v4180
      %v4182 = vand.u32 %v2621, 4294901760
      %v4183 = vsub.f32 %v2621, %v4182
      %4184 = vmatpush.msra.mxu0 %v4183
      %v4185 = vand.u32 %v2620, 4294901760
      %v4186 = vsub.f32 %v2620, %v4185
      %4187 = vmatpush.msra.mxu0 %v4186
      %v4188 = vand.u32 %v2619, 4294901760
      %v4189 = vsub.f32 %v2619, %v4188
      %4190 = vmatpush.msra.mxu0 %v4189
      %v4191 = vand.u32 %v2618, 4294901760
      %v4192 = vsub.f32 %v2618, %v4191
      %4193 = vmatpush.msra.mxu0 %v4192
      %v4194 = vand.u32 %v2617, 4294901760
      %v4195 = vsub.f32 %v2617, %v4194
      %4196 = vmatpush.msra.mxu0 %v4195
      %v4197 = vand.u32 %v2616, 4294901760
      %v4198 = vsub.f32 %v2616, %v4197
      %4199 = vmatpush.msra.mxu0 %v4198
      %v4200 = vand.u32 %v2615, 4294901760
      %v4201 = vsub.f32 %v2615, %v4200
      %4202 = vmatpush.msra.mxu0 %v4201
      %v4203 = vand.u32 %v2614, 4294901760
      %v4204 = vsub.f32 %v2614, %v4203
      %4205 = vmatpush.msra.mxu0 %v4204
      %v4206 = vand.u32 %v2613, 4294901760
      %v4207 = vsub.f32 %v2613, %v4206
      %4208 = vmatpush.msra.mxu0 %v4207
      %v4209 = vand.u32 %v2612, 4294901760
      %v4210 = vsub.f32 %v2612, %v4209
      %4211 = vmatpush.msra.mxu0 %v4210
      %v4212 = vand.u32 %v2611, 4294901760
      %v4213 = vsub.f32 %v2611, %v4212
      %4214 = vmatpush.msra.mxu0 %v4213
      %v4215 = vand.u32 %v2610, 4294901760
      %v4216 = vsub.f32 %v2610, %v4215
      %4217 = vmatpush.msra.mxu0 %v4216
      %v4218 = vand.u32 %v3934, 4294901760
      %v4219 = vsub.f32 %v3934, %v4218
      %4220 = vmatmul.f32.gmra.mxu0 %v4219
      %v4221 = vpop.f32.mrf.mxu0
      %v4222 = vadd.f32 %v4140, %v4221
      %v4223 = vand.u32 %v3935, 4294901760
      %v4224 = vsub.f32 %v3935, %v4223
      %4225 = vmatmul.f32.gmra.mxu0 %v4224
      %v4226 = vpop.f32.mrf.mxu0
      %v4227 = vadd.f32 %v4144, %v4226
      %v4228 = vand.u32 %v3936, 4294901760
      %v4229 = vsub.f32 %v3936, %v4228
      %4230 = vmatmul.f32.gmra.mxu0 %v4229
      %v4231 = vpop.f32.mrf.mxu0
      %v4232 = vadd.f32 %v4148, %v4231
      %v4233 = vand.u32 %v3937, 4294901760
      %v4234 = vsub.f32 %v3937, %v4233
      %4235 = vmatmul.f32.gmra.mxu0 %v4234
      %v4236 = vpop.f32.mrf.mxu0
      %v4237 = vadd.f32 %v4152, %v4236
      %v4238 = vand.u32 %v3938, 4294901760
      %v4239 = vsub.f32 %v3938, %v4238
      %4240 = vmatmul.f32.gmra.mxu0 %v4239
      %v4241 = vpop.f32.mrf.mxu0
      %v4242 = vadd.f32 %v4156, %v4241
      %v4243 = vand.u32 %v3939, 4294901760
      %v4244 = vsub.f32 %v3939, %v4243
      %4245 = vmatmul.f32.gmra.mxu0 %v4244
      %v4246 = vpop.f32.mrf.mxu0
      %v4247 = vadd.f32 %v4160, %v4246
      %v4248 = vand.u32 %v3940, 4294901760
      %v4249 = vsub.f32 %v3940, %v4248
      %4250 = vmatmul.f32.gmra.mxu0 %v4249
      %v4251 = vpop.f32.mrf.mxu0
      %v4252 = vadd.f32 %v4164, %v4251
      %v4253 = vand.u32 %v3941, 4294901760
      %v4254 = vsub.f32 %v3941, %v4253
      %4255 = vmatmul.f32.gmra.mxu0 %v4254
      %v4256 = vpop.f32.mrf.mxu0
      %v4257 = vadd.f32 %v4168, %v4256
      %4258 = vdwg.mxu0
      %v4259 = vand.u32 %v2625, 4294901760
      %4260 = vmatpush.msra.mxu0 %v4259
      %v4261 = vand.u32 %v2624, 4294901760
      %4262 = vmatpush.msra.mxu0 %v4261
      %v4263 = vand.u32 %v2623, 4294901760
      %4264 = vmatpush.msra.mxu0 %v4263
      %v4265 = vand.u32 %v2622, 4294901760
      %4266 = vmatpush.msra.mxu0 %v4265
      %v4267 = vand.u32 %v2621, 4294901760
      %4268 = vmatpush.msra.mxu0 %v4267
      %v4269 = vand.u32 %v2620, 4294901760
      %4270 = vmatpush.msra.mxu0 %v4269
      %v4271 = vand.u32 %v2619, 4294901760
      %4272 = vmatpush.msra.mxu0 %v4271
      %v4273 = vand.u32 %v2618, 4294901760
      %4274 = vmatpush.msra.mxu0 %v4273
      %v4275 = vand.u32 %v2617, 4294901760
      %4276 = vmatpush.msra.mxu0 %v4275
      %v4277 = vand.u32 %v2616, 4294901760
      %4278 = vmatpush.msra.mxu0 %v4277
      %v4279 = vand.u32 %v2615, 4294901760
      %4280 = vmatpush.msra.mxu0 %v4279
      %v4281 = vand.u32 %v2614, 4294901760
      %4282 = vmatpush.msra.mxu0 %v4281
      %v4283 = vand.u32 %v2613, 4294901760
      %4284 = vmatpush.msra.mxu0 %v4283
      %v4285 = vand.u32 %v2612, 4294901760
      %4286 = vmatpush.msra.mxu0 %v4285
      %v4287 = vand.u32 %v2611, 4294901760
      %4288 = vmatpush.msra.mxu0 %v4287
      %v4289 = vand.u32 %v2610, 4294901760
      %4290 = vmatpush.msra.mxu0 %v4289
      %v4291 = vand.u32 %v3934, 4294901760
      %v4292 = vsub.f32 %v3934, %v4291
      %v4293 = vand.u32 %v4292, 4294901760
      %4294 = vmatmul.f32.gmra.mxu0 %v4293
      %v4295 = vpop.f32.mrf.mxu0
      %v4296 = vadd.f32 %v4222, %v4295
      %v4297 = vand.u32 %v3935, 4294901760
      %v4298 = vsub.f32 %v3935, %v4297
      %v4299 = vand.u32 %v4298, 4294901760
      %4300 = vmatmul.f32.gmra.mxu0 %v4299
      %v4301 = vpop.f32.mrf.mxu0
      %v4302 = vadd.f32 %v4227, %v4301
      %v4303 = vand.u32 %v3936, 4294901760
      %v4304 = vsub.f32 %v3936, %v4303
      %v4305 = vand.u32 %v4304, 4294901760
      %4306 = vmatmul.f32.gmra.mxu0 %v4305
      %v4307 = vpop.f32.mrf.mxu0
      %v4308 = vadd.f32 %v4232, %v4307
      %v4309 = vand.u32 %v3937, 4294901760
      %v4310 = vsub.f32 %v3937, %v4309
      %v4311 = vand.u32 %v4310, 4294901760
      %4312 = vmatmul.f32.gmra.mxu0 %v4311
      %v4313 = vpop.f32.mrf.mxu0
      %v4314 = vadd.f32 %v4237, %v4313
      %v4315 = vand.u32 %v3938, 4294901760
      %v4316 = vsub.f32 %v3938, %v4315
      %v4317 = vand.u32 %v4316, 4294901760
      %4318 = vmatmul.f32.gmra.mxu0 %v4317
      %v4319 = vpop.f32.mrf.mxu0
      %v4320 = vadd.f32 %v4242, %v4319
      %v4321 = vand.u32 %v3939, 4294901760
      %v4322 = vsub.f32 %v3939, %v4321
      %v4323 = vand.u32 %v4322, 4294901760
      %4324 = vmatmul.f32.gmra.mxu0 %v4323
      %v4325 = vpop.f32.mrf.mxu0
      %v4326 = vadd.f32 %v4247, %v4325
      %v4327 = vand.u32 %v3940, 4294901760
      %v4328 = vsub.f32 %v3940, %v4327
      %v4329 = vand.u32 %v4328, 4294901760
      %4330 = vmatmul.f32.gmra.mxu0 %v4329
      %v4331 = vpop.f32.mrf.mxu0
      %v4332 = vadd.f32 %v4252, %v4331
      %v4333 = vand.u32 %v3941, 4294901760
      %v4334 = vsub.f32 %v3941, %v4333
      %v4335 = vand.u32 %v4334, 4294901760
      %4336 = vmatmul.f32.gmra.mxu0 %v4335
      %v4337 = vpop.f32.mrf.mxu0
      %v4338 = vadd.f32 %v4257, %v4337
      %4339 = vdwg.mxu0
      %v4340 = vand.u32 %v2625, 4294901760
      %v4341 = vsub.f32 %v2625, %v4340
      %v4342 = vand.u32 %v4341, 4294901760
      %4343 = vmatpush.msra.mxu0 %v4342
      %v4344 = vand.u32 %v2624, 4294901760
      %v4345 = vsub.f32 %v2624, %v4344
      %v4346 = vand.u32 %v4345, 4294901760
      %4347 = vmatpush.msra.mxu0 %v4346
      %v4348 = vand.u32 %v2623, 4294901760
      %v4349 = vsub.f32 %v2623, %v4348
      %v4350 = vand.u32 %v4349, 4294901760
      %4351 = vmatpush.msra.mxu0 %v4350
      %v4352 = vand.u32 %v2622, 4294901760
      %v4353 = vsub.f32 %v2622, %v4352
      %v4354 = vand.u32 %v4353, 4294901760
      %4355 = vmatpush.msra.mxu0 %v4354
      %v4356 = vand.u32 %v2621, 4294901760
      %v4357 = vsub.f32 %v2621, %v4356
      %v4358 = vand.u32 %v4357, 4294901760
      %4359 = vmatpush.msra.mxu0 %v4358
      %v4360 = vand.u32 %v2620, 4294901760
      %v4361 = vsub.f32 %v2620, %v4360
      %v4362 = vand.u32 %v4361, 4294901760
      %4363 = vmatpush.msra.mxu0 %v4362
      %v4364 = vand.u32 %v2619, 4294901760
      %v4365 = vsub.f32 %v2619, %v4364
      %v4366 = vand.u32 %v4365, 4294901760
      %4367 = vmatpush.msra.mxu0 %v4366
      %v4368 = vand.u32 %v2618, 4294901760
      %v4369 = vsub.f32 %v2618, %v4368
      %v4370 = vand.u32 %v4369, 4294901760
      %4371 = vmatpush.msra.mxu0 %v4370
      %v4372 = vand.u32 %v2617, 4294901760
      %v4373 = vsub.f32 %v2617, %v4372
      %v4374 = vand.u32 %v4373, 4294901760
      %4375 = vmatpush.msra.mxu0 %v4374
      %v4376 = vand.u32 %v2616, 4294901760
      %v4377 = vsub.f32 %v2616, %v4376
      %v4378 = vand.u32 %v4377, 4294901760
      %4379 = vmatpush.msra.mxu0 %v4378
      %v4380 = vand.u32 %v2615, 4294901760
      %v4381 = vsub.f32 %v2615, %v4380
      %v4382 = vand.u32 %v4381, 4294901760
      %4383 = vmatpush.msra.mxu0 %v4382
      %v4384 = vand.u32 %v2614, 4294901760
      %v4385 = vsub.f32 %v2614, %v4384
      %v4386 = vand.u32 %v4385, 4294901760
      %4387 = vmatpush.msra.mxu0 %v4386
      %v4388 = vand.u32 %v2613, 4294901760
      %v4389 = vsub.f32 %v2613, %v4388
      %v4390 = vand.u32 %v4389, 4294901760
      %4391 = vmatpush.msra.mxu0 %v4390
      %v4392 = vand.u32 %v2612, 4294901760
      %v4393 = vsub.f32 %v2612, %v4392
      %v4394 = vand.u32 %v4393, 4294901760
      %4395 = vmatpush.msra.mxu0 %v4394
      %v4396 = vand.u32 %v2611, 4294901760
      %v4397 = vsub.f32 %v2611, %v4396
      %v4398 = vand.u32 %v4397, 4294901760
      %4399 = vmatpush.msra.mxu0 %v4398
      %v4400 = vand.u32 %v2610, 4294901760
      %v4401 = vsub.f32 %v2610, %v4400
      %v4402 = vand.u32 %v4401, 4294901760
      %4403 = vmatpush.msra.mxu0 %v4402
      %v4404 = vand.u32 %v3934, 4294901760
      %4405 = vmatmul.f32.gmra.mxu0 %v4404
      %v4406 = vpop.f32.mrf.mxu0
      %v4407 = vadd.f32 %v4296, %v4406
      %v4408 = vand.u32 %v3935, 4294901760
      %4409 = vmatmul.f32.gmra.mxu0 %v4408
      %v4410 = vpop.f32.mrf.mxu0
      %v4411 = vadd.f32 %v4302, %v4410
      %v4412 = vand.u32 %v3936, 4294901760
      %4413 = vmatmul.f32.gmra.mxu0 %v4412
      %v4414 = vpop.f32.mrf.mxu0
      %v4415 = vadd.f32 %v4308, %v4414
      %v4416 = vand.u32 %v3937, 4294901760
      %4417 = vmatmul.f32.gmra.mxu0 %v4416
      %v4418 = vpop.f32.mrf.mxu0
      %v4419 = vadd.f32 %v4314, %v4418
      %v4420 = vand.u32 %v3938, 4294901760
      %4421 = vmatmul.f32.gmra.mxu0 %v4420
      %v4422 = vpop.f32.mrf.mxu0
      %v4423 = vadd.f32 %v4320, %v4422
      %v4424 = vand.u32 %v3939, 4294901760
      %4425 = vmatmul.f32.gmra.mxu0 %v4424
      %v4426 = vpop.f32.mrf.mxu0
      %v4427 = vadd.f32 %v4326, %v4426
      %v4428 = vand.u32 %v3940, 4294901760
      %4429 = vmatmul.f32.gmra.mxu0 %v4428
      %v4430 = vpop.f32.mrf.mxu0
      %v4431 = vadd.f32 %v4332, %v4430
      %v4432 = vand.u32 %v3941, 4294901760
      %4433 = vmatmul.f32.gmra.mxu0 %v4432
      %v4434 = vpop.f32.mrf.mxu0
      %v4435 = vadd.f32 %v4338, %v4434
      %4436 = vdwg.mxu0
      %v4437 = vand.u32 %v2625, 4294901760
      %4438 = vmatpush.msra.mxu0 %v4437
      %v4439 = vand.u32 %v2624, 4294901760
      %4440 = vmatpush.msra.mxu0 %v4439
      %v4441 = vand.u32 %v2623, 4294901760
      %4442 = vmatpush.msra.mxu0 %v4441
      %v4443 = vand.u32 %v2622, 4294901760
      %4444 = vmatpush.msra.mxu0 %v4443
      %v4445 = vand.u32 %v2621, 4294901760
      %4446 = vmatpush.msra.mxu0 %v4445
      %v4447 = vand.u32 %v2620, 4294901760
      %4448 = vmatpush.msra.mxu0 %v4447
      %v4449 = vand.u32 %v2619, 4294901760
      %4450 = vmatpush.msra.mxu0 %v4449
      %v4451 = vand.u32 %v2618, 4294901760
      %4452 = vmatpush.msra.mxu0 %v4451
      %v4453 = vand.u32 %v2617, 4294901760
      %4454 = vmatpush.msra.mxu0 %v4453
      %v4455 = vand.u32 %v2616, 4294901760
      %4456 = vmatpush.msra.mxu0 %v4455
      %v4457 = vand.u32 %v2615, 4294901760
      %4458 = vmatpush.msra.mxu0 %v4457
      %v4459 = vand.u32 %v2614, 4294901760
      %4460 = vmatpush.msra.mxu0 %v4459
      %v4461 = vand.u32 %v2613, 4294901760
      %4462 = vmatpush.msra.mxu0 %v4461
      %v4463 = vand.u32 %v2612, 4294901760
      %4464 = vmatpush.msra.mxu0 %v4463
      %v4465 = vand.u32 %v2611, 4294901760
      %4466 = vmatpush.msra.mxu0 %v4465
      %v4467 = vand.u32 %v2610, 4294901760
      %4468 = vmatpush.msra.mxu0 %v4467
      %v4469 = vand.u32 %v3934, 4294901760
      %4470 = vmatmul.f32.gmra.mxu0 %v4469
      %v4471 = vpop.f32.mrf.mxu0
      %v4472 = vadd.f32 %v4407, %v4471
      %v4473 = vand.u32 %v3935, 4294901760
      %4474 = vmatmul.f32.gmra.mxu0 %v4473
      %v4475 = vpop.f32.mrf.mxu0
      %v4476 = vadd.f32 %v4411, %v4475
      %v4477 = vand.u32 %v3936, 4294901760
      %4478 = vmatmul.f32.gmra.mxu0 %v4477
      %v4479 = vpop.f32.mrf.mxu0
      %v4480 = vadd.f32 %v4415, %v4479
      %v4481 = vand.u32 %v3937, 4294901760
      %4482 = vmatmul.f32.gmra.mxu0 %v4481
      %v4483 = vpop.f32.mrf.mxu0
      %v4484 = vadd.f32 %v4419, %v4483
      %v4485 = vand.u32 %v3938, 4294901760
      %4486 = vmatmul.f32.gmra.mxu0 %v4485
      %v4487 = vpop.f32.mrf.mxu0
      %v4488 = vadd.f32 %v4423, %v4487
      %v4489 = vand.u32 %v3939, 4294901760
      %4490 = vmatmul.f32.gmra.mxu0 %v4489
      %v4491 = vpop.f32.mrf.mxu0
      %v4492 = vadd.f32 %v4427, %v4491
      %v4493 = vand.u32 %v3940, 4294901760
      %4494 = vmatmul.f32.gmra.mxu0 %v4493
      %v4495 = vpop.f32.mrf.mxu0
      %v4496 = vadd.f32 %v4431, %v4495
      %v4497 = vand.u32 %v3941, 4294901760
      %4498 = vmatmul.f32.gmra.mxu0 %v4497
      %v4499 = vpop.f32.mrf.mxu0
      %v4500 = vadd.f32 %v4435, %v4499
      %4501 = vdwg.mxu0
      %v4502 = vsub.f32 %v3934, %v4472
      %v4503 = vsub.f32 %v3935, %v4476
      %v4504 = vsub.f32 %v3936, %v4480
      %v4505 = vsub.f32 %v3937, %v4484
      %v4506 = vsub.f32 %v3938, %v4488
      %v4507 = vsub.f32 %v3939, %v4492
      %v4508 = vsub.f32 %v3940, %v4496
      %v4509 = vsub.f32 %v3941, %v4500
      %v4510 = vmul.f32 %v4502, %v4502
      %v4511 = vmul.f32 %v4503, %v4503
      %v4512 = vmul.f32 %v4504, %v4504
      %v4513 = vmul.f32 %v4505, %v4505
      %v4514 = vmul.f32 %v4506, %v4506
      %v4515 = vmul.f32 %v4507, %v4507
      %v4516 = vmul.f32 %v4508, %v4508
      %v4517 = vmul.f32 %v4509, %v4509
      %v4518 = vand.u32 %v2625, 4294901760
      %4519 = vmatpush.msra.mxu0 %v4518
      %v4520 = vand.u32 %v2624, 4294901760
      %4521 = vmatpush.msra.mxu0 %v4520
      %v4522 = vand.u32 %v2623, 4294901760
      %4523 = vmatpush.msra.mxu0 %v4522
      %v4524 = vand.u32 %v2622, 4294901760
      %4525 = vmatpush.msra.mxu0 %v4524
      %v4526 = vand.u32 %v2621, 4294901760
      %4527 = vmatpush.msra.mxu0 %v4526
      %v4528 = vand.u32 %v2620, 4294901760
      %4529 = vmatpush.msra.mxu0 %v4528
      %v4530 = vand.u32 %v2619, 4294901760
      %4531 = vmatpush.msra.mxu0 %v4530
      %v4532 = vand.u32 %v2618, 4294901760
      %4533 = vmatpush.msra.mxu0 %v4532
      %v4534 = vand.u32 %v2617, 4294901760
      %4535 = vmatpush.msra.mxu0 %v4534
      %v4536 = vand.u32 %v2616, 4294901760
      %4537 = vmatpush.msra.mxu0 %v4536
      %v4538 = vand.u32 %v2615, 4294901760
      %4539 = vmatpush.msra.mxu0 %v4538
      %v4540 = vand.u32 %v2614, 4294901760
      %4541 = vmatpush.msra.mxu0 %v4540
      %v4542 = vand.u32 %v2613, 4294901760
      %4543 = vmatpush.msra.mxu0 %v4542
      %v4544 = vand.u32 %v2612, 4294901760
      %4545 = vmatpush.msra.mxu0 %v4544
      %v4546 = vand.u32 %v2611, 4294901760
      %4547 = vmatpush.msra.mxu0 %v4546
      %v4548 = vand.u32 %v2610, 4294901760
      %4549 = vmatpush.msra.mxu0 %v4548
      %v4550 = vand.u32 %v4510, 4294901760
      %v4551 = vsub.f32 %v4510, %v4550
      %v4552 = vand.u32 %v4551, 4294901760
      %v4553 = vsub.f32 %v4551, %v4552
      %v4554 = vand.u32 %v4553, 4294901760
      %4555 = vmatmul.f32.gmra.mxu0 %v4554
      %v4556 = vpop.f32.mrf.mxu0
      %v4557 = vadd.f32 1e-05, %v4556
      %v4558 = vand.u32 %v4511, 4294901760
      %v4559 = vsub.f32 %v4511, %v4558
      %v4560 = vand.u32 %v4559, 4294901760
      %v4561 = vsub.f32 %v4559, %v4560
      %v4562 = vand.u32 %v4561, 4294901760
      %4563 = vmatmul.f32.gmra.mxu0 %v4562
      %v4564 = vpop.f32.mrf.mxu0
      %v4565 = vadd.f32 1e-05, %v4564
      %v4566 = vand.u32 %v4512, 4294901760
      %v4567 = vsub.f32 %v4512, %v4566
      %v4568 = vand.u32 %v4567, 4294901760
      %v4569 = vsub.f32 %v4567, %v4568
      %v4570 = vand.u32 %v4569, 4294901760
      %4571 = vmatmul.f32.gmra.mxu0 %v4570
      %v4572 = vpop.f32.mrf.mxu0
      %v4573 = vadd.f32 1e-05, %v4572
      %v4574 = vand.u32 %v4513, 4294901760
      %v4575 = vsub.f32 %v4513, %v4574
      %v4576 = vand.u32 %v4575, 4294901760
      %v4577 = vsub.f32 %v4575, %v4576
      %v4578 = vand.u32 %v4577, 4294901760
      %4579 = vmatmul.f32.gmra.mxu0 %v4578
      %v4580 = vpop.f32.mrf.mxu0
      %v4581 = vadd.f32 1e-05, %v4580
      %v4582 = vand.u32 %v4514, 4294901760
      %v4583 = vsub.f32 %v4514, %v4582
      %v4584 = vand.u32 %v4583, 4294901760
      %v4585 = vsub.f32 %v4583, %v4584
      %v4586 = vand.u32 %v4585, 4294901760
      %4587 = vmatmul.f32.gmra.mxu0 %v4586
      %v4588 = vpop.f32.mrf.mxu0
      %v4589 = vadd.f32 1e-05, %v4588
      %v4590 = vand.u32 %v4515, 4294901760
      %v4591 = vsub.f32 %v4515, %v4590
      %v4592 = vand.u32 %v4591, 4294901760
      %v4593 = vsub.f32 %v4591, %v4592
      %v4594 = vand.u32 %v4593, 4294901760
      %4595 = vmatmul.f32.gmra.mxu0 %v4594
      %v4596 = vpop.f32.mrf.mxu0
      %v4597 = vadd.f32 1e-05, %v4596
      %v4598 = vand.u32 %v4516, 4294901760
      %v4599 = vsub.f32 %v4516, %v4598
      %v4600 = vand.u32 %v4599, 4294901760
      %v4601 = vsub.f32 %v4599, %v4600
      %v4602 = vand.u32 %v4601, 4294901760
      %4603 = vmatmul.f32.gmra.mxu0 %v4602
      %v4604 = vpop.f32.mrf.mxu0
      %v4605 = vadd.f32 1e-05, %v4604
      %v4606 = vand.u32 %v4517, 4294901760
      %v4607 = vsub.f32 %v4517, %v4606
      %v4608 = vand.u32 %v4607, 4294901760
      %v4609 = vsub.f32 %v4607, %v4608
      %v4610 = vand.u32 %v4609, 4294901760
      %4611 = vmatmul.f32.gmra.mxu0 %v4610
      %v4612 = vpop.f32.mrf.mxu0
      %v4613 = vadd.f32 1e-05, %v4612
      %4614 = vdwg.mxu0
      %v4615 = vand.u32 %v2625, 4294901760
      %v4616 = vsub.f32 %v2625, %v4615
      %v4617 = vand.u32 %v4616, 4294901760
      %v4618 = vsub.f32 %v4616, %v4617
      %v4619 = vand.u32 %v4618, 4294901760
      %4620 = vmatpush.msra.mxu0 %v4619
      %v4621 = vand.u32 %v2624, 4294901760
      %v4622 = vsub.f32 %v2624, %v4621
      %v4623 = vand.u32 %v4622, 4294901760
      %v4624 = vsub.f32 %v4622, %v4623
      %v4625 = vand.u32 %v4624, 4294901760
      %4626 = vmatpush.msra.mxu0 %v4625
      %v4627 = vand.u32 %v2623, 4294901760
      %v4628 = vsub.f32 %v2623, %v4627
      %v4629 = vand.u32 %v4628, 4294901760
      %v4630 = vsub.f32 %v4628, %v4629
      %v4631 = vand.u32 %v4630, 4294901760
      %4632 = vmatpush.msra.mxu0 %v4631
      %v4633 = vand.u32 %v2622, 4294901760
      %v4634 = vsub.f32 %v2622, %v4633
      %v4635 = vand.u32 %v4634, 4294901760
      %v4636 = vsub.f32 %v4634, %v4635
      %v4637 = vand.u32 %v4636, 4294901760
      %4638 = vmatpush.msra.mxu0 %v4637
      %v4639 = vand.u32 %v2621, 4294901760
      %v4640 = vsub.f32 %v2621, %v4639
      %v4641 = vand.u32 %v4640, 4294901760
      %v4642 = vsub.f32 %v4640, %v4641
      %v4643 = vand.u32 %v4642, 4294901760
      %4644 = vmatpush.msra.mxu0 %v4643
      %v4645 = vand.u32 %v2620, 4294901760
      %v4646 = vsub.f32 %v2620, %v4645
      %v4647 = vand.u32 %v4646, 4294901760
      %v4648 = vsub.f32 %v4646, %v4647
      %v4649 = vand.u32 %v4648, 4294901760
      %4650 = vmatpush.msra.mxu0 %v4649
      %v4651 = vand.u32 %v2619, 4294901760
      %v4652 = vsub.f32 %v2619, %v4651
      %v4653 = vand.u32 %v4652, 4294901760
      %v4654 = vsub.f32 %v4652, %v4653
      %v4655 = vand.u32 %v4654, 4294901760
      %4656 = vmatpush.msra.mxu0 %v4655
      %v4657 = vand.u32 %v2618, 4294901760
      %v4658 = vsub.f32 %v2618, %v4657
      %v4659 = vand.u32 %v4658, 4294901760
      %v4660 = vsub.f32 %v4658, %v4659
      %v4661 = vand.u32 %v4660, 4294901760
      %4662 = vmatpush.msra.mxu0 %v4661
      %v4663 = vand.u32 %v2617, 4294901760
      %v4664 = vsub.f32 %v2617, %v4663
      %v4665 = vand.u32 %v4664, 4294901760
      %v4666 = vsub.f32 %v4664, %v4665
      %v4667 = vand.u32 %v4666, 4294901760
      %4668 = vmatpush.msra.mxu0 %v4667
      %v4669 = vand.u32 %v2616, 4294901760
      %v4670 = vsub.f32 %v2616, %v4669
      %v4671 = vand.u32 %v4670, 4294901760
      %v4672 = vsub.f32 %v4670, %v4671
      %v4673 = vand.u32 %v4672, 4294901760
      %4674 = vmatpush.msra.mxu0 %v4673
      %v4675 = vand.u32 %v2615, 4294901760
      %v4676 = vsub.f32 %v2615, %v4675
      %v4677 = vand.u32 %v4676, 4294901760
      %v4678 = vsub.f32 %v4676, %v4677
      %v4679 = vand.u32 %v4678, 4294901760
      %4680 = vmatpush.msra.mxu0 %v4679
      %v4681 = vand.u32 %v2614, 4294901760
      %v4682 = vsub.f32 %v2614, %v4681
      %v4683 = vand.u32 %v4682, 4294901760
      %v4684 = vsub.f32 %v4682, %v4683
      %v4685 = vand.u32 %v4684, 4294901760
      %4686 = vmatpush.msra.mxu0 %v4685
      %v4687 = vand.u32 %v2613, 4294901760
      %v4688 = vsub.f32 %v2613, %v4687
      %v4689 = vand.u32 %v4688, 4294901760
      %v4690 = vsub.f32 %v4688, %v4689
      %v4691 = vand.u32 %v4690, 4294901760
      %4692 = vmatpush.msra.mxu0 %v4691
      %v4693 = vand.u32 %v2612, 4294901760
      %v4694 = vsub.f32 %v2612, %v4693
      %v4695 = vand.u32 %v4694, 4294901760
      %v4696 = vsub.f32 %v4694, %v4695
      %v4697 = vand.u32 %v4696, 4294901760
      %4698 = vmatpush.msra.mxu0 %v4697
      %v4699 = vand.u32 %v2611, 4294901760
      %v4700 = vsub.f32 %v2611, %v4699
      %v4701 = vand.u32 %v4700, 4294901760
      %v4702 = vsub.f32 %v4700, %v4701
      %v4703 = vand.u32 %v4702, 4294901760
      %4704 = vmatpush.msra.mxu0 %v4703
      %v4705 = vand.u32 %v2610, 4294901760
      %v4706 = vsub.f32 %v2610, %v4705
      %v4707 = vand.u32 %v4706, 4294901760
      %v4708 = vsub.f32 %v4706, %v4707
      %v4709 = vand.u32 %v4708, 4294901760
      %4710 = vmatpush.msra.mxu0 %v4709
      %v4711 = vand.u32 %v4510, 4294901760
      %4712 = vmatmul.f32.gmra.mxu0 %v4711
      %v4713 = vpop.f32.mrf.mxu0
      %v4714 = vadd.f32 %v4557, %v4713
      %v4715 = vand.u32 %v4511, 4294901760
      %4716 = vmatmul.f32.gmra.mxu0 %v4715
      %v4717 = vpop.f32.mrf.mxu0
      %v4718 = vadd.f32 %v4565, %v4717
      %v4719 = vand.u32 %v4512, 4294901760
      %4720 = vmatmul.f32.gmra.mxu0 %v4719
      %v4721 = vpop.f32.mrf.mxu0
      %v4722 = vadd.f32 %v4573, %v4721
      %v4723 = vand.u32 %v4513, 4294901760
      %4724 = vmatmul.f32.gmra.mxu0 %v4723
      %v4725 = vpop.f32.mrf.mxu0
      %v4726 = vadd.f32 %v4581, %v4725
      %v4727 = vand.u32 %v4514, 4294901760
      %4728 = vmatmul.f32.gmra.mxu0 %v4727
      %v4729 = vpop.f32.mrf.mxu0
      %v4730 = vadd.f32 %v4589, %v4729
      %v4731 = vand.u32 %v4515, 4294901760
      %4732 = vmatmul.f32.gmra.mxu0 %v4731
      %v4733 = vpop.f32.mrf.mxu0
      %v4734 = vadd.f32 %v4597, %v4733
      %v4735 = vand.u32 %v4516, 4294901760
      %4736 = vmatmul.f32.gmra.mxu0 %v4735
      %v4737 = vpop.f32.mrf.mxu0
      %v4738 = vadd.f32 %v4605, %v4737
      %v4739 = vand.u32 %v4517, 4294901760
      %4740 = vmatmul.f32.gmra.mxu0 %v4739
      %v4741 = vpop.f32.mrf.mxu0
      %v4742 = vadd.f32 %v4613, %v4741
      %4743 = vdwg.mxu0
      %v4744 = vand.u32 %v2625, 4294901760
      %v4745 = vsub.f32 %v2625, %v4744
      %4746 = vmatpush.msra.mxu0 %v4745
      %v4747 = vand.u32 %v2624, 4294901760
      %v4748 = vsub.f32 %v2624, %v4747
      %4749 = vmatpush.msra.mxu0 %v4748
      %v4750 = vand.u32 %v2623, 4294901760
      %v4751 = vsub.f32 %v2623, %v4750
      %4752 = vmatpush.msra.mxu0 %v4751
      %v4753 = vand.u32 %v2622, 4294901760
      %v4754 = vsub.f32 %v2622, %v4753
      %4755 = vmatpush.msra.mxu0 %v4754
      %v4756 = vand.u32 %v2621, 4294901760
      %v4757 = vsub.f32 %v2621, %v4756
      %4758 = vmatpush.msra.mxu0 %v4757
      %v4759 = vand.u32 %v2620, 4294901760
      %v4760 = vsub.f32 %v2620, %v4759
      %4761 = vmatpush.msra.mxu0 %v4760
      %v4762 = vand.u32 %v2619, 4294901760
      %v4763 = vsub.f32 %v2619, %v4762
      %4764 = vmatpush.msra.mxu0 %v4763
      %v4765 = vand.u32 %v2618, 4294901760
      %v4766 = vsub.f32 %v2618, %v4765
      %4767 = vmatpush.msra.mxu0 %v4766
      %v4768 = vand.u32 %v2617, 4294901760
      %v4769 = vsub.f32 %v2617, %v4768
      %4770 = vmatpush.msra.mxu0 %v4769
      %v4771 = vand.u32 %v2616, 4294901760
      %v4772 = vsub.f32 %v2616, %v4771
      %4773 = vmatpush.msra.mxu0 %v4772
      %v4774 = vand.u32 %v2615, 4294901760
      %v4775 = vsub.f32 %v2615, %v4774
      %4776 = vmatpush.msra.mxu0 %v4775
      %v4777 = vand.u32 %v2614, 4294901760
      %v4778 = vsub.f32 %v2614, %v4777
      %4779 = vmatpush.msra.mxu0 %v4778
      %v4780 = vand.u32 %v2613, 4294901760
      %v4781 = vsub.f32 %v2613, %v4780
      %4782 = vmatpush.msra.mxu0 %v4781
      %v4783 = vand.u32 %v2612, 4294901760
      %v4784 = vsub.f32 %v2612, %v4783
      %4785 = vmatpush.msra.mxu0 %v4784
      %v4786 = vand.u32 %v2611, 4294901760
      %v4787 = vsub.f32 %v2611, %v4786
      %4788 = vmatpush.msra.mxu0 %v4787
      %v4789 = vand.u32 %v2610, 4294901760
      %v4790 = vsub.f32 %v2610, %v4789
      %4791 = vmatpush.msra.mxu0 %v4790
      %v4792 = vand.u32 %v4510, 4294901760
      %v4793 = vsub.f32 %v4510, %v4792
      %4794 = vmatmul.f32.gmra.mxu0 %v4793
      %v4795 = vpop.f32.mrf.mxu0
      %v4796 = vadd.f32 %v4714, %v4795
      %v4797 = vand.u32 %v4511, 4294901760
      %v4798 = vsub.f32 %v4511, %v4797
      %4799 = vmatmul.f32.gmra.mxu0 %v4798
      %v4800 = vpop.f32.mrf.mxu0
      %v4801 = vadd.f32 %v4718, %v4800
      %v4802 = vand.u32 %v4512, 4294901760
      %v4803 = vsub.f32 %v4512, %v4802
      %4804 = vmatmul.f32.gmra.mxu0 %v4803
      %v4805 = vpop.f32.mrf.mxu0
      %v4806 = vadd.f32 %v4722, %v4805
      %v4807 = vand.u32 %v4513, 4294901760
      %v4808 = vsub.f32 %v4513, %v4807
      %4809 = vmatmul.f32.gmra.mxu0 %v4808
      %v4810 = vpop.f32.mrf.mxu0
      %v4811 = vadd.f32 %v4726, %v4810
      %v4812 = vand.u32 %v4514, 4294901760
      %v4813 = vsub.f32 %v4514, %v4812
      %4814 = vmatmul.f32.gmra.mxu0 %v4813
      %v4815 = vpop.f32.mrf.mxu0
      %v4816 = vadd.f32 %v4730, %v4815
      %v4817 = vand.u32 %v4515, 4294901760
      %v4818 = vsub.f32 %v4515, %v4817
      %4819 = vmatmul.f32.gmra.mxu0 %v4818
      %v4820 = vpop.f32.mrf.mxu0
      %v4821 = vadd.f32 %v4734, %v4820
      %v4822 = vand.u32 %v4516, 4294901760
      %v4823 = vsub.f32 %v4516, %v4822
      %4824 = vmatmul.f32.gmra.mxu0 %v4823
      %v4825 = vpop.f32.mrf.mxu0
      %v4826 = vadd.f32 %v4738, %v4825
      %v4827 = vand.u32 %v4517, 4294901760
      %v4828 = vsub.f32 %v4517, %v4827
      %4829 = vmatmul.f32.gmra.mxu0 %v4828
      %v4830 = vpop.f32.mrf.mxu0
      %v4831 = vadd.f32 %v4742, %v4830
      %4832 = vdwg.mxu0
      %v4833 = vand.u32 %v2625, 4294901760
      %4834 = vmatpush.msra.mxu0 %v4833
      %v4835 = vand.u32 %v2624, 4294901760
      %4836 = vmatpush.msra.mxu0 %v4835
      %v4837 = vand.u32 %v2623, 4294901760
      %4838 = vmatpush.msra.mxu0 %v4837
      %v4839 = vand.u32 %v2622, 4294901760
      %4840 = vmatpush.msra.mxu0 %v4839
      %v4841 = vand.u32 %v2621, 4294901760
      %4842 = vmatpush.msra.mxu0 %v4841
      %v4843 = vand.u32 %v2620, 4294901760
      %4844 = vmatpush.msra.mxu0 %v4843
      %v4845 = vand.u32 %v2619, 4294901760
      %4846 = vmatpush.msra.mxu0 %v4845
      %v4847 = vand.u32 %v2618, 4294901760
      %4848 = vmatpush.msra.mxu0 %v4847
      %v4849 = vand.u32 %v2617, 4294901760
      %4850 = vmatpush.msra.mxu0 %v4849
      %v4851 = vand.u32 %v2616, 4294901760
      %4852 = vmatpush.msra.mxu0 %v4851
      %v4853 = vand.u32 %v2615, 4294901760
      %4854 = vmatpush.msra.mxu0 %v4853
      %v4855 = vand.u32 %v2614, 4294901760
      %4856 = vmatpush.msra.mxu0 %v4855
      %v4857 = vand.u32 %v2613, 4294901760
      %4858 = vmatpush.msra.mxu0 %v4857
      %v4859 = vand.u32 %v2612, 4294901760
      %4860 = vmatpush.msra.mxu0 %v4859
      %v4861 = vand.u32 %v2611, 4294901760
      %4862 = vmatpush.msra.mxu0 %v4861
      %v4863 = vand.u32 %v2610, 4294901760
      %4864 = vmatpush.msra.mxu0 %v4863
      %v4865 = vand.u32 %v4510, 4294901760
      %v4866 = vsub.f32 %v4510, %v4865
      %v4867 = vand.u32 %v4866, 4294901760
      %4868 = vmatmul.f32.gmra.mxu0 %v4867
      %v4869 = vpop.f32.mrf.mxu0
      %v4870 = vadd.f32 %v4796, %v4869
      %v4871 = vand.u32 %v4511, 4294901760
      %v4872 = vsub.f32 %v4511, %v4871
      %v4873 = vand.u32 %v4872, 4294901760
      %4874 = vmatmul.f32.gmra.mxu0 %v4873
      %v4875 = vpop.f32.mrf.mxu0
      %v4876 = vadd.f32 %v4801, %v4875
      %v4877 = vand.u32 %v4512, 4294901760
      %v4878 = vsub.f32 %v4512, %v4877
      %v4879 = vand.u32 %v4878, 4294901760
      %4880 = vmatmul.f32.gmra.mxu0 %v4879
      %v4881 = vpop.f32.mrf.mxu0
      %v4882 = vadd.f32 %v4806, %v4881
      %v4883 = vand.u32 %v4513, 4294901760
      %v4884 = vsub.f32 %v4513, %v4883
      %v4885 = vand.u32 %v4884, 4294901760
      %4886 = vmatmul.f32.gmra.mxu0 %v4885
      %v4887 = vpop.f32.mrf.mxu0
      %v4888 = vadd.f32 %v4811, %v4887
      %v4889 = vand.u32 %v4514, 4294901760
      %v4890 = vsub.f32 %v4514, %v4889
      %v4891 = vand.u32 %v4890, 4294901760
      %4892 = vmatmul.f32.gmra.mxu0 %v4891
      %v4893 = vpop.f32.mrf.mxu0
      %v4894 = vadd.f32 %v4816, %v4893
      %v4895 = vand.u32 %v4515, 4294901760
      %v4896 = vsub.f32 %v4515, %v4895
      %v4897 = vand.u32 %v4896, 4294901760
      %4898 = vmatmul.f32.gmra.mxu0 %v4897
      %v4899 = vpop.f32.mrf.mxu0
      %v4900 = vadd.f32 %v4821, %v4899
      %v4901 = vand.u32 %v4516, 4294901760
      %v4902 = vsub.f32 %v4516, %v4901
      %v4903 = vand.u32 %v4902, 4294901760
      %4904 = vmatmul.f32.gmra.mxu0 %v4903
      %v4905 = vpop.f32.mrf.mxu0
      %v4906 = vadd.f32 %v4826, %v4905
      %v4907 = vand.u32 %v4517, 4294901760
      %v4908 = vsub.f32 %v4517, %v4907
      %v4909 = vand.u32 %v4908, 4294901760
      %4910 = vmatmul.f32.gmra.mxu0 %v4909
      %v4911 = vpop.f32.mrf.mxu0
      %v4912 = vadd.f32 %v4831, %v4911
      %4913 = vdwg.mxu0
      %v4914 = vand.u32 %v2625, 4294901760
      %v4915 = vsub.f32 %v2625, %v4914
      %v4916 = vand.u32 %v4915, 4294901760
      %4917 = vmatpush.msra.mxu0 %v4916
      %v4918 = vand.u32 %v2624, 4294901760
      %v4919 = vsub.f32 %v2624, %v4918
      %v4920 = vand.u32 %v4919, 4294901760
      %4921 = vmatpush.msra.mxu0 %v4920
      %v4922 = vand.u32 %v2623, 4294901760
      %v4923 = vsub.f32 %v2623, %v4922
      %v4924 = vand.u32 %v4923, 4294901760
      %4925 = vmatpush.msra.mxu0 %v4924
      %v4926 = vand.u32 %v2622, 4294901760
      %v4927 = vsub.f32 %v2622, %v4926
      %v4928 = vand.u32 %v4927, 4294901760
      %4929 = vmatpush.msra.mxu0 %v4928
      %v4930 = vand.u32 %v2621, 4294901760
      %v4931 = vsub.f32 %v2621, %v4930
      %v4932 = vand.u32 %v4931, 4294901760
      %4933 = vmatpush.msra.mxu0 %v4932
      %v4934 = vand.u32 %v2620, 4294901760
      %v4935 = vsub.f32 %v2620, %v4934
      %v4936 = vand.u32 %v4935, 4294901760
      %4937 = vmatpush.msra.mxu0 %v4936
      %v4938 = vand.u32 %v2619, 4294901760
      %v4939 = vsub.f32 %v2619, %v4938
      %v4940 = vand.u32 %v4939, 4294901760
      %4941 = vmatpush.msra.mxu0 %v4940
      %v4942 = vand.u32 %v2618, 4294901760
      %v4943 = vsub.f32 %v2618, %v4942
      %v4944 = vand.u32 %v4943, 4294901760
      %4945 = vmatpush.msra.mxu0 %v4944
      %v4946 = vand.u32 %v2617, 4294901760
      %v4947 = vsub.f32 %v2617, %v4946
      %v4948 = vand.u32 %v4947, 4294901760
      %4949 = vmatpush.msra.mxu0 %v4948
      %v4950 = vand.u32 %v2616, 4294901760
      %v4951 = vsub.f32 %v2616, %v4950
      %v4952 = vand.u32 %v4951, 4294901760
      %4953 = vmatpush.msra.mxu0 %v4952
      %v4954 = vand.u32 %v2615, 4294901760
      %v4955 = vsub.f32 %v2615, %v4954
      %v4956 = vand.u32 %v4955, 4294901760
      %4957 = vmatpush.msra.mxu0 %v4956
      %v4958 = vand.u32 %v2614, 4294901760
      %v4959 = vsub.f32 %v2614, %v4958
      %v4960 = vand.u32 %v4959, 4294901760
      %4961 = vmatpush.msra.mxu0 %v4960
      %v4962 = vand.u32 %v2613, 4294901760
      %v4963 = vsub.f32 %v2613, %v4962
      %v4964 = vand.u32 %v4963, 4294901760
      %4965 = vmatpush.msra.mxu0 %v4964
      %v4966 = vand.u32 %v2612, 4294901760
      %v4967 = vsub.f32 %v2612, %v4966
      %v4968 = vand.u32 %v4967, 4294901760
      %4969 = vmatpush.msra.mxu0 %v4968
      %v4970 = vand.u32 %v2611, 4294901760
      %v4971 = vsub.f32 %v2611, %v4970
      %v4972 = vand.u32 %v4971, 4294901760
      %4973 = vmatpush.msra.mxu0 %v4972
      %v4974 = vand.u32 %v2610, 4294901760
      %v4975 = vsub.f32 %v2610, %v4974
      %v4976 = vand.u32 %v4975, 4294901760
      %4977 = vmatpush.msra.mxu0 %v4976
      %v4978 = vand.u32 %v4510, 4294901760
      %4979 = vmatmul.f32.gmra.mxu0 %v4978
      %v4980 = vpop.f32.mrf.mxu0
      %v4981 = vadd.f32 %v4870, %v4980
      %v4982 = vand.u32 %v4511, 4294901760
      %4983 = vmatmul.f32.gmra.mxu0 %v4982
      %v4984 = vpop.f32.mrf.mxu0
      %v4985 = vadd.f32 %v4876, %v4984
      %v4986 = vand.u32 %v4512, 4294901760
      %4987 = vmatmul.f32.gmra.mxu0 %v4986
      %v4988 = vpop.f32.mrf.mxu0
      %v4989 = vadd.f32 %v4882, %v4988
      %v4990 = vand.u32 %v4513, 4294901760
      %4991 = vmatmul.f32.gmra.mxu0 %v4990
      %v4992 = vpop.f32.mrf.mxu0
      %v4993 = vadd.f32 %v4888, %v4992
      %v4994 = vand.u32 %v4514, 4294901760
      %4995 = vmatmul.f32.gmra.mxu0 %v4994
      %v4996 = vpop.f32.mrf.mxu0
      %v4997 = vadd.f32 %v4894, %v4996
      %v4998 = vand.u32 %v4515, 4294901760
      %4999 = vmatmul.f32.gmra.mxu0 %v4998
      %v5000 = vpop.f32.mrf.mxu0
      %v5001 = vadd.f32 %v4900, %v5000
      %v5002 = vand.u32 %v4516, 4294901760
      %5003 = vmatmul.f32.gmra.mxu0 %v5002
      %v5004 = vpop.f32.mrf.mxu0
      %v5005 = vadd.f32 %v4906, %v5004
      %v5006 = vand.u32 %v4517, 4294901760
      %5007 = vmatmul.f32.gmra.mxu0 %v5006
      %v5008 = vpop.f32.mrf.mxu0
      %v5009 = vadd.f32 %v4912, %v5008
      %5010 = vdwg.mxu0
      %v5011 = vand.u32 %v2625, 4294901760
      %5012 = vmatpush.msra.mxu0 %v5011
      %v5013 = vand.u32 %v2624, 4294901760
      %5014 = vmatpush.msra.mxu0 %v5013
      %v5015 = vand.u32 %v2623, 4294901760
      %5016 = vmatpush.msra.mxu0 %v5015
      %v5017 = vand.u32 %v2622, 4294901760
      %5018 = vmatpush.msra.mxu0 %v5017
      %v5019 = vand.u32 %v2621, 4294901760
      %5020 = vmatpush.msra.mxu0 %v5019
      %v5021 = vand.u32 %v2620, 4294901760
      %5022 = vmatpush.msra.mxu0 %v5021
      %v5023 = vand.u32 %v2619, 4294901760
      %5024 = vmatpush.msra.mxu0 %v5023
      %v5025 = vand.u32 %v2618, 4294901760
      %5026 = vmatpush.msra.mxu0 %v5025
      %v5027 = vand.u32 %v2617, 4294901760
      %5028 = vmatpush.msra.mxu0 %v5027
      %v5029 = vand.u32 %v2616, 4294901760
      %5030 = vmatpush.msra.mxu0 %v5029
      %v5031 = vand.u32 %v2615, 4294901760
      %5032 = vmatpush.msra.mxu0 %v5031
      %v5033 = vand.u32 %v2614, 4294901760
      %5034 = vmatpush.msra.mxu0 %v5033
      %v5035 = vand.u32 %v2613, 4294901760
      %5036 = vmatpush.msra.mxu0 %v5035
      %v5037 = vand.u32 %v2612, 4294901760
      %5038 = vmatpush.msra.mxu0 %v5037
      %v5039 = vand.u32 %v2611, 4294901760
      %5040 = vmatpush.msra.mxu0 %v5039
      %v5041 = vand.u32 %v2610, 4294901760
      %5042 = vmatpush.msra.mxu0 %v5041
      %v5043 = vand.u32 %v4510, 4294901760
      %5044 = vmatmul.f32.gmra.mxu0 %v5043
      %v5045 = vpop.f32.mrf.mxu0
      %v5046 = vadd.f32 %v4981, %v5045
      %v5047 = vand.u32 %v4511, 4294901760
      %5048 = vmatmul.f32.gmra.mxu0 %v5047
      %v5049 = vpop.f32.mrf.mxu0
      %v5050 = vadd.f32 %v4985, %v5049
      %v5051 = vand.u32 %v4512, 4294901760
      %5052 = vmatmul.f32.gmra.mxu0 %v5051
      %v5053 = vpop.f32.mrf.mxu0
      %v5054 = vadd.f32 %v4989, %v5053
      %v5055 = vand.u32 %v4513, 4294901760
      %5056 = vmatmul.f32.gmra.mxu0 %v5055
      %v5057 = vpop.f32.mrf.mxu0
      %v5058 = vadd.f32 %v4993, %v5057
      %v5059 = vand.u32 %v4514, 4294901760
      %5060 = vmatmul.f32.gmra.mxu0 %v5059
      %v5061 = vpop.f32.mrf.mxu0
      %v5062 = vadd.f32 %v4997, %v5061
      %v5063 = vand.u32 %v4515, 4294901760
      %5064 = vmatmul.f32.gmra.mxu0 %v5063
      %v5065 = vpop.f32.mrf.mxu0
      %v5066 = vadd.f32 %v5001, %v5065
      %v5067 = vand.u32 %v4516, 4294901760
      %5068 = vmatmul.f32.gmra.mxu0 %v5067
      %v5069 = vpop.f32.mrf.mxu0
      %v5070 = vadd.f32 %v5005, %v5069
      %v5071 = vand.u32 %v4517, 4294901760
      %5072 = vmatmul.f32.gmra.mxu0 %v5071
      %v5073 = vpop.f32.mrf.mxu0
      %v5074 = vadd.f32 %v5009, %v5073
      %5075 = vdwg.mxu0
      %v5076 = vrsqrt.pop %v5046
      %v5077 = vmul.f32 %v5076, %v5046
      %v5078 = vmul.f32 %v5077, %v5076
      %v5079 = vmul.f32 0.5, %v5078
      %v5080 = vsub.f32 1.5, %v5079
      %v5081 = vmul.f32 %v5076, %v5080
      %vm5082 = vweird.f32 %v5046
      %vm5083 = vweird.f32 %v5076
      %vm5084 = vmor %vm5082, %vm5083
      %v5085 = vsel %vm5084, %v5076, %v5081
      %v5086 = vrsqrt.pop %v5050
      %v5087 = vmul.f32 %v5086, %v5050
      %v5088 = vmul.f32 %v5087, %v5086
      %v5089 = vmul.f32 0.5, %v5088
      %v5090 = vsub.f32 1.5, %v5089
      %v5091 = vmul.f32 %v5086, %v5090
      %vm5092 = vweird.f32 %v5050
      %vm5093 = vweird.f32 %v5086
      %vm5094 = vmor %vm5092, %vm5093
      %v5095 = vsel %vm5094, %v5086, %v5091
      %v5096 = vrsqrt.pop %v5054
      %v5097 = vmul.f32 %v5096, %v5054
      %v5098 = vmul.f32 %v5097, %v5096
      %v5099 = vmul.f32 0.5, %v5098
      %v5100 = vsub.f32 1.5, %v5099
      %v5101 = vmul.f32 %v5096, %v5100
      %vm5102 = vweird.f32 %v5054
      %vm5103 = vweird.f32 %v5096
      %vm5104 = vmor %vm5102, %vm5103
      %v5105 = vsel %vm5104, %v5096, %v5101
      %v5106 = vrsqrt.pop %v5058
      %v5107 = vmul.f32 %v5106, %v5058
      %v5108 = vmul.f32 %v5107, %v5106
      %v5109 = vmul.f32 0.5, %v5108
      %v5110 = vsub.f32 1.5, %v5109
      %v5111 = vmul.f32 %v5106, %v5110
      %vm5112 = vweird.f32 %v5058
      %vm5113 = vweird.f32 %v5106
      %vm5114 = vmor %vm5112, %vm5113
      %v5115 = vsel %vm5114, %v5106, %v5111
      %v5116 = vrsqrt.pop %v5062
      %v5117 = vmul.f32 %v5116, %v5062
      %v5118 = vmul.f32 %v5117, %v5116
      %v5119 = vmul.f32 0.5, %v5118
      %v5120 = vsub.f32 1.5, %v5119
      %v5121 = vmul.f32 %v5116, %v5120
      %vm5122 = vweird.f32 %v5062
      %vm5123 = vweird.f32 %v5116
      %vm5124 = vmor %vm5122, %vm5123
      %v5125 = vsel %vm5124, %v5116, %v5121
      %v5126 = vrsqrt.pop %v5066
      %v5127 = vmul.f32 %v5126, %v5066
      %v5128 = vmul.f32 %v5127, %v5126
      %v5129 = vmul.f32 0.5, %v5128
      %v5130 = vsub.f32 1.5, %v5129
      %v5131 = vmul.f32 %v5126, %v5130
      %vm5132 = vweird.f32 %v5066
      %vm5133 = vweird.f32 %v5126
      %vm5134 = vmor %vm5132, %vm5133
      %v5135 = vsel %vm5134, %v5126, %v5131
      %v5136 = vrsqrt.pop %v5070
      %v5137 = vmul.f32 %v5136, %v5070
      %v5138 = vmul.f32 %v5137, %v5136
      %v5139 = vmul.f32 0.5, %v5138
      %v5140 = vsub.f32 1.5, %v5139
      %v5141 = vmul.f32 %v5136, %v5140
      %vm5142 = vweird.f32 %v5070
      %vm5143 = vweird.f32 %v5136
      %vm5144 = vmor %vm5142, %vm5143
      %v5145 = vsel %vm5144, %v5136, %v5141
      %v5146 = vrsqrt.pop %v5074
      %v5147 = vmul.f32 %v5146, %v5074
      %v5148 = vmul.f32 %v5147, %v5146
      %v5149 = vmul.f32 0.5, %v5148
      %v5150 = vsub.f32 1.5, %v5149
      %v5151 = vmul.f32 %v5146, %v5150
      %vm5152 = vweird.f32 %v5074
      %vm5153 = vweird.f32 %v5146
      %vm5154 = vmor %vm5152, %vm5153
      %v5155 = vsel %vm5154, %v5146, %v5151
      %v5156 = vmul.f32 %v4502, %v5085
      %v5157 = vmul.f32 %v4503, %v5095
      %v5158 = vmul.f32 %v4504, %v5105
      %v5159 = vmul.f32 %v4505, %v5115
      %v5160 = vmul.f32 %v4506, %v5125
      %v5161 = vmul.f32 %v4507, %v5135
      %v5162 = vmul.f32 %v4508, %v5145
      %v5163 = vmul.f32 %v4509, %v5155
      %v5165 = vperm.slane %v3942, 0
      %v5167 = vmul.f32 %v5156, %v5165
      %v5168 = vmul.f32 %v5157, %v5165
      %v5169 = vmul.f32 %v5158, %v5165
      %v5170 = vmul.f32 %v5159, %v5165
      %v5171 = vmul.f32 %v5160, %v5165
      %v5172 = vmul.f32 %v5161, %v5165
      %v5173 = vmul.f32 %v5162, %v5165
      %v5174 = vmul.f32 %v5163, %v5165
      %v5176 = vperm.slane %v3943, 0
      %v5178 = vadd.f32 %v5167, %v5176
      %v5179 = vadd.f32 %v5168, %v5176
      %v5180 = vadd.f32 %v5169, %v5176
      %v5181 = vadd.f32 %v5170, %v5176
      %v5182 = vadd.f32 %v5171, %v5176
      %v5183 = vadd.f32 %v5172, %v5176
      %v5184 = vadd.f32 %v5173, %v5176
      %v5185 = vadd.f32 %v5174, %v5176
      %v5186 = vmul.f32 %v5178, 0.5
      %v5187 = vmul.f32 %v5179, 0.5
      %v5188 = vmul.f32 %v5180, 0.5
      %v5189 = vmul.f32 %v5181, 0.5
      %v5190 = vmul.f32 %v5182, 0.5
      %v5191 = vmul.f32 %v5183, 0.5
      %v5192 = vmul.f32 %v5184, 0.5
      %v5193 = vmul.f32 %v5185, 0.5
      %v5194 = vmul.f32 %v5178, 0.044715
      %v5195 = vmul.f32 %v5179, 0.044715
      %v5196 = vmul.f32 %v5180, 0.044715
      %v5197 = vmul.f32 %v5181, 0.044715
      %v5198 = vmul.f32 %v5182, 0.044715
      %v5199 = vmul.f32 %v5183, 0.044715
      %v5200 = vmul.f32 %v5184, 0.044715
      %v5201 = vmul.f32 %v5185, 0.044715
      %v5202 = vmul.f32 %v5194, %v5178
      %v5203 = vmul.f32 %v5195, %v5179
      %v5204 = vmul.f32 %v5196, %v5180
      %v5205 = vmul.f32 %v5197, %v5181
      %v5206 = vmul.f32 %v5198, %v5182
      %v5207 = vmul.f32 %v5199, %v5183
      %v5208 = vmul.f32 %v5200, %v5184
      %v5209 = vmul.f32 %v5201, %v5185
      %v5210 = vmul.f32 %v5202, %v5178
      %v5211 = vmul.f32 %v5203, %v5179
      %v5212 = vmul.f32 %v5204, %v5180
      %v5213 = vmul.f32 %v5205, %v5181
      %v5214 = vmul.f32 %v5206, %v5182
      %v5215 = vmul.f32 %v5207, %v5183
      %v5216 = vmul.f32 %v5208, %v5184
      %v5217 = vmul.f32 %v5209, %v5185
      %v5218 = vadd.f32 %v5178, %v5210
      %v5219 = vadd.f32 %v5179, %v5211
      %v5220 = vadd.f32 %v5180, %v5212
      %v5221 = vadd.f32 %v5181, %v5213
      %v5222 = vadd.f32 %v5182, %v5214
      %v5223 = vadd.f32 %v5183, %v5215
      %v5224 = vadd.f32 %v5184, %v5216
      %v5225 = vadd.f32 %v5185, %v5217
      %v5226 = vmul.f32 %v5218, 0.7978846
      %v5227 = vmul.f32 %v5219, 0.7978846
      %v5228 = vmul.f32 %v5220, 0.7978846
      %v5229 = vmul.f32 %v5221, 0.7978846
      %v5230 = vmul.f32 %v5222, 0.7978846
      %v5231 = vmul.f32 %v5223, 0.7978846
      %v5232 = vmul.f32 %v5224, 0.7978846
      %v5233 = vmul.f32 %v5225, 0.7978846
      %v5234 = vtanh.pop %v5226
      %v5235 = vtanh.pop %v5227
      %v5236 = vtanh.pop %v5228
      %v5237 = vtanh.pop %v5229
      %v5238 = vtanh.pop %v5230
      %v5239 = vtanh.pop %v5231
      %v5240 = vtanh.pop %v5232
      %v5241 = vtanh.pop %v5233
      %v5242 = vadd.f32 %v5234, 1.0
      %v5243 = vadd.f32 %v5235, 1.0
      %v5244 = vadd.f32 %v5236, 1.0
      %v5245 = vadd.f32 %v5237, 1.0
      %v5246 = vadd.f32 %v5238, 1.0
      %v5247 = vadd.f32 %v5239, 1.0
      %v5248 = vadd.f32 %v5240, 1.0
      %v5249 = vadd.f32 %v5241, 1.0
      %v5250 = vmul.f32 %v5186, %v5242
      %v5251 = vmul.f32 %v5187, %v5243
      %v5252 = vmul.f32 %v5188, %v5244
      %v5253 = vmul.f32 %v5189, %v5245
      %v5254 = vmul.f32 %v5190, %v5246
      %v5255 = vmul.f32 %v5191, %v5247
      %v5256 = vmul.f32 %v5192, %v5248
      %v5257 = vmul.f32 %v5193, %v5249
      %v5258 = vld [vmem:[%s10] sm:$0xff]
      %v5259 = vld [vmem:[%s10 + $0x8] sm:$0xff]
      %v5260 = vld [vmem:[%s10 + $0x10] sm:$0xff]
      %v5261 = vld [vmem:[%s10 + $0x18] sm:$0xff]
      %v5262 = vld [vmem:[%s10 + $0x20] sm:$0xff]
      %v5263 = vld [vmem:[%s10 + $0x28] sm:$0xff]
      %v5264 = vld [vmem:[%s10 + $0x30] sm:$0xff]
      %v5265 = vld [vmem:[%s10 + $0x38] sm:$0xff]
      %v5266 = vld [vmem:[%s11] sm:$0xff]
      %v5267 = vld [vmem:[%s11 + $0x8] sm:$0xff]
      %v5268 = vld [vmem:[%s11 + $0x10] sm:$0xff]
      %v5269 = vld [vmem:[%s11 + $0x18] sm:$0xff]
      %v5270 = vld [vmem:[%s11 + $0x20] sm:$0xff]
      %v5271 = vld [vmem:[%s11 + $0x28] sm:$0xff]
      %v5272 = vld [vmem:[%s11 + $0x30] sm:$0xff]
      %v5273 = vld [vmem:[%s11 + $0x38] sm:$0xff]
      %5275 = vset.pattern.permute.xlu0 0
      %5276 = vperm.xlu0 %5275, %v5266
      %v5277 = vpop.permute.xlu0 %5276
      %5280 = vset.pattern.permute.xlu0 0
      %5281 = vperm.xlu0 %5280, %v5267
      %v5282 = vpop.permute.xlu0 %5281
      %5285 = vset.pattern.permute.xlu0 0
      %5286 = vperm.xlu0 %5285, %v5268
      %v5287 = vpop.permute.xlu0 %5286
      %5290 = vset.pattern.permute.xlu0 0
      %5291 = vperm.xlu0 %5290, %v5269
      %v5292 = vpop.permute.xlu0 %5291
      %5295 = vset.pattern.permute.xlu0 0
      %5296 = vperm.xlu0 %5295, %v5270
      %v5297 = vpop.permute.xlu0 %5296
      %5300 = vset.pattern.permute.xlu0 0
      %5301 = vperm.xlu0 %5300, %v5271
      %v5302 = vpop.permute.xlu0 %5301
      %5305 = vset.pattern.permute.xlu0 0
      %5306 = vperm.xlu0 %5305, %v5272
      %v5307 = vpop.permute.xlu0 %5306
      %5310 = vset.pattern.permute.xlu0 0
      %5311 = vperm.xlu0 %5310, %v5273
      %v5312 = vpop.permute.xlu0 %5311
      %vm5314 = vcmask 523264
      %v5316 = vsel %vm5314, %v5258, 0
      %v5319 = vsel %vm5314, %v5259, 0
      %v5322 = vsel %vm5314, %v5260, 0
      %v5325 = vsel %vm5314, %v5261, 0
      %v5328 = vsel %vm5314, %v5262, 0
      %v5331 = vsel %vm5314, %v5263, 0
      %v5334 = vsel %vm5314, %v5264, 0
      %v5337 = vsel %vm5314, %v5265, 0
      %5339 = vmatpush.msra.mxu0 0.0
      %5340 = vmatpush.msra.mxu0 0.0
      %5341 = vmatpush.msra.mxu0 0.0
      %5342 = vmatpush.msra.mxu0 0.0
      %5343 = vmatpush.msra.mxu0 0.0
      %5344 = vmatpush.msra.mxu0 0.0
      %5345 = vmatpush.msra.mxu0 0.0
      %5346 = vmatpush.msra.mxu0 0.0
      %v5347 = vand.u32 %v5257, 4294901760
      %5348 = vmatpush.msra.mxu0 %v5347
      %v5349 = vand.u32 %v5256, 4294901760
      %5350 = vmatpush.msra.mxu0 %v5349
      %v5351 = vand.u32 %v5255, 4294901760
      %5352 = vmatpush.msra.mxu0 %v5351
      %v5353 = vand.u32 %v5254, 4294901760
      %5354 = vmatpush.msra.mxu0 %v5353
      %v5355 = vand.u32 %v5253, 4294901760
      %5356 = vmatpush.msra.mxu0 %v5355
      %v5357 = vand.u32 %v5252, 4294901760
      %5358 = vmatpush.msra.mxu0 %v5357
      %v5359 = vand.u32 %v5251, 4294901760
      %5360 = vmatpush.msra.mxu0 %v5359
      %v5361 = vand.u32 %v5250, 4294901760
      %5362 = vmatpush.msra.mxu0 %v5361
      %v5363 = vand.u32 %v5316, 4294901760
      %v5364 = vsub.f32 %v5316, %v5363
      %v5365 = vand.u32 %v5364, 4294901760
      %v5366 = vsub.f32 %v5364, %v5365
      %v5367 = vand.u32 %v5366, 4294901760
      %5368 = vmatmul.f32.gmra.mxu0 %v5367
      %v5369 = vpop.f32.mrf.mxu0
      %v5370 = vadd.f32 %v5277, %v5369
      %v5371 = vand.u32 %v5319, 4294901760
      %v5372 = vsub.f32 %v5319, %v5371
      %v5373 = vand.u32 %v5372, 4294901760
      %v5374 = vsub.f32 %v5372, %v5373
      %v5375 = vand.u32 %v5374, 4294901760
      %5376 = vmatmul.f32.gmra.mxu0 %v5375
      %v5377 = vpop.f32.mrf.mxu0
      %v5378 = vadd.f32 %v5282, %v5377
      %v5379 = vand.u32 %v5322, 4294901760
      %v5380 = vsub.f32 %v5322, %v5379
      %v5381 = vand.u32 %v5380, 4294901760
      %v5382 = vsub.f32 %v5380, %v5381
      %v5383 = vand.u32 %v5382, 4294901760
      %5384 = vmatmul.f32.gmra.mxu0 %v5383
      %v5385 = vpop.f32.mrf.mxu0
      %v5386 = vadd.f32 %v5287, %v5385
      %v5387 = vand.u32 %v5325, 4294901760
      %v5388 = vsub.f32 %v5325, %v5387
      %v5389 = vand.u32 %v5388, 4294901760
      %v5390 = vsub.f32 %v5388, %v5389
      %v5391 = vand.u32 %v5390, 4294901760
      %5392 = vmatmul.f32.gmra.mxu0 %v5391
      %v5393 = vpop.f32.mrf.mxu0
      %v5394 = vadd.f32 %v5292, %v5393
      %v5395 = vand.u32 %v5328, 4294901760
      %v5396 = vsub.f32 %v5328, %v5395
      %v5397 = vand.u32 %v5396, 4294901760
      %v5398 = vsub.f32 %v5396, %v5397
      %v5399 = vand.u32 %v5398, 4294901760
      %5400 = vmatmul.f32.gmra.mxu0 %v5399
      %v5401 = vpop.f32.mrf.mxu0
      %v5402 = vadd.f32 %v5297, %v5401
      %v5403 = vand.u32 %v5331, 4294901760
      %v5404 = vsub.f32 %v5331, %v5403
      %v5405 = vand.u32 %v5404, 4294901760
      %v5406 = vsub.f32 %v5404, %v5405
      %v5407 = vand.u32 %v5406, 4294901760
      %5408 = vmatmul.f32.gmra.mxu0 %v5407
      %v5409 = vpop.f32.mrf.mxu0
      %v5410 = vadd.f32 %v5302, %v5409
      %v5411 = vand.u32 %v5334, 4294901760
      %v5412 = vsub.f32 %v5334, %v5411
      %v5413 = vand.u32 %v5412, 4294901760
      %v5414 = vsub.f32 %v5412, %v5413
      %v5415 = vand.u32 %v5414, 4294901760
      %5416 = vmatmul.f32.gmra.mxu0 %v5415
      %v5417 = vpop.f32.mrf.mxu0
      %v5418 = vadd.f32 %v5307, %v5417
      %v5419 = vand.u32 %v5337, 4294901760
      %v5420 = vsub.f32 %v5337, %v5419
      %v5421 = vand.u32 %v5420, 4294901760
      %v5422 = vsub.f32 %v5420, %v5421
      %v5423 = vand.u32 %v5422, 4294901760
      %5424 = vmatmul.f32.gmra.mxu0 %v5423
      %v5425 = vpop.f32.mrf.mxu0
      %v5426 = vadd.f32 %v5312, %v5425
      %5427 = vdwg.mxu0
      %5428 = vmatpush.msra.mxu0 0.0
      %5429 = vmatpush.msra.mxu0 0.0
      %5430 = vmatpush.msra.mxu0 0.0
      %5431 = vmatpush.msra.mxu0 0.0
      %5432 = vmatpush.msra.mxu0 0.0
      %5433 = vmatpush.msra.mxu0 0.0
      %5434 = vmatpush.msra.mxu0 0.0
      %5435 = vmatpush.msra.mxu0 0.0
      %v5436 = vand.u32 %v5257, 4294901760
      %v5437 = vsub.f32 %v5257, %v5436
      %v5438 = vand.u32 %v5437, 4294901760
      %v5439 = vsub.f32 %v5437, %v5438
      %v5440 = vand.u32 %v5439, 4294901760
      %5441 = vmatpush.msra.mxu0 %v5440
      %v5442 = vand.u32 %v5256, 4294901760
      %v5443 = vsub.f32 %v5256, %v5442
      %v5444 = vand.u32 %v5443, 4294901760
      %v5445 = vsub.f32 %v5443, %v5444
      %v5446 = vand.u32 %v5445, 4294901760
      %5447 = vmatpush.msra.mxu0 %v5446
      %v5448 = vand.u32 %v5255, 4294901760
      %v5449 = vsub.f32 %v5255, %v5448
      %v5450 = vand.u32 %v5449, 4294901760
      %v5451 = vsub.f32 %v5449, %v5450
      %v5452 = vand.u32 %v5451, 4294901760
      %5453 = vmatpush.msra.mxu0 %v5452
      %v5454 = vand.u32 %v5254, 4294901760
      %v5455 = vsub.f32 %v5254, %v5454
      %v5456 = vand.u32 %v5455, 4294901760
      %v5457 = vsub.f32 %v5455, %v5456
      %v5458 = vand.u32 %v5457, 4294901760
      %5459 = vmatpush.msra.mxu0 %v5458
      %v5460 = vand.u32 %v5253, 4294901760
      %v5461 = vsub.f32 %v5253, %v5460
      %v5462 = vand.u32 %v5461, 4294901760
      %v5463 = vsub.f32 %v5461, %v5462
      %v5464 = vand.u32 %v5463, 4294901760
      %5465 = vmatpush.msra.mxu0 %v5464
      %v5466 = vand.u32 %v5252, 4294901760
      %v5467 = vsub.f32 %v5252, %v5466
      %v5468 = vand.u32 %v5467, 4294901760
      %v5469 = vsub.f32 %v5467, %v5468
      %v5470 = vand.u32 %v5469, 4294901760
      %5471 = vmatpush.msra.mxu0 %v5470
      %v5472 = vand.u32 %v5251, 4294901760
      %v5473 = vsub.f32 %v5251, %v5472
      %v5474 = vand.u32 %v5473, 4294901760
      %v5475 = vsub.f32 %v5473, %v5474
      %v5476 = vand.u32 %v5475, 4294901760
      %5477 = vmatpush.msra.mxu0 %v5476
      %v5478 = vand.u32 %v5250, 4294901760
      %v5479 = vsub.f32 %v5250, %v5478
      %v5480 = vand.u32 %v5479, 4294901760
      %v5481 = vsub.f32 %v5479, %v5480
      %v5482 = vand.u32 %v5481, 4294901760
      %5483 = vmatpush.msra.mxu0 %v5482
      %v5484 = vand.u32 %v5316, 4294901760
      %5485 = vmatmul.f32.gmra.mxu0 %v5484
      %v5486 = vpop.f32.mrf.mxu0
      %v5487 = vadd.f32 %v5370, %v5486
      %v5488 = vand.u32 %v5319, 4294901760
      %5489 = vmatmul.f32.gmra.mxu0 %v5488
      %v5490 = vpop.f32.mrf.mxu0
      %v5491 = vadd.f32 %v5378, %v5490
      %v5492 = vand.u32 %v5322, 4294901760
      %5493 = vmatmul.f32.gmra.mxu0 %v5492
      %v5494 = vpop.f32.mrf.mxu0
      %v5495 = vadd.f32 %v5386, %v5494
      %v5496 = vand.u32 %v5325, 4294901760
      %5497 = vmatmul.f32.gmra.mxu0 %v5496
      %v5498 = vpop.f32.mrf.mxu0
      %v5499 = vadd.f32 %v5394, %v5498
      %v5500 = vand.u32 %v5328, 4294901760
      %5501 = vmatmul.f32.gmra.mxu0 %v5500
      %v5502 = vpop.f32.mrf.mxu0
      %v5503 = vadd.f32 %v5402, %v5502
      %v5504 = vand.u32 %v5331, 4294901760
      %5505 = vmatmul.f32.gmra.mxu0 %v5504
      %v5506 = vpop.f32.mrf.mxu0
      %v5507 = vadd.f32 %v5410, %v5506
      %v5508 = vand.u32 %v5334, 4294901760
      %5509 = vmatmul.f32.gmra.mxu0 %v5508
      %v5510 = vpop.f32.mrf.mxu0
      %v5511 = vadd.f32 %v5418, %v5510
      %v5512 = vand.u32 %v5337, 4294901760
      %5513 = vmatmul.f32.gmra.mxu0 %v5512
      %v5514 = vpop.f32.mrf.mxu0
      %v5515 = vadd.f32 %v5426, %v5514
      %5516 = vdwg.mxu0
      %5517 = vmatpush.msra.mxu0 0.0
      %5518 = vmatpush.msra.mxu0 0.0
      %5519 = vmatpush.msra.mxu0 0.0
      %5520 = vmatpush.msra.mxu0 0.0
      %5521 = vmatpush.msra.mxu0 0.0
      %5522 = vmatpush.msra.mxu0 0.0
      %5523 = vmatpush.msra.mxu0 0.0
      %5524 = vmatpush.msra.mxu0 0.0
      %v5525 = vand.u32 %v5257, 4294901760
      %v5526 = vsub.f32 %v5257, %v5525
      %5527 = vmatpush.msra.mxu0 %v5526
      %v5528 = vand.u32 %v5256, 4294901760
      %v5529 = vsub.f32 %v5256, %v5528
      %5530 = vmatpush.msra.mxu0 %v5529
      %v5531 = vand.u32 %v5255, 4294901760
      %v5532 = vsub.f32 %v5255, %v5531
      %5533 = vmatpush.msra.mxu0 %v5532
      %v5534 = vand.u32 %v5254, 4294901760
      %v5535 = vsub.f32 %v5254, %v5534
      %5536 = vmatpush.msra.mxu0 %v5535
      %v5537 = vand.u32 %v5253, 4294901760
      %v5538 = vsub.f32 %v5253, %v5537
      %5539 = vmatpush.msra.mxu0 %v5538
      %v5540 = vand.u32 %v5252, 4294901760
      %v5541 = vsub.f32 %v5252, %v5540
      %5542 = vmatpush.msra.mxu0 %v5541
      %v5543 = vand.u32 %v5251, 4294901760
      %v5544 = vsub.f32 %v5251, %v5543
      %5545 = vmatpush.msra.mxu0 %v5544
      %v5546 = vand.u32 %v5250, 4294901760
      %v5547 = vsub.f32 %v5250, %v5546
      %5548 = vmatpush.msra.mxu0 %v5547
      %v5549 = vand.u32 %v5316, 4294901760
      %v5550 = vsub.f32 %v5316, %v5549
      %5551 = vmatmul.f32.gmra.mxu0 %v5550
      %v5552 = vpop.f32.mrf.mxu0
      %v5553 = vadd.f32 %v5487, %v5552
      %v5554 = vand.u32 %v5319, 4294901760
      %v5555 = vsub.f32 %v5319, %v5554
      %5556 = vmatmul.f32.gmra.mxu0 %v5555
      %v5557 = vpop.f32.mrf.mxu0
      %v5558 = vadd.f32 %v5491, %v5557
      %v5559 = vand.u32 %v5322, 4294901760
      %v5560 = vsub.f32 %v5322, %v5559
      %5561 = vmatmul.f32.gmra.mxu0 %v5560
      %v5562 = vpop.f32.mrf.mxu0
      %v5563 = vadd.f32 %v5495, %v5562
      %v5564 = vand.u32 %v5325, 4294901760
      %v5565 = vsub.f32 %v5325, %v5564
      %5566 = vmatmul.f32.gmra.mxu0 %v5565
      %v5567 = vpop.f32.mrf.mxu0
      %v5568 = vadd.f32 %v5499, %v5567
      %v5569 = vand.u32 %v5328, 4294901760
      %v5570 = vsub.f32 %v5328, %v5569
      %5571 = vmatmul.f32.gmra.mxu0 %v5570
      %v5572 = vpop.f32.mrf.mxu0
      %v5573 = vadd.f32 %v5503, %v5572
      %v5574 = vand.u32 %v5331, 4294901760
      %v5575 = vsub.f32 %v5331, %v5574
      %5576 = vmatmul.f32.gmra.mxu0 %v5575
      %v5577 = vpop.f32.mrf.mxu0
      %v5578 = vadd.f32 %v5507, %v5577
      %v5579 = vand.u32 %v5334, 4294901760
      %v5580 = vsub.f32 %v5334, %v5579
      %5581 = vmatmul.f32.gmra.mxu0 %v5580
      %v5582 = vpop.f32.mrf.mxu0
      %v5583 = vadd.f32 %v5511, %v5582
      %v5584 = vand.u32 %v5337, 4294901760
      %v5585 = vsub.f32 %v5337, %v5584
      %5586 = vmatmul.f32.gmra.mxu0 %v5585
      %v5587 = vpop.f32.mrf.mxu0
      %v5588 = vadd.f32 %v5515, %v5587
      %5589 = vdwg.mxu0
      %5590 = vmatpush.msra.mxu0 0.0
      %5591 = vmatpush.msra.mxu0 0.0
      %5592 = vmatpush.msra.mxu0 0.0
      %5593 = vmatpush.msra.mxu0 0.0
      %5594 = vmatpush.msra.mxu0 0.0
      %5595 = vmatpush.msra.mxu0 0.0
      %5596 = vmatpush.msra.mxu0 0.0
      %5597 = vmatpush.msra.mxu0 0.0
      %v5598 = vand.u32 %v5257, 4294901760
      %5599 = vmatpush.msra.mxu0 %v5598
      %v5600 = vand.u32 %v5256, 4294901760
      %5601 = vmatpush.msra.mxu0 %v5600
      %v5602 = vand.u32 %v5255, 4294901760
      %5603 = vmatpush.msra.mxu0 %v5602
      %v5604 = vand.u32 %v5254, 4294901760
      %5605 = vmatpush.msra.mxu0 %v5604
      %v5606 = vand.u32 %v5253, 4294901760
      %5607 = vmatpush.msra.mxu0 %v5606
      %v5608 = vand.u32 %v5252, 4294901760
      %5609 = vmatpush.msra.mxu0 %v5608
      %v5610 = vand.u32 %v5251, 4294901760
      %5611 = vmatpush.msra.mxu0 %v5610
      %v5612 = vand.u32 %v5250, 4294901760
      %5613 = vmatpush.msra.mxu0 %v5612
      %v5614 = vand.u32 %v5316, 4294901760
      %v5615 = vsub.f32 %v5316, %v5614
      %v5616 = vand.u32 %v5615, 4294901760
      %5617 = vmatmul.f32.gmra.mxu0 %v5616
      %v5618 = vpop.f32.mrf.mxu0
      %v5619 = vadd.f32 %v5553, %v5618
      %v5620 = vand.u32 %v5319, 4294901760
      %v5621 = vsub.f32 %v5319, %v5620
      %v5622 = vand.u32 %v5621, 4294901760
      %5623 = vmatmul.f32.gmra.mxu0 %v5622
      %v5624 = vpop.f32.mrf.mxu0
      %v5625 = vadd.f32 %v5558, %v5624
      %v5626 = vand.u32 %v5322, 4294901760
      %v5627 = vsub.f32 %v5322, %v5626
      %v5628 = vand.u32 %v5627, 4294901760
      %5629 = vmatmul.f32.gmra.mxu0 %v5628
      %v5630 = vpop.f32.mrf.mxu0
      %v5631 = vadd.f32 %v5563, %v5630
      %v5632 = vand.u32 %v5325, 4294901760
      %v5633 = vsub.f32 %v5325, %v5632
      %v5634 = vand.u32 %v5633, 4294901760
      %5635 = vmatmul.f32.gmra.mxu0 %v5634
      %v5636 = vpop.f32.mrf.mxu0
      %v5637 = vadd.f32 %v5568, %v5636
      %v5638 = vand.u32 %v5328, 4294901760
      %v5639 = vsub.f32 %v5328, %v5638
      %v5640 = vand.u32 %v5639, 4294901760
      %5641 = vmatmul.f32.gmra.mxu0 %v5640
      %v5642 = vpop.f32.mrf.mxu0
      %v5643 = vadd.f32 %v5573, %v5642
      %v5644 = vand.u32 %v5331, 4294901760
      %v5645 = vsub.f32 %v5331, %v5644
      %v5646 = vand.u32 %v5645, 4294901760
      %5647 = vmatmul.f32.gmra.mxu0 %v5646
      %v5648 = vpop.f32.mrf.mxu0
      %v5649 = vadd.f32 %v5578, %v5648
      %v5650 = vand.u32 %v5334, 4294901760
      %v5651 = vsub.f32 %v5334, %v5650
      %v5652 = vand.u32 %v5651, 4294901760
      %5653 = vmatmul.f32.gmra.mxu0 %v5652
      %v5654 = vpop.f32.mrf.mxu0
      %v5655 = vadd.f32 %v5583, %v5654
      %v5656 = vand.u32 %v5337, 4294901760
      %v5657 = vsub.f32 %v5337, %v5656
      %v5658 = vand.u32 %v5657, 4294901760
      %5659 = vmatmul.f32.gmra.mxu0 %v5658
      %v5660 = vpop.f32.mrf.mxu0
      %v5661 = vadd.f32 %v5588, %v5660
      %5662 = vdwg.mxu0
      %5663 = vmatpush.msra.mxu0 0.0
      %5664 = vmatpush.msra.mxu0 0.0
      %5665 = vmatpush.msra.mxu0 0.0
      %5666 = vmatpush.msra.mxu0 0.0
      %5667 = vmatpush.msra.mxu0 0.0
      %5668 = vmatpush.msra.mxu0 0.0
      %5669 = vmatpush.msra.mxu0 0.0
      %5670 = vmatpush.msra.mxu0 0.0
      %v5671 = vand.u32 %v5257, 4294901760
      %v5672 = vsub.f32 %v5257, %v5671
      %v5673 = vand.u32 %v5672, 4294901760
      %5674 = vmatpush.msra.mxu0 %v5673
      %v5675 = vand.u32 %v5256, 4294901760
      %v5676 = vsub.f32 %v5256, %v5675
      %v5677 = vand.u32 %v5676, 4294901760
      %5678 = vmatpush.msra.mxu0 %v5677
      %v5679 = vand.u32 %v5255, 4294901760
      %v5680 = vsub.f32 %v5255, %v5679
      %v5681 = vand.u32 %v5680, 4294901760
      %5682 = vmatpush.msra.mxu0 %v5681
      %v5683 = vand.u32 %v5254, 4294901760
      %v5684 = vsub.f32 %v5254, %v5683
      %v5685 = vand.u32 %v5684, 4294901760
      %5686 = vmatpush.msra.mxu0 %v5685
      %v5687 = vand.u32 %v5253, 4294901760
      %v5688 = vsub.f32 %v5253, %v5687
      %v5689 = vand.u32 %v5688, 4294901760
      %5690 = vmatpush.msra.mxu0 %v5689
      %v5691 = vand.u32 %v5252, 4294901760
      %v5692 = vsub.f32 %v5252, %v5691
      %v5693 = vand.u32 %v5692, 4294901760
      %5694 = vmatpush.msra.mxu0 %v5693
      %v5695 = vand.u32 %v5251, 4294901760
      %v5696 = vsub.f32 %v5251, %v5695
      %v5697 = vand.u32 %v5696, 4294901760
      %5698 = vmatpush.msra.mxu0 %v5697
      %v5699 = vand.u32 %v5250, 4294901760
      %v5700 = vsub.f32 %v5250, %v5699
      %v5701 = vand.u32 %v5700, 4294901760
      %5702 = vmatpush.msra.mxu0 %v5701
      %v5703 = vand.u32 %v5316, 4294901760
      %5704 = vmatmul.f32.gmra.mxu0 %v5703
      %v5705 = vpop.f32.mrf.mxu0
      %v5706 = vadd.f32 %v5619, %v5705
      %v5707 = vand.u32 %v5319, 4294901760
      %5708 = vmatmul.f32.gmra.mxu0 %v5707
      %v5709 = vpop.f32.mrf.mxu0
      %v5710 = vadd.f32 %v5625, %v5709
      %v5711 = vand.u32 %v5322, 4294901760
      %5712 = vmatmul.f32.gmra.mxu0 %v5711
      %v5713 = vpop.f32.mrf.mxu0
      %v5714 = vadd.f32 %v5631, %v5713
      %v5715 = vand.u32 %v5325, 4294901760
      %5716 = vmatmul.f32.gmra.mxu0 %v5715
      %v5717 = vpop.f32.mrf.mxu0
      %v5718 = vadd.f32 %v5637, %v5717
      %v5719 = vand.u32 %v5328, 4294901760
      %5720 = vmatmul.f32.gmra.mxu0 %v5719
      %v5721 = vpop.f32.mrf.mxu0
      %v5722 = vadd.f32 %v5643, %v5721
      %v5723 = vand.u32 %v5331, 4294901760
      %5724 = vmatmul.f32.gmra.mxu0 %v5723
      %v5725 = vpop.f32.mrf.mxu0
      %v5726 = vadd.f32 %v5649, %v5725
      %v5727 = vand.u32 %v5334, 4294901760
      %5728 = vmatmul.f32.gmra.mxu0 %v5727
      %v5729 = vpop.f32.mrf.mxu0
      %v5730 = vadd.f32 %v5655, %v5729
      %v5731 = vand.u32 %v5337, 4294901760
      %5732 = vmatmul.f32.gmra.mxu0 %v5731
      %v5733 = vpop.f32.mrf.mxu0
      %v5734 = vadd.f32 %v5661, %v5733
      %5735 = vdwg.mxu0
      %5736 = vmatpush.msra.mxu0 0.0
      %5737 = vmatpush.msra.mxu0 0.0
      %5738 = vmatpush.msra.mxu0 0.0
      %5739 = vmatpush.msra.mxu0 0.0
      %5740 = vmatpush.msra.mxu0 0.0
      %5741 = vmatpush.msra.mxu0 0.0
      %5742 = vmatpush.msra.mxu0 0.0
      %5743 = vmatpush.msra.mxu0 0.0
      %v5744 = vand.u32 %v5257, 4294901760
      %5745 = vmatpush.msra.mxu0 %v5744
      %v5746 = vand.u32 %v5256, 4294901760
      %5747 = vmatpush.msra.mxu0 %v5746
      %v5748 = vand.u32 %v5255, 4294901760
      %5749 = vmatpush.msra.mxu0 %v5748
      %v5750 = vand.u32 %v5254, 4294901760
      %5751 = vmatpush.msra.mxu0 %v5750
      %v5752 = vand.u32 %v5253, 4294901760
      %5753 = vmatpush.msra.mxu0 %v5752
      %v5754 = vand.u32 %v5252, 4294901760
      %5755 = vmatpush.msra.mxu0 %v5754
      %v5756 = vand.u32 %v5251, 4294901760
      %5757 = vmatpush.msra.mxu0 %v5756
      %v5758 = vand.u32 %v5250, 4294901760
      %5759 = vmatpush.msra.mxu0 %v5758
      %v5760 = vand.u32 %v5316, 4294901760
      %5761 = vmatmul.f32.gmra.mxu0 %v5760
      %v5762 = vpop.f32.mrf.mxu0
      %v5763 = vadd.f32 %v5706, %v5762
      %v5764 = vand.u32 %v5319, 4294901760
      %5765 = vmatmul.f32.gmra.mxu0 %v5764
      %v5766 = vpop.f32.mrf.mxu0
      %v5767 = vadd.f32 %v5710, %v5766
      %v5768 = vand.u32 %v5322, 4294901760
      %5769 = vmatmul.f32.gmra.mxu0 %v5768
      %v5770 = vpop.f32.mrf.mxu0
      %v5771 = vadd.f32 %v5714, %v5770
      %v5772 = vand.u32 %v5325, 4294901760
      %5773 = vmatmul.f32.gmra.mxu0 %v5772
      %v5774 = vpop.f32.mrf.mxu0
      %v5775 = vadd.f32 %v5718, %v5774
      %v5776 = vand.u32 %v5328, 4294901760
      %5777 = vmatmul.f32.gmra.mxu0 %v5776
      %v5778 = vpop.f32.mrf.mxu0
      %v5779 = vadd.f32 %v5722, %v5778
      %v5780 = vand.u32 %v5331, 4294901760
      %5781 = vmatmul.f32.gmra.mxu0 %v5780
      %v5782 = vpop.f32.mrf.mxu0
      %v5783 = vadd.f32 %v5726, %v5782
      %v5784 = vand.u32 %v5334, 4294901760
      %5785 = vmatmul.f32.gmra.mxu0 %v5784
      %v5786 = vpop.f32.mrf.mxu0
      %v5787 = vadd.f32 %v5730, %v5786
      %v5788 = vand.u32 %v5337, 4294901760
      %5789 = vmatmul.f32.gmra.mxu0 %v5788
      %v5790 = vpop.f32.mrf.mxu0
      %v5791 = vadd.f32 %v5734, %v5790
      %5792 = vdwg.mxu0
      %v5793 = vld [vmem:[%s12] sm:$0xff]
      %v5794 = vld [vmem:[%s12 + $0x8] sm:$0xff]
      %v5795 = vld [vmem:[%s12 + $0x10] sm:$0xff]
      %v5796 = vld [vmem:[%s12 + $0x18] sm:$0xff]
      %v5797 = vld [vmem:[%s12 + $0x20] sm:$0xff]
      %v5798 = vld [vmem:[%s12 + $0x28] sm:$0xff]
      %v5799 = vld [vmem:[%s12 + $0x30] sm:$0xff]
      %v5800 = vld [vmem:[%s12 + $0x38] sm:$0xff]
      %v5801 = vld [vmem:[%s13] sm:$0xff]
      %v5802 = vld [vmem:[%s13 + $0x8] sm:$0xff]
      %v5803 = vld [vmem:[%s13 + $0x10] sm:$0xff]
      %v5804 = vld [vmem:[%s13 + $0x18] sm:$0xff]
      %v5805 = vld [vmem:[%s13 + $0x20] sm:$0xff]
      %v5806 = vld [vmem:[%s13 + $0x28] sm:$0xff]
      %v5807 = vld [vmem:[%s13 + $0x30] sm:$0xff]
      %v5808 = vld [vmem:[%s13 + $0x38] sm:$0xff]
      %5810 = vset.pattern.permute.xlu0 0
      %5811 = vperm.xlu0 %5810, %v5801
      %v5812 = vpop.permute.xlu0 %5811
      %5815 = vset.pattern.permute.xlu0 0
      %5816 = vperm.xlu0 %5815, %v5802
      %v5817 = vpop.permute.xlu0 %5816
      %5820 = vset.pattern.permute.xlu0 0
      %5821 = vperm.xlu0 %5820, %v5803
      %v5822 = vpop.permute.xlu0 %5821
      %5825 = vset.pattern.permute.xlu0 0
      %5826 = vperm.xlu0 %5825, %v5804
      %v5827 = vpop.permute.xlu0 %5826
      %5830 = vset.pattern.permute.xlu0 0
      %5831 = vperm.xlu0 %5830, %v5805
      %v5832 = vpop.permute.xlu0 %5831
      %5835 = vset.pattern.permute.xlu0 0
      %5836 = vperm.xlu0 %5835, %v5806
      %v5837 = vpop.permute.xlu0 %5836
      %5840 = vset.pattern.permute.xlu0 0
      %5841 = vperm.xlu0 %5840, %v5807
      %v5842 = vpop.permute.xlu0 %5841
      %5845 = vset.pattern.permute.xlu0 0
      %5846 = vperm.xlu0 %5845, %v5808
      %v5847 = vpop.permute.xlu0 %5846
      %v5850 = vsel %vm5314, %v5793, 0
      %v5853 = vsel %vm5314, %v5794, 0
      %v5856 = vsel %vm5314, %v5795, 0
      %v5859 = vsel %vm5314, %v5796, 0
      %v5862 = vsel %vm5314, %v5797, 0
      %v5865 = vsel %vm5314, %v5798, 0
      %v5868 = vsel %vm5314, %v5799, 0
      %v5871 = vsel %vm5314, %v5800, 0
      %5873 = vmatpush.msra.mxu0 0.0
      %5874 = vmatpush.msra.mxu0 0.0
      %5875 = vmatpush.msra.mxu0 0.0
      %5876 = vmatpush.msra.mxu0 0.0
      %5877 = vmatpush.msra.mxu0 0.0
      %5878 = vmatpush.msra.mxu0 0.0
      %5879 = vmatpush.msra.mxu0 0.0
      %5880 = vmatpush.msra.mxu0 0.0
      %v5881 = vand.u32 %v5257, 4294901760
      %5882 = vmatpush.msra.mxu0 %v5881
      %v5883 = vand.u32 %v5256, 4294901760
      %5884 = vmatpush.msra.mxu0 %v5883
      %v5885 = vand.u32 %v5255, 4294901760
      %5886 = vmatpush.msra.mxu0 %v5885
      %v5887 = vand.u32 %v5254, 4294901760
      %5888 = vmatpush.msra.mxu0 %v5887
      %v5889 = vand.u32 %v5253, 4294901760
      %5890 = vmatpush.msra.mxu0 %v5889
      %v5891 = vand.u32 %v5252, 4294901760
      %5892 = vmatpush.msra.mxu0 %v5891
      %v5893 = vand.u32 %v5251, 4294901760
      %5894 = vmatpush.msra.mxu0 %v5893
      %v5895 = vand.u32 %v5250, 4294901760
      %5896 = vmatpush.msra.mxu0 %v5895
      %v5897 = vand.u32 %v5850, 4294901760
      %v5898 = vsub.f32 %v5850, %v5897
      %v5899 = vand.u32 %v5898, 4294901760
      %v5900 = vsub.f32 %v5898, %v5899
      %v5901 = vand.u32 %v5900, 4294901760
      %5902 = vmatmul.f32.gmra.mxu0 %v5901
      %v5903 = vpop.f32.mrf.mxu0
      %v5904 = vadd.f32 %v5812, %v5903
      %v5905 = vand.u32 %v5853, 4294901760
      %v5906 = vsub.f32 %v5853, %v5905
      %v5907 = vand.u32 %v5906, 4294901760
      %v5908 = vsub.f32 %v5906, %v5907
      %v5909 = vand.u32 %v5908, 4294901760
      %5910 = vmatmul.f32.gmra.mxu0 %v5909
      %v5911 = vpop.f32.mrf.mxu0
      %v5912 = vadd.f32 %v5817, %v5911
      %v5913 = vand.u32 %v5856, 4294901760
      %v5914 = vsub.f32 %v5856, %v5913
      %v5915 = vand.u32 %v5914, 4294901760
      %v5916 = vsub.f32 %v5914, %v5915
      %v5917 = vand.u32 %v5916, 4294901760
      %5918 = vmatmul.f32.gmra.mxu0 %v5917
      %v5919 = vpop.f32.mrf.mxu0
      %v5920 = vadd.f32 %v5822, %v5919
      %v5921 = vand.u32 %v5859, 4294901760
      %v5922 = vsub.f32 %v5859, %v5921
      %v5923 = vand.u32 %v5922, 4294901760
      %v5924 = vsub.f32 %v5922, %v5923
      %v5925 = vand.u32 %v5924, 4294901760
      %5926 = vmatmul.f32.gmra.mxu0 %v5925
      %v5927 = vpop.f32.mrf.mxu0
      %v5928 = vadd.f32 %v5827, %v5927
      %v5929 = vand.u32 %v5862, 4294901760
      %v5930 = vsub.f32 %v5862, %v5929
      %v5931 = vand.u32 %v5930, 4294901760
      %v5932 = vsub.f32 %v5930, %v5931
      %v5933 = vand.u32 %v5932, 4294901760
      %5934 = vmatmul.f32.gmra.mxu0 %v5933
      %v5935 = vpop.f32.mrf.mxu0
      %v5936 = vadd.f32 %v5832, %v5935
      %v5937 = vand.u32 %v5865, 4294901760
      %v5938 = vsub.f32 %v5865, %v5937
      %v5939 = vand.u32 %v5938, 4294901760
      %v5940 = vsub.f32 %v5938, %v5939
      %v5941 = vand.u32 %v5940, 4294901760
      %5942 = vmatmul.f32.gmra.mxu0 %v5941
      %v5943 = vpop.f32.mrf.mxu0
      %v5944 = vadd.f32 %v5837, %v5943
      %v5945 = vand.u32 %v5868, 4294901760
      %v5946 = vsub.f32 %v5868, %v5945
      %v5947 = vand.u32 %v5946, 4294901760
      %v5948 = vsub.f32 %v5946, %v5947
      %v5949 = vand.u32 %v5948, 4294901760
      %5950 = vmatmul.f32.gmra.mxu0 %v5949
      %v5951 = vpop.f32.mrf.mxu0
      %v5952 = vadd.f32 %v5842, %v5951
      %v5953 = vand.u32 %v5871, 4294901760
      %v5954 = vsub.f32 %v5871, %v5953
      %v5955 = vand.u32 %v5954, 4294901760
      %v5956 = vsub.f32 %v5954, %v5955
      %v5957 = vand.u32 %v5956, 4294901760
      %5958 = vmatmul.f32.gmra.mxu0 %v5957
      %v5959 = vpop.f32.mrf.mxu0
      %v5960 = vadd.f32 %v5847, %v5959
      %5961 = vdwg.mxu0
      %5962 = vmatpush.msra.mxu0 0.0
      %5963 = vmatpush.msra.mxu0 0.0
      %5964 = vmatpush.msra.mxu0 0.0
      %5965 = vmatpush.msra.mxu0 0.0
      %5966 = vmatpush.msra.mxu0 0.0
      %5967 = vmatpush.msra.mxu0 0.0
      %5968 = vmatpush.msra.mxu0 0.0
      %5969 = vmatpush.msra.mxu0 0.0
      %v5970 = vand.u32 %v5257, 4294901760
      %v5971 = vsub.f32 %v5257, %v5970
      %v5972 = vand.u32 %v5971, 4294901760
      %v5973 = vsub.f32 %v5971, %v5972
      %v5974 = vand.u32 %v5973, 4294901760
      %5975 = vmatpush.msra.mxu0 %v5974
      %v5976 = vand.u32 %v5256, 4294901760
      %v5977 = vsub.f32 %v5256, %v5976
      %v5978 = vand.u32 %v5977, 4294901760
      %v5979 = vsub.f32 %v5977, %v5978
      %v5980 = vand.u32 %v5979, 4294901760
      %5981 = vmatpush.msra.mxu0 %v5980
      %v5982 = vand.u32 %v5255, 4294901760
      %v5983 = vsub.f32 %v5255, %v5982
      %v5984 = vand.u32 %v5983, 4294901760
      %v5985 = vsub.f32 %v5983, %v5984
      %v5986 = vand.u32 %v5985, 4294901760
      %5987 = vmatpush.msra.mxu0 %v5986
      %v5988 = vand.u32 %v5254, 4294901760
      %v5989 = vsub.f32 %v5254, %v5988
      %v5990 = vand.u32 %v5989, 4294901760
      %v5991 = vsub.f32 %v5989, %v5990
      %v5992 = vand.u32 %v5991, 4294901760
      %5993 = vmatpush.msra.mxu0 %v5992
      %v5994 = vand.u32 %v5253, 4294901760
      %v5995 = vsub.f32 %v5253, %v5994
      %v5996 = vand.u32 %v5995, 4294901760
      %v5997 = vsub.f32 %v5995, %v5996
      %v5998 = vand.u32 %v5997, 4294901760
      %5999 = vmatpush.msra.mxu0 %v5998
      %v6000 = vand.u32 %v5252, 4294901760
      %v6001 = vsub.f32 %v5252, %v6000
      %v6002 = vand.u32 %v6001, 4294901760
      %v6003 = vsub.f32 %v6001, %v6002
      %v6004 = vand.u32 %v6003, 4294901760
      %6005 = vmatpush.msra.mxu0 %v6004
      %v6006 = vand.u32 %v5251, 4294901760
      %v6007 = vsub.f32 %v5251, %v6006
      %v6008 = vand.u32 %v6007, 4294901760
      %v6009 = vsub.f32 %v6007, %v6008
      %v6010 = vand.u32 %v6009, 4294901760
      %6011 = vmatpush.msra.mxu0 %v6010
      %v6012 = vand.u32 %v5250, 4294901760
      %v6013 = vsub.f32 %v5250, %v6012
      %v6014 = vand.u32 %v6013, 4294901760
      %v6015 = vsub.f32 %v6013, %v6014
      %v6016 = vand.u32 %v6015, 4294901760
      %6017 = vmatpush.msra.mxu0 %v6016
      %v6018 = vand.u32 %v5850, 4294901760
      %6019 = vmatmul.f32.gmra.mxu0 %v6018
      %v6020 = vpop.f32.mrf.mxu0
      %v6021 = vadd.f32 %v5904, %v6020
      %v6022 = vand.u32 %v5853, 4294901760
      %6023 = vmatmul.f32.gmra.mxu0 %v6022
      %v6024 = vpop.f32.mrf.mxu0
      %v6025 = vadd.f32 %v5912, %v6024
      %v6026 = vand.u32 %v5856, 4294901760
      %6027 = vmatmul.f32.gmra.mxu0 %v6026
      %v6028 = vpop.f32.mrf.mxu0
      %v6029 = vadd.f32 %v5920, %v6028
      %v6030 = vand.u32 %v5859, 4294901760
      %6031 = vmatmul.f32.gmra.mxu0 %v6030
      %v6032 = vpop.f32.mrf.mxu0
      %v6033 = vadd.f32 %v5928, %v6032
      %v6034 = vand.u32 %v5862, 4294901760
      %6035 = vmatmul.f32.gmra.mxu0 %v6034
      %v6036 = vpop.f32.mrf.mxu0
      %v6037 = vadd.f32 %v5936, %v6036
      %v6038 = vand.u32 %v5865, 4294901760
      %6039 = vmatmul.f32.gmra.mxu0 %v6038
      %v6040 = vpop.f32.mrf.mxu0
      %v6041 = vadd.f32 %v5944, %v6040
      %v6042 = vand.u32 %v5868, 4294901760
      %6043 = vmatmul.f32.gmra.mxu0 %v6042
      %v6044 = vpop.f32.mrf.mxu0
      %v6045 = vadd.f32 %v5952, %v6044
      %v6046 = vand.u32 %v5871, 4294901760
      %6047 = vmatmul.f32.gmra.mxu0 %v6046
      %v6048 = vpop.f32.mrf.mxu0
      %v6049 = vadd.f32 %v5960, %v6048
      %6050 = vdwg.mxu0
      %6051 = vmatpush.msra.mxu0 0.0
      %6052 = vmatpush.msra.mxu0 0.0
      %6053 = vmatpush.msra.mxu0 0.0
      %6054 = vmatpush.msra.mxu0 0.0
      %6055 = vmatpush.msra.mxu0 0.0
      %6056 = vmatpush.msra.mxu0 0.0
      %6057 = vmatpush.msra.mxu0 0.0
      %6058 = vmatpush.msra.mxu0 0.0
      %v6059 = vand.u32 %v5257, 4294901760
      %v6060 = vsub.f32 %v5257, %v6059
      %6061 = vmatpush.msra.mxu0 %v6060
      %v6062 = vand.u32 %v5256, 4294901760
      %v6063 = vsub.f32 %v5256, %v6062
      %6064 = vmatpush.msra.mxu0 %v6063
      %v6065 = vand.u32 %v5255, 4294901760
      %v6066 = vsub.f32 %v5255, %v6065
      %6067 = vmatpush.msra.mxu0 %v6066
      %v6068 = vand.u32 %v5254, 4294901760
      %v6069 = vsub.f32 %v5254, %v6068
      %6070 = vmatpush.msra.mxu0 %v6069
      %v6071 = vand.u32 %v5253, 4294901760
      %v6072 = vsub.f32 %v5253, %v6071
      %6073 = vmatpush.msra.mxu0 %v6072
      %v6074 = vand.u32 %v5252, 4294901760
      %v6075 = vsub.f32 %v5252, %v6074
      %6076 = vmatpush.msra.mxu0 %v6075
      %v6077 = vand.u32 %v5251, 4294901760
      %v6078 = vsub.f32 %v5251, %v6077
      %6079 = vmatpush.msra.mxu0 %v6078
      %v6080 = vand.u32 %v5250, 4294901760
      %v6081 = vsub.f32 %v5250, %v6080
      %6082 = vmatpush.msra.mxu0 %v6081
      %v6083 = vand.u32 %v5850, 4294901760
      %v6084 = vsub.f32 %v5850, %v6083
      %6085 = vmatmul.f32.gmra.mxu0 %v6084
      %v6086 = vpop.f32.mrf.mxu0
      %v6087 = vadd.f32 %v6021, %v6086
      %v6088 = vand.u32 %v5853, 4294901760
      %v6089 = vsub.f32 %v5853, %v6088
      %6090 = vmatmul.f32.gmra.mxu0 %v6089
      %v6091 = vpop.f32.mrf.mxu0
      %v6092 = vadd.f32 %v6025, %v6091
      %v6093 = vand.u32 %v5856, 4294901760
      %v6094 = vsub.f32 %v5856, %v6093
      %6095 = vmatmul.f32.gmra.mxu0 %v6094
      %v6096 = vpop.f32.mrf.mxu0
      %v6097 = vadd.f32 %v6029, %v6096
      %v6098 = vand.u32 %v5859, 4294901760
      %v6099 = vsub.f32 %v5859, %v6098
      %6100 = vmatmul.f32.gmra.mxu0 %v6099
      %v6101 = vpop.f32.mrf.mxu0
      %v6102 = vadd.f32 %v6033, %v6101
      %v6103 = vand.u32 %v5862, 4294901760
      %v6104 = vsub.f32 %v5862, %v6103
      %6105 = vmatmul.f32.gmra.mxu0 %v6104
      %v6106 = vpop.f32.mrf.mxu0
      %v6107 = vadd.f32 %v6037, %v6106
      %v6108 = vand.u32 %v5865, 4294901760
      %v6109 = vsub.f32 %v5865, %v6108
      %6110 = vmatmul.f32.gmra.mxu0 %v6109
      %v6111 = vpop.f32.mrf.mxu0
      %v6112 = vadd.f32 %v6041, %v6111
      %v6113 = vand.u32 %v5868, 4294901760
      %v6114 = vsub.f32 %v5868, %v6113
      %6115 = vmatmul.f32.gmra.mxu0 %v6114
      %v6116 = vpop.f32.mrf.mxu0
      %v6117 = vadd.f32 %v6045, %v6116
      %v6118 = vand.u32 %v5871, 4294901760
      %v6119 = vsub.f32 %v5871, %v6118
      %6120 = vmatmul.f32.gmra.mxu0 %v6119
      %v6121 = vpop.f32.mrf.mxu0
      %v6122 = vadd.f32 %v6049, %v6121
      %6123 = vdwg.mxu0
      %6124 = vmatpush.msra.mxu0 0.0
      %6125 = vmatpush.msra.mxu0 0.0
      %6126 = vmatpush.msra.mxu0 0.0
      %6127 = vmatpush.msra.mxu0 0.0
      %6128 = vmatpush.msra.mxu0 0.0
      %6129 = vmatpush.msra.mxu0 0.0
      %6130 = vmatpush.msra.mxu0 0.0
      %6131 = vmatpush.msra.mxu0 0.0
      %v6132 = vand.u32 %v5257, 4294901760
      %6133 = vmatpush.msra.mxu0 %v6132
      %v6134 = vand.u32 %v5256, 4294901760
      %6135 = vmatpush.msra.mxu0 %v6134
      %v6136 = vand.u32 %v5255, 4294901760
      %6137 = vmatpush.msra.mxu0 %v6136
      %v6138 = vand.u32 %v5254, 4294901760
      %6139 = vmatpush.msra.mxu0 %v6138
      %v6140 = vand.u32 %v5253, 4294901760
      %6141 = vmatpush.msra.mxu0 %v6140
      %v6142 = vand.u32 %v5252, 4294901760
      %6143 = vmatpush.msra.mxu0 %v6142
      %v6144 = vand.u32 %v5251, 4294901760
      %6145 = vmatpush.msra.mxu0 %v6144
      %v6146 = vand.u32 %v5250, 4294901760
      %6147 = vmatpush.msra.mxu0 %v6146
      %v6148 = vand.u32 %v5850, 4294901760
      %v6149 = vsub.f32 %v5850, %v6148
      %v6150 = vand.u32 %v6149, 4294901760
      %6151 = vmatmul.f32.gmra.mxu0 %v6150
      %v6152 = vpop.f32.mrf.mxu0
      %v6153 = vadd.f32 %v6087, %v6152
      %v6154 = vand.u32 %v5853, 4294901760
      %v6155 = vsub.f32 %v5853, %v6154
      %v6156 = vand.u32 %v6155, 4294901760
      %6157 = vmatmul.f32.gmra.mxu0 %v6156
      %v6158 = vpop.f32.mrf.mxu0
      %v6159 = vadd.f32 %v6092, %v6158
      %v6160 = vand.u32 %v5856, 4294901760
      %v6161 = vsub.f32 %v5856, %v6160
      %v6162 = vand.u32 %v6161, 4294901760
      %6163 = vmatmul.f32.gmra.mxu0 %v6162
      %v6164 = vpop.f32.mrf.mxu0
      %v6165 = vadd.f32 %v6097, %v6164
      %v6166 = vand.u32 %v5859, 4294901760
      %v6167 = vsub.f32 %v5859, %v6166
      %v6168 = vand.u32 %v6167, 4294901760
      %6169 = vmatmul.f32.gmra.mxu0 %v6168
      %v6170 = vpop.f32.mrf.mxu0
      %v6171 = vadd.f32 %v6102, %v6170
      %v6172 = vand.u32 %v5862, 4294901760
      %v6173 = vsub.f32 %v5862, %v6172
      %v6174 = vand.u32 %v6173, 4294901760
      %6175 = vmatmul.f32.gmra.mxu0 %v6174
      %v6176 = vpop.f32.mrf.mxu0
      %v6177 = vadd.f32 %v6107, %v6176
      %v6178 = vand.u32 %v5865, 4294901760
      %v6179 = vsub.f32 %v5865, %v6178
      %v6180 = vand.u32 %v6179, 4294901760
      %6181 = vmatmul.f32.gmra.mxu0 %v6180
      %v6182 = vpop.f32.mrf.mxu0
      %v6183 = vadd.f32 %v6112, %v6182
      %v6184 = vand.u32 %v5868, 4294901760
      %v6185 = vsub.f32 %v5868, %v6184
      %v6186 = vand.u32 %v6185, 4294901760
      %6187 = vmatmul.f32.gmra.mxu0 %v6186
      %v6188 = vpop.f32.mrf.mxu0
      %v6189 = vadd.f32 %v6117, %v6188
      %v6190 = vand.u32 %v5871, 4294901760
      %v6191 = vsub.f32 %v5871, %v6190
      %v6192 = vand.u32 %v6191, 4294901760
      %6193 = vmatmul.f32.gmra.mxu0 %v6192
      %v6194 = vpop.f32.mrf.mxu0
      %v6195 = vadd.f32 %v6122, %v6194
      %6196 = vdwg.mxu0
      %6197 = vmatpush.msra.mxu0 0.0
      %6198 = vmatpush.msra.mxu0 0.0
      %6199 = vmatpush.msra.mxu0 0.0
      %6200 = vmatpush.msra.mxu0 0.0
      %6201 = vmatpush.msra.mxu0 0.0
      %6202 = vmatpush.msra.mxu0 0.0
      %6203 = vmatpush.msra.mxu0 0.0
      %6204 = vmatpush.msra.mxu0 0.0
      %v6205 = vand.u32 %v5257, 4294901760
      %v6206 = vsub.f32 %v5257, %v6205
      %v6207 = vand.u32 %v6206, 4294901760
      %6208 = vmatpush.msra.mxu0 %v6207
      %v6209 = vand.u32 %v5256, 4294901760
      %v6210 = vsub.f32 %v5256, %v6209
      %v6211 = vand.u32 %v6210, 4294901760
      %6212 = vmatpush.msra.mxu0 %v6211
      %v6213 = vand.u32 %v5255, 4294901760
      %v6214 = vsub.f32 %v5255, %v6213
      %v6215 = vand.u32 %v6214, 4294901760
      %6216 = vmatpush.msra.mxu0 %v6215
      %v6217 = vand.u32 %v5254, 4294901760
      %v6218 = vsub.f32 %v5254, %v6217
      %v6219 = vand.u32 %v6218, 4294901760
      %6220 = vmatpush.msra.mxu0 %v6219
      %v6221 = vand.u32 %v5253, 4294901760
      %v6222 = vsub.f32 %v5253, %v6221
      %v6223 = vand.u32 %v6222, 4294901760
      %6224 = vmatpush.msra.mxu0 %v6223
      %v6225 = vand.u32 %v5252, 4294901760
      %v6226 = vsub.f32 %v5252, %v6225
      %v6227 = vand.u32 %v6226, 4294901760
      %6228 = vmatpush.msra.mxu0 %v6227
      %v6229 = vand.u32 %v5251, 4294901760
      %v6230 = vsub.f32 %v5251, %v6229
      %v6231 = vand.u32 %v6230, 4294901760
      %6232 = vmatpush.msra.mxu0 %v6231
      %v6233 = vand.u32 %v5250, 4294901760
      %v6234 = vsub.f32 %v5250, %v6233
      %v6235 = vand.u32 %v6234, 4294901760
      %6236 = vmatpush.msra.mxu0 %v6235
      %v6237 = vand.u32 %v5850, 4294901760
      %6238 = vmatmul.f32.gmra.mxu0 %v6237
      %v6239 = vpop.f32.mrf.mxu0
      %v6240 = vadd.f32 %v6153, %v6239
      %v6241 = vand.u32 %v5853, 4294901760
      %6242 = vmatmul.f32.gmra.mxu0 %v6241
      %v6243 = vpop.f32.mrf.mxu0
      %v6244 = vadd.f32 %v6159, %v6243
      %v6245 = vand.u32 %v5856, 4294901760
      %6246 = vmatmul.f32.gmra.mxu0 %v6245
      %v6247 = vpop.f32.mrf.mxu0
      %v6248 = vadd.f32 %v6165, %v6247
      %v6249 = vand.u32 %v5859, 4294901760
      %6250 = vmatmul.f32.gmra.mxu0 %v6249
      %v6251 = vpop.f32.mrf.mxu0
      %v6252 = vadd.f32 %v6171, %v6251
      %v6253 = vand.u32 %v5862, 4294901760
      %6254 = vmatmul.f32.gmra.mxu0 %v6253
      %v6255 = vpop.f32.mrf.mxu0
      %v6256 = vadd.f32 %v6177, %v6255
      %v6257 = vand.u32 %v5865, 4294901760
      %6258 = vmatmul.f32.gmra.mxu0 %v6257
      %v6259 = vpop.f32.mrf.mxu0
      %v6260 = vadd.f32 %v6183, %v6259
      %v6261 = vand.u32 %v5868, 4294901760
      %6262 = vmatmul.f32.gmra.mxu0 %v6261
      %v6263 = vpop.f32.mrf.mxu0
      %v6264 = vadd.f32 %v6189, %v6263
      %v6265 = vand.u32 %v5871, 4294901760
      %6266 = vmatmul.f32.gmra.mxu0 %v6265
      %v6267 = vpop.f32.mrf.mxu0
      %v6268 = vadd.f32 %v6195, %v6267
      %6269 = vdwg.mxu0
      %6270 = vmatpush.msra.mxu0 0.0
      %6271 = vmatpush.msra.mxu0 0.0
      %6272 = vmatpush.msra.mxu0 0.0
      %6273 = vmatpush.msra.mxu0 0.0
      %6274 = vmatpush.msra.mxu0 0.0
      %6275 = vmatpush.msra.mxu0 0.0
      %6276 = vmatpush.msra.mxu0 0.0
      %6277 = vmatpush.msra.mxu0 0.0
      %v6278 = vand.u32 %v5257, 4294901760
      %6279 = vmatpush.msra.mxu0 %v6278
      %v6280 = vand.u32 %v5256, 4294901760
      %6281 = vmatpush.msra.mxu0 %v6280
      %v6282 = vand.u32 %v5255, 4294901760
      %6283 = vmatpush.msra.mxu0 %v6282
      %v6284 = vand.u32 %v5254, 4294901760
      %6285 = vmatpush.msra.mxu0 %v6284
      %v6286 = vand.u32 %v5253, 4294901760
      %6287 = vmatpush.msra.mxu0 %v6286
      %v6288 = vand.u32 %v5252, 4294901760
      %6289 = vmatpush.msra.mxu0 %v6288
      %v6290 = vand.u32 %v5251, 4294901760
      %6291 = vmatpush.msra.mxu0 %v6290
      %v6292 = vand.u32 %v5250, 4294901760
      %6293 = vmatpush.msra.mxu0 %v6292
      %v6294 = vand.u32 %v5850, 4294901760
      %6295 = vmatmul.f32.gmra.mxu0 %v6294
      %v6296 = vpop.f32.mrf.mxu0
      %v6297 = vadd.f32 %v6240, %v6296
      %v6298 = vand.u32 %v5853, 4294901760
      %6299 = vmatmul.f32.gmra.mxu0 %v6298
      %v6300 = vpop.f32.mrf.mxu0
      %v6301 = vadd.f32 %v6244, %v6300
      %v6302 = vand.u32 %v5856, 4294901760
      %6303 = vmatmul.f32.gmra.mxu0 %v6302
      %v6304 = vpop.f32.mrf.mxu0
      %v6305 = vadd.f32 %v6248, %v6304
      %v6306 = vand.u32 %v5859, 4294901760
      %6307 = vmatmul.f32.gmra.mxu0 %v6306
      %v6308 = vpop.f32.mrf.mxu0
      %v6309 = vadd.f32 %v6252, %v6308
      %v6310 = vand.u32 %v5862, 4294901760
      %6311 = vmatmul.f32.gmra.mxu0 %v6310
      %v6312 = vpop.f32.mrf.mxu0
      %v6313 = vadd.f32 %v6256, %v6312
      %v6314 = vand.u32 %v5865, 4294901760
      %6315 = vmatmul.f32.gmra.mxu0 %v6314
      %v6316 = vpop.f32.mrf.mxu0
      %v6317 = vadd.f32 %v6260, %v6316
      %v6318 = vand.u32 %v5868, 4294901760
      %6319 = vmatmul.f32.gmra.mxu0 %v6318
      %v6320 = vpop.f32.mrf.mxu0
      %v6321 = vadd.f32 %v6264, %v6320
      %v6322 = vand.u32 %v5871, 4294901760
      %6323 = vmatmul.f32.gmra.mxu0 %v6322
      %v6324 = vpop.f32.mrf.mxu0
      %v6325 = vadd.f32 %v6268, %v6324
      %6326 = vdwg.mxu0
      %v6327 = vld [vmem:[%s14] sm:$0xff]
      %v6328 = vld [vmem:[%s14 + $0x8] sm:$0xff]
      %v6329 = vld [vmem:[%s14 + $0x10] sm:$0xff]
      %v6330 = vld [vmem:[%s14 + $0x18] sm:$0xff]
      %v6331 = vld [vmem:[%s14 + $0x20] sm:$0xff]
      %v6332 = vld [vmem:[%s14 + $0x28] sm:$0xff]
      %v6333 = vld [vmem:[%s14 + $0x30] sm:$0xff]
      %v6334 = vld [vmem:[%s14 + $0x38] sm:$0xff]
      %v6335 = vld [vmem:[%s14 + $0x40] sm:$0xff]
      %v6336 = vld [vmem:[%s14 + $0x48] sm:$0xff]
      %v6337 = vld [vmem:[%s14 + $0x50] sm:$0xff]
      %v6338 = vld [vmem:[%s14 + $0x58] sm:$0xff]
      %v6339 = vld [vmem:[%s14 + $0x60] sm:$0xff]
      %v6340 = vld [vmem:[%s14 + $0x68] sm:$0xff]
      %v6341 = vld [vmem:[%s14 + $0x70] sm:$0xff]
      %v6342 = vld [vmem:[%s14 + $0x78] sm:$0xff]
      %v6343 = vld [vmem:[%s15] sm:$0x1]
      %v6345 = vperm.slane %v6343, 0
      %v6347 = vand.u32 %v6342, 4294901760
      %6348 = vmatpush.msra.mxu0 %v6347
      %v6349 = vand.u32 %v6341, 4294901760
      %6350 = vmatpush.msra.mxu0 %v6349
      %v6351 = vand.u32 %v6340, 4294901760
      %6352 = vmatpush.msra.mxu0 %v6351
      %v6353 = vand.u32 %v6339, 4294901760
      %6354 = vmatpush.msra.mxu0 %v6353
      %v6355 = vand.u32 %v6338, 4294901760
      %6356 = vmatpush.msra.mxu0 %v6355
      %v6357 = vand.u32 %v6337, 4294901760
      %6358 = vmatpush.msra.mxu0 %v6357
      %v6359 = vand.u32 %v6336, 4294901760
      %6360 = vmatpush.msra.mxu0 %v6359
      %v6361 = vand.u32 %v6335, 4294901760
      %6362 = vmatpush.msra.mxu0 %v6361
      %v6363 = vand.u32 %v6334, 4294901760
      %6364 = vmatpush.msra.mxu0 %v6363
      %v6365 = vand.u32 %v6333, 4294901760
      %6366 = vmatpush.msra.mxu0 %v6365
      %v6367 = vand.u32 %v6332, 4294901760
      %6368 = vmatpush.msra.mxu0 %v6367
      %v6369 = vand.u32 %v6331, 4294901760
      %6370 = vmatpush.msra.mxu0 %v6369
      %v6371 = vand.u32 %v6330, 4294901760
      %6372 = vmatpush.msra.mxu0 %v6371
      %v6373 = vand.u32 %v6329, 4294901760
      %6374 = vmatpush.msra.mxu0 %v6373
      %v6375 = vand.u32 %v6328, 4294901760
      %6376 = vmatpush.msra.mxu0 %v6375
      %v6377 = vand.u32 %v6327, 4294901760
      %6378 = vmatpush.msra.mxu0 %v6377
      %v6379 = vand.u32 %v5250, 4294901760
      %v6380 = vsub.f32 %v5250, %v6379
      %v6381 = vand.u32 %v6380, 4294901760
      %v6382 = vsub.f32 %v6380, %v6381
      %v6383 = vand.u32 %v6382, 4294901760
      %6384 = vmatmul.f32.gmra.mxu0 %v6383
      %v6385 = vpop.f32.mrf.mxu0
      %v6386 = vadd.f32 %v6345, %v6385
      %v6387 = vand.u32 %v5251, 4294901760
      %v6388 = vsub.f32 %v5251, %v6387
      %v6389 = vand.u32 %v6388, 4294901760
      %v6390 = vsub.f32 %v6388, %v6389
      %v6391 = vand.u32 %v6390, 4294901760
      %6392 = vmatmul.f32.gmra.mxu0 %v6391
      %v6393 = vpop.f32.mrf.mxu0
      %v6394 = vadd.f32 %v6345, %v6393
      %v6395 = vand.u32 %v5252, 4294901760
      %v6396 = vsub.f32 %v5252, %v6395
      %v6397 = vand.u32 %v6396, 4294901760
      %v6398 = vsub.f32 %v6396, %v6397
      %v6399 = vand.u32 %v6398, 4294901760
      %6400 = vmatmul.f32.gmra.mxu0 %v6399
      %v6401 = vpop.f32.mrf.mxu0
      %v6402 = vadd.f32 %v6345, %v6401
      %v6403 = vand.u32 %v5253, 4294901760
      %v6404 = vsub.f32 %v5253, %v6403
      %v6405 = vand.u32 %v6404, 4294901760
      %v6406 = vsub.f32 %v6404, %v6405
      %v6407 = vand.u32 %v6406, 4294901760
      %6408 = vmatmul.f32.gmra.mxu0 %v6407
      %v6409 = vpop.f32.mrf.mxu0
      %v6410 = vadd.f32 %v6345, %v6409
      %v6411 = vand.u32 %v5254, 4294901760
      %v6412 = vsub.f32 %v5254, %v6411
      %v6413 = vand.u32 %v6412, 4294901760
      %v6414 = vsub.f32 %v6412, %v6413
      %v6415 = vand.u32 %v6414, 4294901760
      %6416 = vmatmul.f32.gmra.mxu0 %v6415
      %v6417 = vpop.f32.mrf.mxu0
      %v6418 = vadd.f32 %v6345, %v6417
      %v6419 = vand.u32 %v5255, 4294901760
      %v6420 = vsub.f32 %v5255, %v6419
      %v6421 = vand.u32 %v6420, 4294901760
      %v6422 = vsub.f32 %v6420, %v6421
      %v6423 = vand.u32 %v6422, 4294901760
      %6424 = vmatmul.f32.gmra.mxu0 %v6423
      %v6425 = vpop.f32.mrf.mxu0
      %v6426 = vadd.f32 %v6345, %v6425
      %v6427 = vand.u32 %v5256, 4294901760
      %v6428 = vsub.f32 %v5256, %v6427
      %v6429 = vand.u32 %v6428, 4294901760
      %v6430 = vsub.f32 %v6428, %v6429
      %v6431 = vand.u32 %v6430, 4294901760
      %6432 = vmatmul.f32.gmra.mxu0 %v6431
      %v6433 = vpop.f32.mrf.mxu0
      %v6434 = vadd.f32 %v6345, %v6433
      %v6435 = vand.u32 %v5257, 4294901760
      %v6436 = vsub.f32 %v5257, %v6435
      %v6437 = vand.u32 %v6436, 4294901760
      %v6438 = vsub.f32 %v6436, %v6437
      %v6439 = vand.u32 %v6438, 4294901760
      %6440 = vmatmul.f32.gmra.mxu0 %v6439
      %v6441 = vpop.f32.mrf.mxu0
      %v6442 = vadd.f32 %v6345, %v6441
      %6443 = vdwg.mxu0
      %v6444 = vand.u32 %v6342, 4294901760
      %v6445 = vsub.f32 %v6342, %v6444
      %v6446 = vand.u32 %v6445, 4294901760
      %v6447 = vsub.f32 %v6445, %v6446
      %v6448 = vand.u32 %v6447, 4294901760
      %6449 = vmatpush.msra.mxu0 %v6448
      %v6450 = vand.u32 %v6341, 4294901760
      %v6451 = vsub.f32 %v6341, %v6450
      %v6452 = vand.u32 %v6451, 4294901760
      %v6453 = vsub.f32 %v6451, %v6452
      %v6454 = vand.u32 %v6453, 4294901760
      %6455 = vmatpush.msra.mxu0 %v6454
      %v6456 = vand.u32 %v6340, 4294901760
      %v6457 = vsub.f32 %v6340, %v6456
      %v6458 = vand.u32 %v6457, 4294901760
      %v6459 = vsub.f32 %v6457, %v6458
      %v6460 = vand.u32 %v6459, 4294901760
      %6461 = vmatpush.msra.mxu0 %v6460
      %v6462 = vand.u32 %v6339, 4294901760
      %v6463 = vsub.f32 %v6339, %v6462
      %v6464 = vand.u32 %v6463, 4294901760
      %v6465 = vsub.f32 %v6463, %v6464
      %v6466 = vand.u32 %v6465, 4294901760
      %6467 = vmatpush.msra.mxu0 %v6466
      %v6468 = vand.u32 %v6338, 4294901760
      %v6469 = vsub.f32 %v6338, %v6468
      %v6470 = vand.u32 %v6469, 4294901760
      %v6471 = vsub.f32 %v6469, %v6470
      %v6472 = vand.u32 %v6471, 4294901760
      %6473 = vmatpush.msra.mxu0 %v6472
      %v6474 = vand.u32 %v6337, 4294901760
      %v6475 = vsub.f32 %v6337, %v6474
      %v6476 = vand.u32 %v6475, 4294901760
      %v6477 = vsub.f32 %v6475, %v6476
      %v6478 = vand.u32 %v6477, 4294901760
      %6479 = vmatpush.msra.mxu0 %v6478
      %v6480 = vand.u32 %v6336, 4294901760
      %v6481 = vsub.f32 %v6336, %v6480
      %v6482 = vand.u32 %v6481, 4294901760
      %v6483 = vsub.f32 %v6481, %v6482
      %v6484 = vand.u32 %v6483, 4294901760
      %6485 = vmatpush.msra.mxu0 %v6484
      %v6486 = vand.u32 %v6335, 4294901760
      %v6487 = vsub.f32 %v6335, %v6486
      %v6488 = vand.u32 %v6487, 4294901760
      %v6489 = vsub.f32 %v6487, %v6488
      %v6490 = vand.u32 %v6489, 4294901760
      %6491 = vmatpush.msra.mxu0 %v6490
      %v6492 = vand.u32 %v6334, 4294901760
      %v6493 = vsub.f32 %v6334, %v6492
      %v6494 = vand.u32 %v6493, 4294901760
      %v6495 = vsub.f32 %v6493, %v6494
      %v6496 = vand.u32 %v6495, 4294901760
      %6497 = vmatpush.msra.mxu0 %v6496
      %v6498 = vand.u32 %v6333, 4294901760
      %v6499 = vsub.f32 %v6333, %v6498
      %v6500 = vand.u32 %v6499, 4294901760
      %v6501 = vsub.f32 %v6499, %v6500
      %v6502 = vand.u32 %v6501, 4294901760
      %6503 = vmatpush.msra.mxu0 %v6502
      %v6504 = vand.u32 %v6332, 4294901760
      %v6505 = vsub.f32 %v6332, %v6504
      %v6506 = vand.u32 %v6505, 4294901760
      %v6507 = vsub.f32 %v6505, %v6506
      %v6508 = vand.u32 %v6507, 4294901760
      %6509 = vmatpush.msra.mxu0 %v6508
      %v6510 = vand.u32 %v6331, 4294901760
      %v6511 = vsub.f32 %v6331, %v6510
      %v6512 = vand.u32 %v6511, 4294901760
      %v6513 = vsub.f32 %v6511, %v6512
      %v6514 = vand.u32 %v6513, 4294901760
      %6515 = vmatpush.msra.mxu0 %v6514
      %v6516 = vand.u32 %v6330, 4294901760
      %v6517 = vsub.f32 %v6330, %v6516
      %v6518 = vand.u32 %v6517, 4294901760
      %v6519 = vsub.f32 %v6517, %v6518
      %v6520 = vand.u32 %v6519, 4294901760
      %6521 = vmatpush.msra.mxu0 %v6520
      %v6522 = vand.u32 %v6329, 4294901760
      %v6523 = vsub.f32 %v6329, %v6522
      %v6524 = vand.u32 %v6523, 4294901760
      %v6525 = vsub.f32 %v6523, %v6524
      %v6526 = vand.u32 %v6525, 4294901760
      %6527 = vmatpush.msra.mxu0 %v6526
      %v6528 = vand.u32 %v6328, 4294901760
      %v6529 = vsub.f32 %v6328, %v6528
      %v6530 = vand.u32 %v6529, 4294901760
      %v6531 = vsub.f32 %v6529, %v6530
      %v6532 = vand.u32 %v6531, 4294901760
      %6533 = vmatpush.msra.mxu0 %v6532
      %v6534 = vand.u32 %v6327, 4294901760
      %v6535 = vsub.f32 %v6327, %v6534
      %v6536 = vand.u32 %v6535, 4294901760
      %v6537 = vsub.f32 %v6535, %v6536
      %v6538 = vand.u32 %v6537, 4294901760
      %6539 = vmatpush.msra.mxu0 %v6538
      %v6540 = vand.u32 %v5250, 4294901760
      %6541 = vmatmul.f32.gmra.mxu0 %v6540
      %v6542 = vpop.f32.mrf.mxu0
      %v6543 = vadd.f32 %v6386, %v6542
      %v6544 = vand.u32 %v5251, 4294901760
      %6545 = vmatmul.f32.gmra.mxu0 %v6544
      %v6546 = vpop.f32.mrf.mxu0
      %v6547 = vadd.f32 %v6394, %v6546
      %v6548 = vand.u32 %v5252, 4294901760
      %6549 = vmatmul.f32.gmra.mxu0 %v6548
      %v6550 = vpop.f32.mrf.mxu0
      %v6551 = vadd.f32 %v6402, %v6550
      %v6552 = vand.u32 %v5253, 4294901760
      %6553 = vmatmul.f32.gmra.mxu0 %v6552
      %v6554 = vpop.f32.mrf.mxu0
      %v6555 = vadd.f32 %v6410, %v6554
      %v6556 = vand.u32 %v5254, 4294901760
      %6557 = vmatmul.f32.gmra.mxu0 %v6556
      %v6558 = vpop.f32.mrf.mxu0
      %v6559 = vadd.f32 %v6418, %v6558
      %v6560 = vand.u32 %v5255, 4294901760
      %6561 = vmatmul.f32.gmra.mxu0 %v6560
      %v6562 = vpop.f32.mrf.mxu0
      %v6563 = vadd.f32 %v6426, %v6562
      %v6564 = vand.u32 %v5256, 4294901760
      %6565 = vmatmul.f32.gmra.mxu0 %v6564
      %v6566 = vpop.f32.mrf.mxu0
      %v6567 = vadd.f32 %v6434, %v6566
      %v6568 = vand.u32 %v5257, 4294901760
      %6569 = vmatmul.f32.gmra.mxu0 %v6568
      %v6570 = vpop.f32.mrf.mxu0
      %v6571 = vadd.f32 %v6442, %v6570
      %6572 = vdwg.mxu0
      %v6573 = vand.u32 %v6342, 4294901760
      %v6574 = vsub.f32 %v6342, %v6573
      %6575 = vmatpush.msra.mxu0 %v6574
      %v6576 = vand.u32 %v6341, 4294901760
      %v6577 = vsub.f32 %v6341, %v6576
      %6578 = vmatpush.msra.mxu0 %v6577
      %v6579 = vand.u32 %v6340, 4294901760
      %v6580 = vsub.f32 %v6340, %v6579
      %6581 = vmatpush.msra.mxu0 %v6580
      %v6582 = vand.u32 %v6339, 4294901760
      %v6583 = vsub.f32 %v6339, %v6582
      %6584 = vmatpush.msra.mxu0 %v6583
      %v6585 = vand.u32 %v6338, 4294901760
      %v6586 = vsub.f32 %v6338, %v6585
      %6587 = vmatpush.msra.mxu0 %v6586
      %v6588 = vand.u32 %v6337, 4294901760
      %v6589 = vsub.f32 %v6337, %v6588
      %6590 = vmatpush.msra.mxu0 %v6589
      %v6591 = vand.u32 %v6336, 4294901760
      %v6592 = vsub.f32 %v6336, %v6591
      %6593 = vmatpush.msra.mxu0 %v6592
      %v6594 = vand.u32 %v6335, 4294901760
      %v6595 = vsub.f32 %v6335, %v6594
      %6596 = vmatpush.msra.mxu0 %v6595
      %v6597 = vand.u32 %v6334, 4294901760
      %v6598 = vsub.f32 %v6334, %v6597
      %6599 = vmatpush.msra.mxu0 %v6598
      %v6600 = vand.u32 %v6333, 4294901760
      %v6601 = vsub.f32 %v6333, %v6600
      %6602 = vmatpush.msra.mxu0 %v6601
      %v6603 = vand.u32 %v6332, 4294901760
      %v6604 = vsub.f32 %v6332, %v6603
      %6605 = vmatpush.msra.mxu0 %v6604
      %v6606 = vand.u32 %v6331, 4294901760
      %v6607 = vsub.f32 %v6331, %v6606
      %6608 = vmatpush.msra.mxu0 %v6607
      %v6609 = vand.u32 %v6330, 4294901760
      %v6610 = vsub.f32 %v6330, %v6609
      %6611 = vmatpush.msra.mxu0 %v6610
      %v6612 = vand.u32 %v6329, 4294901760
      %v6613 = vsub.f32 %v6329, %v6612
      %6614 = vmatpush.msra.mxu0 %v6613
      %v6615 = vand.u32 %v6328, 4294901760
      %v6616 = vsub.f32 %v6328, %v6615
      %6617 = vmatpush.msra.mxu0 %v6616
      %v6618 = vand.u32 %v6327, 4294901760
      %v6619 = vsub.f32 %v6327, %v6618
      %6620 = vmatpush.msra.mxu0 %v6619
      %v6621 = vand.u32 %v5250, 4294901760
      %v6622 = vsub.f32 %v5250, %v6621
      %6623 = vmatmul.f32.gmra.mxu0 %v6622
      %v6624 = vpop.f32.mrf.mxu0
      %v6625 = vadd.f32 %v6543, %v6624
      %v6626 = vand.u32 %v5251, 4294901760
      %v6627 = vsub.f32 %v5251, %v6626
      %6628 = vmatmul.f32.gmra.mxu0 %v6627
      %v6629 = vpop.f32.mrf.mxu0
      %v6630 = vadd.f32 %v6547, %v6629
      %v6631 = vand.u32 %v5252, 4294901760
      %v6632 = vsub.f32 %v5252, %v6631
      %6633 = vmatmul.f32.gmra.mxu0 %v6632
      %v6634 = vpop.f32.mrf.mxu0
      %v6635 = vadd.f32 %v6551, %v6634
      %v6636 = vand.u32 %v5253, 4294901760
      %v6637 = vsub.f32 %v5253, %v6636
      %6638 = vmatmul.f32.gmra.mxu0 %v6637
      %v6639 = vpop.f32.mrf.mxu0
      %v6640 = vadd.f32 %v6555, %v6639
      %v6641 = vand.u32 %v5254, 4294901760
      %v6642 = vsub.f32 %v5254, %v6641
      %6643 = vmatmul.f32.gmra.mxu0 %v6642
      %v6644 = vpop.f32.mrf.mxu0
      %v6645 = vadd.f32 %v6559, %v6644
      %v6646 = vand.u32 %v5255, 4294901760
      %v6647 = vsub.f32 %v5255, %v6646
      %6648 = vmatmul.f32.gmra.mxu0 %v6647
      %v6649 = vpop.f32.mrf.mxu0
      %v6650 = vadd.f32 %v6563, %v6649
      %v6651 = vand.u32 %v5256, 4294901760
      %v6652 = vsub.f32 %v5256, %v6651
      %6653 = vmatmul.f32.gmra.mxu0 %v6652
      %v6654 = vpop.f32.mrf.mxu0
      %v6655 = vadd.f32 %v6567, %v6654
      %v6656 = vand.u32 %v5257, 4294901760
      %v6657 = vsub.f32 %v5257, %v6656
      %6658 = vmatmul.f32.gmra.mxu0 %v6657
      %v6659 = vpop.f32.mrf.mxu0
      %v6660 = vadd.f32 %v6571, %v6659
      %6661 = vdwg.mxu0
      %v6662 = vand.u32 %v6342, 4294901760
      %6663 = vmatpush.msra.mxu0 %v6662
      %v6664 = vand.u32 %v6341, 4294901760
      %6665 = vmatpush.msra.mxu0 %v6664
      %v6666 = vand.u32 %v6340, 4294901760
      %6667 = vmatpush.msra.mxu0 %v6666
      %v6668 = vand.u32 %v6339, 4294901760
      %6669 = vmatpush.msra.mxu0 %v6668
      %v6670 = vand.u32 %v6338, 4294901760
      %6671 = vmatpush.msra.mxu0 %v6670
      %v6672 = vand.u32 %v6337, 4294901760
      %6673 = vmatpush.msra.mxu0 %v6672
      %v6674 = vand.u32 %v6336, 4294901760
      %6675 = vmatpush.msra.mxu0 %v6674
      %v6676 = vand.u32 %v6335, 4294901760
      %6677 = vmatpush.msra.mxu0 %v6676
      %v6678 = vand.u32 %v6334, 4294901760
      %6679 = vmatpush.msra.mxu0 %v6678
      %v6680 = vand.u32 %v6333, 4294901760
      %6681 = vmatpush.msra.mxu0 %v6680
      %v6682 = vand.u32 %v6332, 4294901760
      %6683 = vmatpush.msra.mxu0 %v6682
      %v6684 = vand.u32 %v6331, 4294901760
      %6685 = vmatpush.msra.mxu0 %v6684
      %v6686 = vand.u32 %v6330, 4294901760
      %6687 = vmatpush.msra.mxu0 %v6686
      %v6688 = vand.u32 %v6329, 4294901760
      %6689 = vmatpush.msra.mxu0 %v6688
      %v6690 = vand.u32 %v6328, 4294901760
      %6691 = vmatpush.msra.mxu0 %v6690
      %v6692 = vand.u32 %v6327, 4294901760
      %6693 = vmatpush.msra.mxu0 %v6692
      %v6694 = vand.u32 %v5250, 4294901760
      %v6695 = vsub.f32 %v5250, %v6694
      %v6696 = vand.u32 %v6695, 4294901760
      %6697 = vmatmul.f32.gmra.mxu0 %v6696
      %v6698 = vpop.f32.mrf.mxu0
      %v6699 = vadd.f32 %v6625, %v6698
      %v6700 = vand.u32 %v5251, 4294901760
      %v6701 = vsub.f32 %v5251, %v6700
      %v6702 = vand.u32 %v6701, 4294901760
      %6703 = vmatmul.f32.gmra.mxu0 %v6702
      %v6704 = vpop.f32.mrf.mxu0
      %v6705 = vadd.f32 %v6630, %v6704
      %v6706 = vand.u32 %v5252, 4294901760
      %v6707 = vsub.f32 %v5252, %v6706
      %v6708 = vand.u32 %v6707, 4294901760
      %6709 = vmatmul.f32.gmra.mxu0 %v6708
      %v6710 = vpop.f32.mrf.mxu0
      %v6711 = vadd.f32 %v6635, %v6710
      %v6712 = vand.u32 %v5253, 4294901760
      %v6713 = vsub.f32 %v5253, %v6712
      %v6714 = vand.u32 %v6713, 4294901760
      %6715 = vmatmul.f32.gmra.mxu0 %v6714
      %v6716 = vpop.f32.mrf.mxu0
      %v6717 = vadd.f32 %v6640, %v6716
      %v6718 = vand.u32 %v5254, 4294901760
      %v6719 = vsub.f32 %v5254, %v6718
      %v6720 = vand.u32 %v6719, 4294901760
      %6721 = vmatmul.f32.gmra.mxu0 %v6720
      %v6722 = vpop.f32.mrf.mxu0
      %v6723 = vadd.f32 %v6645, %v6722
      %v6724 = vand.u32 %v5255, 4294901760
      %v6725 = vsub.f32 %v5255, %v6724
      %v6726 = vand.u32 %v6725, 4294901760
      %6727 = vmatmul.f32.gmra.mxu0 %v6726
      %v6728 = vpop.f32.mrf.mxu0
      %v6729 = vadd.f32 %v6650, %v6728
      %v6730 = vand.u32 %v5256, 4294901760
      %v6731 = vsub.f32 %v5256, %v6730
      %v6732 = vand.u32 %v6731, 4294901760
      %6733 = vmatmul.f32.gmra.mxu0 %v6732
      %v6734 = vpop.f32.mrf.mxu0
      %v6735 = vadd.f32 %v6655, %v6734
      %v6736 = vand.u32 %v5257, 4294901760
      %v6737 = vsub.f32 %v5257, %v6736
      %v6738 = vand.u32 %v6737, 4294901760
      %6739 = vmatmul.f32.gmra.mxu0 %v6738
      %v6740 = vpop.f32.mrf.mxu0
      %v6741 = vadd.f32 %v6660, %v6740
      %6742 = vdwg.mxu0
      %v6743 = vand.u32 %v6342, 4294901760
      %v6744 = vsub.f32 %v6342, %v6743
      %v6745 = vand.u32 %v6744, 4294901760
      %6746 = vmatpush.msra.mxu0 %v6745
      %v6747 = vand.u32 %v6341, 4294901760
      %v6748 = vsub.f32 %v6341, %v6747
      %v6749 = vand.u32 %v6748, 4294901760
      %6750 = vmatpush.msra.mxu0 %v6749
      %v6751 = vand.u32 %v6340, 4294901760
      %v6752 = vsub.f32 %v6340, %v6751
      %v6753 = vand.u32 %v6752, 4294901760
      %6754 = vmatpush.msra.mxu0 %v6753
      %v6755 = vand.u32 %v6339, 4294901760
      %v6756 = vsub.f32 %v6339, %v6755
      %v6757 = vand.u32 %v6756, 4294901760
      %6758 = vmatpush.msra.mxu0 %v6757
      %v6759 = vand.u32 %v6338, 4294901760
      %v6760 = vsub.f32 %v6338, %v6759
      %v6761 = vand.u32 %v6760, 4294901760
      %6762 = vmatpush.msra.mxu0 %v6761
      %v6763 = vand.u32 %v6337, 4294901760
      %v6764 = vsub.f32 %v6337, %v6763
      %v6765 = vand.u32 %v6764, 4294901760
      %6766 = vmatpush.msra.mxu0 %v6765
      %v6767 = vand.u32 %v6336, 4294901760
      %v6768 = vsub.f32 %v6336, %v6767
      %v6769 = vand.u32 %v6768, 4294901760
      %6770 = vmatpush.msra.mxu0 %v6769
      %v6771 = vand.u32 %v6335, 4294901760
      %v6772 = vsub.f32 %v6335, %v6771
      %v6773 = vand.u32 %v6772, 4294901760
      %6774 = vmatpush.msra.mxu0 %v6773
      %v6775 = vand.u32 %v6334, 4294901760
      %v6776 = vsub.f32 %v6334, %v6775
      %v6777 = vand.u32 %v6776, 4294901760
      %6778 = vmatpush.msra.mxu0 %v6777
      %v6779 = vand.u32 %v6333, 4294901760
      %v6780 = vsub.f32 %v6333, %v6779
      %v6781 = vand.u32 %v6780, 4294901760
      %6782 = vmatpush.msra.mxu0 %v6781
      %v6783 = vand.u32 %v6332, 4294901760
      %v6784 = vsub.f32 %v6332, %v6783
      %v6785 = vand.u32 %v6784, 4294901760
      %6786 = vmatpush.msra.mxu0 %v6785
      %v6787 = vand.u32 %v6331, 4294901760
      %v6788 = vsub.f32 %v6331, %v6787
      %v6789 = vand.u32 %v6788, 4294901760
      %6790 = vmatpush.msra.mxu0 %v6789
      %v6791 = vand.u32 %v6330, 4294901760
      %v6792 = vsub.f32 %v6330, %v6791
      %v6793 = vand.u32 %v6792, 4294901760
      %6794 = vmatpush.msra.mxu0 %v6793
      %v6795 = vand.u32 %v6329, 4294901760
      %v6796 = vsub.f32 %v6329, %v6795
      %v6797 = vand.u32 %v6796, 4294901760
      %6798 = vmatpush.msra.mxu0 %v6797
      %v6799 = vand.u32 %v6328, 4294901760
      %v6800 = vsub.f32 %v6328, %v6799
      %v6801 = vand.u32 %v6800, 4294901760
      %6802 = vmatpush.msra.mxu0 %v6801
      %v6803 = vand.u32 %v6327, 4294901760
      %v6804 = vsub.f32 %v6327, %v6803
      %v6805 = vand.u32 %v6804, 4294901760
      %6806 = vmatpush.msra.mxu0 %v6805
      %v6807 = vand.u32 %v5250, 4294901760
      %6808 = vmatmul.f32.gmra.mxu0 %v6807
      %v6809 = vpop.f32.mrf.mxu0
      %v6810 = vadd.f32 %v6699, %v6809
      %v6811 = vand.u32 %v5251, 4294901760
      %6812 = vmatmul.f32.gmra.mxu0 %v6811
      %v6813 = vpop.f32.mrf.mxu0
      %v6814 = vadd.f32 %v6705, %v6813
      %v6815 = vand.u32 %v5252, 4294901760
      %6816 = vmatmul.f32.gmra.mxu0 %v6815
      %v6817 = vpop.f32.mrf.mxu0
      %v6818 = vadd.f32 %v6711, %v6817
      %v6819 = vand.u32 %v5253, 4294901760
      %6820 = vmatmul.f32.gmra.mxu0 %v6819
      %v6821 = vpop.f32.mrf.mxu0
      %v6822 = vadd.f32 %v6717, %v6821
      %v6823 = vand.u32 %v5254, 4294901760
      %6824 = vmatmul.f32.gmra.mxu0 %v6823
      %v6825 = vpop.f32.mrf.mxu0
      %v6826 = vadd.f32 %v6723, %v6825
      %v6827 = vand.u32 %v5255, 4294901760
      %6828 = vmatmul.f32.gmra.mxu0 %v6827
      %v6829 = vpop.f32.mrf.mxu0
      %v6830 = vadd.f32 %v6729, %v6829
      %v6831 = vand.u32 %v5256, 4294901760
      %6832 = vmatmul.f32.gmra.mxu0 %v6831
      %v6833 = vpop.f32.mrf.mxu0
      %v6834 = vadd.f32 %v6735, %v6833
      %v6835 = vand.u32 %v5257, 4294901760
      %6836 = vmatmul.f32.gmra.mxu0 %v6835
      %v6837 = vpop.f32.mrf.mxu0
      %v6838 = vadd.f32 %v6741, %v6837
      %6839 = vdwg.mxu0
      %v6840 = vand.u32 %v6342, 4294901760
      %6841 = vmatpush.msra.mxu0 %v6840
      %v6842 = vand.u32 %v6341, 4294901760
      %6843 = vmatpush.msra.mxu0 %v6842
      %v6844 = vand.u32 %v6340, 4294901760
      %6845 = vmatpush.msra.mxu0 %v6844
      %v6846 = vand.u32 %v6339, 4294901760
      %6847 = vmatpush.msra.mxu0 %v6846
      %v6848 = vand.u32 %v6338, 4294901760
      %6849 = vmatpush.msra.mxu0 %v6848
      %v6850 = vand.u32 %v6337, 4294901760
      %6851 = vmatpush.msra.mxu0 %v6850
      %v6852 = vand.u32 %v6336, 4294901760
      %6853 = vmatpush.msra.mxu0 %v6852
      %v6854 = vand.u32 %v6335, 4294901760
      %6855 = vmatpush.msra.mxu0 %v6854
      %v6856 = vand.u32 %v6334, 4294901760
      %6857 = vmatpush.msra.mxu0 %v6856
      %v6858 = vand.u32 %v6333, 4294901760
      %6859 = vmatpush.msra.mxu0 %v6858
      %v6860 = vand.u32 %v6332, 4294901760
      %6861 = vmatpush.msra.mxu0 %v6860
      %v6862 = vand.u32 %v6331, 4294901760
      %6863 = vmatpush.msra.mxu0 %v6862
      %v6864 = vand.u32 %v6330, 4294901760
      %6865 = vmatpush.msra.mxu0 %v6864
      %v6866 = vand.u32 %v6329, 4294901760
      %6867 = vmatpush.msra.mxu0 %v6866
      %v6868 = vand.u32 %v6328, 4294901760
      %6869 = vmatpush.msra.mxu0 %v6868
      %v6870 = vand.u32 %v6327, 4294901760
      %6871 = vmatpush.msra.mxu0 %v6870
      %v6872 = vand.u32 %v5250, 4294901760
      %6873 = vmatmul.f32.gmra.mxu0 %v6872
      %v6874 = vpop.f32.mrf.mxu0
      %v6875 = vadd.f32 %v6810, %v6874
      %v6876 = vand.u32 %v5251, 4294901760
      %6877 = vmatmul.f32.gmra.mxu0 %v6876
      %v6878 = vpop.f32.mrf.mxu0
      %v6879 = vadd.f32 %v6814, %v6878
      %v6880 = vand.u32 %v5252, 4294901760
      %6881 = vmatmul.f32.gmra.mxu0 %v6880
      %v6882 = vpop.f32.mrf.mxu0
      %v6883 = vadd.f32 %v6818, %v6882
      %v6884 = vand.u32 %v5253, 4294901760
      %6885 = vmatmul.f32.gmra.mxu0 %v6884
      %v6886 = vpop.f32.mrf.mxu0
      %v6887 = vadd.f32 %v6822, %v6886
      %v6888 = vand.u32 %v5254, 4294901760
      %6889 = vmatmul.f32.gmra.mxu0 %v6888
      %v6890 = vpop.f32.mrf.mxu0
      %v6891 = vadd.f32 %v6826, %v6890
      %v6892 = vand.u32 %v5255, 4294901760
      %6893 = vmatmul.f32.gmra.mxu0 %v6892
      %v6894 = vpop.f32.mrf.mxu0
      %v6895 = vadd.f32 %v6830, %v6894
      %v6896 = vand.u32 %v5256, 4294901760
      %6897 = vmatmul.f32.gmra.mxu0 %v6896
      %v6898 = vpop.f32.mrf.mxu0
      %v6899 = vadd.f32 %v6834, %v6898
      %v6900 = vand.u32 %v5257, 4294901760
      %6901 = vmatmul.f32.gmra.mxu0 %v6900
      %v6902 = vpop.f32.mrf.mxu0
      %v6903 = vadd.f32 %v6838, %v6902
      %6904 = vdwg.mxu0
      %v6905 = vld [vmem:[%s16] sm:$0xff]
      %v6906 = vld [vmem:[%s16 + $0x8] sm:$0xff]
      %v6907 = vld [vmem:[%s16 + $0x10] sm:$0xff]
      %v6908 = vld [vmem:[%s16 + $0x18] sm:$0xff]
      %v6909 = vld [vmem:[%s16 + $0x20] sm:$0xff]
      %v6910 = vld [vmem:[%s16 + $0x28] sm:$0xff]
      %v6911 = vld [vmem:[%s16 + $0x30] sm:$0xff]
      %v6912 = vld [vmem:[%s16 + $0x38] sm:$0xff]
      %v6913 = vld [vmem:[%s16 + $0x40] sm:$0xff]
      %v6914 = vld [vmem:[%s16 + $0x48] sm:$0xff]
      %v6915 = vld [vmem:[%s16 + $0x50] sm:$0xff]
      %v6916 = vld [vmem:[%s16 + $0x58] sm:$0xff]
      %v6917 = vld [vmem:[%s16 + $0x60] sm:$0xff]
      %v6918 = vld [vmem:[%s16 + $0x68] sm:$0xff]
      %v6919 = vld [vmem:[%s16 + $0x70] sm:$0xff]
      %v6920 = vld [vmem:[%s16 + $0x78] sm:$0xff]
      %v6921 = vld [vmem:[%s17] sm:$0xff]
      %v6922 = vld [vmem:[%s17 + $0x8] sm:$0xff]
      %v6923 = vld [vmem:[%s17 + $0x10] sm:$0xff]
      %v6924 = vld [vmem:[%s17 + $0x18] sm:$0xff]
      %v6925 = vld [vmem:[%s17 + $0x20] sm:$0xff]
      %v6926 = vld [vmem:[%s17 + $0x28] sm:$0xff]
      %v6927 = vld [vmem:[%s17 + $0x30] sm:$0xff]
      %v6928 = vld [vmem:[%s17 + $0x38] sm:$0xff]
      %v6929 = vld [vmem:[%s17 + $0x40] sm:$0xff]
      %v6930 = vld [vmem:[%s17 + $0x48] sm:$0xff]
      %v6931 = vld [vmem:[%s17 + $0x50] sm:$0xff]
      %v6932 = vld [vmem:[%s17 + $0x58] sm:$0xff]
      %v6933 = vld [vmem:[%s17 + $0x60] sm:$0xff]
      %v6934 = vld [vmem:[%s17 + $0x68] sm:$0xff]
      %v6935 = vld [vmem:[%s17 + $0x70] sm:$0xff]
      %v6936 = vld [vmem:[%s17 + $0x78] sm:$0xff]
      %v6937 = vand.u32 %v6936, 4294901760
      %6938 = vmatpush.msra.mxu0 %v6937
      %v6939 = vand.u32 %v6935, 4294901760
      %6940 = vmatpush.msra.mxu0 %v6939
      %v6941 = vand.u32 %v6934, 4294901760
      %6942 = vmatpush.msra.mxu0 %v6941
      %v6943 = vand.u32 %v6933, 4294901760
      %6944 = vmatpush.msra.mxu0 %v6943
      %v6945 = vand.u32 %v6932, 4294901760
      %6946 = vmatpush.msra.mxu0 %v6945
      %v6947 = vand.u32 %v6931, 4294901760
      %6948 = vmatpush.msra.mxu0 %v6947
      %v6949 = vand.u32 %v6930, 4294901760
      %6950 = vmatpush.msra.mxu0 %v6949
      %v6951 = vand.u32 %v6929, 4294901760
      %6952 = vmatpush.msra.mxu0 %v6951
      %v6953 = vand.u32 %v6928, 4294901760
      %6954 = vmatpush.msra.mxu0 %v6953
      %v6955 = vand.u32 %v6927, 4294901760
      %6956 = vmatpush.msra.mxu0 %v6955
      %v6957 = vand.u32 %v6926, 4294901760
      %6958 = vmatpush.msra.mxu0 %v6957
      %v6959 = vand.u32 %v6925, 4294901760
      %6960 = vmatpush.msra.mxu0 %v6959
      %v6961 = vand.u32 %v6924, 4294901760
      %6962 = vmatpush.msra.mxu0 %v6961
      %v6963 = vand.u32 %v6923, 4294901760
      %6964 = vmatpush.msra.mxu0 %v6963
      %v6965 = vand.u32 %v6922, 4294901760
      %6966 = vmatpush.msra.mxu0 %v6965
      %v6967 = vand.u32 %v6921, 4294901760
      %6968 = vmatpush.msra.mxu0 %v6967
      %v6969 = vand.u32 %v5763, 4294901760
      %v6970 = vsub.f32 %v5763, %v6969
      %v6971 = vand.u32 %v6970, 4294901760
      %v6972 = vsub.f32 %v6970, %v6971
      %v6973 = vand.u32 %v6972, 4294901760
      %6974 = vmatmul.f32.gmra.mxu0 %v6973
      %v6975 = vpop.f32.mrf.mxu0
      %v6976 = vadd.f32 0.0, %v6975
      %v6977 = vand.u32 %v5767, 4294901760
      %v6978 = vsub.f32 %v5767, %v6977
      %v6979 = vand.u32 %v6978, 4294901760
      %v6980 = vsub.f32 %v6978, %v6979
      %v6981 = vand.u32 %v6980, 4294901760
      %6982 = vmatmul.f32.gmra.mxu0 %v6981
      %v6983 = vpop.f32.mrf.mxu0
      %v6984 = vadd.f32 0.0, %v6983
      %v6985 = vand.u32 %v5771, 4294901760
      %v6986 = vsub.f32 %v5771, %v6985
      %v6987 = vand.u32 %v6986, 4294901760
      %v6988 = vsub.f32 %v6986, %v6987
      %v6989 = vand.u32 %v6988, 4294901760
      %6990 = vmatmul.f32.gmra.mxu0 %v6989
      %v6991 = vpop.f32.mrf.mxu0
      %v6992 = vadd.f32 0.0, %v6991
      %v6993 = vand.u32 %v5775, 4294901760
      %v6994 = vsub.f32 %v5775, %v6993
      %v6995 = vand.u32 %v6994, 4294901760
      %v6996 = vsub.f32 %v6994, %v6995
      %v6997 = vand.u32 %v6996, 4294901760
      %6998 = vmatmul.f32.gmra.mxu0 %v6997
      %v6999 = vpop.f32.mrf.mxu0
      %v7000 = vadd.f32 0.0, %v6999
      %v7001 = vand.u32 %v5779, 4294901760
      %v7002 = vsub.f32 %v5779, %v7001
      %v7003 = vand.u32 %v7002, 4294901760
      %v7004 = vsub.f32 %v7002, %v7003
      %v7005 = vand.u32 %v7004, 4294901760
      %7006 = vmatmul.f32.gmra.mxu0 %v7005
      %v7007 = vpop.f32.mrf.mxu0
      %v7008 = vadd.f32 0.0, %v7007
      %v7009 = vand.u32 %v5783, 4294901760
      %v7010 = vsub.f32 %v5783, %v7009
      %v7011 = vand.u32 %v7010, 4294901760
      %v7012 = vsub.f32 %v7010, %v7011
      %v7013 = vand.u32 %v7012, 4294901760
      %7014 = vmatmul.f32.gmra.mxu0 %v7013
      %v7015 = vpop.f32.mrf.mxu0
      %v7016 = vadd.f32 0.0, %v7015
      %v7017 = vand.u32 %v5787, 4294901760
      %v7018 = vsub.f32 %v5787, %v7017
      %v7019 = vand.u32 %v7018, 4294901760
      %v7020 = vsub.f32 %v7018, %v7019
      %v7021 = vand.u32 %v7020, 4294901760
      %7022 = vmatmul.f32.gmra.mxu0 %v7021
      %v7023 = vpop.f32.mrf.mxu0
      %v7024 = vadd.f32 0.0, %v7023
      %v7025 = vand.u32 %v5791, 4294901760
      %v7026 = vsub.f32 %v5791, %v7025
      %v7027 = vand.u32 %v7026, 4294901760
      %v7028 = vsub.f32 %v7026, %v7027
      %v7029 = vand.u32 %v7028, 4294901760
      %7030 = vmatmul.f32.gmra.mxu0 %v7029
      %v7031 = vpop.f32.mrf.mxu0
      %v7032 = vadd.f32 0.0, %v7031
      %7033 = vdwg.mxu0
      %v7034 = vand.u32 %v6936, 4294901760
      %v7035 = vsub.f32 %v6936, %v7034
      %v7036 = vand.u32 %v7035, 4294901760
      %v7037 = vsub.f32 %v7035, %v7036
      %v7038 = vand.u32 %v7037, 4294901760
      %7039 = vmatpush.msra.mxu0 %v7038
      %v7040 = vand.u32 %v6935, 4294901760
      %v7041 = vsub.f32 %v6935, %v7040
      %v7042 = vand.u32 %v7041, 4294901760
      %v7043 = vsub.f32 %v7041, %v7042
      %v7044 = vand.u32 %v7043, 4294901760
      %7045 = vmatpush.msra.mxu0 %v7044
      %v7046 = vand.u32 %v6934, 4294901760
      %v7047 = vsub.f32 %v6934, %v7046
      %v7048 = vand.u32 %v7047, 4294901760
      %v7049 = vsub.f32 %v7047, %v7048
      %v7050 = vand.u32 %v7049, 4294901760
      %7051 = vmatpush.msra.mxu0 %v7050
      %v7052 = vand.u32 %v6933, 4294901760
      %v7053 = vsub.f32 %v6933, %v7052
      %v7054 = vand.u32 %v7053, 4294901760
      %v7055 = vsub.f32 %v7053, %v7054
      %v7056 = vand.u32 %v7055, 4294901760
      %7057 = vmatpush.msra.mxu0 %v7056
      %v7058 = vand.u32 %v6932, 4294901760
      %v7059 = vsub.f32 %v6932, %v7058
      %v7060 = vand.u32 %v7059, 4294901760
      %v7061 = vsub.f32 %v7059, %v7060
      %v7062 = vand.u32 %v7061, 4294901760
      %7063 = vmatpush.msra.mxu0 %v7062
      %v7064 = vand.u32 %v6931, 4294901760
      %v7065 = vsub.f32 %v6931, %v7064
      %v7066 = vand.u32 %v7065, 4294901760
      %v7067 = vsub.f32 %v7065, %v7066
      %v7068 = vand.u32 %v7067, 4294901760
      %7069 = vmatpush.msra.mxu0 %v7068
      %v7070 = vand.u32 %v6930, 4294901760
      %v7071 = vsub.f32 %v6930, %v7070
      %v7072 = vand.u32 %v7071, 4294901760
      %v7073 = vsub.f32 %v7071, %v7072
      %v7074 = vand.u32 %v7073, 4294901760
      %7075 = vmatpush.msra.mxu0 %v7074
      %v7076 = vand.u32 %v6929, 4294901760
      %v7077 = vsub.f32 %v6929, %v7076
      %v7078 = vand.u32 %v7077, 4294901760
      %v7079 = vsub.f32 %v7077, %v7078
      %v7080 = vand.u32 %v7079, 4294901760
      %7081 = vmatpush.msra.mxu0 %v7080
      %v7082 = vand.u32 %v6928, 4294901760
      %v7083 = vsub.f32 %v6928, %v7082
      %v7084 = vand.u32 %v7083, 4294901760
      %v7085 = vsub.f32 %v7083, %v7084
      %v7086 = vand.u32 %v7085, 4294901760
      %7087 = vmatpush.msra.mxu0 %v7086
      %v7088 = vand.u32 %v6927, 4294901760
      %v7089 = vsub.f32 %v6927, %v7088
      %v7090 = vand.u32 %v7089, 4294901760
      %v7091 = vsub.f32 %v7089, %v7090
      %v7092 = vand.u32 %v7091, 4294901760
      %7093 = vmatpush.msra.mxu0 %v7092
      %v7094 = vand.u32 %v6926, 4294901760
      %v7095 = vsub.f32 %v6926, %v7094
      %v7096 = vand.u32 %v7095, 4294901760
      %v7097 = vsub.f32 %v7095, %v7096
      %v7098 = vand.u32 %v7097, 4294901760
      %7099 = vmatpush.msra.mxu0 %v7098
      %v7100 = vand.u32 %v6925, 4294901760
      %v7101 = vsub.f32 %v6925, %v7100
      %v7102 = vand.u32 %v7101, 4294901760
      %v7103 = vsub.f32 %v7101, %v7102
      %v7104 = vand.u32 %v7103, 4294901760
      %7105 = vmatpush.msra.mxu0 %v7104
      %v7106 = vand.u32 %v6924, 4294901760
      %v7107 = vsub.f32 %v6924, %v7106
      %v7108 = vand.u32 %v7107, 4294901760
      %v7109 = vsub.f32 %v7107, %v7108
      %v7110 = vand.u32 %v7109, 4294901760
      %7111 = vmatpush.msra.mxu0 %v7110
      %v7112 = vand.u32 %v6923, 4294901760
      %v7113 = vsub.f32 %v6923, %v7112
      %v7114 = vand.u32 %v7113, 4294901760
      %v7115 = vsub.f32 %v7113, %v7114
      %v7116 = vand.u32 %v7115, 4294901760
      %7117 = vmatpush.msra.mxu0 %v7116
      %v7118 = vand.u32 %v6922, 4294901760
      %v7119 = vsub.f32 %v6922, %v7118
      %v7120 = vand.u32 %v7119, 4294901760
      %v7121 = vsub.f32 %v7119, %v7120
      %v7122 = vand.u32 %v7121, 4294901760
      %7123 = vmatpush.msra.mxu0 %v7122
      %v7124 = vand.u32 %v6921, 4294901760
      %v7125 = vsub.f32 %v6921, %v7124
      %v7126 = vand.u32 %v7125, 4294901760
      %v7127 = vsub.f32 %v7125, %v7126
      %v7128 = vand.u32 %v7127, 4294901760
      %7129 = vmatpush.msra.mxu0 %v7128
      %v7130 = vand.u32 %v5763, 4294901760
      %7131 = vmatmul.f32.gmra.mxu0 %v7130
      %v7132 = vpop.f32.mrf.mxu0
      %v7133 = vadd.f32 %v6976, %v7132
      %v7134 = vand.u32 %v5767, 4294901760
      %7135 = vmatmul.f32.gmra.mxu0 %v7134
      %v7136 = vpop.f32.mrf.mxu0
      %v7137 = vadd.f32 %v6984, %v7136
      %v7138 = vand.u32 %v5771, 4294901760
      %7139 = vmatmul.f32.gmra.mxu0 %v7138
      %v7140 = vpop.f32.mrf.mxu0
      %v7141 = vadd.f32 %v6992, %v7140
      %v7142 = vand.u32 %v5775, 4294901760
      %7143 = vmatmul.f32.gmra.mxu0 %v7142
      %v7144 = vpop.f32.mrf.mxu0
      %v7145 = vadd.f32 %v7000, %v7144
      %v7146 = vand.u32 %v5779, 4294901760
      %7147 = vmatmul.f32.gmra.mxu0 %v7146
      %v7148 = vpop.f32.mrf.mxu0
      %v7149 = vadd.f32 %v7008, %v7148
      %v7150 = vand.u32 %v5783, 4294901760
      %7151 = vmatmul.f32.gmra.mxu0 %v7150
      %v7152 = vpop.f32.mrf.mxu0
      %v7153 = vadd.f32 %v7016, %v7152
      %v7154 = vand.u32 %v5787, 4294901760
      %7155 = vmatmul.f32.gmra.mxu0 %v7154
      %v7156 = vpop.f32.mrf.mxu0
      %v7157 = vadd.f32 %v7024, %v7156
      %v7158 = vand.u32 %v5791, 4294901760
      %7159 = vmatmul.f32.gmra.mxu0 %v7158
      %v7160 = vpop.f32.mrf.mxu0
      %v7161 = vadd.f32 %v7032, %v7160
      %7162 = vdwg.mxu0
      %v7163 = vand.u32 %v6936, 4294901760
      %v7164 = vsub.f32 %v6936, %v7163
      %7165 = vmatpush.msra.mxu0 %v7164
      %v7166 = vand.u32 %v6935, 4294901760
      %v7167 = vsub.f32 %v6935, %v7166
      %7168 = vmatpush.msra.mxu0 %v7167
      %v7169 = vand.u32 %v6934, 4294901760
      %v7170 = vsub.f32 %v6934, %v7169
      %7171 = vmatpush.msra.mxu0 %v7170
      %v7172 = vand.u32 %v6933, 4294901760
      %v7173 = vsub.f32 %v6933, %v7172
      %7174 = vmatpush.msra.mxu0 %v7173
      %v7175 = vand.u32 %v6932, 4294901760
      %v7176 = vsub.f32 %v6932, %v7175
      %7177 = vmatpush.msra.mxu0 %v7176
      %v7178 = vand.u32 %v6931, 4294901760
      %v7179 = vsub.f32 %v6931, %v7178
      %7180 = vmatpush.msra.mxu0 %v7179
      %v7181 = vand.u32 %v6930, 4294901760
      %v7182 = vsub.f32 %v6930, %v7181
      %7183 = vmatpush.msra.mxu0 %v7182
      %v7184 = vand.u32 %v6929, 4294901760
      %v7185 = vsub.f32 %v6929, %v7184
      %7186 = vmatpush.msra.mxu0 %v7185
      %v7187 = vand.u32 %v6928, 4294901760
      %v7188 = vsub.f32 %v6928, %v7187
      %7189 = vmatpush.msra.mxu0 %v7188
      %v7190 = vand.u32 %v6927, 4294901760
      %v7191 = vsub.f32 %v6927, %v7190
      %7192 = vmatpush.msra.mxu0 %v7191
      %v7193 = vand.u32 %v6926, 4294901760
      %v7194 = vsub.f32 %v6926, %v7193
      %7195 = vmatpush.msra.mxu0 %v7194
      %v7196 = vand.u32 %v6925, 4294901760
      %v7197 = vsub.f32 %v6925, %v7196
      %7198 = vmatpush.msra.mxu0 %v7197
      %v7199 = vand.u32 %v6924, 4294901760
      %v7200 = vsub.f32 %v6924, %v7199
      %7201 = vmatpush.msra.mxu0 %v7200
      %v7202 = vand.u32 %v6923, 4294901760
      %v7203 = vsub.f32 %v6923, %v7202
      %7204 = vmatpush.msra.mxu0 %v7203
      %v7205 = vand.u32 %v6922, 4294901760
      %v7206 = vsub.f32 %v6922, %v7205
      %7207 = vmatpush.msra.mxu0 %v7206
      %v7208 = vand.u32 %v6921, 4294901760
      %v7209 = vsub.f32 %v6921, %v7208
      %7210 = vmatpush.msra.mxu0 %v7209
      %v7211 = vand.u32 %v5763, 4294901760
      %v7212 = vsub.f32 %v5763, %v7211
      %7213 = vmatmul.f32.gmra.mxu0 %v7212
      %v7214 = vpop.f32.mrf.mxu0
      %v7215 = vadd.f32 %v7133, %v7214
      %v7216 = vand.u32 %v5767, 4294901760
      %v7217 = vsub.f32 %v5767, %v7216
      %7218 = vmatmul.f32.gmra.mxu0 %v7217
      %v7219 = vpop.f32.mrf.mxu0
      %v7220 = vadd.f32 %v7137, %v7219
      %v7221 = vand.u32 %v5771, 4294901760
      %v7222 = vsub.f32 %v5771, %v7221
      %7223 = vmatmul.f32.gmra.mxu0 %v7222
      %v7224 = vpop.f32.mrf.mxu0
      %v7225 = vadd.f32 %v7141, %v7224
      %v7226 = vand.u32 %v5775, 4294901760
      %v7227 = vsub.f32 %v5775, %v7226
      %7228 = vmatmul.f32.gmra.mxu0 %v7227
      %v7229 = vpop.f32.mrf.mxu0
      %v7230 = vadd.f32 %v7145, %v7229
      %v7231 = vand.u32 %v5779, 4294901760
      %v7232 = vsub.f32 %v5779, %v7231
      %7233 = vmatmul.f32.gmra.mxu0 %v7232
      %v7234 = vpop.f32.mrf.mxu0
      %v7235 = vadd.f32 %v7149, %v7234
      %v7236 = vand.u32 %v5783, 4294901760
      %v7237 = vsub.f32 %v5783, %v7236
      %7238 = vmatmul.f32.gmra.mxu0 %v7237
      %v7239 = vpop.f32.mrf.mxu0
      %v7240 = vadd.f32 %v7153, %v7239
      %v7241 = vand.u32 %v5787, 4294901760
      %v7242 = vsub.f32 %v5787, %v7241
      %7243 = vmatmul.f32.gmra.mxu0 %v7242
      %v7244 = vpop.f32.mrf.mxu0
      %v7245 = vadd.f32 %v7157, %v7244
      %v7246 = vand.u32 %v5791, 4294901760
      %v7247 = vsub.f32 %v5791, %v7246
      %7248 = vmatmul.f32.gmra.mxu0 %v7247
      %v7249 = vpop.f32.mrf.mxu0
      %v7250 = vadd.f32 %v7161, %v7249
      %7251 = vdwg.mxu0
      %v7252 = vand.u32 %v6936, 4294901760
      %7253 = vmatpush.msra.mxu0 %v7252
      %v7254 = vand.u32 %v6935, 4294901760
      %7255 = vmatpush.msra.mxu0 %v7254
      %v7256 = vand.u32 %v6934, 4294901760
      %7257 = vmatpush.msra.mxu0 %v7256
      %v7258 = vand.u32 %v6933, 4294901760
      %7259 = vmatpush.msra.mxu0 %v7258
      %v7260 = vand.u32 %v6932, 4294901760
      %7261 = vmatpush.msra.mxu0 %v7260
      %v7262 = vand.u32 %v6931, 4294901760
      %7263 = vmatpush.msra.mxu0 %v7262
      %v7264 = vand.u32 %v6930, 4294901760
      %7265 = vmatpush.msra.mxu0 %v7264
      %v7266 = vand.u32 %v6929, 4294901760
      %7267 = vmatpush.msra.mxu0 %v7266
      %v7268 = vand.u32 %v6928, 4294901760
      %7269 = vmatpush.msra.mxu0 %v7268
      %v7270 = vand.u32 %v6927, 4294901760
      %7271 = vmatpush.msra.mxu0 %v7270
      %v7272 = vand.u32 %v6926, 4294901760
      %7273 = vmatpush.msra.mxu0 %v7272
      %v7274 = vand.u32 %v6925, 4294901760
      %7275 = vmatpush.msra.mxu0 %v7274
      %v7276 = vand.u32 %v6924, 4294901760
      %7277 = vmatpush.msra.mxu0 %v7276
      %v7278 = vand.u32 %v6923, 4294901760
      %7279 = vmatpush.msra.mxu0 %v7278
      %v7280 = vand.u32 %v6922, 4294901760
      %7281 = vmatpush.msra.mxu0 %v7280
      %v7282 = vand.u32 %v6921, 4294901760
      %7283 = vmatpush.msra.mxu0 %v7282
      %v7284 = vand.u32 %v5763, 4294901760
      %v7285 = vsub.f32 %v5763, %v7284
      %v7286 = vand.u32 %v7285, 4294901760
      %7287 = vmatmul.f32.gmra.mxu0 %v7286
      %v7288 = vpop.f32.mrf.mxu0
      %v7289 = vadd.f32 %v7215, %v7288
      %v7290 = vand.u32 %v5767, 4294901760
      %v7291 = vsub.f32 %v5767, %v7290
      %v7292 = vand.u32 %v7291, 4294901760
      %7293 = vmatmul.f32.gmra.mxu0 %v7292
      %v7294 = vpop.f32.mrf.mxu0
      %v7295 = vadd.f32 %v7220, %v7294
      %v7296 = vand.u32 %v5771, 4294901760
      %v7297 = vsub.f32 %v5771, %v7296
      %v7298 = vand.u32 %v7297, 4294901760
      %7299 = vmatmul.f32.gmra.mxu0 %v7298
      %v7300 = vpop.f32.mrf.mxu0
      %v7301 = vadd.f32 %v7225, %v7300
      %v7302 = vand.u32 %v5775, 4294901760
      %v7303 = vsub.f32 %v5775, %v7302
      %v7304 = vand.u32 %v7303, 4294901760
      %7305 = vmatmul.f32.gmra.mxu0 %v7304
      %v7306 = vpop.f32.mrf.mxu0
      %v7307 = vadd.f32 %v7230, %v7306
      %v7308 = vand.u32 %v5779, 4294901760
      %v7309 = vsub.f32 %v5779, %v7308
      %v7310 = vand.u32 %v7309, 4294901760
      %7311 = vmatmul.f32.gmra.mxu0 %v7310
      %v7312 = vpop.f32.mrf.mxu0
      %v7313 = vadd.f32 %v7235, %v7312
      %v7314 = vand.u32 %v5783, 4294901760
      %v7315 = vsub.f32 %v5783, %v7314
      %v7316 = vand.u32 %v7315, 4294901760
      %7317 = vmatmul.f32.gmra.mxu0 %v7316
      %v7318 = vpop.f32.mrf.mxu0
      %v7319 = vadd.f32 %v7240, %v7318
      %v7320 = vand.u32 %v5787, 4294901760
      %v7321 = vsub.f32 %v5787, %v7320
      %v7322 = vand.u32 %v7321, 4294901760
      %7323 = vmatmul.f32.gmra.mxu0 %v7322
      %v7324 = vpop.f32.mrf.mxu0
      %v7325 = vadd.f32 %v7245, %v7324
      %v7326 = vand.u32 %v5791, 4294901760
      %v7327 = vsub.f32 %v5791, %v7326
      %v7328 = vand.u32 %v7327, 4294901760
      %7329 = vmatmul.f32.gmra.mxu0 %v7328
      %v7330 = vpop.f32.mrf.mxu0
      %v7331 = vadd.f32 %v7250, %v7330
      %7332 = vdwg.mxu0
      %v7333 = vand.u32 %v6936, 4294901760
      %v7334 = vsub.f32 %v6936, %v7333
      %v7335 = vand.u32 %v7334, 4294901760
      %7336 = vmatpush.msra.mxu0 %v7335
      %v7337 = vand.u32 %v6935, 4294901760
      %v7338 = vsub.f32 %v6935, %v7337
      %v7339 = vand.u32 %v7338, 4294901760
      %7340 = vmatpush.msra.mxu0 %v7339
      %v7341 = vand.u32 %v6934, 4294901760
      %v7342 = vsub.f32 %v6934, %v7341
      %v7343 = vand.u32 %v7342, 4294901760
      %7344 = vmatpush.msra.mxu0 %v7343
      %v7345 = vand.u32 %v6933, 4294901760
      %v7346 = vsub.f32 %v6933, %v7345
      %v7347 = vand.u32 %v7346, 4294901760
      %7348 = vmatpush.msra.mxu0 %v7347
      %v7349 = vand.u32 %v6932, 4294901760
      %v7350 = vsub.f32 %v6932, %v7349
      %v7351 = vand.u32 %v7350, 4294901760
      %7352 = vmatpush.msra.mxu0 %v7351
      %v7353 = vand.u32 %v6931, 4294901760
      %v7354 = vsub.f32 %v6931, %v7353
      %v7355 = vand.u32 %v7354, 4294901760
      %7356 = vmatpush.msra.mxu0 %v7355
      %v7357 = vand.u32 %v6930, 4294901760
      %v7358 = vsub.f32 %v6930, %v7357
      %v7359 = vand.u32 %v7358, 4294901760
      %7360 = vmatpush.msra.mxu0 %v7359
      %v7361 = vand.u32 %v6929, 4294901760
      %v7362 = vsub.f32 %v6929, %v7361
      %v7363 = vand.u32 %v7362, 4294901760
      %7364 = vmatpush.msra.mxu0 %v7363
      %v7365 = vand.u32 %v6928, 4294901760
      %v7366 = vsub.f32 %v6928, %v7365
      %v7367 = vand.u32 %v7366, 4294901760
      %7368 = vmatpush.msra.mxu0 %v7367
      %v7369 = vand.u32 %v6927, 4294901760
      %v7370 = vsub.f32 %v6927, %v7369
      %v7371 = vand.u32 %v7370, 4294901760
      %7372 = vmatpush.msra.mxu0 %v7371
      %v7373 = vand.u32 %v6926, 4294901760
      %v7374 = vsub.f32 %v6926, %v7373
      %v7375 = vand.u32 %v7374, 4294901760
      %7376 = vmatpush.msra.mxu0 %v7375
      %v7377 = vand.u32 %v6925, 4294901760
      %v7378 = vsub.f32 %v6925, %v7377
      %v7379 = vand.u32 %v7378, 4294901760
      %7380 = vmatpush.msra.mxu0 %v7379
      %v7381 = vand.u32 %v6924, 4294901760
      %v7382 = vsub.f32 %v6924, %v7381
      %v7383 = vand.u32 %v7382, 4294901760
      %7384 = vmatpush.msra.mxu0 %v7383
      %v7385 = vand.u32 %v6923, 4294901760
      %v7386 = vsub.f32 %v6923, %v7385
      %v7387 = vand.u32 %v7386, 4294901760
      %7388 = vmatpush.msra.mxu0 %v7387
      %v7389 = vand.u32 %v6922, 4294901760
      %v7390 = vsub.f32 %v6922, %v7389
      %v7391 = vand.u32 %v7390, 4294901760
      %7392 = vmatpush.msra.mxu0 %v7391
      %v7393 = vand.u32 %v6921, 4294901760
      %v7394 = vsub.f32 %v6921, %v7393
      %v7395 = vand.u32 %v7394, 4294901760
      %7396 = vmatpush.msra.mxu0 %v7395
      %v7397 = vand.u32 %v5763, 4294901760
      %7398 = vmatmul.f32.gmra.mxu0 %v7397
      %v7399 = vpop.f32.mrf.mxu0
      %v7400 = vadd.f32 %v7289, %v7399
      %v7401 = vand.u32 %v5767, 4294901760
      %7402 = vmatmul.f32.gmra.mxu0 %v7401
      %v7403 = vpop.f32.mrf.mxu0
      %v7404 = vadd.f32 %v7295, %v7403
      %v7405 = vand.u32 %v5771, 4294901760
      %7406 = vmatmul.f32.gmra.mxu0 %v7405
      %v7407 = vpop.f32.mrf.mxu0
      %v7408 = vadd.f32 %v7301, %v7407
      %v7409 = vand.u32 %v5775, 4294901760
      %7410 = vmatmul.f32.gmra.mxu0 %v7409
      %v7411 = vpop.f32.mrf.mxu0
      %v7412 = vadd.f32 %v7307, %v7411
      %v7413 = vand.u32 %v5779, 4294901760
      %7414 = vmatmul.f32.gmra.mxu0 %v7413
      %v7415 = vpop.f32.mrf.mxu0
      %v7416 = vadd.f32 %v7313, %v7415
      %v7417 = vand.u32 %v5783, 4294901760
      %7418 = vmatmul.f32.gmra.mxu0 %v7417
      %v7419 = vpop.f32.mrf.mxu0
      %v7420 = vadd.f32 %v7319, %v7419
      %v7421 = vand.u32 %v5787, 4294901760
      %7422 = vmatmul.f32.gmra.mxu0 %v7421
      %v7423 = vpop.f32.mrf.mxu0
      %v7424 = vadd.f32 %v7325, %v7423
      %v7425 = vand.u32 %v5791, 4294901760
      %7426 = vmatmul.f32.gmra.mxu0 %v7425
      %v7427 = vpop.f32.mrf.mxu0
      %v7428 = vadd.f32 %v7331, %v7427
      %7429 = vdwg.mxu0
      %v7430 = vand.u32 %v6936, 4294901760
      %7431 = vmatpush.msra.mxu0 %v7430
      %v7432 = vand.u32 %v6935, 4294901760
      %7433 = vmatpush.msra.mxu0 %v7432
      %v7434 = vand.u32 %v6934, 4294901760
      %7435 = vmatpush.msra.mxu0 %v7434
      %v7436 = vand.u32 %v6933, 4294901760
      %7437 = vmatpush.msra.mxu0 %v7436
      %v7438 = vand.u32 %v6932, 4294901760
      %7439 = vmatpush.msra.mxu0 %v7438
      %v7440 = vand.u32 %v6931, 4294901760
      %7441 = vmatpush.msra.mxu0 %v7440
      %v7442 = vand.u32 %v6930, 4294901760
      %7443 = vmatpush.msra.mxu0 %v7442
      %v7444 = vand.u32 %v6929, 4294901760
      %7445 = vmatpush.msra.mxu0 %v7444
      %v7446 = vand.u32 %v6928, 4294901760
      %7447 = vmatpush.msra.mxu0 %v7446
      %v7448 = vand.u32 %v6927, 4294901760
      %7449 = vmatpush.msra.mxu0 %v7448
      %v7450 = vand.u32 %v6926, 4294901760
      %7451 = vmatpush.msra.mxu0 %v7450
      %v7452 = vand.u32 %v6925, 4294901760
      %7453 = vmatpush.msra.mxu0 %v7452
      %v7454 = vand.u32 %v6924, 4294901760
      %7455 = vmatpush.msra.mxu0 %v7454
      %v7456 = vand.u32 %v6923, 4294901760
      %7457 = vmatpush.msra.mxu0 %v7456
      %v7458 = vand.u32 %v6922, 4294901760
      %7459 = vmatpush.msra.mxu0 %v7458
      %v7460 = vand.u32 %v6921, 4294901760
      %7461 = vmatpush.msra.mxu0 %v7460
      %v7462 = vand.u32 %v5763, 4294901760
      %7463 = vmatmul.f32.gmra.mxu0 %v7462
      %v7464 = vpop.f32.mrf.mxu0
      %v7465 = vadd.f32 %v7400, %v7464
      %v7466 = vand.u32 %v5767, 4294901760
      %7467 = vmatmul.f32.gmra.mxu0 %v7466
      %v7468 = vpop.f32.mrf.mxu0
      %v7469 = vadd.f32 %v7404, %v7468
      %v7470 = vand.u32 %v5771, 4294901760
      %7471 = vmatmul.f32.gmra.mxu0 %v7470
      %v7472 = vpop.f32.mrf.mxu0
      %v7473 = vadd.f32 %v7408, %v7472
      %v7474 = vand.u32 %v5775, 4294901760
      %7475 = vmatmul.f32.gmra.mxu0 %v7474
      %v7476 = vpop.f32.mrf.mxu0
      %v7477 = vadd.f32 %v7412, %v7476
      %v7478 = vand.u32 %v5779, 4294901760
      %7479 = vmatmul.f32.gmra.mxu0 %v7478
      %v7480 = vpop.f32.mrf.mxu0
      %v7481 = vadd.f32 %v7416, %v7480
      %v7482 = vand.u32 %v5783, 4294901760
      %7483 = vmatmul.f32.gmra.mxu0 %v7482
      %v7484 = vpop.f32.mrf.mxu0
      %v7485 = vadd.f32 %v7420, %v7484
      %v7486 = vand.u32 %v5787, 4294901760
      %7487 = vmatmul.f32.gmra.mxu0 %v7486
      %v7488 = vpop.f32.mrf.mxu0
      %v7489 = vadd.f32 %v7424, %v7488
      %v7490 = vand.u32 %v5791, 4294901760
      %7491 = vmatmul.f32.gmra.mxu0 %v7490
      %v7492 = vpop.f32.mrf.mxu0
      %v7493 = vadd.f32 %v7428, %v7492
      %7494 = vdwg.mxu0
      %v7495 = vand.u32 %v6920, 4294901760
      %7496 = vmatpush.msra.mxu0 %v7495
      %v7497 = vand.u32 %v6919, 4294901760
      %7498 = vmatpush.msra.mxu0 %v7497
      %v7499 = vand.u32 %v6918, 4294901760
      %7500 = vmatpush.msra.mxu0 %v7499
      %v7501 = vand.u32 %v6917, 4294901760
      %7502 = vmatpush.msra.mxu0 %v7501
      %v7503 = vand.u32 %v6916, 4294901760
      %7504 = vmatpush.msra.mxu0 %v7503
      %v7505 = vand.u32 %v6915, 4294901760
      %7506 = vmatpush.msra.mxu0 %v7505
      %v7507 = vand.u32 %v6914, 4294901760
      %7508 = vmatpush.msra.mxu0 %v7507
      %v7509 = vand.u32 %v6913, 4294901760
      %7510 = vmatpush.msra.mxu0 %v7509
      %v7511 = vand.u32 %v6912, 4294901760
      %7512 = vmatpush.msra.mxu0 %v7511
      %v7513 = vand.u32 %v6911, 4294901760
      %7514 = vmatpush.msra.mxu0 %v7513
      %v7515 = vand.u32 %v6910, 4294901760
      %7516 = vmatpush.msra.mxu0 %v7515
      %v7517 = vand.u32 %v6909, 4294901760
      %7518 = vmatpush.msra.mxu0 %v7517
      %v7519 = vand.u32 %v6908, 4294901760
      %7520 = vmatpush.msra.mxu0 %v7519
      %v7521 = vand.u32 %v6907, 4294901760
      %7522 = vmatpush.msra.mxu0 %v7521
      %v7523 = vand.u32 %v6906, 4294901760
      %7524 = vmatpush.msra.mxu0 %v7523
      %v7525 = vand.u32 %v6905, 4294901760
      %7526 = vmatpush.msra.mxu0 %v7525
      %v7527 = vand.u32 %v5250, 4294901760
      %v7528 = vsub.f32 %v5250, %v7527
      %v7529 = vand.u32 %v7528, 4294901760
      %v7530 = vsub.f32 %v7528, %v7529
      %v7531 = vand.u32 %v7530, 4294901760
      %7532 = vmatmul.f32.gmra.mxu0 %v7531
      %v7533 = vpop.f32.mrf.mxu0
      %v7534 = vadd.f32 %v7465, %v7533
      %v7535 = vand.u32 %v5251, 4294901760
      %v7536 = vsub.f32 %v5251, %v7535
      %v7537 = vand.u32 %v7536, 4294901760
      %v7538 = vsub.f32 %v7536, %v7537
      %v7539 = vand.u32 %v7538, 4294901760
      %7540 = vmatmul.f32.gmra.mxu0 %v7539
      %v7541 = vpop.f32.mrf.mxu0
      %v7542 = vadd.f32 %v7469, %v7541
      %v7543 = vand.u32 %v5252, 4294901760
      %v7544 = vsub.f32 %v5252, %v7543
      %v7545 = vand.u32 %v7544, 4294901760
      %v7546 = vsub.f32 %v7544, %v7545
      %v7547 = vand.u32 %v7546, 4294901760
      %7548 = vmatmul.f32.gmra.mxu0 %v7547
      %v7549 = vpop.f32.mrf.mxu0
      %v7550 = vadd.f32 %v7473, %v7549
      %v7551 = vand.u32 %v5253, 4294901760
      %v7552 = vsub.f32 %v5253, %v7551
      %v7553 = vand.u32 %v7552, 4294901760
      %v7554 = vsub.f32 %v7552, %v7553
      %v7555 = vand.u32 %v7554, 4294901760
      %7556 = vmatmul.f32.gmra.mxu0 %v7555
      %v7557 = vpop.f32.mrf.mxu0
      %v7558 = vadd.f32 %v7477, %v7557
      %v7559 = vand.u32 %v5254, 4294901760
      %v7560 = vsub.f32 %v5254, %v7559
      %v7561 = vand.u32 %v7560, 4294901760
      %v7562 = vsub.f32 %v7560, %v7561
      %v7563 = vand.u32 %v7562, 4294901760
      %7564 = vmatmul.f32.gmra.mxu0 %v7563
      %v7565 = vpop.f32.mrf.mxu0
      %v7566 = vadd.f32 %v7481, %v7565
      %v7567 = vand.u32 %v5255, 4294901760
      %v7568 = vsub.f32 %v5255, %v7567
      %v7569 = vand.u32 %v7568, 4294901760
      %v7570 = vsub.f32 %v7568, %v7569
      %v7571 = vand.u32 %v7570, 4294901760
      %7572 = vmatmul.f32.gmra.mxu0 %v7571
      %v7573 = vpop.f32.mrf.mxu0
      %v7574 = vadd.f32 %v7485, %v7573
      %v7575 = vand.u32 %v5256, 4294901760
      %v7576 = vsub.f32 %v5256, %v7575
      %v7577 = vand.u32 %v7576, 4294901760
      %v7578 = vsub.f32 %v7576, %v7577
      %v7579 = vand.u32 %v7578, 4294901760
      %7580 = vmatmul.f32.gmra.mxu0 %v7579
      %v7581 = vpop.f32.mrf.mxu0
      %v7582 = vadd.f32 %v7489, %v7581
      %v7583 = vand.u32 %v5257, 4294901760
      %v7584 = vsub.f32 %v5257, %v7583
      %v7585 = vand.u32 %v7584, 4294901760
      %v7586 = vsub.f32 %v7584, %v7585
      %v7587 = vand.u32 %v7586, 4294901760
      %7588 = vmatmul.f32.gmra.mxu0 %v7587
      %v7589 = vpop.f32.mrf.mxu0
      %v7590 = vadd.f32 %v7493, %v7589
      %7591 = vdwg.mxu0
      %v7592 = vand.u32 %v6920, 4294901760
      %v7593 = vsub.f32 %v6920, %v7592
      %v7594 = vand.u32 %v7593, 4294901760
      %v7595 = vsub.f32 %v7593, %v7594
      %v7596 = vand.u32 %v7595, 4294901760
      %7597 = vmatpush.msra.mxu0 %v7596
      %v7598 = vand.u32 %v6919, 4294901760
      %v7599 = vsub.f32 %v6919, %v7598
      %v7600 = vand.u32 %v7599, 4294901760
      %v7601 = vsub.f32 %v7599, %v7600
      %v7602 = vand.u32 %v7601, 4294901760
      %7603 = vmatpush.msra.mxu0 %v7602
      %v7604 = vand.u32 %v6918, 4294901760
      %v7605 = vsub.f32 %v6918, %v7604
      %v7606 = vand.u32 %v7605, 4294901760
      %v7607 = vsub.f32 %v7605, %v7606
      %v7608 = vand.u32 %v7607, 4294901760
      %7609 = vmatpush.msra.mxu0 %v7608
      %v7610 = vand.u32 %v6917, 4294901760
      %v7611 = vsub.f32 %v6917, %v7610
      %v7612 = vand.u32 %v7611, 4294901760
      %v7613 = vsub.f32 %v7611, %v7612
      %v7614 = vand.u32 %v7613, 4294901760
      %7615 = vmatpush.msra.mxu0 %v7614
      %v7616 = vand.u32 %v6916, 4294901760
      %v7617 = vsub.f32 %v6916, %v7616
      %v7618 = vand.u32 %v7617, 4294901760
      %v7619 = vsub.f32 %v7617, %v7618
      %v7620 = vand.u32 %v7619, 4294901760
      %7621 = vmatpush.msra.mxu0 %v7620
      %v7622 = vand.u32 %v6915, 4294901760
      %v7623 = vsub.f32 %v6915, %v7622
      %v7624 = vand.u32 %v7623, 4294901760
      %v7625 = vsub.f32 %v7623, %v7624
      %v7626 = vand.u32 %v7625, 4294901760
      %7627 = vmatpush.msra.mxu0 %v7626
      %v7628 = vand.u32 %v6914, 4294901760
      %v7629 = vsub.f32 %v6914, %v7628
      %v7630 = vand.u32 %v7629, 4294901760
      %v7631 = vsub.f32 %v7629, %v7630
      %v7632 = vand.u32 %v7631, 4294901760
      %7633 = vmatpush.msra.mxu0 %v7632
      %v7634 = vand.u32 %v6913, 4294901760
      %v7635 = vsub.f32 %v6913, %v7634
      %v7636 = vand.u32 %v7635, 4294901760
      %v7637 = vsub.f32 %v7635, %v7636
      %v7638 = vand.u32 %v7637, 4294901760
      %7639 = vmatpush.msra.mxu0 %v7638
      %v7640 = vand.u32 %v6912, 4294901760
      %v7641 = vsub.f32 %v6912, %v7640
      %v7642 = vand.u32 %v7641, 4294901760
      %v7643 = vsub.f32 %v7641, %v7642
      %v7644 = vand.u32 %v7643, 4294901760
      %7645 = vmatpush.msra.mxu0 %v7644
      %v7646 = vand.u32 %v6911, 4294901760
      %v7647 = vsub.f32 %v6911, %v7646
      %v7648 = vand.u32 %v7647, 4294901760
      %v7649 = vsub.f32 %v7647, %v7648
      %v7650 = vand.u32 %v7649, 4294901760
      %7651 = vmatpush.msra.mxu0 %v7650
      %v7652 = vand.u32 %v6910, 4294901760
      %v7653 = vsub.f32 %v6910, %v7652
      %v7654 = vand.u32 %v7653, 4294901760
      %v7655 = vsub.f32 %v7653, %v7654
      %v7656 = vand.u32 %v7655, 4294901760
      %7657 = vmatpush.msra.mxu0 %v7656
      %v7658 = vand.u32 %v6909, 4294901760
      %v7659 = vsub.f32 %v6909, %v7658
      %v7660 = vand.u32 %v7659, 4294901760
      %v7661 = vsub.f32 %v7659, %v7660
      %v7662 = vand.u32 %v7661, 4294901760
      %7663 = vmatpush.msra.mxu0 %v7662
      %v7664 = vand.u32 %v6908, 4294901760
      %v7665 = vsub.f32 %v6908, %v7664
      %v7666 = vand.u32 %v7665, 4294901760
      %v7667 = vsub.f32 %v7665, %v7666
      %v7668 = vand.u32 %v7667, 4294901760
      %7669 = vmatpush.msra.mxu0 %v7668
      %v7670 = vand.u32 %v6907, 4294901760
      %v7671 = vsub.f32 %v6907, %v7670
      %v7672 = vand.u32 %v7671, 4294901760
      %v7673 = vsub.f32 %v7671, %v7672
      %v7674 = vand.u32 %v7673, 4294901760
      %7675 = vmatpush.msra.mxu0 %v7674
      %v7676 = vand.u32 %v6906, 4294901760
      %v7677 = vsub.f32 %v6906, %v7676
      %v7678 = vand.u32 %v7677, 4294901760
      %v7679 = vsub.f32 %v7677, %v7678
      %v7680 = vand.u32 %v7679, 4294901760
      %7681 = vmatpush.msra.mxu0 %v7680
      %v7682 = vand.u32 %v6905, 4294901760
      %v7683 = vsub.f32 %v6905, %v7682
      %v7684 = vand.u32 %v7683, 4294901760
      %v7685 = vsub.f32 %v7683, %v7684
      %v7686 = vand.u32 %v7685, 4294901760
      %7687 = vmatpush.msra.mxu0 %v7686
      %v7688 = vand.u32 %v5250, 4294901760
      %7689 = vmatmul.f32.gmra.mxu0 %v7688
      %v7690 = vpop.f32.mrf.mxu0
      %v7691 = vadd.f32 %v7534, %v7690
      %v7692 = vand.u32 %v5251, 4294901760
      %7693 = vmatmul.f32.gmra.mxu0 %v7692
      %v7694 = vpop.f32.mrf.mxu0
      %v7695 = vadd.f32 %v7542, %v7694
      %v7696 = vand.u32 %v5252, 4294901760
      %7697 = vmatmul.f32.gmra.mxu0 %v7696
      %v7698 = vpop.f32.mrf.mxu0
      %v7699 = vadd.f32 %v7550, %v7698
      %v7700 = vand.u32 %v5253, 4294901760
      %7701 = vmatmul.f32.gmra.mxu0 %v7700
      %v7702 = vpop.f32.mrf.mxu0
      %v7703 = vadd.f32 %v7558, %v7702
      %v7704 = vand.u32 %v5254, 4294901760
      %7705 = vmatmul.f32.gmra.mxu0 %v7704
      %v7706 = vpop.f32.mrf.mxu0
      %v7707 = vadd.f32 %v7566, %v7706
      %v7708 = vand.u32 %v5255, 4294901760
      %7709 = vmatmul.f32.gmra.mxu0 %v7708
      %v7710 = vpop.f32.mrf.mxu0
      %v7711 = vadd.f32 %v7574, %v7710
      %v7712 = vand.u32 %v5256, 4294901760
      %7713 = vmatmul.f32.gmra.mxu0 %v7712
      %v7714 = vpop.f32.mrf.mxu0
      %v7715 = vadd.f32 %v7582, %v7714
      %v7716 = vand.u32 %v5257, 4294901760
      %7717 = vmatmul.f32.gmra.mxu0 %v7716
      %v7718 = vpop.f32.mrf.mxu0
      %v7719 = vadd.f32 %v7590, %v7718
      %7720 = vdwg.mxu0
      %v7721 = vand.u32 %v6920, 4294901760
      %v7722 = vsub.f32 %v6920, %v7721
      %7723 = vmatpush.msra.mxu0 %v7722
      %v7724 = vand.u32 %v6919, 4294901760
      %v7725 = vsub.f32 %v6919, %v7724
      %7726 = vmatpush.msra.mxu0 %v7725
      %v7727 = vand.u32 %v6918, 4294901760
      %v7728 = vsub.f32 %v6918, %v7727
      %7729 = vmatpush.msra.mxu0 %v7728
      %v7730 = vand.u32 %v6917, 4294901760
      %v7731 = vsub.f32 %v6917, %v7730
      %7732 = vmatpush.msra.mxu0 %v7731
      %v7733 = vand.u32 %v6916, 4294901760
      %v7734 = vsub.f32 %v6916, %v7733
      %7735 = vmatpush.msra.mxu0 %v7734
      %v7736 = vand.u32 %v6915, 4294901760
      %v7737 = vsub.f32 %v6915, %v7736
      %7738 = vmatpush.msra.mxu0 %v7737
      %v7739 = vand.u32 %v6914, 4294901760
      %v7740 = vsub.f32 %v6914, %v7739
      %7741 = vmatpush.msra.mxu0 %v7740
      %v7742 = vand.u32 %v6913, 4294901760
      %v7743 = vsub.f32 %v6913, %v7742
      %7744 = vmatpush.msra.mxu0 %v7743
      %v7745 = vand.u32 %v6912, 4294901760
      %v7746 = vsub.f32 %v6912, %v7745
      %7747 = vmatpush.msra.mxu0 %v7746
      %v7748 = vand.u32 %v6911, 4294901760
      %v7749 = vsub.f32 %v6911, %v7748
      %7750 = vmatpush.msra.mxu0 %v7749
      %v7751 = vand.u32 %v6910, 4294901760
      %v7752 = vsub.f32 %v6910, %v7751
      %7753 = vmatpush.msra.mxu0 %v7752
      %v7754 = vand.u32 %v6909, 4294901760
      %v7755 = vsub.f32 %v6909, %v7754
      %7756 = vmatpush.msra.mxu0 %v7755
      %v7757 = vand.u32 %v6908, 4294901760
      %v7758 = vsub.f32 %v6908, %v7757
      %7759 = vmatpush.msra.mxu0 %v7758
      %v7760 = vand.u32 %v6907, 4294901760
      %v7761 = vsub.f32 %v6907, %v7760
      %7762 = vmatpush.msra.mxu0 %v7761
      %v7763 = vand.u32 %v6906, 4294901760
      %v7764 = vsub.f32 %v6906, %v7763
      %7765 = vmatpush.msra.mxu0 %v7764
      %v7766 = vand.u32 %v6905, 4294901760
      %v7767 = vsub.f32 %v6905, %v7766
      %7768 = vmatpush.msra.mxu0 %v7767
      %v7769 = vand.u32 %v5250, 4294901760
      %v7770 = vsub.f32 %v5250, %v7769
      %7771 = vmatmul.f32.gmra.mxu0 %v7770
      %v7772 = vpop.f32.mrf.mxu0
      %v7773 = vadd.f32 %v7691, %v7772
      %v7774 = vand.u32 %v5251, 4294901760
      %v7775 = vsub.f32 %v5251, %v7774
      %7776 = vmatmul.f32.gmra.mxu0 %v7775
      %v7777 = vpop.f32.mrf.mxu0
      %v7778 = vadd.f32 %v7695, %v7777
      %v7779 = vand.u32 %v5252, 4294901760
      %v7780 = vsub.f32 %v5252, %v7779
      %7781 = vmatmul.f32.gmra.mxu0 %v7780
      %v7782 = vpop.f32.mrf.mxu0
      %v7783 = vadd.f32 %v7699, %v7782
      %v7784 = vand.u32 %v5253, 4294901760
      %v7785 = vsub.f32 %v5253, %v7784
      %7786 = vmatmul.f32.gmra.mxu0 %v7785
      %v7787 = vpop.f32.mrf.mxu0
      %v7788 = vadd.f32 %v7703, %v7787
      %v7789 = vand.u32 %v5254, 4294901760
      %v7790 = vsub.f32 %v5254, %v7789
      %7791 = vmatmul.f32.gmra.mxu0 %v7790
      %v7792 = vpop.f32.mrf.mxu0
      %v7793 = vadd.f32 %v7707, %v7792
      %v7794 = vand.u32 %v5255, 4294901760
      %v7795 = vsub.f32 %v5255, %v7794
      %7796 = vmatmul.f32.gmra.mxu0 %v7795
      %v7797 = vpop.f32.mrf.mxu0
      %v7798 = vadd.f32 %v7711, %v7797
      %v7799 = vand.u32 %v5256, 4294901760
      %v7800 = vsub.f32 %v5256, %v7799
      %7801 = vmatmul.f32.gmra.mxu0 %v7800
      %v7802 = vpop.f32.mrf.mxu0
      %v7803 = vadd.f32 %v7715, %v7802
      %v7804 = vand.u32 %v5257, 4294901760
      %v7805 = vsub.f32 %v5257, %v7804
      %7806 = vmatmul.f32.gmra.mxu0 %v7805
      %v7807 = vpop.f32.mrf.mxu0
      %v7808 = vadd.f32 %v7719, %v7807
      %7809 = vdwg.mxu0
      %v7810 = vand.u32 %v6920, 4294901760
      %7811 = vmatpush.msra.mxu0 %v7810
      %v7812 = vand.u32 %v6919, 4294901760
      %7813 = vmatpush.msra.mxu0 %v7812
      %v7814 = vand.u32 %v6918, 4294901760
      %7815 = vmatpush.msra.mxu0 %v7814
      %v7816 = vand.u32 %v6917, 4294901760
      %7817 = vmatpush.msra.mxu0 %v7816
      %v7818 = vand.u32 %v6916, 4294901760
      %7819 = vmatpush.msra.mxu0 %v7818
      %v7820 = vand.u32 %v6915, 4294901760
      %7821 = vmatpush.msra.mxu0 %v7820
      %v7822 = vand.u32 %v6914, 4294901760
      %7823 = vmatpush.msra.mxu0 %v7822
      %v7824 = vand.u32 %v6913, 4294901760
      %7825 = vmatpush.msra.mxu0 %v7824
      %v7826 = vand.u32 %v6912, 4294901760
      %7827 = vmatpush.msra.mxu0 %v7826
      %v7828 = vand.u32 %v6911, 4294901760
      %7829 = vmatpush.msra.mxu0 %v7828
      %v7830 = vand.u32 %v6910, 4294901760
      %7831 = vmatpush.msra.mxu0 %v7830
      %v7832 = vand.u32 %v6909, 4294901760
      %7833 = vmatpush.msra.mxu0 %v7832
      %v7834 = vand.u32 %v6908, 4294901760
      %7835 = vmatpush.msra.mxu0 %v7834
      %v7836 = vand.u32 %v6907, 4294901760
      %7837 = vmatpush.msra.mxu0 %v7836
      %v7838 = vand.u32 %v6906, 4294901760
      %7839 = vmatpush.msra.mxu0 %v7838
      %v7840 = vand.u32 %v6905, 4294901760
      %7841 = vmatpush.msra.mxu0 %v7840
      %v7842 = vand.u32 %v5250, 4294901760
      %v7843 = vsub.f32 %v5250, %v7842
      %v7844 = vand.u32 %v7843, 4294901760
      %7845 = vmatmul.f32.gmra.mxu0 %v7844
      %v7846 = vpop.f32.mrf.mxu0
      %v7847 = vadd.f32 %v7773, %v7846
      %v7848 = vand.u32 %v5251, 4294901760
      %v7849 = vsub.f32 %v5251, %v7848
      %v7850 = vand.u32 %v7849, 4294901760
      %7851 = vmatmul.f32.gmra.mxu0 %v7850
      %v7852 = vpop.f32.mrf.mxu0
      %v7853 = vadd.f32 %v7778, %v7852
      %v7854 = vand.u32 %v5252, 4294901760
      %v7855 = vsub.f32 %v5252, %v7854
      %v7856 = vand.u32 %v7855, 4294901760
      %7857 = vmatmul.f32.gmra.mxu0 %v7856
      %v7858 = vpop.f32.mrf.mxu0
      %v7859 = vadd.f32 %v7783, %v7858
      %v7860 = vand.u32 %v5253, 4294901760
      %v7861 = vsub.f32 %v5253, %v7860
      %v7862 = vand.u32 %v7861, 4294901760
      %7863 = vmatmul.f32.gmra.mxu0 %v7862
      %v7864 = vpop.f32.mrf.mxu0
      %v7865 = vadd.f32 %v7788, %v7864
      %v7866 = vand.u32 %v5254, 4294901760
      %v7867 = vsub.f32 %v5254, %v7866
      %v7868 = vand.u32 %v7867, 4294901760
      %7869 = vmatmul.f32.gmra.mxu0 %v7868
      %v7870 = vpop.f32.mrf.mxu0
      %v7871 = vadd.f32 %v7793, %v7870
      %v7872 = vand.u32 %v5255, 4294901760
      %v7873 = vsub.f32 %v5255, %v7872
      %v7874 = vand.u32 %v7873, 4294901760
      %7875 = vmatmul.f32.gmra.mxu0 %v7874
      %v7876 = vpop.f32.mrf.mxu0
      %v7877 = vadd.f32 %v7798, %v7876
      %v7878 = vand.u32 %v5256, 4294901760
      %v7879 = vsub.f32 %v5256, %v7878
      %v7880 = vand.u32 %v7879, 4294901760
      %7881 = vmatmul.f32.gmra.mxu0 %v7880
      %v7882 = vpop.f32.mrf.mxu0
      %v7883 = vadd.f32 %v7803, %v7882
      %v7884 = vand.u32 %v5257, 4294901760
      %v7885 = vsub.f32 %v5257, %v7884
      %v7886 = vand.u32 %v7885, 4294901760
      %7887 = vmatmul.f32.gmra.mxu0 %v7886
      %v7888 = vpop.f32.mrf.mxu0
      %v7889 = vadd.f32 %v7808, %v7888
      %7890 = vdwg.mxu0
      %v7891 = vand.u32 %v6920, 4294901760
      %v7892 = vsub.f32 %v6920, %v7891
      %v7893 = vand.u32 %v7892, 4294901760
      %7894 = vmatpush.msra.mxu0 %v7893
      %v7895 = vand.u32 %v6919, 4294901760
      %v7896 = vsub.f32 %v6919, %v7895
      %v7897 = vand.u32 %v7896, 4294901760
      %7898 = vmatpush.msra.mxu0 %v7897
      %v7899 = vand.u32 %v6918, 4294901760
      %v7900 = vsub.f32 %v6918, %v7899
      %v7901 = vand.u32 %v7900, 4294901760
      %7902 = vmatpush.msra.mxu0 %v7901
      %v7903 = vand.u32 %v6917, 4294901760
      %v7904 = vsub.f32 %v6917, %v7903
      %v7905 = vand.u32 %v7904, 4294901760
      %7906 = vmatpush.msra.mxu0 %v7905
      %v7907 = vand.u32 %v6916, 4294901760
      %v7908 = vsub.f32 %v6916, %v7907
      %v7909 = vand.u32 %v7908, 4294901760
      %7910 = vmatpush.msra.mxu0 %v7909
      %v7911 = vand.u32 %v6915, 4294901760
      %v7912 = vsub.f32 %v6915, %v7911
      %v7913 = vand.u32 %v7912, 4294901760
      %7914 = vmatpush.msra.mxu0 %v7913
      %v7915 = vand.u32 %v6914, 4294901760
      %v7916 = vsub.f32 %v6914, %v7915
      %v7917 = vand.u32 %v7916, 4294901760
      %7918 = vmatpush.msra.mxu0 %v7917
      %v7919 = vand.u32 %v6913, 4294901760
      %v7920 = vsub.f32 %v6913, %v7919
      %v7921 = vand.u32 %v7920, 4294901760
      %7922 = vmatpush.msra.mxu0 %v7921
      %v7923 = vand.u32 %v6912, 4294901760
      %v7924 = vsub.f32 %v6912, %v7923
      %v7925 = vand.u32 %v7924, 4294901760
      %7926 = vmatpush.msra.mxu0 %v7925
      %v7927 = vand.u32 %v6911, 4294901760
      %v7928 = vsub.f32 %v6911, %v7927
      %v7929 = vand.u32 %v7928, 4294901760
      %7930 = vmatpush.msra.mxu0 %v7929
      %v7931 = vand.u32 %v6910, 4294901760
      %v7932 = vsub.f32 %v6910, %v7931
      %v7933 = vand.u32 %v7932, 4294901760
      %7934 = vmatpush.msra.mxu0 %v7933
      %v7935 = vand.u32 %v6909, 4294901760
      %v7936 = vsub.f32 %v6909, %v7935
      %v7937 = vand.u32 %v7936, 4294901760
      %7938 = vmatpush.msra.mxu0 %v7937
      %v7939 = vand.u32 %v6908, 4294901760
      %v7940 = vsub.f32 %v6908, %v7939
      %v7941 = vand.u32 %v7940, 4294901760
      %7942 = vmatpush.msra.mxu0 %v7941
      %v7943 = vand.u32 %v6907, 4294901760
      %v7944 = vsub.f32 %v6907, %v7943
      %v7945 = vand.u32 %v7944, 4294901760
      %7946 = vmatpush.msra.mxu0 %v7945
      %v7947 = vand.u32 %v6906, 4294901760
      %v7948 = vsub.f32 %v6906, %v7947
      %v7949 = vand.u32 %v7948, 4294901760
      %7950 = vmatpush.msra.mxu0 %v7949
      %v7951 = vand.u32 %v6905, 4294901760
      %v7952 = vsub.f32 %v6905, %v7951
      %v7953 = vand.u32 %v7952, 4294901760
      %7954 = vmatpush.msra.mxu0 %v7953
      %v7955 = vand.u32 %v5250, 4294901760
      %7956 = vmatmul.f32.gmra.mxu0 %v7955
      %v7957 = vpop.f32.mrf.mxu0
      %v7958 = vadd.f32 %v7847, %v7957
      %v7959 = vand.u32 %v5251, 4294901760
      %7960 = vmatmul.f32.gmra.mxu0 %v7959
      %v7961 = vpop.f32.mrf.mxu0
      %v7962 = vadd.f32 %v7853, %v7961
      %v7963 = vand.u32 %v5252, 4294901760
      %7964 = vmatmul.f32.gmra.mxu0 %v7963
      %v7965 = vpop.f32.mrf.mxu0
      %v7966 = vadd.f32 %v7859, %v7965
      %v7967 = vand.u32 %v5253, 4294901760
      %7968 = vmatmul.f32.gmra.mxu0 %v7967
      %v7969 = vpop.f32.mrf.mxu0
      %v7970 = vadd.f32 %v7865, %v7969
      %v7971 = vand.u32 %v5254, 4294901760
      %7972 = vmatmul.f32.gmra.mxu0 %v7971
      %v7973 = vpop.f32.mrf.mxu0
      %v7974 = vadd.f32 %v7871, %v7973
      %v7975 = vand.u32 %v5255, 4294901760
      %7976 = vmatmul.f32.gmra.mxu0 %v7975
      %v7977 = vpop.f32.mrf.mxu0
      %v7978 = vadd.f32 %v7877, %v7977
      %v7979 = vand.u32 %v5256, 4294901760
      %7980 = vmatmul.f32.gmra.mxu0 %v7979
      %v7981 = vpop.f32.mrf.mxu0
      %v7982 = vadd.f32 %v7883, %v7981
      %v7983 = vand.u32 %v5257, 4294901760
      %7984 = vmatmul.f32.gmra.mxu0 %v7983
      %v7985 = vpop.f32.mrf.mxu0
      %v7986 = vadd.f32 %v7889, %v7985
      %7987 = vdwg.mxu0
      %v7988 = vand.u32 %v6920, 4294901760
      %7989 = vmatpush.msra.mxu0 %v7988
      %v7990 = vand.u32 %v6919, 4294901760
      %7991 = vmatpush.msra.mxu0 %v7990
      %v7992 = vand.u32 %v6918, 4294901760
      %7993 = vmatpush.msra.mxu0 %v7992
      %v7994 = vand.u32 %v6917, 4294901760
      %7995 = vmatpush.msra.mxu0 %v7994
      %v7996 = vand.u32 %v6916, 4294901760
      %7997 = vmatpush.msra.mxu0 %v7996
      %v7998 = vand.u32 %v6915, 4294901760
      %7999 = vmatpush.msra.mxu0 %v7998
      %v8000 = vand.u32 %v6914, 4294901760
      %8001 = vmatpush.msra.mxu0 %v8000
      %v8002 = vand.u32 %v6913, 4294901760
      %8003 = vmatpush.msra.mxu0 %v8002
      %v8004 = vand.u32 %v6912, 4294901760
      %8005 = vmatpush.msra.mxu0 %v8004
      %v8006 = vand.u32 %v6911, 4294901760
      %8007 = vmatpush.msra.mxu0 %v8006
      %v8008 = vand.u32 %v6910, 4294901760
      %8009 = vmatpush.msra.mxu0 %v8008
      %v8010 = vand.u32 %v6909, 4294901760
      %8011 = vmatpush.msra.mxu0 %v8010
      %v8012 = vand.u32 %v6908, 4294901760
      %8013 = vmatpush.msra.mxu0 %v8012
      %v8014 = vand.u32 %v6907, 4294901760
      %8015 = vmatpush.msra.mxu0 %v8014
      %v8016 = vand.u32 %v6906, 4294901760
      %8017 = vmatpush.msra.mxu0 %v8016
      %v8018 = vand.u32 %v6905, 4294901760
      %8019 = vmatpush.msra.mxu0 %v8018
      %v8020 = vand.u32 %v5250, 4294901760
      %8021 = vmatmul.f32.gmra.mxu0 %v8020
      %v8022 = vpop.f32.mrf.mxu0
      %v8023 = vadd.f32 %v7958, %v8022
      %v8024 = vand.u32 %v5251, 4294901760
      %8025 = vmatmul.f32.gmra.mxu0 %v8024
      %v8026 = vpop.f32.mrf.mxu0
      %v8027 = vadd.f32 %v7962, %v8026
      %v8028 = vand.u32 %v5252, 4294901760
      %8029 = vmatmul.f32.gmra.mxu0 %v8028
      %v8030 = vpop.f32.mrf.mxu0
      %v8031 = vadd.f32 %v7966, %v8030
      %v8032 = vand.u32 %v5253, 4294901760
      %8033 = vmatmul.f32.gmra.mxu0 %v8032
      %v8034 = vpop.f32.mrf.mxu0
      %v8035 = vadd.f32 %v7970, %v8034
      %v8036 = vand.u32 %v5254, 4294901760
      %8037 = vmatmul.f32.gmra.mxu0 %v8036
      %v8038 = vpop.f32.mrf.mxu0
      %v8039 = vadd.f32 %v7974, %v8038
      %v8040 = vand.u32 %v5255, 4294901760
      %8041 = vmatmul.f32.gmra.mxu0 %v8040
      %v8042 = vpop.f32.mrf.mxu0
      %v8043 = vadd.f32 %v7978, %v8042
      %v8044 = vand.u32 %v5256, 4294901760
      %8045 = vmatmul.f32.gmra.mxu0 %v8044
      %v8046 = vpop.f32.mrf.mxu0
      %v8047 = vadd.f32 %v7982, %v8046
      %v8048 = vand.u32 %v5257, 4294901760
      %8049 = vmatmul.f32.gmra.mxu0 %v8048
      %v8050 = vpop.f32.mrf.mxu0
      %v8051 = vadd.f32 %v7986, %v8050
      %8052 = vdwg.mxu0
      %v8053 = vld [vmem:[%s18] sm:$0xff]
      %v8054 = vld [vmem:[%s18 + $0x8] sm:$0xff]
      %v8055 = vld [vmem:[%s18 + $0x10] sm:$0xff]
      %v8056 = vld [vmem:[%s18 + $0x18] sm:$0xff]
      %v8057 = vld [vmem:[%s18 + $0x20] sm:$0xff]
      %v8058 = vld [vmem:[%s18 + $0x28] sm:$0xff]
      %v8059 = vld [vmem:[%s18 + $0x30] sm:$0xff]
      %v8060 = vld [vmem:[%s18 + $0x38] sm:$0xff]
      %v8061 = vld [vmem:[%s18 + $0x40] sm:$0xff]
      %v8062 = vld [vmem:[%s18 + $0x48] sm:$0xff]
      %v8063 = vld [vmem:[%s18 + $0x50] sm:$0xff]
      %v8064 = vld [vmem:[%s18 + $0x58] sm:$0xff]
      %v8065 = vld [vmem:[%s18 + $0x60] sm:$0xff]
      %v8066 = vld [vmem:[%s18 + $0x68] sm:$0xff]
      %v8067 = vld [vmem:[%s18 + $0x70] sm:$0xff]
      %v8068 = vld [vmem:[%s18 + $0x78] sm:$0xff]
      %v8069 = vand.u32 %v8068, 4294901760
      %8070 = vmatpush.msra.mxu0 %v8069
      %v8071 = vand.u32 %v8067, 4294901760
      %8072 = vmatpush.msra.mxu0 %v8071
      %v8073 = vand.u32 %v8066, 4294901760
      %8074 = vmatpush.msra.mxu0 %v8073
      %v8075 = vand.u32 %v8065, 4294901760
      %8076 = vmatpush.msra.mxu0 %v8075
      %v8077 = vand.u32 %v8064, 4294901760
      %8078 = vmatpush.msra.mxu0 %v8077
      %v8079 = vand.u32 %v8063, 4294901760
      %8080 = vmatpush.msra.mxu0 %v8079
      %v8081 = vand.u32 %v8062, 4294901760
      %8082 = vmatpush.msra.mxu0 %v8081
      %v8083 = vand.u32 %v8061, 4294901760
      %8084 = vmatpush.msra.mxu0 %v8083
      %v8085 = vand.u32 %v8060, 4294901760
      %8086 = vmatpush.msra.mxu0 %v8085
      %v8087 = vand.u32 %v8059, 4294901760
      %8088 = vmatpush.msra.mxu0 %v8087
      %v8089 = vand.u32 %v8058, 4294901760
      %8090 = vmatpush.msra.mxu0 %v8089
      %v8091 = vand.u32 %v8057, 4294901760
      %8092 = vmatpush.msra.mxu0 %v8091
      %v8093 = vand.u32 %v8056, 4294901760
      %8094 = vmatpush.msra.mxu0 %v8093
      %v8095 = vand.u32 %v8055, 4294901760
      %8096 = vmatpush.msra.mxu0 %v8095
      %v8097 = vand.u32 %v8054, 4294901760
      %8098 = vmatpush.msra.mxu0 %v8097
      %v8099 = vand.u32 %v8053, 4294901760
      %8100 = vmatpush.msra.mxu0 %v8099
      %v8101 = vand.u32 %v6297, 4294901760
      %v8102 = vsub.f32 %v6297, %v8101
      %v8103 = vand.u32 %v8102, 4294901760
      %v8104 = vsub.f32 %v8102, %v8103
      %v8105 = vand.u32 %v8104, 4294901760
      %8106 = vmatmul.f32.gmra.mxu0 %v8105
      %v8107 = vpop.f32.mrf.mxu0
      %v8108 = vadd.f32 0.0, %v8107
      %v8109 = vand.u32 %v6301, 4294901760
      %v8110 = vsub.f32 %v6301, %v8109
      %v8111 = vand.u32 %v8110, 4294901760
      %v8112 = vsub.f32 %v8110, %v8111
      %v8113 = vand.u32 %v8112, 4294901760
      %8114 = vmatmul.f32.gmra.mxu0 %v8113
      %v8115 = vpop.f32.mrf.mxu0
      %v8116 = vadd.f32 0.0, %v8115
      %v8117 = vand.u32 %v6305, 4294901760
      %v8118 = vsub.f32 %v6305, %v8117
      %v8119 = vand.u32 %v8118, 4294901760
      %v8120 = vsub.f32 %v8118, %v8119
      %v8121 = vand.u32 %v8120, 4294901760
      %8122 = vmatmul.f32.gmra.mxu0 %v8121
      %v8123 = vpop.f32.mrf.mxu0
      %v8124 = vadd.f32 0.0, %v8123
      %v8125 = vand.u32 %v6309, 4294901760
      %v8126 = vsub.f32 %v6309, %v8125
      %v8127 = vand.u32 %v8126, 4294901760
      %v8128 = vsub.f32 %v8126, %v8127
      %v8129 = vand.u32 %v8128, 4294901760
      %8130 = vmatmul.f32.gmra.mxu0 %v8129
      %v8131 = vpop.f32.mrf.mxu0
      %v8132 = vadd.f32 0.0, %v8131
      %v8133 = vand.u32 %v6313, 4294901760
      %v8134 = vsub.f32 %v6313, %v8133
      %v8135 = vand.u32 %v8134, 4294901760
      %v8136 = vsub.f32 %v8134, %v8135
      %v8137 = vand.u32 %v8136, 4294901760
      %8138 = vmatmul.f32.gmra.mxu0 %v8137
      %v8139 = vpop.f32.mrf.mxu0
      %v8140 = vadd.f32 0.0, %v8139
      %v8141 = vand.u32 %v6317, 4294901760
      %v8142 = vsub.f32 %v6317, %v8141
      %v8143 = vand.u32 %v8142, 4294901760
      %v8144 = vsub.f32 %v8142, %v8143
      %v8145 = vand.u32 %v8144, 4294901760
      %8146 = vmatmul.f32.gmra.mxu0 %v8145
      %v8147 = vpop.f32.mrf.mxu0
      %v8148 = vadd.f32 0.0, %v8147
      %v8149 = vand.u32 %v6321, 4294901760
      %v8150 = vsub.f32 %v6321, %v8149
      %v8151 = vand.u32 %v8150, 4294901760
      %v8152 = vsub.f32 %v8150, %v8151
      %v8153 = vand.u32 %v8152, 4294901760
      %8154 = vmatmul.f32.gmra.mxu0 %v8153
      %v8155 = vpop.f32.mrf.mxu0
      %v8156 = vadd.f32 0.0, %v8155
      %v8157 = vand.u32 %v6325, 4294901760
      %v8158 = vsub.f32 %v6325, %v8157
      %v8159 = vand.u32 %v8158, 4294901760
      %v8160 = vsub.f32 %v8158, %v8159
      %v8161 = vand.u32 %v8160, 4294901760
      %8162 = vmatmul.f32.gmra.mxu0 %v8161
      %v8163 = vpop.f32.mrf.mxu0
      %v8164 = vadd.f32 0.0, %v8163
      %8165 = vdwg.mxu0
      %v8166 = vand.u32 %v8068, 4294901760
      %v8167 = vsub.f32 %v8068, %v8166
      %v8168 = vand.u32 %v8167, 4294901760
      %v8169 = vsub.f32 %v8167, %v8168
      %v8170 = vand.u32 %v8169, 4294901760
      %8171 = vmatpush.msra.mxu0 %v8170
      %v8172 = vand.u32 %v8067, 4294901760
      %v8173 = vsub.f32 %v8067, %v8172
      %v8174 = vand.u32 %v8173, 4294901760
      %v8175 = vsub.f32 %v8173, %v8174
      %v8176 = vand.u32 %v8175, 4294901760
      %8177 = vmatpush.msra.mxu0 %v8176
      %v8178 = vand.u32 %v8066, 4294901760
      %v8179 = vsub.f32 %v8066, %v8178
      %v8180 = vand.u32 %v8179, 4294901760
      %v8181 = vsub.f32 %v8179, %v8180
      %v8182 = vand.u32 %v8181, 4294901760
      %8183 = vmatpush.msra.mxu0 %v8182
      %v8184 = vand.u32 %v8065, 4294901760
      %v8185 = vsub.f32 %v8065, %v8184
      %v8186 = vand.u32 %v8185, 4294901760
      %v8187 = vsub.f32 %v8185, %v8186
      %v8188 = vand.u32 %v8187, 4294901760
      %8189 = vmatpush.msra.mxu0 %v8188
      %v8190 = vand.u32 %v8064, 4294901760
      %v8191 = vsub.f32 %v8064, %v8190
      %v8192 = vand.u32 %v8191, 4294901760
      %v8193 = vsub.f32 %v8191, %v8192
      %v8194 = vand.u32 %v8193, 4294901760
      %8195 = vmatpush.msra.mxu0 %v8194
      %v8196 = vand.u32 %v8063, 4294901760
      %v8197 = vsub.f32 %v8063, %v8196
      %v8198 = vand.u32 %v8197, 4294901760
      %v8199 = vsub.f32 %v8197, %v8198
      %v8200 = vand.u32 %v8199, 4294901760
      %8201 = vmatpush.msra.mxu0 %v8200
      %v8202 = vand.u32 %v8062, 4294901760
      %v8203 = vsub.f32 %v8062, %v8202
      %v8204 = vand.u32 %v8203, 4294901760
      %v8205 = vsub.f32 %v8203, %v8204
      %v8206 = vand.u32 %v8205, 4294901760
      %8207 = vmatpush.msra.mxu0 %v8206
      %v8208 = vand.u32 %v8061, 4294901760
      %v8209 = vsub.f32 %v8061, %v8208
      %v8210 = vand.u32 %v8209, 4294901760
      %v8211 = vsub.f32 %v8209, %v8210
      %v8212 = vand.u32 %v8211, 4294901760
      %8213 = vmatpush.msra.mxu0 %v8212
      %v8214 = vand.u32 %v8060, 4294901760
      %v8215 = vsub.f32 %v8060, %v8214
      %v8216 = vand.u32 %v8215, 4294901760
      %v8217 = vsub.f32 %v8215, %v8216
      %v8218 = vand.u32 %v8217, 4294901760
      %8219 = vmatpush.msra.mxu0 %v8218
      %v8220 = vand.u32 %v8059, 4294901760
      %v8221 = vsub.f32 %v8059, %v8220
      %v8222 = vand.u32 %v8221, 4294901760
      %v8223 = vsub.f32 %v8221, %v8222
      %v8224 = vand.u32 %v8223, 4294901760
      %8225 = vmatpush.msra.mxu0 %v8224
      %v8226 = vand.u32 %v8058, 4294901760
      %v8227 = vsub.f32 %v8058, %v8226
      %v8228 = vand.u32 %v8227, 4294901760
      %v8229 = vsub.f32 %v8227, %v8228
      %v8230 = vand.u32 %v8229, 4294901760
      %8231 = vmatpush.msra.mxu0 %v8230
      %v8232 = vand.u32 %v8057, 4294901760
      %v8233 = vsub.f32 %v8057, %v8232
      %v8234 = vand.u32 %v8233, 4294901760
      %v8235 = vsub.f32 %v8233, %v8234
      %v8236 = vand.u32 %v8235, 4294901760
      %8237 = vmatpush.msra.mxu0 %v8236
      %v8238 = vand.u32 %v8056, 4294901760
      %v8239 = vsub.f32 %v8056, %v8238
      %v8240 = vand.u32 %v8239, 4294901760
      %v8241 = vsub.f32 %v8239, %v8240
      %v8242 = vand.u32 %v8241, 4294901760
      %8243 = vmatpush.msra.mxu0 %v8242
      %v8244 = vand.u32 %v8055, 4294901760
      %v8245 = vsub.f32 %v8055, %v8244
      %v8246 = vand.u32 %v8245, 4294901760
      %v8247 = vsub.f32 %v8245, %v8246
      %v8248 = vand.u32 %v8247, 4294901760
      %8249 = vmatpush.msra.mxu0 %v8248
      %v8250 = vand.u32 %v8054, 4294901760
      %v8251 = vsub.f32 %v8054, %v8250
      %v8252 = vand.u32 %v8251, 4294901760
      %v8253 = vsub.f32 %v8251, %v8252
      %v8254 = vand.u32 %v8253, 4294901760
      %8255 = vmatpush.msra.mxu0 %v8254
      %v8256 = vand.u32 %v8053, 4294901760
      %v8257 = vsub.f32 %v8053, %v8256
      %v8258 = vand.u32 %v8257, 4294901760
      %v8259 = vsub.f32 %v8257, %v8258
      %v8260 = vand.u32 %v8259, 4294901760
      %8261 = vmatpush.msra.mxu0 %v8260
      %v8262 = vand.u32 %v6297, 4294901760
      %8263 = vmatmul.f32.gmra.mxu0 %v8262
      %v8264 = vpop.f32.mrf.mxu0
      %v8265 = vadd.f32 %v8108, %v8264
      %v8266 = vand.u32 %v6301, 4294901760
      %8267 = vmatmul.f32.gmra.mxu0 %v8266
      %v8268 = vpop.f32.mrf.mxu0
      %v8269 = vadd.f32 %v8116, %v8268
      %v8270 = vand.u32 %v6305, 4294901760
      %8271 = vmatmul.f32.gmra.mxu0 %v8270
      %v8272 = vpop.f32.mrf.mxu0
      %v8273 = vadd.f32 %v8124, %v8272
      %v8274 = vand.u32 %v6309, 4294901760
      %8275 = vmatmul.f32.gmra.mxu0 %v8274
      %v8276 = vpop.f32.mrf.mxu0
      %v8277 = vadd.f32 %v8132, %v8276
      %v8278 = vand.u32 %v6313, 4294901760
      %8279 = vmatmul.f32.gmra.mxu0 %v8278
      %v8280 = vpop.f32.mrf.mxu0
      %v8281 = vadd.f32 %v8140, %v8280
      %v8282 = vand.u32 %v6317, 4294901760
      %8283 = vmatmul.f32.gmra.mxu0 %v8282
      %v8284 = vpop.f32.mrf.mxu0
      %v8285 = vadd.f32 %v8148, %v8284
      %v8286 = vand.u32 %v6321, 4294901760
      %8287 = vmatmul.f32.gmra.mxu0 %v8286
      %v8288 = vpop.f32.mrf.mxu0
      %v8289 = vadd.f32 %v8156, %v8288
      %v8290 = vand.u32 %v6325, 4294901760
      %8291 = vmatmul.f32.gmra.mxu0 %v8290
      %v8292 = vpop.f32.mrf.mxu0
      %v8293 = vadd.f32 %v8164, %v8292
      %8294 = vdwg.mxu0
      %v8295 = vand.u32 %v8068, 4294901760
      %v8296 = vsub.f32 %v8068, %v8295
      %8297 = vmatpush.msra.mxu0 %v8296
      %v8298 = vand.u32 %v8067, 4294901760
      %v8299 = vsub.f32 %v8067, %v8298
      %8300 = vmatpush.msra.mxu0 %v8299
      %v8301 = vand.u32 %v8066, 4294901760
      %v8302 = vsub.f32 %v8066, %v8301
      %8303 = vmatpush.msra.mxu0 %v8302
      %v8304 = vand.u32 %v8065, 4294901760
      %v8305 = vsub.f32 %v8065, %v8304
      %8306 = vmatpush.msra.mxu0 %v8305
      %v8307 = vand.u32 %v8064, 4294901760
      %v8308 = vsub.f32 %v8064, %v8307
      %8309 = vmatpush.msra.mxu0 %v8308
      %v8310 = vand.u32 %v8063, 4294901760
      %v8311 = vsub.f32 %v8063, %v8310
      %8312 = vmatpush.msra.mxu0 %v8311
      %v8313 = vand.u32 %v8062, 4294901760
      %v8314 = vsub.f32 %v8062, %v8313
      %8315 = vmatpush.msra.mxu0 %v8314
      %v8316 = vand.u32 %v8061, 4294901760
      %v8317 = vsub.f32 %v8061, %v8316
      %8318 = vmatpush.msra.mxu0 %v8317
      %v8319 = vand.u32 %v8060, 4294901760
      %v8320 = vsub.f32 %v8060, %v8319
      %8321 = vmatpush.msra.mxu0 %v8320
      %v8322 = vand.u32 %v8059, 4294901760
      %v8323 = vsub.f32 %v8059, %v8322
      %8324 = vmatpush.msra.mxu0 %v8323
      %v8325 = vand.u32 %v8058, 4294901760
      %v8326 = vsub.f32 %v8058, %v8325
      %8327 = vmatpush.msra.mxu0 %v8326
      %v8328 = vand.u32 %v8057, 4294901760
      %v8329 = vsub.f32 %v8057, %v8328
      %8330 = vmatpush.msra.mxu0 %v8329
      %v8331 = vand.u32 %v8056, 4294901760
      %v8332 = vsub.f32 %v8056, %v8331
      %8333 = vmatpush.msra.mxu0 %v8332
      %v8334 = vand.u32 %v8055, 4294901760
      %v8335 = vsub.f32 %v8055, %v8334
      %8336 = vmatpush.msra.mxu0 %v8335
      %v8337 = vand.u32 %v8054, 4294901760
      %v8338 = vsub.f32 %v8054, %v8337
      %8339 = vmatpush.msra.mxu0 %v8338
      %v8340 = vand.u32 %v8053, 4294901760
      %v8341 = vsub.f32 %v8053, %v8340
      %8342 = vmatpush.msra.mxu0 %v8341
      %v8343 = vand.u32 %v6297, 4294901760
      %v8344 = vsub.f32 %v6297, %v8343
      %8345 = vmatmul.f32.gmra.mxu0 %v8344
      %v8346 = vpop.f32.mrf.mxu0
      %v8347 = vadd.f32 %v8265, %v8346
      %v8348 = vand.u32 %v6301, 4294901760
      %v8349 = vsub.f32 %v6301, %v8348
      %8350 = vmatmul.f32.gmra.mxu0 %v8349
      %v8351 = vpop.f32.mrf.mxu0
      %v8352 = vadd.f32 %v8269, %v8351
      %v8353 = vand.u32 %v6305, 4294901760
      %v8354 = vsub.f32 %v6305, %v8353
      %8355 = vmatmul.f32.gmra.mxu0 %v8354
      %v8356 = vpop.f32.mrf.mxu0
      %v8357 = vadd.f32 %v8273, %v8356
      %v8358 = vand.u32 %v6309, 4294901760
      %v8359 = vsub.f32 %v6309, %v8358
      %8360 = vmatmul.f32.gmra.mxu0 %v8359
      %v8361 = vpop.f32.mrf.mxu0
      %v8362 = vadd.f32 %v8277, %v8361
      %v8363 = vand.u32 %v6313, 4294901760
      %v8364 = vsub.f32 %v6313, %v8363
      %8365 = vmatmul.f32.gmra.mxu0 %v8364
      %v8366 = vpop.f32.mrf.mxu0
      %v8367 = vadd.f32 %v8281, %v8366
      %v8368 = vand.u32 %v6317, 4294901760
      %v8369 = vsub.f32 %v6317, %v8368
      %8370 = vmatmul.f32.gmra.mxu0 %v8369
      %v8371 = vpop.f32.mrf.mxu0
      %v8372 = vadd.f32 %v8285, %v8371
      %v8373 = vand.u32 %v6321, 4294901760
      %v8374 = vsub.f32 %v6321, %v8373
      %8375 = vmatmul.f32.gmra.mxu0 %v8374
      %v8376 = vpop.f32.mrf.mxu0
      %v8377 = vadd.f32 %v8289, %v8376
      %v8378 = vand.u32 %v6325, 4294901760
      %v8379 = vsub.f32 %v6325, %v8378
      %8380 = vmatmul.f32.gmra.mxu0 %v8379
      %v8381 = vpop.f32.mrf.mxu0
      %v8382 = vadd.f32 %v8293, %v8381
      %8383 = vdwg.mxu0
      %v8384 = vand.u32 %v8068, 4294901760
      %8385 = vmatpush.msra.mxu0 %v8384
      %v8386 = vand.u32 %v8067, 4294901760
      %8387 = vmatpush.msra.mxu0 %v8386
      %v8388 = vand.u32 %v8066, 4294901760
      %8389 = vmatpush.msra.mxu0 %v8388
      %v8390 = vand.u32 %v8065, 4294901760
      %8391 = vmatpush.msra.mxu0 %v8390
      %v8392 = vand.u32 %v8064, 4294901760
      %8393 = vmatpush.msra.mxu0 %v8392
      %v8394 = vand.u32 %v8063, 4294901760
      %8395 = vmatpush.msra.mxu0 %v8394
      %v8396 = vand.u32 %v8062, 4294901760
      %8397 = vmatpush.msra.mxu0 %v8396
      %v8398 = vand.u32 %v8061, 4294901760
      %8399 = vmatpush.msra.mxu0 %v8398
      %v8400 = vand.u32 %v8060, 4294901760
      %8401 = vmatpush.msra.mxu0 %v8400
      %v8402 = vand.u32 %v8059, 4294901760
      %8403 = vmatpush.msra.mxu0 %v8402
      %v8404 = vand.u32 %v8058, 4294901760
      %8405 = vmatpush.msra.mxu0 %v8404
      %v8406 = vand.u32 %v8057, 4294901760
      %8407 = vmatpush.msra.mxu0 %v8406
      %v8408 = vand.u32 %v8056, 4294901760
      %8409 = vmatpush.msra.mxu0 %v8408
      %v8410 = vand.u32 %v8055, 4294901760
      %8411 = vmatpush.msra.mxu0 %v8410
      %v8412 = vand.u32 %v8054, 4294901760
      %8413 = vmatpush.msra.mxu0 %v8412
      %v8414 = vand.u32 %v8053, 4294901760
      %8415 = vmatpush.msra.mxu0 %v8414
      %v8416 = vand.u32 %v6297, 4294901760
      %v8417 = vsub.f32 %v6297, %v8416
      %v8418 = vand.u32 %v8417, 4294901760
      %8419 = vmatmul.f32.gmra.mxu0 %v8418
      %v8420 = vpop.f32.mrf.mxu0
      %v8421 = vadd.f32 %v8347, %v8420
      %v8422 = vand.u32 %v6301, 4294901760
      %v8423 = vsub.f32 %v6301, %v8422
      %v8424 = vand.u32 %v8423, 4294901760
      %8425 = vmatmul.f32.gmra.mxu0 %v8424
      %v8426 = vpop.f32.mrf.mxu0
      %v8427 = vadd.f32 %v8352, %v8426
      %v8428 = vand.u32 %v6305, 4294901760
      %v8429 = vsub.f32 %v6305, %v8428
      %v8430 = vand.u32 %v8429, 4294901760
      %8431 = vmatmul.f32.gmra.mxu0 %v8430
      %v8432 = vpop.f32.mrf.mxu0
      %v8433 = vadd.f32 %v8357, %v8432
      %v8434 = vand.u32 %v6309, 4294901760
      %v8435 = vsub.f32 %v6309, %v8434
      %v8436 = vand.u32 %v8435, 4294901760
      %8437 = vmatmul.f32.gmra.mxu0 %v8436
      %v8438 = vpop.f32.mrf.mxu0
      %v8439 = vadd.f32 %v8362, %v8438
      %v8440 = vand.u32 %v6313, 4294901760
      %v8441 = vsub.f32 %v6313, %v8440
      %v8442 = vand.u32 %v8441, 4294901760
      %8443 = vmatmul.f32.gmra.mxu0 %v8442
      %v8444 = vpop.f32.mrf.mxu0
      %v8445 = vadd.f32 %v8367, %v8444
      %v8446 = vand.u32 %v6317, 4294901760
      %v8447 = vsub.f32 %v6317, %v8446
      %v8448 = vand.u32 %v8447, 4294901760
      %8449 = vmatmul.f32.gmra.mxu0 %v8448
      %v8450 = vpop.f32.mrf.mxu0
      %v8451 = vadd.f32 %v8372, %v8450
      %v8452 = vand.u32 %v6321, 4294901760
      %v8453 = vsub.f32 %v6321, %v8452
      %v8454 = vand.u32 %v8453, 4294901760
      %8455 = vmatmul.f32.gmra.mxu0 %v8454
      %v8456 = vpop.f32.mrf.mxu0
      %v8457 = vadd.f32 %v8377, %v8456
      %v8458 = vand.u32 %v6325, 4294901760
      %v8459 = vsub.f32 %v6325, %v8458
      %v8460 = vand.u32 %v8459, 4294901760
      %8461 = vmatmul.f32.gmra.mxu0 %v8460
      %v8462 = vpop.f32.mrf.mxu0
      %v8463 = vadd.f32 %v8382, %v8462
      %8464 = vdwg.mxu0
      %v8465 = vand.u32 %v8068, 4294901760
      %v8466 = vsub.f32 %v8068, %v8465
      %v8467 = vand.u32 %v8466, 4294901760
      %8468 = vmatpush.msra.mxu0 %v8467
      %v8469 = vand.u32 %v8067, 4294901760
      %v8470 = vsub.f32 %v8067, %v8469
      %v8471 = vand.u32 %v8470, 4294901760
      %8472 = vmatpush.msra.mxu0 %v8471
      %v8473 = vand.u32 %v8066, 4294901760
      %v8474 = vsub.f32 %v8066, %v8473
      %v8475 = vand.u32 %v8474, 4294901760
      %8476 = vmatpush.msra.mxu0 %v8475
      %v8477 = vand.u32 %v8065, 4294901760
      %v8478 = vsub.f32 %v8065, %v8477
      %v8479 = vand.u32 %v8478, 4294901760
      %8480 = vmatpush.msra.mxu0 %v8479
      %v8481 = vand.u32 %v8064, 4294901760
      %v8482 = vsub.f32 %v8064, %v8481
      %v8483 = vand.u32 %v8482, 4294901760
      %8484 = vmatpush.msra.mxu0 %v8483
      %v8485 = vand.u32 %v8063, 4294901760
      %v8486 = vsub.f32 %v8063, %v8485
      %v8487 = vand.u32 %v8486, 4294901760
      %8488 = vmatpush.msra.mxu0 %v8487
      %v8489 = vand.u32 %v8062, 4294901760
      %v8490 = vsub.f32 %v8062, %v8489
      %v8491 = vand.u32 %v8490, 4294901760
      %8492 = vmatpush.msra.mxu0 %v8491
      %v8493 = vand.u32 %v8061, 4294901760
      %v8494 = vsub.f32 %v8061, %v8493
      %v8495 = vand.u32 %v8494, 4294901760
      %8496 = vmatpush.msra.mxu0 %v8495
      %v8497 = vand.u32 %v8060, 4294901760
      %v8498 = vsub.f32 %v8060, %v8497
      %v8499 = vand.u32 %v8498, 4294901760
      %8500 = vmatpush.msra.mxu0 %v8499
      %v8501 = vand.u32 %v8059, 4294901760
      %v8502 = vsub.f32 %v8059, %v8501
      %v8503 = vand.u32 %v8502, 4294901760
      %8504 = vmatpush.msra.mxu0 %v8503
      %v8505 = vand.u32 %v8058, 4294901760
      %v8506 = vsub.f32 %v8058, %v8505
      %v8507 = vand.u32 %v8506, 4294901760
      %8508 = vmatpush.msra.mxu0 %v8507
      %v8509 = vand.u32 %v8057, 4294901760
      %v8510 = vsub.f32 %v8057, %v8509
      %v8511 = vand.u32 %v8510, 4294901760
      %8512 = vmatpush.msra.mxu0 %v8511
      %v8513 = vand.u32 %v8056, 4294901760
      %v8514 = vsub.f32 %v8056, %v8513
      %v8515 = vand.u32 %v8514, 4294901760
      %8516 = vmatpush.msra.mxu0 %v8515
      %v8517 = vand.u32 %v8055, 4294901760
      %v8518 = vsub.f32 %v8055, %v8517
      %v8519 = vand.u32 %v8518, 4294901760
      %8520 = vmatpush.msra.mxu0 %v8519
      %v8521 = vand.u32 %v8054, 4294901760
      %v8522 = vsub.f32 %v8054, %v8521
      %v8523 = vand.u32 %v8522, 4294901760
      %8524 = vmatpush.msra.mxu0 %v8523
      %v8525 = vand.u32 %v8053, 4294901760
      %v8526 = vsub.f32 %v8053, %v8525
      %v8527 = vand.u32 %v8526, 4294901760
      %8528 = vmatpush.msra.mxu0 %v8527
      %v8529 = vand.u32 %v6297, 4294901760
      %8530 = vmatmul.f32.gmra.mxu0 %v8529
      %v8531 = vpop.f32.mrf.mxu0
      %v8532 = vadd.f32 %v8421, %v8531
      %v8533 = vand.u32 %v6301, 4294901760
      %8534 = vmatmul.f32.gmra.mxu0 %v8533
      %v8535 = vpop.f32.mrf.mxu0
      %v8536 = vadd.f32 %v8427, %v8535
      %v8537 = vand.u32 %v6305, 4294901760
      %8538 = vmatmul.f32.gmra.mxu0 %v8537
      %v8539 = vpop.f32.mrf.mxu0
      %v8540 = vadd.f32 %v8433, %v8539
      %v8541 = vand.u32 %v6309, 4294901760
      %8542 = vmatmul.f32.gmra.mxu0 %v8541
      %v8543 = vpop.f32.mrf.mxu0
      %v8544 = vadd.f32 %v8439, %v8543
      %v8545 = vand.u32 %v6313, 4294901760
      %8546 = vmatmul.f32.gmra.mxu0 %v8545
      %v8547 = vpop.f32.mrf.mxu0
      %v8548 = vadd.f32 %v8445, %v8547
      %v8549 = vand.u32 %v6317, 4294901760
      %8550 = vmatmul.f32.gmra.mxu0 %v8549
      %v8551 = vpop.f32.mrf.mxu0
      %v8552 = vadd.f32 %v8451, %v8551
      %v8553 = vand.u32 %v6321, 4294901760
      %8554 = vmatmul.f32.gmra.mxu0 %v8553
      %v8555 = vpop.f32.mrf.mxu0
      %v8556 = vadd.f32 %v8457, %v8555
      %v8557 = vand.u32 %v6325, 4294901760
      %8558 = vmatmul.f32.gmra.mxu0 %v8557
      %v8559 = vpop.f32.mrf.mxu0
      %v8560 = vadd.f32 %v8463, %v8559
      %8561 = vdwg.mxu0
      %v8562 = vand.u32 %v8068, 4294901760
      %8563 = vmatpush.msra.mxu0 %v8562
      %v8564 = vand.u32 %v8067, 4294901760
      %8565 = vmatpush.msra.mxu0 %v8564
      %v8566 = vand.u32 %v8066, 4294901760
      %8567 = vmatpush.msra.mxu0 %v8566
      %v8568 = vand.u32 %v8065, 4294901760
      %8569 = vmatpush.msra.mxu0 %v8568
      %v8570 = vand.u32 %v8064, 4294901760
      %8571 = vmatpush.msra.mxu0 %v8570
      %v8572 = vand.u32 %v8063, 4294901760
      %8573 = vmatpush.msra.mxu0 %v8572
      %v8574 = vand.u32 %v8062, 4294901760
      %8575 = vmatpush.msra.mxu0 %v8574
      %v8576 = vand.u32 %v8061, 4294901760
      %8577 = vmatpush.msra.mxu0 %v8576
      %v8578 = vand.u32 %v8060, 4294901760
      %8579 = vmatpush.msra.mxu0 %v8578
      %v8580 = vand.u32 %v8059, 4294901760
      %8581 = vmatpush.msra.mxu0 %v8580
      %v8582 = vand.u32 %v8058, 4294901760
      %8583 = vmatpush.msra.mxu0 %v8582
      %v8584 = vand.u32 %v8057, 4294901760
      %8585 = vmatpush.msra.mxu0 %v8584
      %v8586 = vand.u32 %v8056, 4294901760
      %8587 = vmatpush.msra.mxu0 %v8586
      %v8588 = vand.u32 %v8055, 4294901760
      %8589 = vmatpush.msra.mxu0 %v8588
      %v8590 = vand.u32 %v8054, 4294901760
      %8591 = vmatpush.msra.mxu0 %v8590
      %v8592 = vand.u32 %v8053, 4294901760
      %8593 = vmatpush.msra.mxu0 %v8592
      %v8594 = vand.u32 %v6297, 4294901760
      %8595 = vmatmul.f32.gmra.mxu0 %v8594
      %v8596 = vpop.f32.mrf.mxu0
      %v8597 = vadd.f32 %v8532, %v8596
      %v8598 = vand.u32 %v6301, 4294901760
      %8599 = vmatmul.f32.gmra.mxu0 %v8598
      %v8600 = vpop.f32.mrf.mxu0
      %v8601 = vadd.f32 %v8536, %v8600
      %v8602 = vand.u32 %v6305, 4294901760
      %8603 = vmatmul.f32.gmra.mxu0 %v8602
      %v8604 = vpop.f32.mrf.mxu0
      %v8605 = vadd.f32 %v8540, %v8604
      %v8606 = vand.u32 %v6309, 4294901760
      %8607 = vmatmul.f32.gmra.mxu0 %v8606
      %v8608 = vpop.f32.mrf.mxu0
      %v8609 = vadd.f32 %v8544, %v8608
      %v8610 = vand.u32 %v6313, 4294901760
      %8611 = vmatmul.f32.gmra.mxu0 %v8610
      %v8612 = vpop.f32.mrf.mxu0
      %v8613 = vadd.f32 %v8548, %v8612
      %v8614 = vand.u32 %v6317, 4294901760
      %8615 = vmatmul.f32.gmra.mxu0 %v8614
      %v8616 = vpop.f32.mrf.mxu0
      %v8617 = vadd.f32 %v8552, %v8616
      %v8618 = vand.u32 %v6321, 4294901760
      %8619 = vmatmul.f32.gmra.mxu0 %v8618
      %v8620 = vpop.f32.mrf.mxu0
      %v8621 = vadd.f32 %v8556, %v8620
      %v8622 = vand.u32 %v6325, 4294901760
      %8623 = vmatmul.f32.gmra.mxu0 %v8622
      %v8624 = vpop.f32.mrf.mxu0
      %v8625 = vadd.f32 %v8560, %v8624
      %8626 = vdwg.mxu0
      %v8627 = vadd.f32 %v8023, %v8597
      %v8628 = vadd.f32 %v8027, %v8601
      %v8629 = vadd.f32 %v8031, %v8605
      %v8630 = vadd.f32 %v8035, %v8609
      %v8631 = vadd.f32 %v8039, %v8613
      %v8632 = vadd.f32 %v8043, %v8617
      %v8633 = vadd.f32 %v8047, %v8621
      %v8634 = vadd.f32 %v8051, %v8625
      %v8635 = vld [vmem:[%s19] sm:$0xff]
      %v8636 = vld [vmem:[%s19 + $0x8] sm:$0xff]
      %v8637 = vld [vmem:[%s19 + $0x10] sm:$0xff]
      %v8638 = vld [vmem:[%s19 + $0x18] sm:$0xff]
      %v8639 = vld [vmem:[%s19 + $0x20] sm:$0xff]
      %v8640 = vld [vmem:[%s19 + $0x28] sm:$0xff]
      %v8641 = vld [vmem:[%s19 + $0x30] sm:$0xff]
      %v8642 = vld [vmem:[%s19 + $0x38] sm:$0xff]
      %v8643 = vld [vmem:[%s19 + $0x40] sm:$0xff]
      %v8644 = vld [vmem:[%s19 + $0x48] sm:$0xff]
      %v8645 = vld [vmem:[%s19 + $0x50] sm:$0xff]
      %v8646 = vld [vmem:[%s19 + $0x58] sm:$0xff]
      %v8647 = vld [vmem:[%s19 + $0x60] sm:$0xff]
      %v8648 = vld [vmem:[%s19 + $0x68] sm:$0xff]
      %v8649 = vld [vmem:[%s19 + $0x70] sm:$0xff]
      %v8650 = vld [vmem:[%s19 + $0x78] sm:$0xff]
      %v8651 = vand.u32 %v8650, 4294901760
      %8652 = vmatpush.msra.mxu0 %v8651
      %v8653 = vand.u32 %v8649, 4294901760
      %8654 = vmatpush.msra.mxu0 %v8653
      %v8655 = vand.u32 %v8648, 4294901760
      %8656 = vmatpush.msra.mxu0 %v8655
      %v8657 = vand.u32 %v8647, 4294901760
      %8658 = vmatpush.msra.mxu0 %v8657
      %v8659 = vand.u32 %v8646, 4294901760
      %8660 = vmatpush.msra.mxu0 %v8659
      %v8661 = vand.u32 %v8645, 4294901760
      %8662 = vmatpush.msra.mxu0 %v8661
      %v8663 = vand.u32 %v8644, 4294901760
      %8664 = vmatpush.msra.mxu0 %v8663
      %v8665 = vand.u32 %v8643, 4294901760
      %8666 = vmatpush.msra.mxu0 %v8665
      %v8667 = vand.u32 %v8642, 4294901760
      %8668 = vmatpush.msra.mxu0 %v8667
      %v8669 = vand.u32 %v8641, 4294901760
      %8670 = vmatpush.msra.mxu0 %v8669
      %v8671 = vand.u32 %v8640, 4294901760
      %8672 = vmatpush.msra.mxu0 %v8671
      %v8673 = vand.u32 %v8639, 4294901760
      %8674 = vmatpush.msra.mxu0 %v8673
      %v8675 = vand.u32 %v8638, 4294901760
      %8676 = vmatpush.msra.mxu0 %v8675
      %v8677 = vand.u32 %v8637, 4294901760
      %8678 = vmatpush.msra.mxu0 %v8677
      %v8679 = vand.u32 %v8636, 4294901760
      %8680 = vmatpush.msra.mxu0 %v8679
      %v8681 = vand.u32 %v8635, 4294901760
      %8682 = vmatpush.msra.mxu0 %v8681
      %v8683 = vand.u32 %v6875, 4294901760
      %v8684 = vsub.f32 %v6875, %v8683
      %v8685 = vand.u32 %v8684, 4294901760
      %v8686 = vsub.f32 %v8684, %v8685
      %v8687 = vand.u32 %v8686, 4294901760
      %8688 = vmatmul.f32.gmra.mxu0 %v8687
      %v8689 = vpop.f32.mrf.mxu0
      %v8690 = vadd.f32 0.0, %v8689
      %v8691 = vand.u32 %v6879, 4294901760
      %v8692 = vsub.f32 %v6879, %v8691
      %v8693 = vand.u32 %v8692, 4294901760
      %v8694 = vsub.f32 %v8692, %v8693
      %v8695 = vand.u32 %v8694, 4294901760
      %8696 = vmatmul.f32.gmra.mxu0 %v8695
      %v8697 = vpop.f32.mrf.mxu0
      %v8698 = vadd.f32 0.0, %v8697
      %v8699 = vand.u32 %v6883, 4294901760
      %v8700 = vsub.f32 %v6883, %v8699
      %v8701 = vand.u32 %v8700, 4294901760
      %v8702 = vsub.f32 %v8700, %v8701
      %v8703 = vand.u32 %v8702, 4294901760
      %8704 = vmatmul.f32.gmra.mxu0 %v8703
      %v8705 = vpop.f32.mrf.mxu0
      %v8706 = vadd.f32 0.0, %v8705
      %v8707 = vand.u32 %v6887, 4294901760
      %v8708 = vsub.f32 %v6887, %v8707
      %v8709 = vand.u32 %v8708, 4294901760
      %v8710 = vsub.f32 %v8708, %v8709
      %v8711 = vand.u32 %v8710, 4294901760
      %8712 = vmatmul.f32.gmra.mxu0 %v8711
      %v8713 = vpop.f32.mrf.mxu0
      %v8714 = vadd.f32 0.0, %v8713
      %v8715 = vand.u32 %v6891, 4294901760
      %v8716 = vsub.f32 %v6891, %v8715
      %v8717 = vand.u32 %v8716, 4294901760
      %v8718 = vsub.f32 %v8716, %v8717
      %v8719 = vand.u32 %v8718, 4294901760
      %8720 = vmatmul.f32.gmra.mxu0 %v8719
      %v8721 = vpop.f32.mrf.mxu0
      %v8722 = vadd.f32 0.0, %v8721
      %v8723 = vand.u32 %v6895, 4294901760
      %v8724 = vsub.f32 %v6895, %v8723
      %v8725 = vand.u32 %v8724, 4294901760
      %v8726 = vsub.f32 %v8724, %v8725
      %v8727 = vand.u32 %v8726, 4294901760
      %8728 = vmatmul.f32.gmra.mxu0 %v8727
      %v8729 = vpop.f32.mrf.mxu0
      %v8730 = vadd.f32 0.0, %v8729
      %v8731 = vand.u32 %v6899, 4294901760
      %v8732 = vsub.f32 %v6899, %v8731
      %v8733 = vand.u32 %v8732, 4294901760
      %v8734 = vsub.f32 %v8732, %v8733
      %v8735 = vand.u32 %v8734, 4294901760
      %8736 = vmatmul.f32.gmra.mxu0 %v8735
      %v8737 = vpop.f32.mrf.mxu0
      %v8738 = vadd.f32 0.0, %v8737
      %v8739 = vand.u32 %v6903, 4294901760
      %v8740 = vsub.f32 %v6903, %v8739
      %v8741 = vand.u32 %v8740, 4294901760
      %v8742 = vsub.f32 %v8740, %v8741
      %v8743 = vand.u32 %v8742, 4294901760
      %8744 = vmatmul.f32.gmra.mxu0 %v8743
      %v8745 = vpop.f32.mrf.mxu0
      %v8746 = vadd.f32 0.0, %v8745
      %8747 = vdwg.mxu0
      %v8748 = vand.u32 %v8650, 4294901760
      %v8749 = vsub.f32 %v8650, %v8748
      %v8750 = vand.u32 %v8749, 4294901760
      %v8751 = vsub.f32 %v8749, %v8750
      %v8752 = vand.u32 %v8751, 4294901760
      %8753 = vmatpush.msra.mxu0 %v8752
      %v8754 = vand.u32 %v8649, 4294901760
      %v8755 = vsub.f32 %v8649, %v8754
      %v8756 = vand.u32 %v8755, 4294901760
      %v8757 = vsub.f32 %v8755, %v8756
      %v8758 = vand.u32 %v8757, 4294901760
      %8759 = vmatpush.msra.mxu0 %v8758
      %v8760 = vand.u32 %v8648, 4294901760
      %v8761 = vsub.f32 %v8648, %v8760
      %v8762 = vand.u32 %v8761, 4294901760
      %v8763 = vsub.f32 %v8761, %v8762
      %v8764 = vand.u32 %v8763, 4294901760
      %8765 = vmatpush.msra.mxu0 %v8764
      %v8766 = vand.u32 %v8647, 4294901760
      %v8767 = vsub.f32 %v8647, %v8766
      %v8768 = vand.u32 %v8767, 4294901760
      %v8769 = vsub.f32 %v8767, %v8768
      %v8770 = vand.u32 %v8769, 4294901760
      %8771 = vmatpush.msra.mxu0 %v8770
      %v8772 = vand.u32 %v8646, 4294901760
      %v8773 = vsub.f32 %v8646, %v8772
      %v8774 = vand.u32 %v8773, 4294901760
      %v8775 = vsub.f32 %v8773, %v8774
      %v8776 = vand.u32 %v8775, 4294901760
      %8777 = vmatpush.msra.mxu0 %v8776
      %v8778 = vand.u32 %v8645, 4294901760
      %v8779 = vsub.f32 %v8645, %v8778
      %v8780 = vand.u32 %v8779, 4294901760
      %v8781 = vsub.f32 %v8779, %v8780
      %v8782 = vand.u32 %v8781, 4294901760
      %8783 = vmatpush.msra.mxu0 %v8782
      %v8784 = vand.u32 %v8644, 4294901760
      %v8785 = vsub.f32 %v8644, %v8784
      %v8786 = vand.u32 %v8785, 4294901760
      %v8787 = vsub.f32 %v8785, %v8786
      %v8788 = vand.u32 %v8787, 4294901760
      %8789 = vmatpush.msra.mxu0 %v8788
      %v8790 = vand.u32 %v8643, 4294901760
      %v8791 = vsub.f32 %v8643, %v8790
      %v8792 = vand.u32 %v8791, 4294901760
      %v8793 = vsub.f32 %v8791, %v8792
      %v8794 = vand.u32 %v8793, 4294901760
      %8795 = vmatpush.msra.mxu0 %v8794
      %v8796 = vand.u32 %v8642, 4294901760
      %v8797 = vsub.f32 %v8642, %v8796
      %v8798 = vand.u32 %v8797, 4294901760
      %v8799 = vsub.f32 %v8797, %v8798
      %v8800 = vand.u32 %v8799, 4294901760
      %8801 = vmatpush.msra.mxu0 %v8800
      %v8802 = vand.u32 %v8641, 4294901760
      %v8803 = vsub.f32 %v8641, %v8802
      %v8804 = vand.u32 %v8803, 4294901760
      %v8805 = vsub.f32 %v8803, %v8804
      %v8806 = vand.u32 %v8805, 4294901760
      %8807 = vmatpush.msra.mxu0 %v8806
      %v8808 = vand.u32 %v8640, 4294901760
      %v8809 = vsub.f32 %v8640, %v8808
      %v8810 = vand.u32 %v8809, 4294901760
      %v8811 = vsub.f32 %v8809, %v8810
      %v8812 = vand.u32 %v8811, 4294901760
      %8813 = vmatpush.msra.mxu0 %v8812
      %v8814 = vand.u32 %v8639, 4294901760
      %v8815 = vsub.f32 %v8639, %v8814
      %v8816 = vand.u32 %v8815, 4294901760
      %v8817 = vsub.f32 %v8815, %v8816
      %v8818 = vand.u32 %v8817, 4294901760
      %8819 = vmatpush.msra.mxu0 %v8818
      %v8820 = vand.u32 %v8638, 4294901760
      %v8821 = vsub.f32 %v8638, %v8820
      %v8822 = vand.u32 %v8821, 4294901760
      %v8823 = vsub.f32 %v8821, %v8822
      %v8824 = vand.u32 %v8823, 4294901760
      %8825 = vmatpush.msra.mxu0 %v8824
      %v8826 = vand.u32 %v8637, 4294901760
      %v8827 = vsub.f32 %v8637, %v8826
      %v8828 = vand.u32 %v8827, 4294901760
      %v8829 = vsub.f32 %v8827, %v8828
      %v8830 = vand.u32 %v8829, 4294901760
      %8831 = vmatpush.msra.mxu0 %v8830
      %v8832 = vand.u32 %v8636, 4294901760
      %v8833 = vsub.f32 %v8636, %v8832
      %v8834 = vand.u32 %v8833, 4294901760
      %v8835 = vsub.f32 %v8833, %v8834
      %v8836 = vand.u32 %v8835, 4294901760
      %8837 = vmatpush.msra.mxu0 %v8836
      %v8838 = vand.u32 %v8635, 4294901760
      %v8839 = vsub.f32 %v8635, %v8838
      %v8840 = vand.u32 %v8839, 4294901760
      %v8841 = vsub.f32 %v8839, %v8840
      %v8842 = vand.u32 %v8841, 4294901760
      %8843 = vmatpush.msra.mxu0 %v8842
      %v8844 = vand.u32 %v6875, 4294901760
      %8845 = vmatmul.f32.gmra.mxu0 %v8844
      %v8846 = vpop.f32.mrf.mxu0
      %v8847 = vadd.f32 %v8690, %v8846
      %v8848 = vand.u32 %v6879, 4294901760
      %8849 = vmatmul.f32.gmra.mxu0 %v8848
      %v8850 = vpop.f32.mrf.mxu0
      %v8851 = vadd.f32 %v8698, %v8850
      %v8852 = vand.u32 %v6883, 4294901760
      %8853 = vmatmul.f32.gmra.mxu0 %v8852
      %v8854 = vpop.f32.mrf.mxu0
      %v8855 = vadd.f32 %v8706, %v8854
      %v8856 = vand.u32 %v6887, 4294901760
      %8857 = vmatmul.f32.gmra.mxu0 %v8856
      %v8858 = vpop.f32.mrf.mxu0
      %v8859 = vadd.f32 %v8714, %v8858
      %v8860 = vand.u32 %v6891, 4294901760
      %8861 = vmatmul.f32.gmra.mxu0 %v8860
      %v8862 = vpop.f32.mrf.mxu0
      %v8863 = vadd.f32 %v8722, %v8862
      %v8864 = vand.u32 %v6895, 4294901760
      %8865 = vmatmul.f32.gmra.mxu0 %v8864
      %v8866 = vpop.f32.mrf.mxu0
      %v8867 = vadd.f32 %v8730, %v8866
      %v8868 = vand.u32 %v6899, 4294901760
      %8869 = vmatmul.f32.gmra.mxu0 %v8868
      %v8870 = vpop.f32.mrf.mxu0
      %v8871 = vadd.f32 %v8738, %v8870
      %v8872 = vand.u32 %v6903, 4294901760
      %8873 = vmatmul.f32.gmra.mxu0 %v8872
      %v8874 = vpop.f32.mrf.mxu0
      %v8875 = vadd.f32 %v8746, %v8874
      %8876 = vdwg.mxu0
      %v8877 = vand.u32 %v8650, 4294901760
      %v8878 = vsub.f32 %v8650, %v8877
      %8879 = vmatpush.msra.mxu0 %v8878
      %v8880 = vand.u32 %v8649, 4294901760
      %v8881 = vsub.f32 %v8649, %v8880
      %8882 = vmatpush.msra.mxu0 %v8881
      %v8883 = vand.u32 %v8648, 4294901760
      %v8884 = vsub.f32 %v8648, %v8883
      %8885 = vmatpush.msra.mxu0 %v8884
      %v8886 = vand.u32 %v8647, 4294901760
      %v8887 = vsub.f32 %v8647, %v8886
      %8888 = vmatpush.msra.mxu0 %v8887
      %v8889 = vand.u32 %v8646, 4294901760
      %v8890 = vsub.f32 %v8646, %v8889
      %8891 = vmatpush.msra.mxu0 %v8890
      %v8892 = vand.u32 %v8645, 4294901760
      %v8893 = vsub.f32 %v8645, %v8892
      %8894 = vmatpush.msra.mxu0 %v8893
      %v8895 = vand.u32 %v8644, 4294901760
      %v8896 = vsub.f32 %v8644, %v8895
      %8897 = vmatpush.msra.mxu0 %v8896
      %v8898 = vand.u32 %v8643, 4294901760
      %v8899 = vsub.f32 %v8643, %v8898
      %8900 = vmatpush.msra.mxu0 %v8899
      %v8901 = vand.u32 %v8642, 4294901760
      %v8902 = vsub.f32 %v8642, %v8901
      %8903 = vmatpush.msra.mxu0 %v8902
      %v8904 = vand.u32 %v8641, 4294901760
      %v8905 = vsub.f32 %v8641, %v8904
      %8906 = vmatpush.msra.mxu0 %v8905
      %v8907 = vand.u32 %v8640, 4294901760
      %v8908 = vsub.f32 %v8640, %v8907
      %8909 = vmatpush.msra.mxu0 %v8908
      %v8910 = vand.u32 %v8639, 4294901760
      %v8911 = vsub.f32 %v8639, %v8910
      %8912 = vmatpush.msra.mxu0 %v8911
      %v8913 = vand.u32 %v8638, 4294901760
      %v8914 = vsub.f32 %v8638, %v8913
      %8915 = vmatpush.msra.mxu0 %v8914
      %v8916 = vand.u32 %v8637, 4294901760
      %v8917 = vsub.f32 %v8637, %v8916
      %8918 = vmatpush.msra.mxu0 %v8917
      %v8919 = vand.u32 %v8636, 4294901760
      %v8920 = vsub.f32 %v8636, %v8919
      %8921 = vmatpush.msra.mxu0 %v8920
      %v8922 = vand.u32 %v8635, 4294901760
      %v8923 = vsub.f32 %v8635, %v8922
      %8924 = vmatpush.msra.mxu0 %v8923
      %v8925 = vand.u32 %v6875, 4294901760
      %v8926 = vsub.f32 %v6875, %v8925
      %8927 = vmatmul.f32.gmra.mxu0 %v8926
      %v8928 = vpop.f32.mrf.mxu0
      %v8929 = vadd.f32 %v8847, %v8928
      %v8930 = vand.u32 %v6879, 4294901760
      %v8931 = vsub.f32 %v6879, %v8930
      %8932 = vmatmul.f32.gmra.mxu0 %v8931
      %v8933 = vpop.f32.mrf.mxu0
      %v8934 = vadd.f32 %v8851, %v8933
      %v8935 = vand.u32 %v6883, 4294901760
      %v8936 = vsub.f32 %v6883, %v8935
      %8937 = vmatmul.f32.gmra.mxu0 %v8936
      %v8938 = vpop.f32.mrf.mxu0
      %v8939 = vadd.f32 %v8855, %v8938
      %v8940 = vand.u32 %v6887, 4294901760
      %v8941 = vsub.f32 %v6887, %v8940
      %8942 = vmatmul.f32.gmra.mxu0 %v8941
      %v8943 = vpop.f32.mrf.mxu0
      %v8944 = vadd.f32 %v8859, %v8943
      %v8945 = vand.u32 %v6891, 4294901760
      %v8946 = vsub.f32 %v6891, %v8945
      %8947 = vmatmul.f32.gmra.mxu0 %v8946
      %v8948 = vpop.f32.mrf.mxu0
      %v8949 = vadd.f32 %v8863, %v8948
      %v8950 = vand.u32 %v6895, 4294901760
      %v8951 = vsub.f32 %v6895, %v8950
      %8952 = vmatmul.f32.gmra.mxu0 %v8951
      %v8953 = vpop.f32.mrf.mxu0
      %v8954 = vadd.f32 %v8867, %v8953
      %v8955 = vand.u32 %v6899, 4294901760
      %v8956 = vsub.f32 %v6899, %v8955
      %8957 = vmatmul.f32.gmra.mxu0 %v8956
      %v8958 = vpop.f32.mrf.mxu0
      %v8959 = vadd.f32 %v8871, %v8958
      %v8960 = vand.u32 %v6903, 4294901760
      %v8961 = vsub.f32 %v6903, %v8960
      %8962 = vmatmul.f32.gmra.mxu0 %v8961
      %v8963 = vpop.f32.mrf.mxu0
      %v8964 = vadd.f32 %v8875, %v8963
      %8965 = vdwg.mxu0
      %v8966 = vand.u32 %v8650, 4294901760
      %8967 = vmatpush.msra.mxu0 %v8966
      %v8968 = vand.u32 %v8649, 4294901760
      %8969 = vmatpush.msra.mxu0 %v8968
      %v8970 = vand.u32 %v8648, 4294901760
      %8971 = vmatpush.msra.mxu0 %v8970
      %v8972 = vand.u32 %v8647, 4294901760
      %8973 = vmatpush.msra.mxu0 %v8972
      %v8974 = vand.u32 %v8646, 4294901760
      %8975 = vmatpush.msra.mxu0 %v8974
      %v8976 = vand.u32 %v8645, 4294901760
      %8977 = vmatpush.msra.mxu0 %v8976
      %v8978 = vand.u32 %v8644, 4294901760
      %8979 = vmatpush.msra.mxu0 %v8978
      %v8980 = vand.u32 %v8643, 4294901760
      %8981 = vmatpush.msra.mxu0 %v8980
      %v8982 = vand.u32 %v8642, 4294901760
      %8983 = vmatpush.msra.mxu0 %v8982
      %v8984 = vand.u32 %v8641, 4294901760
      %8985 = vmatpush.msra.mxu0 %v8984
      %v8986 = vand.u32 %v8640, 4294901760
      %8987 = vmatpush.msra.mxu0 %v8986
      %v8988 = vand.u32 %v8639, 4294901760
      %8989 = vmatpush.msra.mxu0 %v8988
      %v8990 = vand.u32 %v8638, 4294901760
      %8991 = vmatpush.msra.mxu0 %v8990
      %v8992 = vand.u32 %v8637, 4294901760
      %8993 = vmatpush.msra.mxu0 %v8992
      %v8994 = vand.u32 %v8636, 4294901760
      %8995 = vmatpush.msra.mxu0 %v8994
      %v8996 = vand.u32 %v8635, 4294901760
      %8997 = vmatpush.msra.mxu0 %v8996
      %v8998 = vand.u32 %v6875, 4294901760
      %v8999 = vsub.f32 %v6875, %v8998
      %v9000 = vand.u32 %v8999, 4294901760
      %9001 = vmatmul.f32.gmra.mxu0 %v9000
      %v9002 = vpop.f32.mrf.mxu0
      %v9003 = vadd.f32 %v8929, %v9002
      %v9004 = vand.u32 %v6879, 4294901760
      %v9005 = vsub.f32 %v6879, %v9004
      %v9006 = vand.u32 %v9005, 4294901760
      %9007 = vmatmul.f32.gmra.mxu0 %v9006
      %v9008 = vpop.f32.mrf.mxu0
      %v9009 = vadd.f32 %v8934, %v9008
      %v9010 = vand.u32 %v6883, 4294901760
      %v9011 = vsub.f32 %v6883, %v9010
      %v9012 = vand.u32 %v9011, 4294901760
      %9013 = vmatmul.f32.gmra.mxu0 %v9012
      %v9014 = vpop.f32.mrf.mxu0
      %v9015 = vadd.f32 %v8939, %v9014
      %v9016 = vand.u32 %v6887, 4294901760
      %v9017 = vsub.f32 %v6887, %v9016
      %v9018 = vand.u32 %v9017, 4294901760
      %9019 = vmatmul.f32.gmra.mxu0 %v9018
      %v9020 = vpop.f32.mrf.mxu0
      %v9021 = vadd.f32 %v8944, %v9020
      %v9022 = vand.u32 %v6891, 4294901760
      %v9023 = vsub.f32 %v6891, %v9022
      %v9024 = vand.u32 %v9023, 4294901760
      %9025 = vmatmul.f32.gmra.mxu0 %v9024
      %v9026 = vpop.f32.mrf.mxu0
      %v9027 = vadd.f32 %v8949, %v9026
      %v9028 = vand.u32 %v6895, 4294901760
      %v9029 = vsub.f32 %v6895, %v9028
      %v9030 = vand.u32 %v9029, 4294901760
      %9031 = vmatmul.f32.gmra.mxu0 %v9030
      %v9032 = vpop.f32.mrf.mxu0
      %v9033 = vadd.f32 %v8954, %v9032
      %v9034 = vand.u32 %v6899, 4294901760
      %v9035 = vsub.f32 %v6899, %v9034
      %v9036 = vand.u32 %v9035, 4294901760
      %9037 = vmatmul.f32.gmra.mxu0 %v9036
      %v9038 = vpop.f32.mrf.mxu0
      %v9039 = vadd.f32 %v8959, %v9038
      %v9040 = vand.u32 %v6903, 4294901760
      %v9041 = vsub.f32 %v6903, %v9040
      %v9042 = vand.u32 %v9041, 4294901760
      %9043 = vmatmul.f32.gmra.mxu0 %v9042
      %v9044 = vpop.f32.mrf.mxu0
      %v9045 = vadd.f32 %v8964, %v9044
      %9046 = vdwg.mxu0
      %v9047 = vand.u32 %v8650, 4294901760
      %v9048 = vsub.f32 %v8650, %v9047
      %v9049 = vand.u32 %v9048, 4294901760
      %9050 = vmatpush.msra.mxu0 %v9049
      %v9051 = vand.u32 %v8649, 4294901760
      %v9052 = vsub.f32 %v8649, %v9051
      %v9053 = vand.u32 %v9052, 4294901760
      %9054 = vmatpush.msra.mxu0 %v9053
      %v9055 = vand.u32 %v8648, 4294901760
      %v9056 = vsub.f32 %v8648, %v9055
      %v9057 = vand.u32 %v9056, 4294901760
      %9058 = vmatpush.msra.mxu0 %v9057
      %v9059 = vand.u32 %v8647, 4294901760
      %v9060 = vsub.f32 %v8647, %v9059
      %v9061 = vand.u32 %v9060, 4294901760
      %9062 = vmatpush.msra.mxu0 %v9061
      %v9063 = vand.u32 %v8646, 4294901760
      %v9064 = vsub.f32 %v8646, %v9063
      %v9065 = vand.u32 %v9064, 4294901760
      %9066 = vmatpush.msra.mxu0 %v9065
      %v9067 = vand.u32 %v8645, 4294901760
      %v9068 = vsub.f32 %v8645, %v9067
      %v9069 = vand.u32 %v9068, 4294901760
      %9070 = vmatpush.msra.mxu0 %v9069
      %v9071 = vand.u32 %v8644, 4294901760
      %v9072 = vsub.f32 %v8644, %v9071
      %v9073 = vand.u32 %v9072, 4294901760
      %9074 = vmatpush.msra.mxu0 %v9073
      %v9075 = vand.u32 %v8643, 4294901760
      %v9076 = vsub.f32 %v8643, %v9075
      %v9077 = vand.u32 %v9076, 4294901760
      %9078 = vmatpush.msra.mxu0 %v9077
      %v9079 = vand.u32 %v8642, 4294901760
      %v9080 = vsub.f32 %v8642, %v9079
      %v9081 = vand.u32 %v9080, 4294901760
      %9082 = vmatpush.msra.mxu0 %v9081
      %v9083 = vand.u32 %v8641, 4294901760
      %v9084 = vsub.f32 %v8641, %v9083
      %v9085 = vand.u32 %v9084, 4294901760
      %9086 = vmatpush.msra.mxu0 %v9085
      %v9087 = vand.u32 %v8640, 4294901760
      %v9088 = vsub.f32 %v8640, %v9087
      %v9089 = vand.u32 %v9088, 4294901760
      %9090 = vmatpush.msra.mxu0 %v9089
      %v9091 = vand.u32 %v8639, 4294901760
      %v9092 = vsub.f32 %v8639, %v9091
      %v9093 = vand.u32 %v9092, 4294901760
      %9094 = vmatpush.msra.mxu0 %v9093
      %v9095 = vand.u32 %v8638, 4294901760
      %v9096 = vsub.f32 %v8638, %v9095
      %v9097 = vand.u32 %v9096, 4294901760
      %9098 = vmatpush.msra.mxu0 %v9097
      %v9099 = vand.u32 %v8637, 4294901760
      %v9100 = vsub.f32 %v8637, %v9099
      %v9101 = vand.u32 %v9100, 4294901760
      %9102 = vmatpush.msra.mxu0 %v9101
      %v9103 = vand.u32 %v8636, 4294901760
      %v9104 = vsub.f32 %v8636, %v9103
      %v9105 = vand.u32 %v9104, 4294901760
      %9106 = vmatpush.msra.mxu0 %v9105
      %v9107 = vand.u32 %v8635, 4294901760
      %v9108 = vsub.f32 %v8635, %v9107
      %v9109 = vand.u32 %v9108, 4294901760
      %9110 = vmatpush.msra.mxu0 %v9109
      %v9111 = vand.u32 %v6875, 4294901760
      %9112 = vmatmul.f32.gmra.mxu0 %v9111
      %v9113 = vpop.f32.mrf.mxu0
      %v9114 = vadd.f32 %v9003, %v9113
      %v9115 = vand.u32 %v6879, 4294901760
      %9116 = vmatmul.f32.gmra.mxu0 %v9115
      %v9117 = vpop.f32.mrf.mxu0
      %v9118 = vadd.f32 %v9009, %v9117
      %v9119 = vand.u32 %v6883, 4294901760
      %9120 = vmatmul.f32.gmra.mxu0 %v9119
      %v9121 = vpop.f32.mrf.mxu0
      %v9122 = vadd.f32 %v9015, %v9121
      %v9123 = vand.u32 %v6887, 4294901760
      %9124 = vmatmul.f32.gmra.mxu0 %v9123
      %v9125 = vpop.f32.mrf.mxu0
      %v9126 = vadd.f32 %v9021, %v9125
      %v9127 = vand.u32 %v6891, 4294901760
      %9128 = vmatmul.f32.gmra.mxu0 %v9127
      %v9129 = vpop.f32.mrf.mxu0
      %v9130 = vadd.f32 %v9027, %v9129
      %v9131 = vand.u32 %v6895, 4294901760
      %9132 = vmatmul.f32.gmra.mxu0 %v9131
      %v9133 = vpop.f32.mrf.mxu0
      %v9134 = vadd.f32 %v9033, %v9133
      %v9135 = vand.u32 %v6899, 4294901760
      %9136 = vmatmul.f32.gmra.mxu0 %v9135
      %v9137 = vpop.f32.mrf.mxu0
      %v9138 = vadd.f32 %v9039, %v9137
      %v9139 = vand.u32 %v6903, 4294901760
      %9140 = vmatmul.f32.gmra.mxu0 %v9139
      %v9141 = vpop.f32.mrf.mxu0
      %v9142 = vadd.f32 %v9045, %v9141
      %9143 = vdwg.mxu0
      %v9144 = vand.u32 %v8650, 4294901760
      %9145 = vmatpush.msra.mxu0 %v9144
      %v9146 = vand.u32 %v8649, 4294901760
      %9147 = vmatpush.msra.mxu0 %v9146
      %v9148 = vand.u32 %v8648, 4294901760
      %9149 = vmatpush.msra.mxu0 %v9148
      %v9150 = vand.u32 %v8647, 4294901760
      %9151 = vmatpush.msra.mxu0 %v9150
      %v9152 = vand.u32 %v8646, 4294901760
      %9153 = vmatpush.msra.mxu0 %v9152
      %v9154 = vand.u32 %v8645, 4294901760
      %9155 = vmatpush.msra.mxu0 %v9154
      %v9156 = vand.u32 %v8644, 4294901760
      %9157 = vmatpush.msra.mxu0 %v9156
      %v9158 = vand.u32 %v8643, 4294901760
      %9159 = vmatpush.msra.mxu0 %v9158
      %v9160 = vand.u32 %v8642, 4294901760
      %9161 = vmatpush.msra.mxu0 %v9160
      %v9162 = vand.u32 %v8641, 4294901760
      %9163 = vmatpush.msra.mxu0 %v9162
      %v9164 = vand.u32 %v8640, 4294901760
      %9165 = vmatpush.msra.mxu0 %v9164
      %v9166 = vand.u32 %v8639, 4294901760
      %9167 = vmatpush.msra.mxu0 %v9166
      %v9168 = vand.u32 %v8638, 4294901760
      %9169 = vmatpush.msra.mxu0 %v9168
      %v9170 = vand.u32 %v8637, 4294901760
      %9171 = vmatpush.msra.mxu0 %v9170
      %v9172 = vand.u32 %v8636, 4294901760
      %9173 = vmatpush.msra.mxu0 %v9172
      %v9174 = vand.u32 %v8635, 4294901760
      %9175 = vmatpush.msra.mxu0 %v9174
      %v9176 = vand.u32 %v6875, 4294901760
      %9177 = vmatmul.f32.gmra.mxu0 %v9176
      %v9178 = vpop.f32.mrf.mxu0
      %v9179 = vadd.f32 %v9114, %v9178
      %v9180 = vand.u32 %v6879, 4294901760
      %9181 = vmatmul.f32.gmra.mxu0 %v9180
      %v9182 = vpop.f32.mrf.mxu0
      %v9183 = vadd.f32 %v9118, %v9182
      %v9184 = vand.u32 %v6883, 4294901760
      %9185 = vmatmul.f32.gmra.mxu0 %v9184
      %v9186 = vpop.f32.mrf.mxu0
      %v9187 = vadd.f32 %v9122, %v9186
      %v9188 = vand.u32 %v6887, 4294901760
      %9189 = vmatmul.f32.gmra.mxu0 %v9188
      %v9190 = vpop.f32.mrf.mxu0
      %v9191 = vadd.f32 %v9126, %v9190
      %v9192 = vand.u32 %v6891, 4294901760
      %9193 = vmatmul.f32.gmra.mxu0 %v9192
      %v9194 = vpop.f32.mrf.mxu0
      %v9195 = vadd.f32 %v9130, %v9194
      %v9196 = vand.u32 %v6895, 4294901760
      %9197 = vmatmul.f32.gmra.mxu0 %v9196
      %v9198 = vpop.f32.mrf.mxu0
      %v9199 = vadd.f32 %v9134, %v9198
      %v9200 = vand.u32 %v6899, 4294901760
      %9201 = vmatmul.f32.gmra.mxu0 %v9200
      %v9202 = vpop.f32.mrf.mxu0
      %v9203 = vadd.f32 %v9138, %v9202
      %v9204 = vand.u32 %v6903, 4294901760
      %9205 = vmatmul.f32.gmra.mxu0 %v9204
      %v9206 = vpop.f32.mrf.mxu0
      %v9207 = vadd.f32 %v9142, %v9206
      %9208 = vdwg.mxu0
      %v9209 = vadd.f32 %v8627, %v9179
      %v9210 = vadd.f32 %v8628, %v9183
      %v9211 = vadd.f32 %v8629, %v9187
      %v9212 = vadd.f32 %v8630, %v9191
      %v9213 = vadd.f32 %v8631, %v9195
      %v9214 = vadd.f32 %v8632, %v9199
      %v9215 = vadd.f32 %v8633, %v9203
      %v9216 = vadd.f32 %v8634, %v9207
      %v9217 = vld [vmem:[%s20] sm:$0x1]
      %v9219 = vperm.slane %v9217, 0
      %v9221 = vadd.f32 %v9209, %v9219
      %v9222 = vadd.f32 %v9210, %v9219
      %v9223 = vadd.f32 %v9211, %v9219
      %v9224 = vadd.f32 %v9212, %v9219
      %v9225 = vadd.f32 %v9213, %v9219
      %v9226 = vadd.f32 %v9214, %v9219
      %v9227 = vadd.f32 %v9215, %v9219
      %v9228 = vadd.f32 %v9216, %v9219
      %v9229 = vadd.f32 %v9221, %v657
      %v9230 = vadd.f32 %v9222, %v658
      %v9231 = vadd.f32 %v9223, %v659
      %v9232 = vadd.f32 %v9224, %v660
      %v9233 = vadd.f32 %v9225, %v661
      %v9234 = vadd.f32 %v9226, %v662
      %v9235 = vadd.f32 %v9227, %v663
      %v9236 = vadd.f32 %v9228, %v664
      %9237 = vst [vmem:[%s656] sm:$0xff] %v9229
      %9238 = vst [vmem:[%s656 + $0x8] sm:$0xff] %v9230
      %9239 = vst [vmem:[%s656 + $0x10] sm:$0xff] %v9231
      %9240 = vst [vmem:[%s656 + $0x18] sm:$0xff] %v9232
      %9241 = vst [vmem:[%s656 + $0x20] sm:$0xff] %v9233
      %9242 = vst [vmem:[%s656 + $0x28] sm:$0xff] %v9234
      %9243 = vst [vmem:[%s656 + $0x30] sm:$0xff] %v9235
      %9244 = vst [vmem:[%s656 + $0x38] sm:$0xff] %v9236
      %p9245 = scmp.lt.s32.totalorder %s32, 1
      %s9246 = scalar_select %p9245, %s32, 1
      %s9247 = smul.addr %s9246, 8
      %s9248 = smul.addr %s9247, 8
      %s9249 = scalar_lea.vmem %s21, %s9248
      // Predicated region
      $region105: #{sparse_mlp_layer_forward.1} parent=103 // pred_check
        %p9250 = pneg %p496
      $region106: #{sparse_mlp_layer_forward.1} parent=103 // pred_check_branch
        %9252 = sbr.rel (%p9250) target = $region108
      $region107: #{sparse_mlp_layer_forward.1} parent=103 // pred_region
        _
      $region108: #{sparse_mlp_layer_forward.1} parent=103 // pred_fallthru
        _
    $region104: #{sparse_mlp_layer_forward.1} parent=5 // pred_fallthru
      _
    %p9253 = scmp.le.s32.totalorder 2, %s27
    // Predicated region
    $region109: #{sparse_mlp_layer_forward.1} parent=5 // pred_check
      %p9254 = pneg %p9253
    $region110: #{sparse_mlp_layer_forward.1} parent=5 // pred_check_branch
      %9256 = sbr.rel (%p9254) target = $region112
    $region111: #{sparse_mlp_layer_forward.1} parent=5 // pred_region
      %s9257 = ssub.s32 %s27, 2
      // Predicated region
      $region113: #{sparse_mlp_layer_forward.1} parent=111 // pred_check
        %p9258 = pneg %p502
      $region114: #{sparse_mlp_layer_forward.1} parent=111 // pred_check_branch
        %9260 = sbr.rel (%p9258) target = $region116
      $region115: #{sparse_mlp_layer_forward.1} parent=111 // pred_region
        %p9261 = scmp.lt.s32.totalorder %s33, 1
        %s9262 = scalar_select %p9261, %s33, 1
        %s9263 = smul.addr %s9262, 8
        %s9264 = smul.addr %s9263, 8
        %s9265 = scalar_lea.vmem %s21, %s9264
      $region116: #{sparse_mlp_layer_forward.1} parent=111 // pred_fallthru
        _
    $region112: #{sparse_mlp_layer_forward.1} parent=5 // pred_fallthru
      _
  $region6: #{sparse_mlp_layer_forward.1} parent=0 // loop_footer
    %s31 = sadd.s32 1, %s27
  $region7: #{sparse_mlp_layer_forward.1} parent=0 // loop_footer_branch
    %26 = sbr.rel target = $region3
  $region8: #{sparse_mlp_layer_forward.1} parent=0 // loop_exit
    _

</llo_original>
